<compile_context>
chip_gen: v5e
topology: v5e:2x2
jax: 0.10.0
libtpu: 0.0.40
codegen_flags: <defaults>
</compile_context>

<pallas_src>
import numpy as np
import jax
import jax.numpy as jnp
from jax.experimental import pallas as pl
from jax.experimental.pallas import tpu as pltpu


# ----------------------------------------------------------------------------
# VMEM limit: derive per generation (v7x has only 64 MiB per TensorCore).
# ----------------------------------------------------------------------------
def _vmem_limit_bytes():
    try:
        cap = int(pltpu.get_tpu_info().vmem_capacity_bytes)
    except Exception:
        cap = 64 * 1024 * 1024  # conservative if the query is unavailable
    return max(32 * 1024 * 1024, min(cap - 16 * 1024 * 1024, 96 * 1024 * 1024))


_VMEM_LIMIT = _vmem_limit_bytes()
_EPS = 1e-5


# ----------------------------------------------------------------------------
# Single-buffering of constant operands (weights / bias / scale / shift).
# Feature-probed so the script still runs on JAX versions without
# pipeline_mode / pl.Buffered support.
# ----------------------------------------------------------------------------
def _buffered_ctor_ok():
    try:
        pl.BlockSpec((8, 128), lambda n: (0, 0), pipeline_mode=pl.Buffered(1))
        return True
    except Exception:
        return False


_USE_BUFFERED1 = _buffered_ctor_ok()
_BUFFERED1_PROBED = False


def _probe_buffered1():
    """Run one tiny pallas_call with Buffered(1) to confirm it actually lowers."""
    global _USE_BUFFERED1, _BUFFERED1_PROBED
    if _BUFFERED1_PROBED:
        return
    _BUFFERED1_PROBED = True
    if not _USE_BUFFERED1:
        return
    try:
        def k(a_ref, o_ref):
            o_ref[...] = a_ref[...]

        out = pl.pallas_call(
            k,
            grid=(1,),
            out_shape=jax.ShapeDtypeStruct((8, 128), jnp.float32),
            in_specs=[pl.BlockSpec((8, 128), lambda n: (0, 0),
                                   pipeline_mode=pl.Buffered(1))],
            out_specs=pl.BlockSpec((8, 128), lambda n: (0, 0)),
        )(jnp.zeros((8, 128), jnp.float32))
        jax.block_until_ready(out)
    except Exception:
        _USE_BUFFERED1 = False


def _const_spec(shape):
    """BlockSpec for a grid-invariant operand (grid is always (N,))."""
    ndim = len(shape)
    imap = lambda n: (0,) * ndim
    if _USE_BUFFERED1:
        try:
            return pl.BlockSpec(shape, imap, pipeline_mode=pl.Buffered(1))
        except Exception:
            pass
    return pl.BlockSpec(shape, imap)


# ----------------------------------------------------------------------------
# Fused conv3x3 kernel: [2x2 maxpool on load] + conv (+bias if no BN)
#                       [+ per-image BN statistics emission]
# ----------------------------------------------------------------------------
def _make_conv_kernel(*, Hp, Wp, Cin, Cprev, Cout, pool, bn, has_prev, head_2d):
    """Ref order (must match the wrapper):
       inputs : x, [prev], w, [w_prev], [b if not bn]
       outputs: y, [sum, sumsq if bn]
       scratch: pad, [pad_prev]
    """
    HW = Hp * Wp
    taps = [(dy, dx) for dy in range(3) for dx in range(3)]

    def kernel(*refs):
        it = iter(refs)
        x_ref = next(it)
        p_ref = next(it) if has_prev else None
        w_ref = next(it)
        wp_ref = next(it) if has_prev else None
        b_ref = None if bn else next(it)
        y_ref = next(it)
        s_ref = next(it) if bn else None
        ss_ref = next(it) if bn else None
        pad_ref = next(it)
        pad2_ref = next(it) if has_prev else None

        def load_padded(src, pref, C):
            # Zero only the 1-px border (the interior is fully overwritten
            # every grid step, so no full-scratch memset).
            pref[0:1, :, :] = jnp.zeros((1, Wp + 2, C), jnp.float32)
            pref[Hp + 1:Hp + 2, :, :] = jnp.zeros((1, Wp + 2, C), jnp.float32)
            pref[1:Hp + 1, 0:1, :] = jnp.zeros((Hp, 1, C), jnp.float32)
            pref[1:Hp + 1, Wp + 1:Wp + 2, :] = jnp.zeros((Hp, 1, C), jnp.float32)
            pref[1:Hp + 1, 1:Wp + 1, :] = src.astype(jnp.float32)

        x = x_ref[0]
        if pool:
            # fused 2x2 max-pool on the input
            x = jnp.max(x.reshape(Hp, 2, 2 * Wp, Cin), axis=1)
            x = jnp.max(x.reshape(Hp, Wp, 2, Cin), axis=2)
        load_padded(x, pad_ref, Cin)
        if has_prev:
            load_padded(p_ref[0], pad2_ref, Cprev)

        def conv_one(pref, C, wref):
            # 3x3 conv as 9 tap-accumulated matmuls contracting only C
            # (no materialized (HW, 9*C) im2col operand).
            acc = None
            for t, (dy, dx) in enumerate(taps):
                win = pref[dy:dy + Hp, dx:dx + Wp, :]
                if C == 1:
                    # Degenerate K: VPU broadcast FMA instead of a K=1 matmul.
                    term = win.reshape(HW, 1) * wref[t].astype(jnp.float32)
                else:
                    term = jnp.dot(win.reshape(HW, C).astype(jnp.bfloat16),
                                   wref[t],
                                   preferred_element_type=jnp.float32)
                acc = term if acc is None else acc + term
            return acc

        y = conv_one(pad_ref, Cin, w_ref)
        if has_prev:
            # Fused skip-connection concat: the second operand has its own
            # slab of the torch conv weight (split along Cin).
            y = y + conv_one(pad2_ref, Cprev, wp_ref)

        if bn:
            # Conv bias omitted: exactly cancelled by the BN mean subtraction.
            y_ref[0] = y
            s_ref[0] = jnp.sum(y, axis=0, keepdims=True)
            ss_ref[0] = jnp.sum(y * y, axis=0, keepdims=True)
        else:
            y = y + b_ref[...].astype(jnp.float32)
            if head_2d:
                # Lane-dense (Hp, Wp) store for Cout == 1 (W on lanes).
                y_ref[0] = y.reshape(Hp, Wp)
            else:
                y_ref[0] = y

    return kernel


def _conv3x3(x, w, *, bias=None, prev=None, w_prev=None, pool=False, bn=True):
    """Pass-1 conv.

    x    : (N, Hin, Win, Cin) f32
    w    : (9, Cin, Cout) bf16, tap-major (tap = dy*3 + dx)
    prev : optional (N, Hp, Wp, Cprev) skip tensor with its own slab w_prev.
    bn=True  -> (pre-norm y2d (N,HW,Cout) f32, sums (N,1,Cout), sumsq (N,1,Cout))
    bn=False -> conv+bias output; lane-dense (N, Hp, Wp) when Cout == 1.
    """
    N, Hin, Win, Cin = x.shape
    Cout = w.shape[-1]
    Hp, Wp = (Hin // 2, Win // 2) if pool else (Hin, Win)
    HW = Hp * Wp
    has_prev = prev is not None
    if has_prev:
        assert w_prev is not None and prev.shape[:3] == (N, Hp, Wp)
    Cprev = prev.shape[-1] if has_prev else 0
    head_2d = (not bn) and Cout == 1

    kernel = _make_conv_kernel(Hp=Hp, Wp=Wp, Cin=Cin, Cprev=Cprev, Cout=Cout,
                               pool=pool, bn=bn, has_prev=has_prev,
                               head_2d=head_2d)

    in_specs = [pl.BlockSpec((1, Hin, Win, Cin), lambda n: (n, 0, 0, 0))]
    inputs = [x]
    if has_prev:
        in_specs.append(pl.BlockSpec((1, Hp, Wp, Cprev), lambda n: (n, 0, 0, 0)))
        inputs.append(prev)
    in_specs.append(_const_spec((9, Cin, Cout)))
    inputs.append(w)
    if has_prev:
        in_specs.append(_const_spec((9, Cprev, Cout)))
        inputs.append(w_prev)
    if not bn:
        in_specs.append(_const_spec((1, Cout)))
        inputs.append(bias.reshape(1, Cout).astype(jnp.float32))

    if bn:
        out_shape = (jax.ShapeDtypeStruct((N, HW, Cout), jnp.float32),
                     jax.ShapeDtypeStruct((N, 1, Cout), jnp.float32),
                     jax.ShapeDtypeStruct((N, 1, Cout), jnp.float32))
        out_specs = (pl.BlockSpec((1, HW, Cout), lambda n: (n, 0, 0)),
                     pl.BlockSpec((1, 1, Cout), lambda n: (n, 0, 0)),
                     pl.BlockSpec((1, 1, Cout), lambda n: (n, 0, 0)))
    elif head_2d:
        out_shape = jax.ShapeDtypeStruct((N, Hp, Wp), jnp.float32)
        out_specs = pl.BlockSpec((1, Hp, Wp), lambda n: (n, 0, 0))
    else:
        out_shape = jax.ShapeDtypeStruct((N, HW, Cout), jnp.float32)
        out_specs = pl.BlockSpec((1, HW, Cout), lambda n: (n, 0, 0))

    scratch = [pltpu.VMEM((Hp + 2, Wp + 2, Cin), jnp.float32)]
    if has_prev:
        scratch.append(pltpu.VMEM((Hp + 2, Wp + 2, Cprev), jnp.float32))

    return pl.pallas_call(
        kernel,
        grid=(N,),
        out_shape=out_shape,
        in_specs=in_specs,
        out_specs=out_specs,
        scratch_shapes=scratch,
        compiler_params=pltpu.CompilerParams(
            dimension_semantics=("parallel",),
            vmem_limit_bytes=_VMEM_LIMIT),
    )(*inputs)


# ----------------------------------------------------------------------------
# Pass-2: elementwise BN normalize + ReLU (fully parallel over the batch)
# ----------------------------------------------------------------------------
def _bn_relu_apply(y2d, scale, shift):
    N, HW, C = y2d.shape

    def kernel(y_ref, sc_ref, sh_ref, o_ref):
        o_ref[0] = jnp.maximum(y_ref[0] * sc_ref[...] + sh_ref[...], 0.0)

    return pl.pallas_call(
        kernel,
        grid=(N,),
        out_shape=jax.ShapeDtypeStruct((N, HW, C), jnp.float32),
        in_specs=[pl.BlockSpec((1, HW, C), lambda n: (n, 0, 0)),
                  _const_spec((1, C)),
                  _const_spec((1, C))],
        out_specs=pl.BlockSpec((1, HW, C), lambda n: (n, 0, 0)),
        compiler_params=pltpu.CompilerParams(
            dimension_semantics=("parallel",),
            vmem_limit_bytes=_VMEM_LIMIT),
    )(y2d, scale, shift)


# ----------------------------------------------------------------------------
# Layer wrappers
# ----------------------------------------------------------------------------
def conv_bn_relu(x, p, *, pool=False, prev=None, eps=_EPS):
    """Conv3x3 (pad=1) + train-mode BatchNorm (batch stats, biased var) + ReLU,
    optionally with a fused 2x2 maxpool on the input and/or a fused skip concat."""
    N, Hin, Win, _ = x.shape
    Cout = p['w'].shape[-1]
    Hp, Wp = (Hin // 2, Win // 2) if pool else (Hin, Win)
    HW = Hp * Wp

    y2d, s, ss = _conv3x3(x, p['w'], prev=prev, w_prev=p.get('w_prev'),
                          pool=pool, bn=True)
    cnt = float(N * HW)
    mean = jnp.sum(s.reshape(N, Cout), axis=0) / cnt
    var = jnp.maximum(jnp.sum(ss.reshape(N, Cout), axis=0) / cnt - mean * mean, 0.0)
    scale = p['gamma'] * jax.lax.rsqrt(var + eps)
    shift = p['beta'] - mean * scale   # conv bias cancelled exactly by `mean`
    y2d = _bn_relu_apply(y2d, scale.reshape(1, Cout), shift.reshape(1, Cout))
    return y2d.reshape(N, Hp, Wp, Cout)


def conv_plain(x, p):
    """Final Conv3x3 + bias (no BN / ReLU); lane-dense store for Cout == 1."""
    N, H, W, _ = x.shape
    Cout = p['w'].shape[-1]
    y = _conv3x3(x, p['w'], bias=p['b'], bn=False)
    return y.reshape(N, H, W, Cout)


# ----------------------------------------------------------------------------
# Plain-JAX glue: bilinear x2 upsample (align_corners=True)
# ----------------------------------------------------------------------------
def _interp_matrix(n_in, n_out):
    src = np.arange(n_out, dtype=np.float64) * (n_in - 1) / max(n_out - 1, 1)
    i0 = np.clip(np.floor(src).astype(np.int64), 0, n_in - 1)
    i1 = np.clip(i0 + 1, 0, n_in - 1)
    frac = src - i0
    A = np.zeros((n_out, n_in), np.float64)
    A[np.arange(n_out), i0] += 1.0 - frac
    A[np.arange(n_out), i1] += frac
    return jnp.asarray(A, jnp.float32)


def upsample2x_bilinear_align_corners(x):
    # TODO(synk): fuse into the up-block conv1 kernel as two in-VMEM matmuls.
    N, H, W, C = x.shape
    Ah = _interp_matrix(H, 2 * H)
    Aw = _interp_matrix(W, 2 * W)
    y = jnp.einsum('ph,nhwc->npwc', Ah, x)
    y = jnp.einsum('qw,npwc->npqc', Aw, y)
    return y


# ----------------------------------------------------------------------------
# Parameter init (deterministic, synthetic; weights packed as (9, Cin, Cout) bf16)
# ----------------------------------------------------------------------------
def _conv_params(key, cin, cout, fan_in=None):
    fan_in = fan_in if fan_in is not None else 9 * cin
    kw, kb, kg, kbt = jax.random.split(key, 4)
    return dict(
        w=(jax.random.normal(kw, (9, cin, cout), jnp.float32)
           / np.sqrt(fan_in)).astype(jnp.bfloat16),
        b=0.01 * jax.random.normal(kb, (cout,), jnp.float32),
        gamma=1.0 + 0.1 * jax.random.normal(kg, (cout,), jnp.float32),
        beta=0.1 * jax.random.normal(kbt, (cout,), jnp.float32),
    )


def _up_conv1_params(key, c_x, c_prev, cout):
    # torch.cat((x, prev), dim=1): weight split into the x-part and the prev-part.
    k1, k2 = jax.random.split(key)
    fan_in = 9 * (c_x + c_prev)
    p = _conv_params(k1, c_x, cout, fan_in=fan_in)
    p['w_prev'] = (jax.random.normal(k2, (9, c_prev, cout), jnp.float32)
                   / np.sqrt(fan_in)).astype(jnp.bfloat16)
    return p


def init_unet_params(key):
    keys = iter(jax.random.split(key, 64))
    params = {}

    down_ch = [(1, 16), (16, 32), (32, 64), (64, 128), (128, 256), (256, 512)]
    params['down'] = []
    for cin, cout in down_ch:
        params['down'].append([
            _conv_params(next(keys), cin, cout),
            _conv_params(next(keys), cout, cout),
            _conv_params(next(keys), cout, cout),
        ])

    params['mid'] = [_conv_params(next(keys), 512, 512) for _ in range(3)]

    # (prev_channel, input_channel, output_channel) as in UNet_up_block
    up_ch = [(256, 512, 256), (128, 256, 128), (64, 128, 64),
             (32, 64, 32), (16, 32, 16)]
    params['up'] = []
    for prev_c, in_c, out_c in up_ch:
        params['up'].append([
            _up_conv1_params(next(keys), in_c, prev_c, out_c),
            _conv_params(next(keys), out_c, out_c),
            _conv_params(next(keys), out_c, out_c),
        ])

    params['last1'] = _conv_params(next(keys), 16, 16)
    params['last2'] = _conv_params(next(keys), 16, 1)
    return params


# ----------------------------------------------------------------------------
# U-Net forward
# ----------------------------------------------------------------------------
def unet_forward(params, x_nchw):
    _probe_buffered1()
    x = jnp.transpose(x_nchw, (0, 2, 3, 1)).astype(jnp.float32)  # NCHW -> NHWC

    # ---- encoder (2x2 maxpool fused into the first conv of each block) ----
    skips = []
    h = x
    for i, blk in enumerate(params['down']):
        h = conv_bn_relu(h, blk[0], pool=(i > 0))
        h = conv_bn_relu(h, blk[1])
        h = conv_bn_relu(h, blk[2])
        skips.append(h)
    x1, x2, x3, x4, x5, _ = skips

    # ---- bottleneck ----
    for p in params['mid']:
        h = conv_bn_relu(h, p)

    # ---- decoder (skip concat fused into the first conv of each block) ----
    for blk, prev in zip(params['up'], [x5, x4, x3, x2, x1]):
        h = upsample2x_bilinear_align_corners(h)
        h = conv_bn_relu(h, blk[0], prev=prev)
        h = conv_bn_relu(h, blk[1])
        h = conv_bn_relu(h, blk[2])

    # ---- head ----
    h = conv_bn_relu(h, params['last1'])     # conv + BN + ReLU
    h = conv_plain(h, params['last2'])       # conv + bias only (Cout=1)

    return jnp.transpose(h, (0, 3, 1, 2))    # NHWC -> NCHW


# ----------------------------------------------------------------------------
if __name__ == "__main__":
    key = jax.random.PRNGKey(0)
    kp, kx = jax.random.split(key)

    params = init_unet_params(kp)
    # Doc says [B, 1, 224, 224]; spatial must be divisible by 32 (5 maxpools),
    # use a small 32x32 example for the test run.
    x = jax.random.normal(kx, (2, 1, 32, 32), jnp.float32)

    out = unet_forward(params, x)
    out = jax.block_until_ready(out)

    assert out.shape == (2, 1, 32, 32), out.shape
    assert np.all(np.isfinite(np.asarray(out)))
    print("KERNEL_OK")
</pallas_src>

<mosaic_0001>
module attributes {stable_mosaic.version = 11 : i64} {
  func.func @k(%arg0: i32, %arg1: memref<8x128xf32, #tpu.memory_space<vmem>>, %arg2: memref<8x128xf32, #tpu.memory_space<vmem>>) attributes {dimension_semantics = [#tpu.dimension_semantics<arbitrary>], iteration_bounds = array<i64: 1>, scalar_prefetch = 0 : i64, scratch_operands = 0 : i64, tpu.core_type = #tpu.core_type<tc>, window_params = [{pipeline_mode = #tpu.pipeline_mode<synchronous>, transform_indices = @transform_0, window_bounds = array<i64: 8, 128>}, {pipeline_mode = #tpu.pipeline_mode<synchronous>, transform_indices = @transform_1, window_bounds = array<i64: 8, 128>}]} {
    %c0 = arith.constant 0 : index
    %c0_0 = arith.constant 0 : index
    %0 = vector.load %arg1[%c0, %c0_0] : memref<8x128xf32, #tpu.memory_space<vmem>>, vector<8x128xf32>
    %c0_1 = arith.constant 0 : index
    %c0_2 = arith.constant 0 : index
    %1 = vector.load %arg2[%c0_1, %c0_2] : memref<8x128xf32, #tpu.memory_space<vmem>>, vector<8x128xf32>
    tpu.vector_store %arg2[%c0_1, %c0_2], %0 {strides = array<i32>} : memref<8x128xf32, #tpu.memory_space<vmem>>, vector<8x128xf32>,
    return
  }
  func.func @transform_0(%arg0: i32) -> (i32, i32) {
    %c0_i32 = arith.constant 0 : i32
    %c0_i32_0 = arith.constant 0 : i32
    %c0_i32_1 = arith.constant 0 : i32
    return %c0_i32, %c0_i32_0 : i32, i32
  }
  func.func @transform_1(%arg0: i32) -> (i32, i32) {
    %c0_i32 = arith.constant 0 : i32
    %c0_i32_0 = arith.constant 0 : i32
    %c0_i32_1 = arith.constant 0 : i32
    return %c0_i32, %c0_i32_0 : i32, i32
  }
}

module attributes {stable_mosaic.version = 11 : i64} {
  func.func @kernel(%arg0: i32, %arg1: memref<1x32x32x1xf32, #tpu.memory_space<vmem>>, %arg2: memref<9x1x16xbf16, #tpu.memory_space<vmem>>, %arg3: memref<1x1024x16xf32, #tpu.memory_space<vmem>>, %arg4: memref<1x1x16xf32, #tpu.memory_space<vmem>>, %arg5: memref<1x1x16xf32, #tpu.memory_space<vmem>>, %arg6: memref<34x34x1xf32, #tpu.memory_space<vmem>>) attributes {dimension_semantics = [#tpu.dimension_semantics<parallel>], iteration_bounds = array<i64: 2>, scalar_prefetch = 0 : i64, scratch_operands = 1 : i64, tpu.core_type = #tpu.core_type<tc>, window_params = [{transform_indices = @transform_0, window_bounds = array<i64: 1, 32, 32, 1>}, {pipeline_mode = #tpu.pipeline_mode<synchronous>, transform_indices = @transform_1, window_bounds = array<i64: 9, 1, 16>}, {transform_indices = @transform_2, window_bounds = array<i64: 1, 1024, 16>}, {transform_indices = @transform_3, window_bounds = array<i64: 1, 1, 16>}, {transform_indices = @transform_4, window_bounds = array<i64: 1, 1, 16>}]} {
    %c0 = arith.constant 0 : index
    %c0_0 = arith.constant 0 : index
    %c0_1 = arith.constant 0 : index
    %c0_2 = arith.constant 0 : index
    %0 = vector.load %arg1[%c0, %c0_0, %c0_1, %c0_2] : memref<1x32x32x1xf32, #tpu.memory_space<vmem>>, vector<1x32x32x1xf32>
    %1 = vector.shape_cast %0 : vector<1x32x32x1xf32> to vector<32x32x1xf32>
    %cst = arith.constant 0.000000e+00 : f32
    %2 = vector.broadcast %cst : f32 to vector<1x34x1xf32>
    %c0_3 = arith.constant 0 : index
    %c0_4 = arith.constant 0 : index
    %c0_5 = arith.constant 0 : index
    %3 = vector.load %arg6[%c0_3, %c0_4, %c0_5] : memref<34x34x1xf32, #tpu.memory_space<vmem>>, vector<1x34x1xf32>
    tpu.vector_store %arg6[%c0_3, %c0_4, %c0_5], %2 {strides = array<i32>} : memref<34x34x1xf32, #tpu.memory_space<vmem>>, vector<1x34x1xf32>,
    %cst_6 = arith.constant 0.000000e+00 : f32
    %4 = vector.broadcast %cst_6 : f32 to vector<1x34x1xf32>
    %c33 = arith.constant 33 : index
    %c0_7 = arith.constant 0 : index
    %c0_8 = arith.constant 0 : index
    %5 = vector.load %arg6[%c33, %c0_7, %c0_8] : memref<34x34x1xf32, #tpu.memory_space<vmem>>, vector<1x34x1xf32>
    tpu.vector_store %arg6[%c33, %c0_7, %c0_8], %4 {strides = array<i32>} : memref<34x34x1xf32, #tpu.memory_space<vmem>>, vector<1x34x1xf32>,
    %cst_9 = arith.constant 0.000000e+00 : f32
    %6 = vector.broadcast %cst_9 : f32 to vector<32x1x1xf32>
    %c1 = arith.constant 1 : index
    %c0_10 = arith.constant 0 : index
    %c0_11 = arith.constant 0 : index
    %7 = vector.load %arg6[%c1, %c0_10, %c0_11] : memref<34x34x1xf32, #tpu.memory_space<vmem>>, vector<32x1x1xf32>
    tpu.vector_store %arg6[%c1, %c0_10, %c0_11], %6 {strides = array<i32>} : memref<34x34x1xf32, #tpu.memory_space<vmem>>, vector<32x1x1xf32>,
    %cst_12 = arith.constant 0.000000e+00 : f32
    %8 = vector.broadcast %cst_12 : f32 to vector<32x1x1xf32>
    %c1_13 = arith.constant 1 : index
    %c33_14 = arith.constant 33 : index
    %c0_15 = arith.constant 0 : index
    %9 = vector.load %arg6[%c1_13, %c33_14, %c0_15] : memref<34x34x1xf32, #tpu.memory_space<vmem>>, vector<32x1x1xf32>
    tpu.vector_store %arg6[%c1_13, %c33_14, %c0_15], %8 {strides = array<i32>} : memref<34x34x1xf32, #tpu.memory_space<vmem>>, vector<32x1x1xf32>,
    %c1_16 = arith.constant 1 : index
    %c1_17 = arith.constant 1 : index
    %c0_18 = arith.constant 0 : index
    %10 = vector.load %arg6[%c1_16, %c1_17, %c0_18] : memref<34x34x1xf32, #tpu.memory_space<vmem>>, vector<32x32x1xf32>
    tpu.vector_store %arg6[%c1_16, %c1_17, %c0_18], %1 {strides = array<i32>} : memref<34x34x1xf32, #tpu.memory_space<vmem>>, vector<32x32x1xf32>,
    %c0_19 = arith.constant 0 : index
    %c0_20 = arith.constant 0 : index
    %c0_21 = arith.constant 0 : index
    %11 = vector.load %arg6[%c0_19, %c0_20, %c0_21] : memref<34x34x1xf32, #tpu.memory_space<vmem>>, vector<32x32x1xf32>
    %12 = vector.shape_cast %11 : vector<32x32x1xf32> to vector<1024x1xf32>
    %c0_22 = arith.constant 0 : index
    %c0_23 = arith.constant 0 : index
    %c0_24 = arith.constant 0 : index
    %13 = vector.load %arg2[%c0_22, %c0_23, %c0_24] : memref<9x1x16xbf16, #tpu.memory_space<vmem>>, vector<1x1x16xbf16>
    %14 = vector.shape_cast %13 : vector<1x1x16xbf16> to vector<1x16xbf16>
    %15 = arith.extf %14 : vector<1x16xbf16> to vector<1x16xf32>
    %16 = vector.broadcast %12 : vector<1024x1xf32> to vector<1024x16xf32>
    %17 = vector.broadcast %15 : vector<1x16xf32> to vector<1024x16xf32>
    %18 = arith.mulf %16, %17 : vector<1024x16xf32>
    %c0_25 = arith.constant 0 : index
    %c1_26 = arith.constant 1 : index
    %c0_27 = arith.constant 0 : index
    %19 = vector.load %arg6[%c0_25, %c1_26, %c0_27] : memref<34x34x1xf32, #tpu.memory_space<vmem>>, vector<32x32x1xf32>
    %20 = vector.shape_cast %19 : vector<32x32x1xf32> to vector<1024x1xf32>
    %c1_28 = arith.constant 1 : index
    %c0_29 = arith.constant 0 : index
    %c0_30 = arith.constant 0 : index
    %21 = vector.load %arg2[%c1_28, %c0_29, %c0_30] : memref<9x1x16xbf16, #tpu.memory_space<vmem>>, vector<1x1x16xbf16>
    %22 = vector.shape_cast %21 : vector<1x1x16xbf16> to vector<1x16xbf16>
    %23 = arith.extf %22 : vector<1x16xbf16> to vector<1x16xf32>
    %24 = vector.broadcast %20 : vector<1024x1xf32> to vector<1024x16xf32>
    %25 = vector.broadcast %23 : vector<1x16xf32> to vector<1024x16xf32>
    %26 = arith.mulf %24, %25 : vector<1024x16xf32>
    %27 = arith.addf %18, %26 : vector<1024x16xf32>
    %c0_31 = arith.constant 0 : index
    %c2 = arith.constant 2 : index
    %c0_32 = arith.constant 0 : index
    %28 = vector.load %arg6[%c0_31, %c2, %c0_32] : memref<34x34x1xf32, #tpu.memory_space<vmem>>, vector<32x32x1xf32>
    %29 = vector.shape_cast %28 : vector<32x32x1xf32> to vector<1024x1xf32>
    %c2_33 = arith.constant 2 : index
    %c0_34 = arith.constant 0 : index
    %c0_35 = arith.constant 0 : index
    %30 = vector.load %arg2[%c2_33, %c0_34, %c0_35] : memref<9x1x16xbf16, #tpu.memory_space<vmem>>, vector<1x1x16xbf16>
    %31 = vector.shape_cast %30 : vector<1x1x16xbf16> to vector<1x16xbf16>
    %32 = arith.extf %31 : vector<1x16xbf16> to vector<1x16xf32>
    %33 = vector.broadcast %29 : vector<1024x1xf32> to vector<1024x16xf32>
    %34 = vector.broadcast %32 : vector<1x16xf32> to vector<1024x16xf32>
    %35 = arith.mulf %33, %34 : vector<1024x16xf32>
    %36 = arith.addf %27, %35 : vector<1024x16xf32>
    %c1_36 = arith.constant 1 : index
    %c0_37 = arith.constant 0 : index
    %c0_38 = arith.constant 0 : index
    %37 = vector.load %arg6[%c1_36, %c0_37, %c0_38] : memref<34x34x1xf32, #tpu.memory_space<vmem>>, vector<32x32x1xf32>
    %38 = vector.shape_cast %37 : vector<32x32x1xf32> to vector<1024x1xf32>
    %c3 = arith.constant 3 : index
    %c0_39 = arith.constant 0 : index
    %c0_40 = arith.constant 0 : index
    %39 = vector.load %arg2[%c3, %c0_39, %c0_40] : memref<9x1x16xbf16, #tpu.memory_space<vmem>>, vector<1x1x16xbf16>
    %40 = vector.shape_cast %39 : vector<1x1x16xbf16> to vector<1x16xbf16>
    %41 = arith.extf %40 : vector<1x16xbf16> to vector<1x16xf32>
    %42 = vector.broadcast %38 : vector<1024x1xf32> to vector<1024x16xf32>
    %43 = vector.broadcast %41 : vector<1x16xf32> to vector<1024x16xf32>
    %44 = arith.mulf %42, %43 : vector<1024x16xf32>
    %45 = arith.addf %36, %44 : vector<1024x16xf32>
    %c1_41 = arith.constant 1 : index
    %c1_42 = arith.constant 1 : index
    %c0_43 = arith.constant 0 : index
    %46 = vector.load %arg6[%c1_41, %c1_42, %c0_43] : memref<34x34x1xf32, #tpu.memory_space<vmem>>, vector<32x32x1xf32>
    %47 = vector.shape_cast %46 : vector<32x32x1xf32> to vector<1024x1xf32>
    %c4 = arith.constant 4 : index
    %c0_44 = arith.constant 0 : index
    %c0_45 = arith.constant 0 : index
    %48 = vector.load %arg2[%c4, %c0_44, %c0_45] : memref<9x1x16xbf16, #tpu.memory_space<vmem>>, vector<1x1x16xbf16>
    %49 = vector.shape_cast %48 : vector<1x1x16xbf16> to vector<1x16xbf16>
    %50 = arith.extf %49 : vector<1x16xbf16> to vector<1x16xf32>
    %51 = vector.broadcast %47 : vector<1024x1xf32> to vector<1024x16xf32>
    %52 = vector.broadcast %50 : vector<1x16xf32> to vector<1024x16xf32>
    %53 = arith.mulf %51, %52 : vector<1024x16xf32>
    %54 = arith.addf %45, %53 : vector<1024x16xf32>
    %c1_46 = arith.constant 1 : index
    %c2_47 = arith.constant 2 : index
    %c0_48 = arith.constant 0 : index
    %55 = vector.load %arg6[%c1_46, %c2_47, %c0_48] : memref<34x34x1xf32, #tpu.memory_space<vmem>>, vector<32x32x1xf32>
    %56 = vector.shape_cast %55 : vector<32x32x1xf32> to vector<1024x1xf32>
    %c5 = arith.constant 5 : index
    %c0_49 = arith.constant 0 : index
    %c0_50 = arith.constant 0 : index
    %57 = vector.load %arg2[%c5, %c0_49, %c0_50] : memref<9x1x16xbf16, #tpu.memory_space<vmem>>, vector<1x1x16xbf16>
    %58 = vector.shape_cast %57 : vector<1x1x16xbf16> to vector<1x16xbf16>
    %59 = arith.extf %58 : vector<1x16xbf16> to vector<1x16xf32>
    %60 = vector.broadcast %56 : vector<1024x1xf32> to vector<1024x16xf32>
    %61 = vector.broadcast %59 : vector<1x16xf32> to vector<1024x16xf32>
    %62 = arith.mulf %60, %61 : vector<1024x16xf32>
    %63 = arith.addf %54, %62 : vector<1024x16xf32>
    %c2_51 = arith.constant 2 : index
    %c0_52 = arith.constant 0 : index
    %c0_53 = arith.constant 0 : index
    %64 = vector.load %arg6[%c2_51, %c0_52, %c0_53] : memref<34x34x1xf32, #tpu.memory_space<vmem>>, vector<32x32x1xf32>
    %65 = vector.shape_cast %64 : vector<32x32x1xf32> to vector<1024x1xf32>
    %c6 = arith.constant 6 : index
    %c0_54 = arith.constant 0 : index
    %c0_55 = arith.constant 0 : index
    %66 = vector.load %arg2[%c6, %c0_54, %c0_55] : memref<9x1x16xbf16, #tpu.memory_space<vmem>>, vector<1x1x16xbf16>
    %67 = vector.shape_cast %66 : vector<1x1x16xbf16> to vector<1x16xbf16>
    %68 = arith.extf %67 : vector<1x16xbf16> to vector<1x16xf32>
    %69 = vector.broadcast %65 : vector<1024x1xf32> to vector<1024x16xf32>
    %70 = vector.broadcast %68 : vector<1x16xf32> to vector<1024x16xf32>
    %71 = arith.mulf %69, %70 : vector<1024x16xf32>
    %72 = arith.addf %63, %71 : vector<1024x16xf32>
    %c2_56 = arith.constant 2 : index
    %c1_57 = arith.constant 1 : index
    %c0_58 = arith.constant 0 : index
    %73 = vector.load %arg6[%c2_56, %c1_57, %c0_58] : memref<34x34x1xf32, #tpu.memory_space<vmem>>, vector<32x32x1xf32>
    %74 = vector.shape_cast %73 : vector<32x32x1xf32> to vector<1024x1xf32>
    %c7 = arith.constant 7 : index
    %c0_59 = arith.constant 0 : index
    %c0_60 = arith.constant 0 : index
    %75 = vector.load %arg2[%c7, %c0_59, %c0_60] : memref<9x1x16xbf16, #tpu.memory_space<vmem>>, vector<1x1x16xbf16>
    %76 = vector.shape_cast %75 : vector<1x1x16xbf16> to vector<1x16xbf16>
    %77 = arith.extf %76 : vector<1x16xbf16> to vector<1x16xf32>
    %78 = vector.broadcast %74 : vector<1024x1xf32> to vector<1024x16xf32>
    %79 = vector.broadcast %77 : vector<1x16xf32> to vector<1024x16xf32>
    %80 = arith.mulf %78, %79 : vector<1024x16xf32>
    %81 = arith.addf %72, %80 : vector<1024x16xf32>
    %c2_61 = arith.constant 2 : index
    %c2_62 = arith.constant 2 : index
    %c0_63 = arith.constant 0 : index
    %82 = vector.load %arg6[%c2_61, %c2_62, %c0_63] : memref<34x34x1xf32, #tpu.memory_space<vmem>>, vector<32x32x1xf32>
    %83 = vector.shape_cast %82 : vector<32x32x1xf32> to vector<1024x1xf32>
    %c8 = arith.constant 8 : index
    %c0_64 = arith.constant 0 : index
    %c0_65 = arith.constant 0 : index
    %84 = vector.load %arg2[%c8, %c0_64, %c0_65] : memref<9x1x16xbf16, #tpu.memory_space<vmem>>, vector<1x1x16xbf16>
    %85 = vector.shape_cast %84 : vector<1x1x16xbf16> to vector<1x16xbf16>
    %86 = arith.extf %85 : vector<1x16xbf16> to vector<1x16xf32>
    %87 = vector.broadcast %83 : vector<1024x1xf32> to vector<1024x16xf32>
    %88 = vector.broadcast %86 : vector<1x16xf32> to vector<1024x16xf32>
    %89 = arith.mulf %87, %88 : vector<1024x16xf32>
    %90 = arith.addf %81, %89 : vector<1024x16xf32>
    %c0_66 = arith.constant 0 : index
    %c0_67 = arith.constant 0 : index
    %c0_68 = arith.constant 0 : index
    %91 = vector.load %arg3[%c0_66, %c0_67, %c0_68] : memref<1x1024x16xf32, #tpu.memory_space<vmem>>, vector<1x1024x16xf32>
    %92 = vector.shape_cast %91 : vector<1x1024x16xf32> to vector<1024x16xf32>
    %93 = vector.shape_cast %90 : vector<1024x16xf32> to vector<1x1024x16xf32>
    tpu.vector_store %arg3[%c0_66, %c0_67, %c0_68], %93 {strides = array<i32>} : memref<1x1024x16xf32, #tpu.memory_space<vmem>>, vector<1x1024x16xf32>,
    %cst_69 = arith.constant dense<0.000000e+00> : vector<16xf32>
    %94 = vector.multi_reduction <add>, %90, %cst_69 [0] : vector<1024x16xf32> to vector<16xf32>
    %95 = vector.shape_cast %94 : vector<16xf32> to vector<1x16xf32>
    %c0_70 = arith.constant 0 : index
    %c0_71 = arith.constant 0 : index
    %c0_72 = arith.constant 0 : index
    %96 = vector.load %arg4[%c0_70, %c0_71, %c0_72] : memref<1x1x16xf32, #tpu.memory_space<vmem>>, vector<1x1x16xf32>
    %97 = vector.shape_cast %96 : vector<1x1x16xf32> to vector<1x16xf32>
    %98 = vector.shape_cast %95 : vector<1x16xf32> to vector<1x1x16xf32>
    tpu.vector_store %arg4[%c0_70, %c0_71, %c0_72], %98 {strides = array<i32>} : memref<1x1x16xf32, #tpu.memory_space<vmem>>, vector<1x1x16xf32>,
    %99 = arith.mulf %90, %90 : vector<1024x16xf32>
    %cst_73 = arith.constant dense<0.000000e+00> : vector<16xf32>
    %100 = vector.multi_reduction <add>, %99, %cst_73 [0] : vector<1024x16xf32> to vector<16xf32>
    %101 = vector.shape_cast %100 : vector<16xf32> to vector<1x16xf32>
    %c0_74 = arith.constant 0 : index
    %c0_75 = arith.constant 0 : index
    %c0_76 = arith.constant 0 : index
    %102 = vector.load %arg5[%c0_74, %c0_75, %c0_76] : memref<1x1x16xf32, #tpu.memory_space<vmem>>, vector<1x1x16xf32>
    %103 = vector.shape_cast %102 : vector<1x1x16xf32> to vector<1x16xf32>
    %104 = vector.shape_cast %101 : vector<1x16xf32> to vector<1x1x16xf32>
    tpu.vector_store %arg5[%c0_74, %c0_75, %c0_76], %104 {strides = array<i32>} : memref<1x1x16xf32, #tpu.memory_space<vmem>>, vector<1x1x16xf32>,
    return
  }
  func.func @transform_0(%arg0: i32) -> (i32, i32, i32, i32) {
    %c0_i32 = arith.constant 0 : i32
    %c0_i32_0 = arith.constant 0 : i32
    %c0_i32_1 = arith.constant 0 : i32
    %c0_i32_2 = arith.constant 0 : i32
    return %arg0, %c0_i32, %c0_i32_0, %c0_i32_1 : i32, i32, i32, i32
  }
  func.func @transform_1(%arg0: i32) -> (i32, i32, i32) {
    %c0_i32 = arith.constant 0 : i32
    %c0_i32_0 = arith.constant 0 : i32
    %c0_i32_1 = arith.constant 0 : i32
    %c0_i32_2 = arith.constant 0 : i32
    return %c0_i32, %c0_i32_0, %c0_i32_1 : i32, i32, i32
  }
  func.func @transform_2(%arg0: i32) -> (i32, i32, i32) {
    %c0_i32 = arith.constant 0 : i32
    %c0_i32_0 = arith.constant 0 : i32
    %c0_i32_1 = arith.constant 0 : i32
    return %arg0, %c0_i32, %c0_i32_0 : i32, i32, i32
  }
  func.func @transform_3(%arg0: i32) -> (i32, i32, i32) {
    %c0_i32 = arith.constant 0 : i32
    %c0_i32_0 = arith.constant 0 : i32
    %c0_i32_1 = arith.constant 0 : i32
    return %arg0, %c0_i32, %c0_i32_0 : i32, i32, i32
  }
  func.func @transform_4(%arg0: i32) -> (i32, i32, i32) {
    %c0_i32 = arith.constant 0 : i32
    %c0_i32_0 = arith.constant 0 : i32
    %c0_i32_1 = arith.constant 0 : i32
    return %arg0, %c0_i32, %c0_i32_0 : i32, i32, i32
  }
}

</mosaic_0001>

<llo_original>
// kernel: tpu_custom_call.1
$region0: #{tpu_custom_call.1}
  #allocation0 [shape = 'u32[]', space=smem, size = 0x4, offset = 0x4, fixed_abs, tag = 'smem constant byte address 0x4 - core index']
  #allocation1 [shape = 'u32[72,128]{1,0:T(1,128)}', space=vmem, size = 0x9000, scoped, tag = 'internal scratch']
  %s0 = inlined_call_operand.hbm [shape: f32[8,128], index: 0, kind: input, shape index: {}]
  %s1 = inlined_call_operand.hbm [shape: f32[8,128], index: 1, kind: output, shape index: {}]
  %s2 = sld [smem:[#allocation0]]
  $region18: #{tpu_custom_call.1} parent=0
    _
  %s4 = ssub.s32 1, %s2
  %s5 = scalar_select 0, %s4, %s2
  $region1: #{tpu_custom_call.1} parent=0
    #allocation2 [shape = 'u8[4096]{0}', space=vmem, size = 0x1000, scoped, tag = 'input window, operand 0, single buffered']
    #allocation3 [shape = 's32[1]{0}', space=sflag, size = 0x4, scoped, tag = 'scoped memory for tpu_custom_call.1']
    #allocation4 [shape = 's32[1]{0}', space=sflag, size = 0x4, scoped, tag = 'scoped memory for tpu_custom_call.1']
    #allocation5 [shape = 'u8[4096]{0}', space=vmem, size = 0x1000, scoped, tag = 'output window, operand 0, single buffered']
    %6 = vsyncpa [#allocation3], 0
    %7 = vsyncpa [#allocation4], 0
    // Predicated region
    $region2: #{tpu_custom_call.1} parent=1 // pred_check
      _
    $region3: #{tpu_custom_call.1} parent=1 // pred_check_branch
      %9 = sbr.rel (0) target = $region5
    $region4: #{tpu_custom_call.1} parent=1 // pred_region
      %11 = vsyncadd [#allocation3], 0
      %s13 = sshll.u32 %s0, 4
      %s14 = int_to_ptr.hbm [resolvable:$true] %s13
      %s15 = sshll.u32 [#allocation2], 4
      %s16 = int_to_ptr.vmem [resolvable:$true] %s15
      %18 = dma.hbm_to_vmem [thread:$0]  %s14, 128, %s16, [#allocation3]
    $region5: #{tpu_custom_call.1} parent=1 // pred_fallthru
      _
    // Predicated region
    $region6: #{tpu_custom_call.1} parent=1 // pred_check
      _
    $region7: #{tpu_custom_call.1} parent=1 // pred_check_branch
      %20 = sbr.rel (0) target = $region9
    $region8: #{tpu_custom_call.1} parent=1 // pred_region
      %22 = dma.done [#allocation3], 128
    $region9: #{tpu_custom_call.1} parent=1 // pred_fallthru
      _
    %v23 = vld [vmem:[#allocation2] sm:$0xff]
    %24 = vst [vmem:[#allocation5] sm:$0xff] %v23
    // Predicated region
    $region10: #{tpu_custom_call.1} parent=1 // pred_check
      _
    $region11: #{tpu_custom_call.1} parent=1 // pred_check_branch
      %26 = sbr.rel (0) target = $region13
    $region12: #{tpu_custom_call.1} parent=1 // pred_region
      %28 = vsyncadd [#allocation4], 0
      %s30 = sshll.u32 [#allocation5], 4
      %s31 = int_to_ptr.vmem [resolvable:$true] %s30
      %s32 = sshll.u32 %s1, 4
      %s33 = int_to_ptr.hbm [resolvable:$true] %s32
      %35 = dma.vmem_to_hbm [thread:$0]  %s31, 128, %s33, [#allocation4]
    $region13: #{tpu_custom_call.1} parent=1 // pred_fallthru
      _
    // Predicated region
    $region14: #{tpu_custom_call.1} parent=1 // pred_check
      _
    $region15: #{tpu_custom_call.1} parent=1 // pred_check_branch
      %37 = sbr.rel (0) target = $region17
    $region16: #{tpu_custom_call.1} parent=1 // pred_region
      %39 = dma.done [#allocation4], 128
    $region17: #{tpu_custom_call.1} parent=1 // pred_fallthru
      _
    %40 = vsyncpa [#allocation3], 1
    %41 = vsyncpa [#allocation4], 1

// kernel: tpu_custom_call.1
$region0: #{tpu_custom_call.1}
  #allocation0 [shape = 'u32[]', space=smem, size = 0x4, offset = 0x4, fixed_abs, tag = 'smem constant byte address 0x4 - core index']
  #allocation1 [shape = 'u32[72,128]{1,0:T(1,128)}', space=vmem, size = 0x9000, scoped, tag = 'internal scratch']
  #allocation2 [shape = 'f32[34,34,1]{2,1,0:T(8,128)}', space=vmem, size = 0xaa000, scoped, tag = 'scratch operand']
  %s0 = inlined_call_operand.vmem [shape: f32[2,32,32,1], index: 0, kind: input, shape index: {}]
  %s1 = inlined_call_operand.vmem [shape: bf16[9,1,16], index: 1, kind: input, shape index: {}]
  %s2 = inlined_call_operand.vmem [shape: f32[2,1024,16], index: 2, kind: output, shape index: {0}]
  %s3 = inlined_call_operand.hbm [shape: f32[2,1,16], index: 3, kind: output, shape index: {1}]
  %s4 = inlined_call_operand.hbm [shape: f32[2,1,16], index: 4, kind: output, shape index: {2}]
  %5 = xla_tuple %s2, %s3, %s4
  %s6 = sld [smem:[#allocation0]]
  $region57: #{tpu_custom_call.1} parent=0
    _
  %s8 = ssub.s32 1, %s6
  %s9 = scalar_select 0, %s8, %s6
  $region1: #{tpu_custom_call.1} parent=0
    #allocation3 [shape = 'u8[1024]{0}', space=vmem, size = 0x400, scoped, tag = 'output window, operand 1']
    #allocation4 [shape = 's32[2]{0}', space=sflag, size = 0x8, scoped, tag = 'scoped memory for tpu_custom_call.1']
    #allocation5 [shape = 'u8[1024]{0}', space=vmem, size = 0x400, scoped, tag = 'output window, operand 2']
    #allocation6 [shape = 's32[2]{0}', space=sflag, size = 0x8, scoped, tag = 'scoped memory for tpu_custom_call.1']
    %10 = vsyncpa [#allocation4], 0
    %s11 = scalar_lea.sflag [#allocation4], 1
    %12 = vsyncpa %s11, 0
    %13 = vsyncpa [#allocation6], 0
    %s14 = scalar_lea.sflag [#allocation6], 1
    %15 = vsyncpa %s14, 0
    loop: start=0, step=1, limit=4
    $region2: #{tpu_custom_call.1} parent=1 // loop_pre_header
      _
    $region3: #{tpu_custom_call.1} parent=1 // loop_header
      %s17 = sphi 0, %s21
      %p18 = scmp.ge.s32.totalorder %s17, 4
      %s27 = sphi 0, %s29
      %s30 = sphi 0, %s27
      %s31 = sphi 0, %s30
      %s47 = sphi 0, %s31
      %s51 = sphi 0, %s51
      %s53 = sphi 0, %s51
      %s54 = sphi 0, %s53
      %s68 = sphi 0, %s54
      %s74 = sphi 0, %s76
      %s77 = sphi 0, %s74
      %s78 = sphi 0, %s77
      %s94 = sphi 0, %s78
      %s100 = sphi 0, %s102
      %s103 = sphi 0, %s100
      %s104 = sphi 0, %s103
      %s120 = sphi 0, %s104
      %s126 = sphi 0, %s128
      %s129 = sphi 0, %s126
      %s130 = sphi 0, %s129
      %s146 = sphi 0, %s130
    $region4: #{tpu_custom_call.1} parent=1 // loop_header_branch
      %20 = sbr.rel (%p18) target = $region8
    $region5: #{tpu_custom_call.1} parent=1 // loop_body
      %s22 = ssub.s32 %s17, 1
      %s23 = ssub.s32 %s17, 2
      %s24 = sadd.s32 %s17, 1
      %s25 = ssub.s32 %s17, %s24
      %p26 = scmp.eq.s32.totalorder %s25, 0
      %s28 = sadd.s32 %s27, 1
      %s29 = scalar_select %p26, %s27, %s28
      %p32 = pneg %p26
      %p33 = scmp.eq.s32.totalorder %s17, 1
      %p34 = por %p32, %p33
      %p35 = scmp.ne.s32.totalorder %s27, %s30
      %p36 = scmp.eq.s32.totalorder %s17, 0
      %p37 = por %p35, %p36
      %p38 = scmp.ne.s32.totalorder %s27, %s30
      %p39 = scmp.eq.s32.totalorder %s22, 1
      %p40 = por %p38, %p39
      %p41 = scmp.ne.s32.totalorder %s30, %s31
      %p42 = scmp.eq.s32.totalorder %s22, 0
      %p43 = por %p41, %p42
      %p44 = scmp.ne.s32.totalorder %s30, %s31
      %p45 = scmp.eq.s32.totalorder %s23, 1
      %p46 = por %p44, %p45
      %p48 = scmp.ne.s32.totalorder %s31, %s47
      %p49 = scmp.eq.s32.totalorder %s23, 0
      %p50 = por %p48, %p49
      %s52 = sadd.s32 %s51, 1
      %p55 = scmp.eq.s32.totalorder %s17, 1
      %p56 = scmp.ne.s32.totalorder %s51, %s53
      %p57 = scmp.eq.s32.totalorder %s17, 0
      %p58 = por %p56, %p57
      %p59 = scmp.ne.s32.totalorder %s51, %s53
      %p60 = scmp.eq.s32.totalorder %s22, 1
      %p61 = por %p59, %p60
      %p62 = scmp.ne.s32.totalorder %s53, %s54
      %p63 = scmp.eq.s32.totalorder %s22, 0
      %p64 = por %p62, %p63
      %p65 = scmp.ne.s32.totalorder %s53, %s54
      %p66 = scmp.eq.s32.totalorder %s23, 1
      %p67 = por %p65, %p66
      %p69 = scmp.ne.s32.totalorder %s54, %s68
      %p70 = scmp.eq.s32.totalorder %s23, 0
      %p71 = por %p69, %p70
      %s72 = ssub.s32 %s17, %s24
      %p73 = scmp.eq.s32.totalorder %s72, 0
      %s75 = sadd.s32 %s74, 1
      %s76 = scalar_select %p73, %s74, %s75
      %p79 = pneg %p73
      %p80 = scmp.eq.s32.totalorder %s17, 1
      %p81 = por %p79, %p80
      %p82 = scmp.ne.s32.totalorder %s74, %s77
      %p83 = scmp.eq.s32.totalorder %s17, 0
      %p84 = por %p82, %p83
      %p85 = scmp.ne.s32.totalorder %s74, %s77
      %p86 = scmp.eq.s32.totalorder %s22, 1
      %p87 = por %p85, %p86
      %p88 = scmp.ne.s32.totalorder %s77, %s78
      %p89 = scmp.eq.s32.totalorder %s22, 0
      %p90 = por %p88, %p89
      %p91 = scmp.ne.s32.totalorder %s77, %s78
      %p92 = scmp.eq.s32.totalorder %s23, 1
      %p93 = por %p91, %p92
      %p95 = scmp.ne.s32.totalorder %s78, %s94
      %p96 = scmp.eq.s32.totalorder %s23, 0
      %p97 = por %p95, %p96
      %s98 = ssub.s32 %s17, %s24
      %p99 = scmp.eq.s32.totalorder %s98, 0
      %s101 = sadd.s32 %s100, 1
      %s102 = scalar_select %p99, %s100, %s101
      %p105 = pneg %p99
      %p106 = scmp.eq.s32.totalorder %s17, 1
      %p107 = por %p105, %p106
      %p108 = scmp.ne.s32.totalorder %s100, %s103
      %p109 = scmp.eq.s32.totalorder %s17, 0
      %p110 = por %p108, %p109
      %p111 = scmp.ne.s32.totalorder %s100, %s103
      %p112 = scmp.eq.s32.totalorder %s22, 1
      %p113 = por %p111, %p112
      %p114 = scmp.ne.s32.totalorder %s103, %s104
      %p115 = scmp.eq.s32.totalorder %s22, 0
      %p116 = por %p114, %p115
      %p117 = scmp.ne.s32.totalorder %s103, %s104
      %p118 = scmp.eq.s32.totalorder %s23, 1
      %p119 = por %p117, %p118
      %p121 = scmp.ne.s32.totalorder %s104, %s120
      %p122 = scmp.eq.s32.totalorder %s23, 0
      %p123 = por %p121, %p122
      %s124 = ssub.s32 %s17, %s24
      %p125 = scmp.eq.s32.totalorder %s124, 0
      %s127 = sadd.s32 %s126, 1
      %s128 = scalar_select %p125, %s126, %s127
      %p131 = pneg %p125
      %p132 = scmp.eq.s32.totalorder %s17, 1
      %p133 = por %p131, %p132
      %p134 = scmp.ne.s32.totalorder %s126, %s129
      %p135 = scmp.eq.s32.totalorder %s17, 0
      %p136 = por %p134, %p135
      %p137 = scmp.ne.s32.totalorder %s126, %s129
      %p138 = scmp.eq.s32.totalorder %s22, 1
      %p139 = por %p137, %p138
      %p140 = scmp.ne.s32.totalorder %s129, %s130
      %p141 = scmp.eq.s32.totalorder %s22, 0
      %p142 = por %p140, %p141
      %p143 = scmp.ne.s32.totalorder %s129, %s130
      %p144 = scmp.eq.s32.totalorder %s23, 1
      %p145 = por %p143, %p144
      %p147 = scmp.ne.s32.totalorder %s130, %s146
      %p148 = scmp.eq.s32.totalorder %s23, 0
      %p149 = por %p147, %p148
      %p150 = scmp.le.s32.totalorder 1, %s17
      %p151 = scmp.lt.s32.totalorder %s17, 3
      %p152 = pnand %p150, %p151
      %p153 = pneg %p152
      // Predicated region
      $region9: #{tpu_custom_call.1} parent=5 // pred_check
        _
      $region10: #{tpu_custom_call.1} parent=5 // pred_check_branch
        %155 = sbr.rel (%p152) target = $region12
      $region11: #{tpu_custom_call.1} parent=5 // pred_region
        %s156 = ssub.s32 %s17, 1
        // Predicated region
        $region13: #{tpu_custom_call.1} parent=11 // pred_check
          %p157 = pneg %p64
        $region14: #{tpu_custom_call.1} parent=11 // pred_check_branch
          %159 = sbr.rel (%p157) target = $region16
        $region15: #{tpu_custom_call.1} parent=11 // pred_region
          _
        $region16: #{tpu_custom_call.1} parent=11 // pred_fallthru
          _
      $region12: #{tpu_custom_call.1} parent=5 // pred_fallthru
        _
      %p160 = scmp.lt.s32.totalorder %s17, 2
      // Predicated region
      $region17: #{tpu_custom_call.1} parent=5 // pred_check
        %p161 = pneg %p160
      $region18: #{tpu_custom_call.1} parent=5 // pred_check_branch
        %163 = sbr.rel (%p161) target = $region20
      $region19: #{tpu_custom_call.1} parent=5 // pred_region
        // Predicated region
        $region21: #{tpu_custom_call.1} parent=19 // pred_check
          %p164 = pneg %p37
        $region22: #{tpu_custom_call.1} parent=19 // pred_check_branch
          %166 = sbr.rel (%p164) target = $region24
        $region23: #{tpu_custom_call.1} parent=19 // pred_region
          %p167 = scmp.lt.s32.totalorder %s17, 1
          %s168 = scalar_select %p167, %s17, 1
          %s169 = smul.addr %s168, 128
          %s170 = smul.addr %s169, 8
          %s171 = scalar_lea.vmem %s0, %s170
        $region24: #{tpu_custom_call.1} parent=19 // pred_fallthru
          _
      $region20: #{tpu_custom_call.1} parent=5 // pred_fallthru
        _
      %p172 = scmp.le.s32.totalorder 1, %s17
      %p173 = scmp.lt.s32.totalorder %s17, 3
      %p174 = pnand %p172, %p173
      %p175 = pneg %p174
      // Predicated region
      $region25: #{tpu_custom_call.1} parent=5 // pred_check
        _
      $region26: #{tpu_custom_call.1} parent=5 // pred_check_branch
        %177 = sbr.rel (%p174) target = $region28
      $region27: #{tpu_custom_call.1} parent=5 // pred_region
        %s178 = ssub.s32 %s17, 1
        %p179 = scmp.lt.s32.totalorder %s22, 1
        %s180 = scalar_select %p179, %s22, 1
        %s181 = smul.addr %s180, 128
        %s182 = smul.addr %s181, 8
        %s183 = scalar_lea.vmem %s0, %s182
        %p184 = pneg %p43
        %p185 = pneg %p40
        %p186 = pneg %p64
        %p187 = pneg %p61
        %p188 = pneg %p90
        %p189 = pneg %p87
        %p190 = scmp.lt.s32.totalorder %s22, 1
        %s191 = scalar_select %p190, %s22, 1
        %s192 = smul.addr %s191, 128
        %s193 = smul.addr %s192, 8
        %s194 = scalar_lea.vmem %s2, %s193
        %p195 = pneg %p116
        %p196 = pneg %p113
        %s197 = sand.u32 %s103, 1
        %s198 = scalar_lea.sflag [#allocation4], %s197
        %s199 = sand.u32 %s103, 1
        %s200 = scalar_lea.vmem [#allocation3], %s199
        %p201 = pneg %p142
        %p202 = pneg %p139
        %s203 = sand.u32 %s129, 1
        %s204 = scalar_lea.sflag [#allocation6], %s203
        %s205 = sand.u32 %s129, 1
        %s206 = scalar_lea.vmem [#allocation5], %s205
        %p207 = scmp.lt.s32.totalorder %s22, 1
        %s208 = scalar_select %p207, %s22, 1
        %s209 = smul.addr %s208, 128
        %s210 = smul.addr %s209, 8
        %s211 = scalar_lea.vmem %s0, %s210
        %p212 = scmp.lt.s32.totalorder %s22, 1
        %s213 = scalar_select %p212, %s22, 1
        %s214 = smul.addr %s213, 128
        %s215 = smul.addr %s214, 8
        %s216 = scalar_lea.vmem %s2, %s215
        %v217 = vld [vmem:[%s211] sm:$0xff]
        %v218 = vld [vmem:[%s211 + $0x8] sm:$0xff]
        %v219 = vld [vmem:[%s211 + $0x10] sm:$0xff]
        %v220 = vld [vmem:[%s211 + $0x18] sm:$0xff]
        %v221 = vld [vmem:[%s211 + $0x20] sm:$0xff]
        %v222 = vld [vmem:[%s211 + $0x28] sm:$0xff]
        %v223 = vld [vmem:[%s211 + $0x30] sm:$0xff]
        %v224 = vld [vmem:[%s211 + $0x38] sm:$0xff]
        %v225 = vld [vmem:[%s211 + $0x40] sm:$0xff]
        %v226 = vld [vmem:[%s211 + $0x48] sm:$0xff]
        %v227 = vld [vmem:[%s211 + $0x50] sm:$0xff]
        %v228 = vld [vmem:[%s211 + $0x58] sm:$0xff]
        %v229 = vld [vmem:[%s211 + $0x60] sm:$0xff]
        %v230 = vld [vmem:[%s211 + $0x68] sm:$0xff]
        %v231 = vld [vmem:[%s211 + $0x70] sm:$0xff]
        %v232 = vld [vmem:[%s211 + $0x78] sm:$0xff]
        %v233 = vld [vmem:[%s211 + $0x80] sm:$0xff]
        %v234 = vld [vmem:[%s211 + $0x88] sm:$0xff]
        %v235 = vld [vmem:[%s211 + $0x90] sm:$0xff]
        %v236 = vld [vmem:[%s211 + $0x98] sm:$0xff]
        %v237 = vld [vmem:[%s211 + $0xa0] sm:$0xff]
        %v238 = vld [vmem:[%s211 + $0xa8] sm:$0xff]
        %v239 = vld [vmem:[%s211 + $0xb0] sm:$0xff]
        %v240 = vld [vmem:[%s211 + $0xb8] sm:$0xff]
        %v241 = vld [vmem:[%s211 + $0xc0] sm:$0xff]
        %v242 = vld [vmem:[%s211 + $0xc8] sm:$0xff]
        %v243 = vld [vmem:[%s211 + $0xd0] sm:$0xff]
        %v244 = vld [vmem:[%s211 + $0xd8] sm:$0xff]
        %v245 = vld [vmem:[%s211 + $0xe0] sm:$0xff]
        %v246 = vld [vmem:[%s211 + $0xe8] sm:$0xff]
        %v247 = vld [vmem:[%s211 + $0xf0] sm:$0xff]
        %v248 = vld [vmem:[%s211 + $0xf8] sm:$0xff]
        %v249 = vld [vmem:[%s211 + $0x100] sm:$0xff]
        %v250 = vld [vmem:[%s211 + $0x108] sm:$0xff]
        %v251 = vld [vmem:[%s211 + $0x110] sm:$0xff]
        %v252 = vld [vmem:[%s211 + $0x118] sm:$0xff]
        %v253 = vld [vmem:[%s211 + $0x120] sm:$0xff]
        %v254 = vld [vmem:[%s211 + $0x128] sm:$0xff]
        %v255 = vld [vmem:[%s211 + $0x130] sm:$0xff]
        %v256 = vld [vmem:[%s211 + $0x138] sm:$0xff]
        %v257 = vld [vmem:[%s211 + $0x140] sm:$0xff]
        %v258 = vld [vmem:[%s211 + $0x148] sm:$0xff]
        %v259 = vld [vmem:[%s211 + $0x150] sm:$0xff]
        %v260 = vld [vmem:[%s211 + $0x158] sm:$0xff]
        %v261 = vld [vmem:[%s211 + $0x160] sm:$0xff]
        %v262 = vld [vmem:[%s211 + $0x168] sm:$0xff]
        %v263 = vld [vmem:[%s211 + $0x170] sm:$0xff]
        %v264 = vld [vmem:[%s211 + $0x178] sm:$0xff]
        %v265 = vld [vmem:[%s211 + $0x180] sm:$0xff]
        %v266 = vld [vmem:[%s211 + $0x188] sm:$0xff]
        %v267 = vld [vmem:[%s211 + $0x190] sm:$0xff]
        %v268 = vld [vmem:[%s211 + $0x198] sm:$0xff]
        %v269 = vld [vmem:[%s211 + $0x1a0] sm:$0xff]
        %v270 = vld [vmem:[%s211 + $0x1a8] sm:$0xff]
        %v271 = vld [vmem:[%s211 + $0x1b0] sm:$0xff]
        %v272 = vld [vmem:[%s211 + $0x1b8] sm:$0xff]
        %v273 = vld [vmem:[%s211 + $0x1c0] sm:$0xff]
        %v274 = vld [vmem:[%s211 + $0x1c8] sm:$0xff]
        %v275 = vld [vmem:[%s211 + $0x1d0] sm:$0xff]
        %v276 = vld [vmem:[%s211 + $0x1d8] sm:$0xff]
        %v277 = vld [vmem:[%s211 + $0x1e0] sm:$0xff]
        %v278 = vld [vmem:[%s211 + $0x1e8] sm:$0xff]
        %v279 = vld [vmem:[%s211 + $0x1f0] sm:$0xff]
        %v280 = vld [vmem:[%s211 + $0x1f8] sm:$0xff]
        %v281 = vld [vmem:[%s211 + $0x200] sm:$0xff]
        %v282 = vld [vmem:[%s211 + $0x208] sm:$0xff]
        %v283 = vld [vmem:[%s211 + $0x210] sm:$0xff]
        %v284 = vld [vmem:[%s211 + $0x218] sm:$0xff]
        %v285 = vld [vmem:[%s211 + $0x220] sm:$0xff]
        %v286 = vld [vmem:[%s211 + $0x228] sm:$0xff]
        %v287 = vld [vmem:[%s211 + $0x230] sm:$0xff]
        %v288 = vld [vmem:[%s211 + $0x238] sm:$0xff]
        %v289 = vld [vmem:[%s211 + $0x240] sm:$0xff]
        %v290 = vld [vmem:[%s211 + $0x248] sm:$0xff]
        %v291 = vld [vmem:[%s211 + $0x250] sm:$0xff]
        %v292 = vld [vmem:[%s211 + $0x258] sm:$0xff]
        %v293 = vld [vmem:[%s211 + $0x260] sm:$0xff]
        %v294 = vld [vmem:[%s211 + $0x268] sm:$0xff]
        %v295 = vld [vmem:[%s211 + $0x270] sm:$0xff]
        %v296 = vld [vmem:[%s211 + $0x278] sm:$0xff]
        %v297 = vld [vmem:[%s211 + $0x280] sm:$0xff]
        %v298 = vld [vmem:[%s211 + $0x288] sm:$0xff]
        %v299 = vld [vmem:[%s211 + $0x290] sm:$0xff]
        %v300 = vld [vmem:[%s211 + $0x298] sm:$0xff]
        %v301 = vld [vmem:[%s211 + $0x2a0] sm:$0xff]
        %v302 = vld [vmem:[%s211 + $0x2a8] sm:$0xff]
        %v303 = vld [vmem:[%s211 + $0x2b0] sm:$0xff]
        %v304 = vld [vmem:[%s211 + $0x2b8] sm:$0xff]
        %v305 = vld [vmem:[%s211 + $0x2c0] sm:$0xff]
        %v306 = vld [vmem:[%s211 + $0x2c8] sm:$0xff]
        %v307 = vld [vmem:[%s211 + $0x2d0] sm:$0xff]
        %v308 = vld [vmem:[%s211 + $0x2d8] sm:$0xff]
        %v309 = vld [vmem:[%s211 + $0x2e0] sm:$0xff]
        %v310 = vld [vmem:[%s211 + $0x2e8] sm:$0xff]
        %v311 = vld [vmem:[%s211 + $0x2f0] sm:$0xff]
        %v312 = vld [vmem:[%s211 + $0x2f8] sm:$0xff]
        %v313 = vld [vmem:[%s211 + $0x300] sm:$0xff]
        %v314 = vld [vmem:[%s211 + $0x308] sm:$0xff]
        %v315 = vld [vmem:[%s211 + $0x310] sm:$0xff]
        %v316 = vld [vmem:[%s211 + $0x318] sm:$0xff]
        %v317 = vld [vmem:[%s211 + $0x320] sm:$0xff]
        %v318 = vld [vmem:[%s211 + $0x328] sm:$0xff]
        %v319 = vld [vmem:[%s211 + $0x330] sm:$0xff]
        %v320 = vld [vmem:[%s211 + $0x338] sm:$0xff]
        %v321 = vld [vmem:[%s211 + $0x340] sm:$0xff]
        %v322 = vld [vmem:[%s211 + $0x348] sm:$0xff]
        %v323 = vld [vmem:[%s211 + $0x350] sm:$0xff]
        %v324 = vld [vmem:[%s211 + $0x358] sm:$0xff]
        %v325 = vld [vmem:[%s211 + $0x360] sm:$0xff]
        %v326 = vld [vmem:[%s211 + $0x368] sm:$0xff]
        %v327 = vld [vmem:[%s211 + $0x370] sm:$0xff]
        %v328 = vld [vmem:[%s211 + $0x378] sm:$0xff]
        %v329 = vld [vmem:[%s211 + $0x380] sm:$0xff]
        %v330 = vld [vmem:[%s211 + $0x388] sm:$0xff]
        %v331 = vld [vmem:[%s211 + $0x390] sm:$0xff]
        %v332 = vld [vmem:[%s211 + $0x398] sm:$0xff]
        %v333 = vld [vmem:[%s211 + $0x3a0] sm:$0xff]
        %v334 = vld [vmem:[%s211 + $0x3a8] sm:$0xff]
        %v335 = vld [vmem:[%s211 + $0x3b0] sm:$0xff]
        %v336 = vld [vmem:[%s211 + $0x3b8] sm:$0xff]
        %v337 = vld [vmem:[%s211 + $0x3c0] sm:$0xff]
        %v338 = vld [vmem:[%s211 + $0x3c8] sm:$0xff]
        %v339 = vld [vmem:[%s211 + $0x3d0] sm:$0xff]
        %v340 = vld [vmem:[%s211 + $0x3d8] sm:$0xff]
        %v341 = vld [vmem:[%s211 + $0x3e0] sm:$0xff]
        %v342 = vld [vmem:[%s211 + $0x3e8] sm:$0xff]
        %v343 = vld [vmem:[%s211 + $0x3f0] sm:$0xff]
        %v344 = vld [vmem:[%s211 + $0x3f8] sm:$0xff]
        %vm345 = vcmask 7168
        %346 = vst.msk [vmem:[#allocation2] sm:$0xff] %vm345, 0.0
        %347 = vst.msk [vmem:[#allocation2 + $0x8] sm:$0xff] %vm345, 0.0
        %348 = vst.msk [vmem:[#allocation2 + $0x10] sm:$0xff] %vm345, 0.0
        %349 = vst.msk [vmem:[#allocation2 + $0x18] sm:$0xff] %vm345, 0.0
        %vm350 = vcmask 1024
        %351 = vst.msk [vmem:[#allocation2 + $0x20] sm:$0x3] %vm350, 0.0
        %s352 = scalar_lea.vmem [#allocation2], 1320
        %353 = vst.msk [vmem:[%s352] sm:$0xff] %vm345, 0.0
        %354 = vst.msk [vmem:[%s352 + $0x8] sm:$0xff] %vm345, 0.0
        %355 = vst.msk [vmem:[%s352 + $0x10] sm:$0xff] %vm345, 0.0
        %356 = vst.msk [vmem:[%s352 + $0x18] sm:$0xff] %vm345, 0.0
        %357 = vst.msk [vmem:[%s352 + $0x20] sm:$0x3] %vm350, 0.0
        %s358 = scalar_lea.vmem [#allocation2], 40
        %vm359 = vcmask 0
        %360 = vst.msk [vmem:[%s358] sm:$0x1] %vm359, 0.0
        %361 = vst.msk [vmem:[%s358 + $0x28] sm:$0x1] %vm359, 0.0
        %362 = vst.msk [vmem:[%s358 + $0x50] sm:$0x1] %vm359, 0.0
        %363 = vst.msk [vmem:[%s358 + $0x78] sm:$0x1] %vm359, 0.0
        %364 = vst.msk [vmem:[%s358 + $0xa0] sm:$0x1] %vm359, 0.0
        %365 = vst.msk [vmem:[%s358 + $0xc8] sm:$0x1] %vm359, 0.0
        %366 = vst.msk [vmem:[%s358 + $0xf0] sm:$0x1] %vm359, 0.0
        %367 = vst.msk [vmem:[%s358 + $0x118] sm:$0x1] %vm359, 0.0
        %368 = vst.msk [vmem:[%s358 + $0x140] sm:$0x1] %vm359, 0.0
        %369 = vst.msk [vmem:[%s358 + $0x168] sm:$0x1] %vm359, 0.0
        %370 = vst.msk [vmem:[%s358 + $0x190] sm:$0x1] %vm359, 0.0
        %371 = vst.msk [vmem:[%s358 + $0x1b8] sm:$0x1] %vm359, 0.0
        %372 = vst.msk [vmem:[%s358 + $0x1e0] sm:$0x1] %vm359, 0.0
        %373 = vst.msk [vmem:[%s358 + $0x208] sm:$0x1] %vm359, 0.0
        %374 = vst.msk [vmem:[%s358 + $0x230] sm:$0x1] %vm359, 0.0
        %375 = vst.msk [vmem:[%s358 + $0x258] sm:$0x1] %vm359, 0.0
        %376 = vst.msk [vmem:[%s358 + $0x280] sm:$0x1] %vm359, 0.0
        %377 = vst.msk [vmem:[%s358 + $0x2a8] sm:$0x1] %vm359, 0.0
        %378 = vst.msk [vmem:[%s358 + $0x2d0] sm:$0x1] %vm359, 0.0
        %379 = vst.msk [vmem:[%s358 + $0x2f8] sm:$0x1] %vm359, 0.0
        %380 = vst.msk [vmem:[%s358 + $0x320] sm:$0x1] %vm359, 0.0
        %381 = vst.msk [vmem:[%s358 + $0x348] sm:$0x1] %vm359, 0.0
        %382 = vst.msk [vmem:[%s358 + $0x370] sm:$0x1] %vm359, 0.0
        %383 = vst.msk [vmem:[%s358 + $0x398] sm:$0x1] %vm359, 0.0
        %384 = vst.msk [vmem:[%s358 + $0x3c0] sm:$0x1] %vm359, 0.0
        %385 = vst.msk [vmem:[%s358 + $0x3e8] sm:$0x1] %vm359, 0.0
        %386 = vst.msk [vmem:[%s358 + $0x410] sm:$0x1] %vm359, 0.0
        %387 = vst.msk [vmem:[%s358 + $0x438] sm:$0x1] %vm359, 0.0
        %388 = vst.msk [vmem:[%s358 + $0x460] sm:$0x1] %vm359, 0.0
        %389 = vst.msk [vmem:[%s358 + $0x488] sm:$0x1] %vm359, 0.0
        %390 = vst.msk [vmem:[%s358 + $0x4b0] sm:$0x1] %vm359, 0.0
        %391 = vst.msk [vmem:[%s358 + $0x4d8] sm:$0x1] %vm359, 0.0
        %392 = vst.msk [vmem:[%s358 + $0x21] sm:$0x1] %vm359, 0.0
        %393 = vst.msk [vmem:[%s358 + $0x49] sm:$0x1] %vm359, 0.0
        %394 = vst.msk [vmem:[%s358 + $0x71] sm:$0x1] %vm359, 0.0
        %395 = vst.msk [vmem:[%s358 + $0x99] sm:$0x1] %vm359, 0.0
        %396 = vst.msk [vmem:[%s358 + $0xc1] sm:$0x1] %vm359, 0.0
        %397 = vst.msk [vmem:[%s358 + $0xe9] sm:$0x1] %vm359, 0.0
        %398 = vst.msk [vmem:[%s358 + $0x111] sm:$0x1] %vm359, 0.0
        %399 = vst.msk [vmem:[%s358 + $0x139] sm:$0x1] %vm359, 0.0
        %400 = vst.msk [vmem:[%s358 + $0x161] sm:$0x1] %vm359, 0.0
        %401 = vst.msk [vmem:[%s358 + $0x189] sm:$0x1] %vm359, 0.0
        %402 = vst.msk [vmem:[%s358 + $0x1b1] sm:$0x1] %vm359, 0.0
        %403 = vst.msk [vmem:[%s358 + $0x1d9] sm:$0x1] %vm359, 0.0
        %404 = vst.msk [vmem:[%s358 + $0x201] sm:$0x1] %vm359, 0.0
        %405 = vst.msk [vmem:[%s358 + $0x229] sm:$0x1] %vm359, 0.0
        %406 = vst.msk [vmem:[%s358 + $0x251] sm:$0x1] %vm359, 0.0
        %407 = vst.msk [vmem:[%s358 + $0x279] sm:$0x1] %vm359, 0.0
        %408 = vst.msk [vmem:[%s358 + $0x2a1] sm:$0x1] %vm359, 0.0
        %409 = vst.msk [vmem:[%s358 + $0x2c9] sm:$0x1] %vm359, 0.0
        %410 = vst.msk [vmem:[%s358 + $0x2f1] sm:$0x1] %vm359, 0.0
        %411 = vst.msk [vmem:[%s358 + $0x319] sm:$0x1] %vm359, 0.0
        %412 = vst.msk [vmem:[%s358 + $0x341] sm:$0x1] %vm359, 0.0
        %413 = vst.msk [vmem:[%s358 + $0x369] sm:$0x1] %vm359, 0.0
        %414 = vst.msk [vmem:[%s358 + $0x391] sm:$0x1] %vm359, 0.0
        %415 = vst.msk [vmem:[%s358 + $0x3b9] sm:$0x1] %vm359, 0.0
        %416 = vst.msk [vmem:[%s358 + $0x3e1] sm:$0x1] %vm359, 0.0
        %417 = vst.msk [vmem:[%s358 + $0x409] sm:$0x1] %vm359, 0.0
        %418 = vst.msk [vmem:[%s358 + $0x431] sm:$0x1] %vm359, 0.0
        %419 = vst.msk [vmem:[%s358 + $0x459] sm:$0x1] %vm359, 0.0
        %420 = vst.msk [vmem:[%s358 + $0x481] sm:$0x1] %vm359, 0.0
        %421 = vst.msk [vmem:[%s358 + $0x4a9] sm:$0x1] %vm359, 0.0
        %422 = vst.msk [vmem:[%s358 + $0x4d1] sm:$0x1] %vm359, 0.0
        %423 = vst.msk [vmem:[%s358 + $0x4f9] sm:$0x1] %vm359, 0.0
        %424 = vst.msk [vmem:[%s358 + $0x1] sm:$0xff] %vm345, %v217
        %425 = vst.msk [vmem:[%s358 + $0x9] sm:$0xff] %vm345, %v218
        %426 = vst.msk [vmem:[%s358 + $0x11] sm:$0xff] %vm345, %v219
        %427 = vst.msk [vmem:[%s358 + $0x19] sm:$0xff] %vm345, %v220
        %428 = vst.msk [vmem:[%s358 + $0x29] sm:$0xff] %vm345, %v221
        %429 = vst.msk [vmem:[%s358 + $0x31] sm:$0xff] %vm345, %v222
        %430 = vst.msk [vmem:[%s358 + $0x39] sm:$0xff] %vm345, %v223
        %431 = vst.msk [vmem:[%s358 + $0x41] sm:$0xff] %vm345, %v224
        %432 = vst.msk [vmem:[%s358 + $0x51] sm:$0xff] %vm345, %v225
        %433 = vst.msk [vmem:[%s358 + $0x59] sm:$0xff] %vm345, %v226
        %434 = vst.msk [vmem:[%s358 + $0x61] sm:$0xff] %vm345, %v227
        %435 = vst.msk [vmem:[%s358 + $0x69] sm:$0xff] %vm345, %v228
        %436 = vst.msk [vmem:[%s358 + $0x79] sm:$0xff] %vm345, %v229
        %437 = vst.msk [vmem:[%s358 + $0x81] sm:$0xff] %vm345, %v230
        %438 = vst.msk [vmem:[%s358 + $0x89] sm:$0xff] %vm345, %v231
        %439 = vst.msk [vmem:[%s358 + $0x91] sm:$0xff] %vm345, %v232
        %440 = vst.msk [vmem:[%s358 + $0xa1] sm:$0xff] %vm345, %v233
        %441 = vst.msk [vmem:[%s358 + $0xa9] sm:$0xff] %vm345, %v234
        %442 = vst.msk [vmem:[%s358 + $0xb1] sm:$0xff] %vm345, %v235
        %443 = vst.msk [vmem:[%s358 + $0xb9] sm:$0xff] %vm345, %v236
        %444 = vst.msk [vmem:[%s358 + $0xc9] sm:$0xff] %vm345, %v237
        %445 = vst.msk [vmem:[%s358 + $0xd1] sm:$0xff] %vm345, %v238
        %446 = vst.msk [vmem:[%s358 + $0xd9] sm:$0xff] %vm345, %v239
        %447 = vst.msk [vmem:[%s358 + $0xe1] sm:$0xff] %vm345, %v240
        %448 = vst.msk [vmem:[%s358 + $0xf1] sm:$0xff] %vm345, %v241
        %449 = vst.msk [vmem:[%s358 + $0xf9] sm:$0xff] %vm345, %v242
        %450 = vst.msk [vmem:[%s358 + $0x101] sm:$0xff] %vm345, %v243
        %451 = vst.msk [vmem:[%s358 + $0x109] sm:$0xff] %vm345, %v244
        %452 = vst.msk [vmem:[%s358 + $0x119] sm:$0xff] %vm345, %v245
        %453 = vst.msk [vmem:[%s358 + $0x121] sm:$0xff] %vm345, %v246
        %454 = vst.msk [vmem:[%s358 + $0x129] sm:$0xff] %vm345, %v247
        %455 = vst.msk [vmem:[%s358 + $0x131] sm:$0xff] %vm345, %v248
        %456 = vst.msk [vmem:[%s358 + $0x141] sm:$0xff] %vm345, %v249
        %457 = vst.msk [vmem:[%s358 + $0x149] sm:$0xff] %vm345, %v250
        %458 = vst.msk [vmem:[%s358 + $0x151] sm:$0xff] %vm345, %v251
        %459 = vst.msk [vmem:[%s358 + $0x159] sm:$0xff] %vm345, %v252
        %460 = vst.msk [vmem:[%s358 + $0x169] sm:$0xff] %vm345, %v253
        %461 = vst.msk [vmem:[%s358 + $0x171] sm:$0xff] %vm345, %v254
        %462 = vst.msk [vmem:[%s358 + $0x179] sm:$0xff] %vm345, %v255
        %463 = vst.msk [vmem:[%s358 + $0x181] sm:$0xff] %vm345, %v256
        %464 = vst.msk [vmem:[%s358 + $0x191] sm:$0xff] %vm345, %v257
        %465 = vst.msk [vmem:[%s358 + $0x199] sm:$0xff] %vm345, %v258
        %466 = vst.msk [vmem:[%s358 + $0x1a1] sm:$0xff] %vm345, %v259
        %467 = vst.msk [vmem:[%s358 + $0x1a9] sm:$0xff] %vm345, %v260
        %468 = vst.msk [vmem:[%s358 + $0x1b9] sm:$0xff] %vm345, %v261
        %469 = vst.msk [vmem:[%s358 + $0x1c1] sm:$0xff] %vm345, %v262
        %470 = vst.msk [vmem:[%s358 + $0x1c9] sm:$0xff] %vm345, %v263
        %471 = vst.msk [vmem:[%s358 + $0x1d1] sm:$0xff] %vm345, %v264
        %472 = vst.msk [vmem:[%s358 + $0x1e1] sm:$0xff] %vm345, %v265
        %473 = vst.msk [vmem:[%s358 + $0x1e9] sm:$0xff] %vm345, %v266
        %474 = vst.msk [vmem:[%s358 + $0x1f1] sm:$0xff] %vm345, %v267
        %475 = vst.msk [vmem:[%s358 + $0x1f9] sm:$0xff] %vm345, %v268
        %476 = vst.msk [vmem:[%s358 + $0x209] sm:$0xff] %vm345, %v269
        %477 = vst.msk [vmem:[%s358 + $0x211] sm:$0xff] %vm345, %v270
        %478 = vst.msk [vmem:[%s358 + $0x219] sm:$0xff] %vm345, %v271
        %479 = vst.msk [vmem:[%s358 + $0x221] sm:$0xff] %vm345, %v272
        %480 = vst.msk [vmem:[%s358 + $0x231] sm:$0xff] %vm345, %v273
        %481 = vst.msk [vmem:[%s358 + $0x239] sm:$0xff] %vm345, %v274
        %482 = vst.msk [vmem:[%s358 + $0x241] sm:$0xff] %vm345, %v275
        %483 = vst.msk [vmem:[%s358 + $0x249] sm:$0xff] %vm345, %v276
        %484 = vst.msk [vmem:[%s358 + $0x259] sm:$0xff] %vm345, %v277
        %485 = vst.msk [vmem:[%s358 + $0x261] sm:$0xff] %vm345, %v278
        %486 = vst.msk [vmem:[%s358 + $0x269] sm:$0xff] %vm345, %v279
        %487 = vst.msk [vmem:[%s358 + $0x271] sm:$0xff] %vm345, %v280
        %488 = vst.msk [vmem:[%s358 + $0x281] sm:$0xff] %vm345, %v281
        %489 = vst.msk [vmem:[%s358 + $0x289] sm:$0xff] %vm345, %v282
        %490 = vst.msk [vmem:[%s358 + $0x291] sm:$0xff] %vm345, %v283
        %491 = vst.msk [vmem:[%s358 + $0x299] sm:$0xff] %vm345, %v284
        %492 = vst.msk [vmem:[%s358 + $0x2a9] sm:$0xff] %vm345, %v285
        %493 = vst.msk [vmem:[%s358 + $0x2b1] sm:$0xff] %vm345, %v286
        %494 = vst.msk [vmem:[%s358 + $0x2b9] sm:$0xff] %vm345, %v287
        %495 = vst.msk [vmem:[%s358 + $0x2c1] sm:$0xff] %vm345, %v288
        %496 = vst.msk [vmem:[%s358 + $0x2d1] sm:$0xff] %vm345, %v289
        %497 = vst.msk [vmem:[%s358 + $0x2d9] sm:$0xff] %vm345, %v290
        %498 = vst.msk [vmem:[%s358 + $0x2e1] sm:$0xff] %vm345, %v291
        %499 = vst.msk [vmem:[%s358 + $0x2e9] sm:$0xff] %vm345, %v292
        %500 = vst.msk [vmem:[%s358 + $0x2f9] sm:$0xff] %vm345, %v293
        %501 = vst.msk [vmem:[%s358 + $0x301] sm:$0xff] %vm345, %v294
        %502 = vst.msk [vmem:[%s358 + $0x309] sm:$0xff] %vm345, %v295
        %503 = vst.msk [vmem:[%s358 + $0x311] sm:$0xff] %vm345, %v296
        %504 = vst.msk [vmem:[%s358 + $0x321] sm:$0xff] %vm345, %v297
        %505 = vst.msk [vmem:[%s358 + $0x329] sm:$0xff] %vm345, %v298
        %506 = vst.msk [vmem:[%s358 + $0x331] sm:$0xff] %vm345, %v299
        %507 = vst.msk [vmem:[%s358 + $0x339] sm:$0xff] %vm345, %v300
        %508 = vst.msk [vmem:[%s358 + $0x349] sm:$0xff] %vm345, %v301
        %509 = vst.msk [vmem:[%s358 + $0x351] sm:$0xff] %vm345, %v302
        %510 = vst.msk [vmem:[%s358 + $0x359] sm:$0xff] %vm345, %v303
        %511 = vst.msk [vmem:[%s358 + $0x361] sm:$0xff] %vm345, %v304
        %512 = vst.msk [vmem:[%s358 + $0x371] sm:$0xff] %vm345, %v305
        %513 = vst.msk [vmem:[%s358 + $0x379] sm:$0xff] %vm345, %v306
        %514 = vst.msk [vmem:[%s358 + $0x381] sm:$0xff] %vm345, %v307
        %515 = vst.msk [vmem:[%s358 + $0x389] sm:$0xff] %vm345, %v308
        %516 = vst.msk [vmem:[%s358 + $0x399] sm:$0xff] %vm345, %v309
        %517 = vst.msk [vmem:[%s358 + $0x3a1] sm:$0xff] %vm345, %v310
        %518 = vst.msk [vmem:[%s358 + $0x3a9] sm:$0xff] %vm345, %v311
        %519 = vst.msk [vmem:[%s358 + $0x3b1] sm:$0xff] %vm345, %v312
        %520 = vst.msk [vmem:[%s358 + $0x3c1] sm:$0xff] %vm345, %v313
        %521 = vst.msk [vmem:[%s358 + $0x3c9] sm:$0xff] %vm345, %v314
        %522 = vst.msk [vmem:[%s358 + $0x3d1] sm:$0xff] %vm345, %v315
        %523 = vst.msk [vmem:[%s358 + $0x3d9] sm:$0xff] %vm345, %v316
        %524 = vst.msk [vmem:[%s358 + $0x3e9] sm:$0xff] %vm345, %v317
        %525 = vst.msk [vmem:[%s358 + $0x3f1] sm:$0xff] %vm345, %v318
        %526 = vst.msk [vmem:[%s358 + $0x3f9] sm:$0xff] %vm345, %v319
        %527 = vst.msk [vmem:[%s358 + $0x401] sm:$0xff] %vm345, %v320
        %528 = vst.msk [vmem:[%s358 + $0x411] sm:$0xff] %vm345, %v321
        %529 = vst.msk [vmem:[%s358 + $0x419] sm:$0xff] %vm345, %v322
        %530 = vst.msk [vmem:[%s358 + $0x421] sm:$0xff] %vm345, %v323
        %531 = vst.msk [vmem:[%s358 + $0x429] sm:$0xff] %vm345, %v324
        %532 = vst.msk [vmem:[%s358 + $0x439] sm:$0xff] %vm345, %v325
        %533 = vst.msk [vmem:[%s358 + $0x441] sm:$0xff] %vm345, %v326
        %534 = vst.msk [vmem:[%s358 + $0x449] sm:$0xff] %vm345, %v327
        %535 = vst.msk [vmem:[%s358 + $0x451] sm:$0xff] %vm345, %v328
        %536 = vst.msk [vmem:[%s358 + $0x461] sm:$0xff] %vm345, %v329
        %537 = vst.msk [vmem:[%s358 + $0x469] sm:$0xff] %vm345, %v330
        %538 = vst.msk [vmem:[%s358 + $0x471] sm:$0xff] %vm345, %v331
        %539 = vst.msk [vmem:[%s358 + $0x479] sm:$0xff] %vm345, %v332
        %540 = vst.msk [vmem:[%s358 + $0x489] sm:$0xff] %vm345, %v333
        %541 = vst.msk [vmem:[%s358 + $0x491] sm:$0xff] %vm345, %v334
        %542 = vst.msk [vmem:[%s358 + $0x499] sm:$0xff] %vm345, %v335
        %543 = vst.msk [vmem:[%s358 + $0x4a1] sm:$0xff] %vm345, %v336
        %544 = vst.msk [vmem:[%s358 + $0x4b1] sm:$0xff] %vm345, %v337
        %545 = vst.msk [vmem:[%s358 + $0x4b9] sm:$0xff] %vm345, %v338
        %546 = vst.msk [vmem:[%s358 + $0x4c1] sm:$0xff] %vm345, %v339
        %547 = vst.msk [vmem:[%s358 + $0x4c9] sm:$0xff] %vm345, %v340
        %548 = vst.msk [vmem:[%s358 + $0x4d9] sm:$0xff] %vm345, %v341
        %549 = vst.msk [vmem:[%s358 + $0x4e1] sm:$0xff] %vm345, %v342
        %550 = vst.msk [vmem:[%s358 + $0x4e9] sm:$0xff] %vm345, %v343
        %551 = vst.msk [vmem:[%s358 + $0x4f1] sm:$0xff] %vm345, %v344
        %v552 = vld [vmem:[#allocation2] sm:$0xff]
        %v553 = vld [vmem:[#allocation2 + $0x8] sm:$0xff]
        %v554 = vld [vmem:[#allocation2 + $0x10] sm:$0xff]
        %v555 = vld [vmem:[#allocation2 + $0x18] sm:$0xff]
        %v556 = vld [vmem:[#allocation2 + $0x28] sm:$0xff]
        %v557 = vld [vmem:[#allocation2 + $0x30] sm:$0xff]
        %v558 = vld [vmem:[#allocation2 + $0x38] sm:$0xff]
        %v559 = vld [vmem:[#allocation2 + $0x40] sm:$0xff]
        %v560 = vld [vmem:[#allocation2 + $0x50] sm:$0xff]
        %v561 = vld [vmem:[#allocation2 + $0x58] sm:$0xff]
        %v562 = vld [vmem:[#allocation2 + $0x60] sm:$0xff]
        %v563 = vld [vmem:[#allocation2 + $0x68] sm:$0xff]
        %v564 = vld [vmem:[#allocation2 + $0x78] sm:$0xff]
        %v565 = vld [vmem:[#allocation2 + $0x80] sm:$0xff]
        %v566 = vld [vmem:[#allocation2 + $0x88] sm:$0xff]
        %v567 = vld [vmem:[#allocation2 + $0x90] sm:$0xff]
        %v568 = vld [vmem:[#allocation2 + $0xa0] sm:$0xff]
        %v569 = vld [vmem:[#allocation2 + $0xa8] sm:$0xff]
        %v570 = vld [vmem:[#allocation2 + $0xb0] sm:$0xff]
        %v571 = vld [vmem:[#allocation2 + $0xb8] sm:$0xff]
        %v572 = vld [vmem:[#allocation2 + $0xc8] sm:$0xff]
        %v573 = vld [vmem:[#allocation2 + $0xd0] sm:$0xff]
        %v574 = vld [vmem:[#allocation2 + $0xd8] sm:$0xff]
        %v575 = vld [vmem:[#allocation2 + $0xe0] sm:$0xff]
        %v576 = vld [vmem:[#allocation2 + $0xf0] sm:$0xff]
        %v577 = vld [vmem:[#allocation2 + $0xf8] sm:$0xff]
        %v578 = vld [vmem:[#allocation2 + $0x100] sm:$0xff]
        %v579 = vld [vmem:[#allocation2 + $0x108] sm:$0xff]
        %v580 = vld [vmem:[#allocation2 + $0x118] sm:$0xff]
        %v581 = vld [vmem:[#allocation2 + $0x120] sm:$0xff]
        %v582 = vld [vmem:[#allocation2 + $0x128] sm:$0xff]
        %v583 = vld [vmem:[#allocation2 + $0x130] sm:$0xff]
        %v584 = vld [vmem:[#allocation2 + $0x140] sm:$0xff]
        %v585 = vld [vmem:[#allocation2 + $0x148] sm:$0xff]
        %v586 = vld [vmem:[#allocation2 + $0x150] sm:$0xff]
        %v587 = vld [vmem:[#allocation2 + $0x158] sm:$0xff]
        %v588 = vld [vmem:[#allocation2 + $0x168] sm:$0xff]
        %v589 = vld [vmem:[#allocation2 + $0x170] sm:$0xff]
        %v590 = vld [vmem:[#allocation2 + $0x178] sm:$0xff]
        %v591 = vld [vmem:[#allocation2 + $0x180] sm:$0xff]
        %v592 = vld [vmem:[#allocation2 + $0x190] sm:$0xff]
        %v593 = vld [vmem:[#allocation2 + $0x198] sm:$0xff]
        %v594 = vld [vmem:[#allocation2 + $0x1a0] sm:$0xff]
        %v595 = vld [vmem:[#allocation2 + $0x1a8] sm:$0xff]
        %v596 = vld [vmem:[#allocation2 + $0x1b8] sm:$0xff]
        %v597 = vld [vmem:[#allocation2 + $0x1c0] sm:$0xff]
        %v598 = vld [vmem:[#allocation2 + $0x1c8] sm:$0xff]
        %v599 = vld [vmem:[#allocation2 + $0x1d0] sm:$0xff]
        %v600 = vld [vmem:[#allocation2 + $0x1e0] sm:$0xff]
        %v601 = vld [vmem:[#allocation2 + $0x1e8] sm:$0xff]
        %v602 = vld [vmem:[#allocation2 + $0x1f0] sm:$0xff]
        %v603 = vld [vmem:[#allocation2 + $0x1f8] sm:$0xff]
        %v604 = vld [vmem:[#allocation2 + $0x208] sm:$0xff]
        %v605 = vld [vmem:[#allocation2 + $0x210] sm:$0xff]
        %v606 = vld [vmem:[#allocation2 + $0x218] sm:$0xff]
        %v607 = vld [vmem:[#allocation2 + $0x220] sm:$0xff]
        %v608 = vld [vmem:[#allocation2 + $0x230] sm:$0xff]
        %v609 = vld [vmem:[#allocation2 + $0x238] sm:$0xff]
        %v610 = vld [vmem:[#allocation2 + $0x240] sm:$0xff]
        %v611 = vld [vmem:[#allocation2 + $0x248] sm:$0xff]
        %v612 = vld [vmem:[#allocation2 + $0x258] sm:$0xff]
        %v613 = vld [vmem:[#allocation2 + $0x260] sm:$0xff]
        %v614 = vld [vmem:[#allocation2 + $0x268] sm:$0xff]
        %v615 = vld [vmem:[#allocation2 + $0x270] sm:$0xff]
        %v616 = vld [vmem:[#allocation2 + $0x280] sm:$0xff]
        %v617 = vld [vmem:[#allocation2 + $0x288] sm:$0xff]
        %v618 = vld [vmem:[#allocation2 + $0x290] sm:$0xff]
        %v619 = vld [vmem:[#allocation2 + $0x298] sm:$0xff]
        %v620 = vld [vmem:[#allocation2 + $0x2a8] sm:$0xff]
        %v621 = vld [vmem:[#allocation2 + $0x2b0] sm:$0xff]
        %v622 = vld [vmem:[#allocation2 + $0x2b8] sm:$0xff]
        %v623 = vld [vmem:[#allocation2 + $0x2c0] sm:$0xff]
        %v624 = vld [vmem:[#allocation2 + $0x2d0] sm:$0xff]
        %v625 = vld [vmem:[#allocation2 + $0x2d8] sm:$0xff]
        %v626 = vld [vmem:[#allocation2 + $0x2e0] sm:$0xff]
        %v627 = vld [vmem:[#allocation2 + $0x2e8] sm:$0xff]
        %v628 = vld [vmem:[#allocation2 + $0x2f8] sm:$0xff]
        %v629 = vld [vmem:[#allocation2 + $0x300] sm:$0xff]
        %v630 = vld [vmem:[#allocation2 + $0x308] sm:$0xff]
        %v631 = vld [vmem:[#allocation2 + $0x310] sm:$0xff]
        %v632 = vld [vmem:[#allocation2 + $0x320] sm:$0xff]
        %v633 = vld [vmem:[#allocation2 + $0x328] sm:$0xff]
        %v634 = vld [vmem:[#allocation2 + $0x330] sm:$0xff]
        %v635 = vld [vmem:[#allocation2 + $0x338] sm:$0xff]
        %v636 = vld [vmem:[#allocation2 + $0x348] sm:$0xff]
        %v637 = vld [vmem:[#allocation2 + $0x350] sm:$0xff]
        %v638 = vld [vmem:[#allocation2 + $0x358] sm:$0xff]
        %v639 = vld [vmem:[#allocation2 + $0x360] sm:$0xff]
        %v640 = vld [vmem:[#allocation2 + $0x370] sm:$0xff]
        %v641 = vld [vmem:[#allocation2 + $0x378] sm:$0xff]
        %v642 = vld [vmem:[#allocation2 + $0x380] sm:$0xff]
        %v643 = vld [vmem:[#allocation2 + $0x388] sm:$0xff]
        %v644 = vld [vmem:[#allocation2 + $0x398] sm:$0xff]
        %v645 = vld [vmem:[#allocation2 + $0x3a0] sm:$0xff]
        %v646 = vld [vmem:[#allocation2 + $0x3a8] sm:$0xff]
        %v647 = vld [vmem:[#allocation2 + $0x3b0] sm:$0xff]
        %v648 = vld [vmem:[#allocation2 + $0x3c0] sm:$0xff]
        %v649 = vld [vmem:[#allocation2 + $0x3c8] sm:$0xff]
        %v650 = vld [vmem:[#allocation2 + $0x3d0] sm:$0xff]
        %v651 = vld [vmem:[#allocation2 + $0x3d8] sm:$0xff]
        %v652 = vld [vmem:[#allocation2 + $0x3e8] sm:$0xff]
        %v653 = vld [vmem:[#allocation2 + $0x3f0] sm:$0xff]
        %v654 = vld [vmem:[#allocation2 + $0x3f8] sm:$0xff]
        %v655 = vld [vmem:[#allocation2 + $0x400] sm:$0xff]
        %v656 = vld [vmem:[#allocation2 + $0x410] sm:$0xff]
        %v657 = vld [vmem:[#allocation2 + $0x418] sm:$0xff]
        %v658 = vld [vmem:[#allocation2 + $0x420] sm:$0xff]
        %v659 = vld [vmem:[#allocation2 + $0x428] sm:$0xff]
        %v660 = vld [vmem:[#allocation2 + $0x438] sm:$0xff]
        %v661 = vld [vmem:[#allocation2 + $0x440] sm:$0xff]
        %v662 = vld [vmem:[#allocation2 + $0x448] sm:$0xff]
        %v663 = vld [vmem:[#allocation2 + $0x450] sm:$0xff]
        %v664 = vld [vmem:[#allocation2 + $0x460] sm:$0xff]
        %v665 = vld [vmem:[#allocation2 + $0x468] sm:$0xff]
        %v666 = vld [vmem:[#allocation2 + $0x470] sm:$0xff]
        %v667 = vld [vmem:[#allocation2 + $0x478] sm:$0xff]
        %v668 = vld [vmem:[#allocation2 + $0x488] sm:$0xff]
        %v669 = vld [vmem:[#allocation2 + $0x490] sm:$0xff]
        %v670 = vld [vmem:[#allocation2 + $0x498] sm:$0xff]
        %v671 = vld [vmem:[#allocation2 + $0x4a0] sm:$0xff]
        %v672 = vld [vmem:[#allocation2 + $0x4b0] sm:$0xff]
        %v673 = vld [vmem:[#allocation2 + $0x4b8] sm:$0xff]
        %v674 = vld [vmem:[#allocation2 + $0x4c0] sm:$0xff]
        %v675 = vld [vmem:[#allocation2 + $0x4c8] sm:$0xff]
        %v676 = vld [vmem:[#allocation2 + $0x4d8] sm:$0xff]
        %v677 = vld [vmem:[#allocation2 + $0x4e0] sm:$0xff]
        %v678 = vld [vmem:[#allocation2 + $0x4e8] sm:$0xff]
        %v679 = vld [vmem:[#allocation2 + $0x4f0] sm:$0xff]
        %v680 = vld [vmem:[%s1] sm:$0x1]
        %v681 = vunpack.c.l.bf16 %v680
        %683 = vset.pattern.permute.xlu0 0
        %684 = vperm.xlu0 %683, %v552
        %v685 = vpop.permute.xlu0 %684
        %688 = vset.pattern.permute.xlu0 0
        %689 = vperm.xlu0 %688, %v553
        %v690 = vpop.permute.xlu0 %689
        %693 = vset.pattern.permute.xlu0 0
        %694 = vperm.xlu0 %693, %v554
        %v695 = vpop.permute.xlu0 %694
        %698 = vset.pattern.permute.xlu0 0
        %699 = vperm.xlu0 %698, %v555
        %v700 = vpop.permute.xlu0 %699
        %703 = vset.pattern.permute.xlu0 0
        %704 = vperm.xlu0 %703, %v556
        %v705 = vpop.permute.xlu0 %704
        %708 = vset.pattern.permute.xlu0 0
        %709 = vperm.xlu0 %708, %v557
        %v710 = vpop.permute.xlu0 %709
        %713 = vset.pattern.permute.xlu0 0
        %714 = vperm.xlu0 %713, %v558
        %v715 = vpop.permute.xlu0 %714
        %718 = vset.pattern.permute.xlu0 0
        %719 = vperm.xlu0 %718, %v559
        %v720 = vpop.permute.xlu0 %719
        %723 = vset.pattern.permute.xlu0 0
        %724 = vperm.xlu0 %723, %v560
        %v725 = vpop.permute.xlu0 %724
        %728 = vset.pattern.permute.xlu0 0
        %729 = vperm.xlu0 %728, %v561
        %v730 = vpop.permute.xlu0 %729
        %733 = vset.pattern.permute.xlu0 0
        %734 = vperm.xlu0 %733, %v562
        %v735 = vpop.permute.xlu0 %734
        %738 = vset.pattern.permute.xlu0 0
        %739 = vperm.xlu0 %738, %v563
        %v740 = vpop.permute.xlu0 %739
        %743 = vset.pattern.permute.xlu0 0
        %744 = vperm.xlu0 %743, %v564
        %v745 = vpop.permute.xlu0 %744
        %748 = vset.pattern.permute.xlu0 0
        %749 = vperm.xlu0 %748, %v565
        %v750 = vpop.permute.xlu0 %749
        %753 = vset.pattern.permute.xlu0 0
        %754 = vperm.xlu0 %753, %v566
        %v755 = vpop.permute.xlu0 %754
        %758 = vset.pattern.permute.xlu0 0
        %759 = vperm.xlu0 %758, %v567
        %v760 = vpop.permute.xlu0 %759
        %763 = vset.pattern.permute.xlu0 0
        %764 = vperm.xlu0 %763, %v568
        %v765 = vpop.permute.xlu0 %764
        %768 = vset.pattern.permute.xlu0 0
        %769 = vperm.xlu0 %768, %v569
        %v770 = vpop.permute.xlu0 %769
        %773 = vset.pattern.permute.xlu0 0
        %774 = vperm.xlu0 %773, %v570
        %v775 = vpop.permute.xlu0 %774
        %778 = vset.pattern.permute.xlu0 0
        %779 = vperm.xlu0 %778, %v571
        %v780 = vpop.permute.xlu0 %779
        %783 = vset.pattern.permute.xlu0 0
        %784 = vperm.xlu0 %783, %v572
        %v785 = vpop.permute.xlu0 %784
        %788 = vset.pattern.permute.xlu0 0
        %789 = vperm.xlu0 %788, %v573
        %v790 = vpop.permute.xlu0 %789
        %793 = vset.pattern.permute.xlu0 0
        %794 = vperm.xlu0 %793, %v574
        %v795 = vpop.permute.xlu0 %794
        %798 = vset.pattern.permute.xlu0 0
        %799 = vperm.xlu0 %798, %v575
        %v800 = vpop.permute.xlu0 %799
        %803 = vset.pattern.permute.xlu0 0
        %804 = vperm.xlu0 %803, %v576
        %v805 = vpop.permute.xlu0 %804
        %808 = vset.pattern.permute.xlu0 0
        %809 = vperm.xlu0 %808, %v577
        %v810 = vpop.permute.xlu0 %809
        %813 = vset.pattern.permute.xlu0 0
        %814 = vperm.xlu0 %813, %v578
        %v815 = vpop.permute.xlu0 %814
        %818 = vset.pattern.permute.xlu0 0
        %819 = vperm.xlu0 %818, %v579
        %v820 = vpop.permute.xlu0 %819
        %823 = vset.pattern.permute.xlu0 0
        %824 = vperm.xlu0 %823, %v580
        %v825 = vpop.permute.xlu0 %824
        %828 = vset.pattern.permute.xlu0 0
        %829 = vperm.xlu0 %828, %v581
        %v830 = vpop.permute.xlu0 %829
        %833 = vset.pattern.permute.xlu0 0
        %834 = vperm.xlu0 %833, %v582
        %v835 = vpop.permute.xlu0 %834
        %838 = vset.pattern.permute.xlu0 0
        %839 = vperm.xlu0 %838, %v583
        %v840 = vpop.permute.xlu0 %839
        %843 = vset.pattern.permute.xlu0 0
        %844 = vperm.xlu0 %843, %v584
        %v845 = vpop.permute.xlu0 %844
        %848 = vset.pattern.permute.xlu0 0
        %849 = vperm.xlu0 %848, %v585
        %v850 = vpop.permute.xlu0 %849
        %853 = vset.pattern.permute.xlu0 0
        %854 = vperm.xlu0 %853, %v586
        %v855 = vpop.permute.xlu0 %854
        %858 = vset.pattern.permute.xlu0 0
        %859 = vperm.xlu0 %858, %v587
        %v860 = vpop.permute.xlu0 %859
        %863 = vset.pattern.permute.xlu0 0
        %864 = vperm.xlu0 %863, %v588
        %v865 = vpop.permute.xlu0 %864
        %868 = vset.pattern.permute.xlu0 0
        %869 = vperm.xlu0 %868, %v589
        %v870 = vpop.permute.xlu0 %869
        %873 = vset.pattern.permute.xlu0 0
        %874 = vperm.xlu0 %873, %v590
        %v875 = vpop.permute.xlu0 %874
        %878 = vset.pattern.permute.xlu0 0
        %879 = vperm.xlu0 %878, %v591
        %v880 = vpop.permute.xlu0 %879
        %883 = vset.pattern.permute.xlu0 0
        %884 = vperm.xlu0 %883, %v592
        %v885 = vpop.permute.xlu0 %884
        %888 = vset.pattern.permute.xlu0 0
        %889 = vperm.xlu0 %888, %v593
        %v890 = vpop.permute.xlu0 %889
        %893 = vset.pattern.permute.xlu0 0
        %894 = vperm.xlu0 %893, %v594
        %v895 = vpop.permute.xlu0 %894
        %898 = vset.pattern.permute.xlu0 0
        %899 = vperm.xlu0 %898, %v595
        %v900 = vpop.permute.xlu0 %899
        %903 = vset.pattern.permute.xlu0 0
        %904 = vperm.xlu0 %903, %v596
        %v905 = vpop.permute.xlu0 %904
        %908 = vset.pattern.permute.xlu0 0
        %909 = vperm.xlu0 %908, %v597
        %v910 = vpop.permute.xlu0 %909
        %913 = vset.pattern.permute.xlu0 0
        %914 = vperm.xlu0 %913, %v598
        %v915 = vpop.permute.xlu0 %914
        %918 = vset.pattern.permute.xlu0 0
        %919 = vperm.xlu0 %918, %v599
        %v920 = vpop.permute.xlu0 %919
        %923 = vset.pattern.permute.xlu0 0
        %924 = vperm.xlu0 %923, %v600
        %v925 = vpop.permute.xlu0 %924
        %928 = vset.pattern.permute.xlu0 0
        %929 = vperm.xlu0 %928, %v601
        %v930 = vpop.permute.xlu0 %929
        %933 = vset.pattern.permute.xlu0 0
        %934 = vperm.xlu0 %933, %v602
        %v935 = vpop.permute.xlu0 %934
        %938 = vset.pattern.permute.xlu0 0
        %939 = vperm.xlu0 %938, %v603
        %v940 = vpop.permute.xlu0 %939
        %943 = vset.pattern.permute.xlu0 0
        %944 = vperm.xlu0 %943, %v604
        %v945 = vpop.permute.xlu0 %944
        %948 = vset.pattern.permute.xlu0 0
        %949 = vperm.xlu0 %948, %v605
        %v950 = vpop.permute.xlu0 %949
        %953 = vset.pattern.permute.xlu0 0
        %954 = vperm.xlu0 %953, %v606
        %v955 = vpop.permute.xlu0 %954
        %958 = vset.pattern.permute.xlu0 0
        %959 = vperm.xlu0 %958, %v607
        %v960 = vpop.permute.xlu0 %959
        %963 = vset.pattern.permute.xlu0 0
        %964 = vperm.xlu0 %963, %v608
        %v965 = vpop.permute.xlu0 %964
        %968 = vset.pattern.permute.xlu0 0
        %969 = vperm.xlu0 %968, %v609
        %v970 = vpop.permute.xlu0 %969
        %973 = vset.pattern.permute.xlu0 0
        %974 = vperm.xlu0 %973, %v610
        %v975 = vpop.permute.xlu0 %974
        %978 = vset.pattern.permute.xlu0 0
        %979 = vperm.xlu0 %978, %v611
        %v980 = vpop.permute.xlu0 %979
        %983 = vset.pattern.permute.xlu0 0
        %984 = vperm.xlu0 %983, %v612
        %v985 = vpop.permute.xlu0 %984
        %988 = vset.pattern.permute.xlu0 0
        %989 = vperm.xlu0 %988, %v613
        %v990 = vpop.permute.xlu0 %989
        %993 = vset.pattern.permute.xlu0 0
        %994 = vperm.xlu0 %993, %v614
        %v995 = vpop.permute.xlu0 %994
        %998 = vset.pattern.permute.xlu0 0
        %999 = vperm.xlu0 %998, %v615
        %v1000 = vpop.permute.xlu0 %999
        %1003 = vset.pattern.permute.xlu0 0
        %1004 = vperm.xlu0 %1003, %v616
        %v1005 = vpop.permute.xlu0 %1004
        %1008 = vset.pattern.permute.xlu0 0
        %1009 = vperm.xlu0 %1008, %v617
        %v1010 = vpop.permute.xlu0 %1009
        %1013 = vset.pattern.permute.xlu0 0
        %1014 = vperm.xlu0 %1013, %v618
        %v1015 = vpop.permute.xlu0 %1014
        %1018 = vset.pattern.permute.xlu0 0
        %1019 = vperm.xlu0 %1018, %v619
        %v1020 = vpop.permute.xlu0 %1019
        %1023 = vset.pattern.permute.xlu0 0
        %1024 = vperm.xlu0 %1023, %v620
        %v1025 = vpop.permute.xlu0 %1024
        %1028 = vset.pattern.permute.xlu0 0
        %1029 = vperm.xlu0 %1028, %v621
        %v1030 = vpop.permute.xlu0 %1029
        %1033 = vset.pattern.permute.xlu0 0
        %1034 = vperm.xlu0 %1033, %v622
        %v1035 = vpop.permute.xlu0 %1034
        %1038 = vset.pattern.permute.xlu0 0
        %1039 = vperm.xlu0 %1038, %v623
        %v1040 = vpop.permute.xlu0 %1039
        %1043 = vset.pattern.permute.xlu0 0
        %1044 = vperm.xlu0 %1043, %v624
        %v1045 = vpop.permute.xlu0 %1044
        %1048 = vset.pattern.permute.xlu0 0
        %1049 = vperm.xlu0 %1048, %v625
        %v1050 = vpop.permute.xlu0 %1049
        %1053 = vset.pattern.permute.xlu0 0
        %1054 = vperm.xlu0 %1053, %v626
        %v1055 = vpop.permute.xlu0 %1054
        %1058 = vset.pattern.permute.xlu0 0
        %1059 = vperm.xlu0 %1058, %v627
        %v1060 = vpop.permute.xlu0 %1059
        %1063 = vset.pattern.permute.xlu0 0
        %1064 = vperm.xlu0 %1063, %v628
        %v1065 = vpop.permute.xlu0 %1064
        %1068 = vset.pattern.permute.xlu0 0
        %1069 = vperm.xlu0 %1068, %v629
        %v1070 = vpop.permute.xlu0 %1069
        %1073 = vset.pattern.permute.xlu0 0
        %1074 = vperm.xlu0 %1073, %v630
        %v1075 = vpop.permute.xlu0 %1074
        %1078 = vset.pattern.permute.xlu0 0
        %1079 = vperm.xlu0 %1078, %v631
        %v1080 = vpop.permute.xlu0 %1079
        %1083 = vset.pattern.permute.xlu0 0
        %1084 = vperm.xlu0 %1083, %v632
        %v1085 = vpop.permute.xlu0 %1084
        %1088 = vset.pattern.permute.xlu0 0
        %1089 = vperm.xlu0 %1088, %v633
        %v1090 = vpop.permute.xlu0 %1089
        %1093 = vset.pattern.permute.xlu0 0
        %1094 = vperm.xlu0 %1093, %v634
        %v1095 = vpop.permute.xlu0 %1094
        %1098 = vset.pattern.permute.xlu0 0
        %1099 = vperm.xlu0 %1098, %v635
        %v1100 = vpop.permute.xlu0 %1099
        %1103 = vset.pattern.permute.xlu0 0
        %1104 = vperm.xlu0 %1103, %v636
        %v1105 = vpop.permute.xlu0 %1104
        %1108 = vset.pattern.permute.xlu0 0
        %1109 = vperm.xlu0 %1108, %v637
        %v1110 = vpop.permute.xlu0 %1109
        %1113 = vset.pattern.permute.xlu0 0
        %1114 = vperm.xlu0 %1113, %v638
        %v1115 = vpop.permute.xlu0 %1114
        %1118 = vset.pattern.permute.xlu0 0
        %1119 = vperm.xlu0 %1118, %v639
        %v1120 = vpop.permute.xlu0 %1119
        %1123 = vset.pattern.permute.xlu0 0
        %1124 = vperm.xlu0 %1123, %v640
        %v1125 = vpop.permute.xlu0 %1124
        %1128 = vset.pattern.permute.xlu0 0
        %1129 = vperm.xlu0 %1128, %v641
        %v1130 = vpop.permute.xlu0 %1129
        %1133 = vset.pattern.permute.xlu0 0
        %1134 = vperm.xlu0 %1133, %v642
        %v1135 = vpop.permute.xlu0 %1134
        %1138 = vset.pattern.permute.xlu0 0
        %1139 = vperm.xlu0 %1138, %v643
        %v1140 = vpop.permute.xlu0 %1139
        %1143 = vset.pattern.permute.xlu0 0
        %1144 = vperm.xlu0 %1143, %v644
        %v1145 = vpop.permute.xlu0 %1144
        %1148 = vset.pattern.permute.xlu0 0
        %1149 = vperm.xlu0 %1148, %v645
        %v1150 = vpop.permute.xlu0 %1149
        %1153 = vset.pattern.permute.xlu0 0
        %1154 = vperm.xlu0 %1153, %v646
        %v1155 = vpop.permute.xlu0 %1154
        %1158 = vset.pattern.permute.xlu0 0
        %1159 = vperm.xlu0 %1158, %v647
        %v1160 = vpop.permute.xlu0 %1159
        %1163 = vset.pattern.permute.xlu0 0
        %1164 = vperm.xlu0 %1163, %v648
        %v1165 = vpop.permute.xlu0 %1164
        %1168 = vset.pattern.permute.xlu0 0
        %1169 = vperm.xlu0 %1168, %v649
        %v1170 = vpop.permute.xlu0 %1169
        %1173 = vset.pattern.permute.xlu0 0
        %1174 = vperm.xlu0 %1173, %v650
        %v1175 = vpop.permute.xlu0 %1174
        %1178 = vset.pattern.permute.xlu0 0
        %1179 = vperm.xlu0 %1178, %v651
        %v1180 = vpop.permute.xlu0 %1179
        %1183 = vset.pattern.permute.xlu0 0
        %1184 = vperm.xlu0 %1183, %v652
        %v1185 = vpop.permute.xlu0 %1184
        %1188 = vset.pattern.permute.xlu0 0
        %1189 = vperm.xlu0 %1188, %v653
        %v1190 = vpop.permute.xlu0 %1189
        %1193 = vset.pattern.permute.xlu0 0
        %1194 = vperm.xlu0 %1193, %v654
        %v1195 = vpop.permute.xlu0 %1194
        %1198 = vset.pattern.permute.xlu0 0
        %1199 = vperm.xlu0 %1198, %v655
        %v1200 = vpop.permute.xlu0 %1199
        %1203 = vset.pattern.permute.xlu0 0
        %1204 = vperm.xlu0 %1203, %v656
        %v1205 = vpop.permute.xlu0 %1204
        %1208 = vset.pattern.permute.xlu0 0
        %1209 = vperm.xlu0 %1208, %v657
        %v1210 = vpop.permute.xlu0 %1209
        %1213 = vset.pattern.permute.xlu0 0
        %1214 = vperm.xlu0 %1213, %v658
        %v1215 = vpop.permute.xlu0 %1214
        %1218 = vset.pattern.permute.xlu0 0
        %1219 = vperm.xlu0 %1218, %v659
        %v1220 = vpop.permute.xlu0 %1219
        %1223 = vset.pattern.permute.xlu0 0
        %1224 = vperm.xlu0 %1223, %v660
        %v1225 = vpop.permute.xlu0 %1224
        %1228 = vset.pattern.permute.xlu0 0
        %1229 = vperm.xlu0 %1228, %v661
        %v1230 = vpop.permute.xlu0 %1229
        %1233 = vset.pattern.permute.xlu0 0
        %1234 = vperm.xlu0 %1233, %v662
        %v1235 = vpop.permute.xlu0 %1234
        %1238 = vset.pattern.permute.xlu0 0
        %1239 = vperm.xlu0 %1238, %v663
        %v1240 = vpop.permute.xlu0 %1239
        %1243 = vset.pattern.permute.xlu0 0
        %1244 = vperm.xlu0 %1243, %v664
        %v1245 = vpop.permute.xlu0 %1244
        %1248 = vset.pattern.permute.xlu0 0
        %1249 = vperm.xlu0 %1248, %v665
        %v1250 = vpop.permute.xlu0 %1249
        %1253 = vset.pattern.permute.xlu0 0
        %1254 = vperm.xlu0 %1253, %v666
        %v1255 = vpop.permute.xlu0 %1254
        %1258 = vset.pattern.permute.xlu0 0
        %1259 = vperm.xlu0 %1258, %v667
        %v1260 = vpop.permute.xlu0 %1259
        %1263 = vset.pattern.permute.xlu0 0
        %1264 = vperm.xlu0 %1263, %v668
        %v1265 = vpop.permute.xlu0 %1264
        %1268 = vset.pattern.permute.xlu0 0
        %1269 = vperm.xlu0 %1268, %v669
        %v1270 = vpop.permute.xlu0 %1269
        %1273 = vset.pattern.permute.xlu0 0
        %1274 = vperm.xlu0 %1273, %v670
        %v1275 = vpop.permute.xlu0 %1274
        %1278 = vset.pattern.permute.xlu0 0
        %1279 = vperm.xlu0 %1278, %v671
        %v1280 = vpop.permute.xlu0 %1279
        %1283 = vset.pattern.permute.xlu0 0
        %1284 = vperm.xlu0 %1283, %v672
        %v1285 = vpop.permute.xlu0 %1284
        %1288 = vset.pattern.permute.xlu0 0
        %1289 = vperm.xlu0 %1288, %v673
        %v1290 = vpop.permute.xlu0 %1289
        %1293 = vset.pattern.permute.xlu0 0
        %1294 = vperm.xlu0 %1293, %v674
        %v1295 = vpop.permute.xlu0 %1294
        %1298 = vset.pattern.permute.xlu0 0
        %1299 = vperm.xlu0 %1298, %v675
        %v1300 = vpop.permute.xlu0 %1299
        %1303 = vset.pattern.permute.xlu0 0
        %1304 = vperm.xlu0 %1303, %v676
        %v1305 = vpop.permute.xlu0 %1304
        %1308 = vset.pattern.permute.xlu0 0
        %1309 = vperm.xlu0 %1308, %v677
        %v1310 = vpop.permute.xlu0 %1309
        %1313 = vset.pattern.permute.xlu0 0
        %1314 = vperm.xlu0 %1313, %v678
        %v1315 = vpop.permute.xlu0 %1314
        %1318 = vset.pattern.permute.xlu0 0
        %1319 = vperm.xlu0 %1318, %v679
        %v1320 = vpop.permute.xlu0 %1319
        %v1322 = vperm.slane %v681, 0
        %v1323 = vmul.f32 %v685, %v1322
        %v1324 = vmul.f32 %v690, %v1322
        %v1325 = vmul.f32 %v695, %v1322
        %v1326 = vmul.f32 %v700, %v1322
        %v1327 = vmul.f32 %v705, %v1322
        %v1328 = vmul.f32 %v710, %v1322
        %v1329 = vmul.f32 %v715, %v1322
        %v1330 = vmul.f32 %v720, %v1322
        %v1331 = vmul.f32 %v725, %v1322
        %v1332 = vmul.f32 %v730, %v1322
        %v1333 = vmul.f32 %v735, %v1322
        %v1334 = vmul.f32 %v740, %v1322
        %v1335 = vmul.f32 %v745, %v1322
        %v1336 = vmul.f32 %v750, %v1322
        %v1337 = vmul.f32 %v755, %v1322
        %v1338 = vmul.f32 %v760, %v1322
        %v1339 = vmul.f32 %v765, %v1322
        %v1340 = vmul.f32 %v770, %v1322
        %v1341 = vmul.f32 %v775, %v1322
        %v1342 = vmul.f32 %v780, %v1322
        %v1343 = vmul.f32 %v785, %v1322
        %v1344 = vmul.f32 %v790, %v1322
        %v1345 = vmul.f32 %v795, %v1322
        %v1346 = vmul.f32 %v800, %v1322
        %v1347 = vmul.f32 %v805, %v1322
        %v1348 = vmul.f32 %v810, %v1322
        %v1349 = vmul.f32 %v815, %v1322
        %v1350 = vmul.f32 %v820, %v1322
        %v1351 = vmul.f32 %v825, %v1322
        %v1352 = vmul.f32 %v830, %v1322
        %v1353 = vmul.f32 %v835, %v1322
        %v1354 = vmul.f32 %v840, %v1322
        %v1355 = vmul.f32 %v845, %v1322
        %v1356 = vmul.f32 %v850, %v1322
        %v1357 = vmul.f32 %v855, %v1322
        %v1358 = vmul.f32 %v860, %v1322
        %v1359 = vmul.f32 %v865, %v1322
        %v1360 = vmul.f32 %v870, %v1322
        %v1361 = vmul.f32 %v875, %v1322
        %v1362 = vmul.f32 %v880, %v1322
        %v1363 = vmul.f32 %v885, %v1322
        %v1364 = vmul.f32 %v890, %v1322
        %v1365 = vmul.f32 %v895, %v1322
        %v1366 = vmul.f32 %v900, %v1322
        %v1367 = vmul.f32 %v905, %v1322
        %v1368 = vmul.f32 %v910, %v1322
        %v1369 = vmul.f32 %v915, %v1322
        %v1370 = vmul.f32 %v920, %v1322
        %v1371 = vmul.f32 %v925, %v1322
        %v1372 = vmul.f32 %v930, %v1322
        %v1373 = vmul.f32 %v935, %v1322
        %v1374 = vmul.f32 %v940, %v1322
        %v1375 = vmul.f32 %v945, %v1322
        %v1376 = vmul.f32 %v950, %v1322
        %v1377 = vmul.f32 %v955, %v1322
        %v1378 = vmul.f32 %v960, %v1322
        %v1379 = vmul.f32 %v965, %v1322
        %v1380 = vmul.f32 %v970, %v1322
        %v1381 = vmul.f32 %v975, %v1322
        %v1382 = vmul.f32 %v980, %v1322
        %v1383 = vmul.f32 %v985, %v1322
        %v1384 = vmul.f32 %v990, %v1322
        %v1385 = vmul.f32 %v995, %v1322
        %v1386 = vmul.f32 %v1000, %v1322
        %v1387 = vmul.f32 %v1005, %v1322
        %v1388 = vmul.f32 %v1010, %v1322
        %v1389 = vmul.f32 %v1015, %v1322
        %v1390 = vmul.f32 %v1020, %v1322
        %v1391 = vmul.f32 %v1025, %v1322
        %v1392 = vmul.f32 %v1030, %v1322
        %v1393 = vmul.f32 %v1035, %v1322
        %v1394 = vmul.f32 %v1040, %v1322
        %v1395 = vmul.f32 %v1045, %v1322
        %v1396 = vmul.f32 %v1050, %v1322
        %v1397 = vmul.f32 %v1055, %v1322
        %v1398 = vmul.f32 %v1060, %v1322
        %v1399 = vmul.f32 %v1065, %v1322
        %v1400 = vmul.f32 %v1070, %v1322
        %v1401 = vmul.f32 %v1075, %v1322
        %v1402 = vmul.f32 %v1080, %v1322
        %v1403 = vmul.f32 %v1085, %v1322
        %v1404 = vmul.f32 %v1090, %v1322
        %v1405 = vmul.f32 %v1095, %v1322
        %v1406 = vmul.f32 %v1100, %v1322
        %v1407 = vmul.f32 %v1105, %v1322
        %v1408 = vmul.f32 %v1110, %v1322
        %v1409 = vmul.f32 %v1115, %v1322
        %v1410 = vmul.f32 %v1120, %v1322
        %v1411 = vmul.f32 %v1125, %v1322
        %v1412 = vmul.f32 %v1130, %v1322
        %v1413 = vmul.f32 %v1135, %v1322
        %v1414 = vmul.f32 %v1140, %v1322
        %v1415 = vmul.f32 %v1145, %v1322
        %v1416 = vmul.f32 %v1150, %v1322
        %v1417 = vmul.f32 %v1155, %v1322
        %v1418 = vmul.f32 %v1160, %v1322
        %v1419 = vmul.f32 %v1165, %v1322
        %v1420 = vmul.f32 %v1170, %v1322
        %v1421 = vmul.f32 %v1175, %v1322
        %v1422 = vmul.f32 %v1180, %v1322
        %v1423 = vmul.f32 %v1185, %v1322
        %v1424 = vmul.f32 %v1190, %v1322
        %v1425 = vmul.f32 %v1195, %v1322
        %v1426 = vmul.f32 %v1200, %v1322
        %v1427 = vmul.f32 %v1205, %v1322
        %v1428 = vmul.f32 %v1210, %v1322
        %v1429 = vmul.f32 %v1215, %v1322
        %v1430 = vmul.f32 %v1220, %v1322
        %v1431 = vmul.f32 %v1225, %v1322
        %v1432 = vmul.f32 %v1230, %v1322
        %v1433 = vmul.f32 %v1235, %v1322
        %v1434 = vmul.f32 %v1240, %v1322
        %v1435 = vmul.f32 %v1245, %v1322
        %v1436 = vmul.f32 %v1250, %v1322
        %v1437 = vmul.f32 %v1255, %v1322
        %v1438 = vmul.f32 %v1260, %v1322
        %v1439 = vmul.f32 %v1265, %v1322
        %v1440 = vmul.f32 %v1270, %v1322
        %v1441 = vmul.f32 %v1275, %v1322
        %v1442 = vmul.f32 %v1280, %v1322
        %v1443 = vmul.f32 %v1285, %v1322
        %v1444 = vmul.f32 %v1290, %v1322
        %v1445 = vmul.f32 %v1295, %v1322
        %v1446 = vmul.f32 %v1300, %v1322
        %v1447 = vmul.f32 %v1305, %v1322
        %v1448 = vmul.f32 %v1310, %v1322
        %v1449 = vmul.f32 %v1315, %v1322
        %v1450 = vmul.f32 %v1320, %v1322
        %v1451 = vld [vmem:[#allocation2 + $0x1] sm:$0xff]
        %v1452 = vld [vmem:[#allocation2 + $0x9] sm:$0xff]
        %v1453 = vld [vmem:[#allocation2 + $0x11] sm:$0xff]
        %v1454 = vld [vmem:[#allocation2 + $0x19] sm:$0xff]
        %v1455 = vld [vmem:[#allocation2 + $0x29] sm:$0xff]
        %v1456 = vld [vmem:[#allocation2 + $0x31] sm:$0xff]
        %v1457 = vld [vmem:[#allocation2 + $0x39] sm:$0xff]
        %v1458 = vld [vmem:[#allocation2 + $0x41] sm:$0xff]
        %v1459 = vld [vmem:[#allocation2 + $0x51] sm:$0xff]
        %v1460 = vld [vmem:[#allocation2 + $0x59] sm:$0xff]
        %v1461 = vld [vmem:[#allocation2 + $0x61] sm:$0xff]
        %v1462 = vld [vmem:[#allocation2 + $0x69] sm:$0xff]
        %v1463 = vld [vmem:[#allocation2 + $0x79] sm:$0xff]
        %v1464 = vld [vmem:[#allocation2 + $0x81] sm:$0xff]
        %v1465 = vld [vmem:[#allocation2 + $0x89] sm:$0xff]
        %v1466 = vld [vmem:[#allocation2 + $0x91] sm:$0xff]
        %v1467 = vld [vmem:[#allocation2 + $0xa1] sm:$0xff]
        %v1468 = vld [vmem:[#allocation2 + $0xa9] sm:$0xff]
        %v1469 = vld [vmem:[#allocation2 + $0xb1] sm:$0xff]
        %v1470 = vld [vmem:[#allocation2 + $0xb9] sm:$0xff]
        %v1471 = vld [vmem:[#allocation2 + $0xc9] sm:$0xff]
        %v1472 = vld [vmem:[#allocation2 + $0xd1] sm:$0xff]
        %v1473 = vld [vmem:[#allocation2 + $0xd9] sm:$0xff]
        %v1474 = vld [vmem:[#allocation2 + $0xe1] sm:$0xff]
        %v1475 = vld [vmem:[#allocation2 + $0xf1] sm:$0xff]
        %v1476 = vld [vmem:[#allocation2 + $0xf9] sm:$0xff]
        %v1477 = vld [vmem:[#allocation2 + $0x101] sm:$0xff]
        %v1478 = vld [vmem:[#allocation2 + $0x109] sm:$0xff]
        %v1479 = vld [vmem:[#allocation2 + $0x119] sm:$0xff]
        %v1480 = vld [vmem:[#allocation2 + $0x121] sm:$0xff]
        %v1481 = vld [vmem:[#allocation2 + $0x129] sm:$0xff]
        %v1482 = vld [vmem:[#allocation2 + $0x131] sm:$0xff]
        %v1483 = vld [vmem:[#allocation2 + $0x141] sm:$0xff]
        %v1484 = vld [vmem:[#allocation2 + $0x149] sm:$0xff]
        %v1485 = vld [vmem:[#allocation2 + $0x151] sm:$0xff]
        %v1486 = vld [vmem:[#allocation2 + $0x159] sm:$0xff]
        %v1487 = vld [vmem:[#allocation2 + $0x169] sm:$0xff]
        %v1488 = vld [vmem:[#allocation2 + $0x171] sm:$0xff]
        %v1489 = vld [vmem:[#allocation2 + $0x179] sm:$0xff]
        %v1490 = vld [vmem:[#allocation2 + $0x181] sm:$0xff]
        %v1491 = vld [vmem:[#allocation2 + $0x191] sm:$0xff]
        %v1492 = vld [vmem:[#allocation2 + $0x199] sm:$0xff]
        %v1493 = vld [vmem:[#allocation2 + $0x1a1] sm:$0xff]
        %v1494 = vld [vmem:[#allocation2 + $0x1a9] sm:$0xff]
        %v1495 = vld [vmem:[#allocation2 + $0x1b9] sm:$0xff]
        %v1496 = vld [vmem:[#allocation2 + $0x1c1] sm:$0xff]
        %v1497 = vld [vmem:[#allocation2 + $0x1c9] sm:$0xff]
        %v1498 = vld [vmem:[#allocation2 + $0x1d1] sm:$0xff]
        %v1499 = vld [vmem:[#allocation2 + $0x1e1] sm:$0xff]
        %v1500 = vld [vmem:[#allocation2 + $0x1e9] sm:$0xff]
        %v1501 = vld [vmem:[#allocation2 + $0x1f1] sm:$0xff]
        %v1502 = vld [vmem:[#allocation2 + $0x1f9] sm:$0xff]
        %v1503 = vld [vmem:[#allocation2 + $0x209] sm:$0xff]
        %v1504 = vld [vmem:[#allocation2 + $0x211] sm:$0xff]
        %v1505 = vld [vmem:[#allocation2 + $0x219] sm:$0xff]
        %v1506 = vld [vmem:[#allocation2 + $0x221] sm:$0xff]
        %v1507 = vld [vmem:[#allocation2 + $0x231] sm:$0xff]
        %v1508 = vld [vmem:[#allocation2 + $0x239] sm:$0xff]
        %v1509 = vld [vmem:[#allocation2 + $0x241] sm:$0xff]
        %v1510 = vld [vmem:[#allocation2 + $0x249] sm:$0xff]
        %v1511 = vld [vmem:[#allocation2 + $0x259] sm:$0xff]
        %v1512 = vld [vmem:[#allocation2 + $0x261] sm:$0xff]
        %v1513 = vld [vmem:[#allocation2 + $0x269] sm:$0xff]
        %v1514 = vld [vmem:[#allocation2 + $0x271] sm:$0xff]
        %v1515 = vld [vmem:[#allocation2 + $0x281] sm:$0xff]
        %v1516 = vld [vmem:[#allocation2 + $0x289] sm:$0xff]
        %v1517 = vld [vmem:[#allocation2 + $0x291] sm:$0xff]
        %v1518 = vld [vmem:[#allocation2 + $0x299] sm:$0xff]
        %v1519 = vld [vmem:[#allocation2 + $0x2a9] sm:$0xff]
        %v1520 = vld [vmem:[#allocation2 + $0x2b1] sm:$0xff]
        %v1521 = vld [vmem:[#allocation2 + $0x2b9] sm:$0xff]
        %v1522 = vld [vmem:[#allocation2 + $0x2c1] sm:$0xff]
        %v1523 = vld [vmem:[#allocation2 + $0x2d1] sm:$0xff]
        %v1524 = vld [vmem:[#allocation2 + $0x2d9] sm:$0xff]
        %v1525 = vld [vmem:[#allocation2 + $0x2e1] sm:$0xff]
        %v1526 = vld [vmem:[#allocation2 + $0x2e9] sm:$0xff]
        %v1527 = vld [vmem:[#allocation2 + $0x2f9] sm:$0xff]
        %v1528 = vld [vmem:[#allocation2 + $0x301] sm:$0xff]
        %v1529 = vld [vmem:[#allocation2 + $0x309] sm:$0xff]
        %v1530 = vld [vmem:[#allocation2 + $0x311] sm:$0xff]
        %v1531 = vld [vmem:[#allocation2 + $0x321] sm:$0xff]
        %v1532 = vld [vmem:[#allocation2 + $0x329] sm:$0xff]
        %v1533 = vld [vmem:[#allocation2 + $0x331] sm:$0xff]
        %v1534 = vld [vmem:[#allocation2 + $0x339] sm:$0xff]
        %v1535 = vld [vmem:[#allocation2 + $0x349] sm:$0xff]
        %v1536 = vld [vmem:[#allocation2 + $0x351] sm:$0xff]
        %v1537 = vld [vmem:[#allocation2 + $0x359] sm:$0xff]
        %v1538 = vld [vmem:[#allocation2 + $0x361] sm:$0xff]
        %v1539 = vld [vmem:[#allocation2 + $0x371] sm:$0xff]
        %v1540 = vld [vmem:[#allocation2 + $0x379] sm:$0xff]
        %v1541 = vld [vmem:[#allocation2 + $0x381] sm:$0xff]
        %v1542 = vld [vmem:[#allocation2 + $0x389] sm:$0xff]
        %v1543 = vld [vmem:[#allocation2 + $0x399] sm:$0xff]
        %v1544 = vld [vmem:[#allocation2 + $0x3a1] sm:$0xff]
        %v1545 = vld [vmem:[#allocation2 + $0x3a9] sm:$0xff]
        %v1546 = vld [vmem:[#allocation2 + $0x3b1] sm:$0xff]
        %v1547 = vld [vmem:[#allocation2 + $0x3c1] sm:$0xff]
        %v1548 = vld [vmem:[#allocation2 + $0x3c9] sm:$0xff]
        %v1549 = vld [vmem:[#allocation2 + $0x3d1] sm:$0xff]
        %v1550 = vld [vmem:[#allocation2 + $0x3d9] sm:$0xff]
        %v1551 = vld [vmem:[#allocation2 + $0x3e9] sm:$0xff]
        %v1552 = vld [vmem:[#allocation2 + $0x3f1] sm:$0xff]
        %v1553 = vld [vmem:[#allocation2 + $0x3f9] sm:$0xff]
        %v1554 = vld [vmem:[#allocation2 + $0x401] sm:$0xff]
        %v1555 = vld [vmem:[#allocation2 + $0x411] sm:$0xff]
        %v1556 = vld [vmem:[#allocation2 + $0x419] sm:$0xff]
        %v1557 = vld [vmem:[#allocation2 + $0x421] sm:$0xff]
        %v1558 = vld [vmem:[#allocation2 + $0x429] sm:$0xff]
        %v1559 = vld [vmem:[#allocation2 + $0x439] sm:$0xff]
        %v1560 = vld [vmem:[#allocation2 + $0x441] sm:$0xff]
        %v1561 = vld [vmem:[#allocation2 + $0x449] sm:$0xff]
        %v1562 = vld [vmem:[#allocation2 + $0x451] sm:$0xff]
        %v1563 = vld [vmem:[#allocation2 + $0x461] sm:$0xff]
        %v1564 = vld [vmem:[#allocation2 + $0x469] sm:$0xff]
        %v1565 = vld [vmem:[#allocation2 + $0x471] sm:$0xff]
        %v1566 = vld [vmem:[#allocation2 + $0x479] sm:$0xff]
        %v1567 = vld [vmem:[#allocation2 + $0x489] sm:$0xff]
        %v1568 = vld [vmem:[#allocation2 + $0x491] sm:$0xff]
        %v1569 = vld [vmem:[#allocation2 + $0x499] sm:$0xff]
        %v1570 = vld [vmem:[#allocation2 + $0x4a1] sm:$0xff]
        %v1571 = vld [vmem:[#allocation2 + $0x4b1] sm:$0xff]
        %v1572 = vld [vmem:[#allocation2 + $0x4b9] sm:$0xff]
        %v1573 = vld [vmem:[#allocation2 + $0x4c1] sm:$0xff]
        %v1574 = vld [vmem:[#allocation2 + $0x4c9] sm:$0xff]
        %v1575 = vld [vmem:[#allocation2 + $0x4d9] sm:$0xff]
        %v1576 = vld [vmem:[#allocation2 + $0x4e1] sm:$0xff]
        %v1577 = vld [vmem:[#allocation2 + $0x4e9] sm:$0xff]
        %v1578 = vld [vmem:[#allocation2 + $0x4f1] sm:$0xff]
        %s1579 = scalar_lea.vmem %s1, 1
        %v1580 = vld [vmem:[%s1579] sm:$0x1]
        %v1581 = vunpack.c.l.bf16 %v1580
        %1583 = vset.pattern.permute.xlu0 0
        %1584 = vperm.xlu0 %1583, %v1451
        %v1585 = vpop.permute.xlu0 %1584
        %1588 = vset.pattern.permute.xlu0 0
        %1589 = vperm.xlu0 %1588, %v1452
        %v1590 = vpop.permute.xlu0 %1589
        %1593 = vset.pattern.permute.xlu0 0
        %1594 = vperm.xlu0 %1593, %v1453
        %v1595 = vpop.permute.xlu0 %1594
        %1598 = vset.pattern.permute.xlu0 0
        %1599 = vperm.xlu0 %1598, %v1454
        %v1600 = vpop.permute.xlu0 %1599
        %1603 = vset.pattern.permute.xlu0 0
        %1604 = vperm.xlu0 %1603, %v1455
        %v1605 = vpop.permute.xlu0 %1604
        %1608 = vset.pattern.permute.xlu0 0
        %1609 = vperm.xlu0 %1608, %v1456
        %v1610 = vpop.permute.xlu0 %1609
        %1613 = vset.pattern.permute.xlu0 0
        %1614 = vperm.xlu0 %1613, %v1457
        %v1615 = vpop.permute.xlu0 %1614
        %1618 = vset.pattern.permute.xlu0 0
        %1619 = vperm.xlu0 %1618, %v1458
        %v1620 = vpop.permute.xlu0 %1619
        %1623 = vset.pattern.permute.xlu0 0
        %1624 = vperm.xlu0 %1623, %v1459
        %v1625 = vpop.permute.xlu0 %1624
        %1628 = vset.pattern.permute.xlu0 0
        %1629 = vperm.xlu0 %1628, %v1460
        %v1630 = vpop.permute.xlu0 %1629
        %1633 = vset.pattern.permute.xlu0 0
        %1634 = vperm.xlu0 %1633, %v1461
        %v1635 = vpop.permute.xlu0 %1634
        %1638 = vset.pattern.permute.xlu0 0
        %1639 = vperm.xlu0 %1638, %v1462
        %v1640 = vpop.permute.xlu0 %1639
        %1643 = vset.pattern.permute.xlu0 0
        %1644 = vperm.xlu0 %1643, %v1463
        %v1645 = vpop.permute.xlu0 %1644
        %1648 = vset.pattern.permute.xlu0 0
        %1649 = vperm.xlu0 %1648, %v1464
        %v1650 = vpop.permute.xlu0 %1649
        %1653 = vset.pattern.permute.xlu0 0
        %1654 = vperm.xlu0 %1653, %v1465
        %v1655 = vpop.permute.xlu0 %1654
        %1658 = vset.pattern.permute.xlu0 0
        %1659 = vperm.xlu0 %1658, %v1466
        %v1660 = vpop.permute.xlu0 %1659
        %1663 = vset.pattern.permute.xlu0 0
        %1664 = vperm.xlu0 %1663, %v1467
        %v1665 = vpop.permute.xlu0 %1664
        %1668 = vset.pattern.permute.xlu0 0
        %1669 = vperm.xlu0 %1668, %v1468
        %v1670 = vpop.permute.xlu0 %1669
        %1673 = vset.pattern.permute.xlu0 0
        %1674 = vperm.xlu0 %1673, %v1469
        %v1675 = vpop.permute.xlu0 %1674
        %1678 = vset.pattern.permute.xlu0 0
        %1679 = vperm.xlu0 %1678, %v1470
        %v1680 = vpop.permute.xlu0 %1679
        %1683 = vset.pattern.permute.xlu0 0
        %1684 = vperm.xlu0 %1683, %v1471
        %v1685 = vpop.permute.xlu0 %1684
        %1688 = vset.pattern.permute.xlu0 0
        %1689 = vperm.xlu0 %1688, %v1472
        %v1690 = vpop.permute.xlu0 %1689
        %1693 = vset.pattern.permute.xlu0 0
        %1694 = vperm.xlu0 %1693, %v1473
        %v1695 = vpop.permute.xlu0 %1694
        %1698 = vset.pattern.permute.xlu0 0
        %1699 = vperm.xlu0 %1698, %v1474
        %v1700 = vpop.permute.xlu0 %1699
        %1703 = vset.pattern.permute.xlu0 0
        %1704 = vperm.xlu0 %1703, %v1475
        %v1705 = vpop.permute.xlu0 %1704
        %1708 = vset.pattern.permute.xlu0 0
        %1709 = vperm.xlu0 %1708, %v1476
        %v1710 = vpop.permute.xlu0 %1709
        %1713 = vset.pattern.permute.xlu0 0
        %1714 = vperm.xlu0 %1713, %v1477
        %v1715 = vpop.permute.xlu0 %1714
        %1718 = vset.pattern.permute.xlu0 0
        %1719 = vperm.xlu0 %1718, %v1478
        %v1720 = vpop.permute.xlu0 %1719
        %1723 = vset.pattern.permute.xlu0 0
        %1724 = vperm.xlu0 %1723, %v1479
        %v1725 = vpop.permute.xlu0 %1724
        %1728 = vset.pattern.permute.xlu0 0
        %1729 = vperm.xlu0 %1728, %v1480
        %v1730 = vpop.permute.xlu0 %1729
        %1733 = vset.pattern.permute.xlu0 0
        %1734 = vperm.xlu0 %1733, %v1481
        %v1735 = vpop.permute.xlu0 %1734
        %1738 = vset.pattern.permute.xlu0 0
        %1739 = vperm.xlu0 %1738, %v1482
        %v1740 = vpop.permute.xlu0 %1739
        %1743 = vset.pattern.permute.xlu0 0
        %1744 = vperm.xlu0 %1743, %v1483
        %v1745 = vpop.permute.xlu0 %1744
        %1748 = vset.pattern.permute.xlu0 0
        %1749 = vperm.xlu0 %1748, %v1484
        %v1750 = vpop.permute.xlu0 %1749
        %1753 = vset.pattern.permute.xlu0 0
        %1754 = vperm.xlu0 %1753, %v1485
        %v1755 = vpop.permute.xlu0 %1754
        %1758 = vset.pattern.permute.xlu0 0
        %1759 = vperm.xlu0 %1758, %v1486
        %v1760 = vpop.permute.xlu0 %1759
        %1763 = vset.pattern.permute.xlu0 0
        %1764 = vperm.xlu0 %1763, %v1487
        %v1765 = vpop.permute.xlu0 %1764
        %1768 = vset.pattern.permute.xlu0 0
        %1769 = vperm.xlu0 %1768, %v1488
        %v1770 = vpop.permute.xlu0 %1769
        %1773 = vset.pattern.permute.xlu0 0
        %1774 = vperm.xlu0 %1773, %v1489
        %v1775 = vpop.permute.xlu0 %1774
        %1778 = vset.pattern.permute.xlu0 0
        %1779 = vperm.xlu0 %1778, %v1490
        %v1780 = vpop.permute.xlu0 %1779
        %1783 = vset.pattern.permute.xlu0 0
        %1784 = vperm.xlu0 %1783, %v1491
        %v1785 = vpop.permute.xlu0 %1784
        %1788 = vset.pattern.permute.xlu0 0
        %1789 = vperm.xlu0 %1788, %v1492
        %v1790 = vpop.permute.xlu0 %1789
        %1793 = vset.pattern.permute.xlu0 0
        %1794 = vperm.xlu0 %1793, %v1493
        %v1795 = vpop.permute.xlu0 %1794
        %1798 = vset.pattern.permute.xlu0 0
        %1799 = vperm.xlu0 %1798, %v1494
        %v1800 = vpop.permute.xlu0 %1799
        %1803 = vset.pattern.permute.xlu0 0
        %1804 = vperm.xlu0 %1803, %v1495
        %v1805 = vpop.permute.xlu0 %1804
        %1808 = vset.pattern.permute.xlu0 0
        %1809 = vperm.xlu0 %1808, %v1496
        %v1810 = vpop.permute.xlu0 %1809
        %1813 = vset.pattern.permute.xlu0 0
        %1814 = vperm.xlu0 %1813, %v1497
        %v1815 = vpop.permute.xlu0 %1814
        %1818 = vset.pattern.permute.xlu0 0
        %1819 = vperm.xlu0 %1818, %v1498
        %v1820 = vpop.permute.xlu0 %1819
        %1823 = vset.pattern.permute.xlu0 0
        %1824 = vperm.xlu0 %1823, %v1499
        %v1825 = vpop.permute.xlu0 %1824
        %1828 = vset.pattern.permute.xlu0 0
        %1829 = vperm.xlu0 %1828, %v1500
        %v1830 = vpop.permute.xlu0 %1829
        %1833 = vset.pattern.permute.xlu0 0
        %1834 = vperm.xlu0 %1833, %v1501
        %v1835 = vpop.permute.xlu0 %1834
        %1838 = vset.pattern.permute.xlu0 0
        %1839 = vperm.xlu0 %1838, %v1502
        %v1840 = vpop.permute.xlu0 %1839
        %1843 = vset.pattern.permute.xlu0 0
        %1844 = vperm.xlu0 %1843, %v1503
        %v1845 = vpop.permute.xlu0 %1844
        %1848 = vset.pattern.permute.xlu0 0
        %1849 = vperm.xlu0 %1848, %v1504
        %v1850 = vpop.permute.xlu0 %1849
        %1853 = vset.pattern.permute.xlu0 0
        %1854 = vperm.xlu0 %1853, %v1505
        %v1855 = vpop.permute.xlu0 %1854
        %1858 = vset.pattern.permute.xlu0 0
        %1859 = vperm.xlu0 %1858, %v1506
        %v1860 = vpop.permute.xlu0 %1859
        %1863 = vset.pattern.permute.xlu0 0
        %1864 = vperm.xlu0 %1863, %v1507
        %v1865 = vpop.permute.xlu0 %1864
        %1868 = vset.pattern.permute.xlu0 0
        %1869 = vperm.xlu0 %1868, %v1508
        %v1870 = vpop.permute.xlu0 %1869
        %1873 = vset.pattern.permute.xlu0 0
        %1874 = vperm.xlu0 %1873, %v1509
        %v1875 = vpop.permute.xlu0 %1874
        %1878 = vset.pattern.permute.xlu0 0
        %1879 = vperm.xlu0 %1878, %v1510
        %v1880 = vpop.permute.xlu0 %1879
        %1883 = vset.pattern.permute.xlu0 0
        %1884 = vperm.xlu0 %1883, %v1511
        %v1885 = vpop.permute.xlu0 %1884
        %1888 = vset.pattern.permute.xlu0 0
        %1889 = vperm.xlu0 %1888, %v1512
        %v1890 = vpop.permute.xlu0 %1889
        %1893 = vset.pattern.permute.xlu0 0
        %1894 = vperm.xlu0 %1893, %v1513
        %v1895 = vpop.permute.xlu0 %1894
        %1898 = vset.pattern.permute.xlu0 0
        %1899 = vperm.xlu0 %1898, %v1514
        %v1900 = vpop.permute.xlu0 %1899
        %1903 = vset.pattern.permute.xlu0 0
        %1904 = vperm.xlu0 %1903, %v1515
        %v1905 = vpop.permute.xlu0 %1904
        %1908 = vset.pattern.permute.xlu0 0
        %1909 = vperm.xlu0 %1908, %v1516
        %v1910 = vpop.permute.xlu0 %1909
        %1913 = vset.pattern.permute.xlu0 0
        %1914 = vperm.xlu0 %1913, %v1517
        %v1915 = vpop.permute.xlu0 %1914
        %1918 = vset.pattern.permute.xlu0 0
        %1919 = vperm.xlu0 %1918, %v1518
        %v1920 = vpop.permute.xlu0 %1919
        %1923 = vset.pattern.permute.xlu0 0
        %1924 = vperm.xlu0 %1923, %v1519
        %v1925 = vpop.permute.xlu0 %1924
        %1928 = vset.pattern.permute.xlu0 0
        %1929 = vperm.xlu0 %1928, %v1520
        %v1930 = vpop.permute.xlu0 %1929
        %1933 = vset.pattern.permute.xlu0 0
        %1934 = vperm.xlu0 %1933, %v1521
        %v1935 = vpop.permute.xlu0 %1934
        %1938 = vset.pattern.permute.xlu0 0
        %1939 = vperm.xlu0 %1938, %v1522
        %v1940 = vpop.permute.xlu0 %1939
        %1943 = vset.pattern.permute.xlu0 0
        %1944 = vperm.xlu0 %1943, %v1523
        %v1945 = vpop.permute.xlu0 %1944
        %1948 = vset.pattern.permute.xlu0 0
        %1949 = vperm.xlu0 %1948, %v1524
        %v1950 = vpop.permute.xlu0 %1949
        %1953 = vset.pattern.permute.xlu0 0
        %1954 = vperm.xlu0 %1953, %v1525
        %v1955 = vpop.permute.xlu0 %1954
        %1958 = vset.pattern.permute.xlu0 0
        %1959 = vperm.xlu0 %1958, %v1526
        %v1960 = vpop.permute.xlu0 %1959
        %1963 = vset.pattern.permute.xlu0 0
        %1964 = vperm.xlu0 %1963, %v1527
        %v1965 = vpop.permute.xlu0 %1964
        %1968 = vset.pattern.permute.xlu0 0
        %1969 = vperm.xlu0 %1968, %v1528
        %v1970 = vpop.permute.xlu0 %1969
        %1973 = vset.pattern.permute.xlu0 0
        %1974 = vperm.xlu0 %1973, %v1529
        %v1975 = vpop.permute.xlu0 %1974
        %1978 = vset.pattern.permute.xlu0 0
        %1979 = vperm.xlu0 %1978, %v1530
        %v1980 = vpop.permute.xlu0 %1979
        %1983 = vset.pattern.permute.xlu0 0
        %1984 = vperm.xlu0 %1983, %v1531
        %v1985 = vpop.permute.xlu0 %1984
        %1988 = vset.pattern.permute.xlu0 0
        %1989 = vperm.xlu0 %1988, %v1532
        %v1990 = vpop.permute.xlu0 %1989
        %1993 = vset.pattern.permute.xlu0 0
        %1994 = vperm.xlu0 %1993, %v1533
        %v1995 = vpop.permute.xlu0 %1994
        %1998 = vset.pattern.permute.xlu0 0
        %1999 = vperm.xlu0 %1998, %v1534
        %v2000 = vpop.permute.xlu0 %1999
        %2003 = vset.pattern.permute.xlu0 0
        %2004 = vperm.xlu0 %2003, %v1535
        %v2005 = vpop.permute.xlu0 %2004
        %2008 = vset.pattern.permute.xlu0 0
        %2009 = vperm.xlu0 %2008, %v1536
        %v2010 = vpop.permute.xlu0 %2009
        %2013 = vset.pattern.permute.xlu0 0
        %2014 = vperm.xlu0 %2013, %v1537
        %v2015 = vpop.permute.xlu0 %2014
        %2018 = vset.pattern.permute.xlu0 0
        %2019 = vperm.xlu0 %2018, %v1538
        %v2020 = vpop.permute.xlu0 %2019
        %2023 = vset.pattern.permute.xlu0 0
        %2024 = vperm.xlu0 %2023, %v1539
        %v2025 = vpop.permute.xlu0 %2024
        %2028 = vset.pattern.permute.xlu0 0
        %2029 = vperm.xlu0 %2028, %v1540
        %v2030 = vpop.permute.xlu0 %2029
        %2033 = vset.pattern.permute.xlu0 0
        %2034 = vperm.xlu0 %2033, %v1541
        %v2035 = vpop.permute.xlu0 %2034
        %2038 = vset.pattern.permute.xlu0 0
        %2039 = vperm.xlu0 %2038, %v1542
        %v2040 = vpop.permute.xlu0 %2039
        %2043 = vset.pattern.permute.xlu0 0
        %2044 = vperm.xlu0 %2043, %v1543
        %v2045 = vpop.permute.xlu0 %2044
        %2048 = vset.pattern.permute.xlu0 0
        %2049 = vperm.xlu0 %2048, %v1544
        %v2050 = vpop.permute.xlu0 %2049
        %2053 = vset.pattern.permute.xlu0 0
        %2054 = vperm.xlu0 %2053, %v1545
        %v2055 = vpop.permute.xlu0 %2054
        %2058 = vset.pattern.permute.xlu0 0
        %2059 = vperm.xlu0 %2058, %v1546
        %v2060 = vpop.permute.xlu0 %2059
        %2063 = vset.pattern.permute.xlu0 0
        %2064 = vperm.xlu0 %2063, %v1547
        %v2065 = vpop.permute.xlu0 %2064
        %2068 = vset.pattern.permute.xlu0 0
        %2069 = vperm.xlu0 %2068, %v1548
        %v2070 = vpop.permute.xlu0 %2069
        %2073 = vset.pattern.permute.xlu0 0
        %2074 = vperm.xlu0 %2073, %v1549
        %v2075 = vpop.permute.xlu0 %2074
        %2078 = vset.pattern.permute.xlu0 0
        %2079 = vperm.xlu0 %2078, %v1550
        %v2080 = vpop.permute.xlu0 %2079
        %2083 = vset.pattern.permute.xlu0 0
        %2084 = vperm.xlu0 %2083, %v1551
        %v2085 = vpop.permute.xlu0 %2084
        %2088 = vset.pattern.permute.xlu0 0
        %2089 = vperm.xlu0 %2088, %v1552
        %v2090 = vpop.permute.xlu0 %2089
        %2093 = vset.pattern.permute.xlu0 0
        %2094 = vperm.xlu0 %2093, %v1553
        %v2095 = vpop.permute.xlu0 %2094
        %2098 = vset.pattern.permute.xlu0 0
        %2099 = vperm.xlu0 %2098, %v1554
        %v2100 = vpop.permute.xlu0 %2099
        %2103 = vset.pattern.permute.xlu0 0
        %2104 = vperm.xlu0 %2103, %v1555
        %v2105 = vpop.permute.xlu0 %2104
        %2108 = vset.pattern.permute.xlu0 0
        %2109 = vperm.xlu0 %2108, %v1556
        %v2110 = vpop.permute.xlu0 %2109
        %2113 = vset.pattern.permute.xlu0 0
        %2114 = vperm.xlu0 %2113, %v1557
        %v2115 = vpop.permute.xlu0 %2114
        %2118 = vset.pattern.permute.xlu0 0
        %2119 = vperm.xlu0 %2118, %v1558
        %v2120 = vpop.permute.xlu0 %2119
        %2123 = vset.pattern.permute.xlu0 0
        %2124 = vperm.xlu0 %2123, %v1559
        %v2125 = vpop.permute.xlu0 %2124
        %2128 = vset.pattern.permute.xlu0 0
        %2129 = vperm.xlu0 %2128, %v1560
        %v2130 = vpop.permute.xlu0 %2129
        %2133 = vset.pattern.permute.xlu0 0
        %2134 = vperm.xlu0 %2133, %v1561
        %v2135 = vpop.permute.xlu0 %2134
        %2138 = vset.pattern.permute.xlu0 0
        %2139 = vperm.xlu0 %2138, %v1562
        %v2140 = vpop.permute.xlu0 %2139
        %2143 = vset.pattern.permute.xlu0 0
        %2144 = vperm.xlu0 %2143, %v1563
        %v2145 = vpop.permute.xlu0 %2144
        %2148 = vset.pattern.permute.xlu0 0
        %2149 = vperm.xlu0 %2148, %v1564
        %v2150 = vpop.permute.xlu0 %2149
        %2153 = vset.pattern.permute.xlu0 0
        %2154 = vperm.xlu0 %2153, %v1565
        %v2155 = vpop.permute.xlu0 %2154
        %2158 = vset.pattern.permute.xlu0 0
        %2159 = vperm.xlu0 %2158, %v1566
        %v2160 = vpop.permute.xlu0 %2159
        %2163 = vset.pattern.permute.xlu0 0
        %2164 = vperm.xlu0 %2163, %v1567
        %v2165 = vpop.permute.xlu0 %2164
        %2168 = vset.pattern.permute.xlu0 0
        %2169 = vperm.xlu0 %2168, %v1568
        %v2170 = vpop.permute.xlu0 %2169
        %2173 = vset.pattern.permute.xlu0 0
        %2174 = vperm.xlu0 %2173, %v1569
        %v2175 = vpop.permute.xlu0 %2174
        %2178 = vset.pattern.permute.xlu0 0
        %2179 = vperm.xlu0 %2178, %v1570
        %v2180 = vpop.permute.xlu0 %2179
        %2183 = vset.pattern.permute.xlu0 0
        %2184 = vperm.xlu0 %2183, %v1571
        %v2185 = vpop.permute.xlu0 %2184
        %2188 = vset.pattern.permute.xlu0 0
        %2189 = vperm.xlu0 %2188, %v1572
        %v2190 = vpop.permute.xlu0 %2189
        %2193 = vset.pattern.permute.xlu0 0
        %2194 = vperm.xlu0 %2193, %v1573
        %v2195 = vpop.permute.xlu0 %2194
        %2198 = vset.pattern.permute.xlu0 0
        %2199 = vperm.xlu0 %2198, %v1574
        %v2200 = vpop.permute.xlu0 %2199
        %2203 = vset.pattern.permute.xlu0 0
        %2204 = vperm.xlu0 %2203, %v1575
        %v2205 = vpop.permute.xlu0 %2204
        %2208 = vset.pattern.permute.xlu0 0
        %2209 = vperm.xlu0 %2208, %v1576
        %v2210 = vpop.permute.xlu0 %2209
        %2213 = vset.pattern.permute.xlu0 0
        %2214 = vperm.xlu0 %2213, %v1577
        %v2215 = vpop.permute.xlu0 %2214
        %2218 = vset.pattern.permute.xlu0 0
        %2219 = vperm.xlu0 %2218, %v1578
        %v2220 = vpop.permute.xlu0 %2219
        %v2222 = vperm.slane %v1581, 0
        %v2223 = vmul.f32 %v1585, %v2222
        %v2224 = vmul.f32 %v1590, %v2222
        %v2225 = vmul.f32 %v1595, %v2222
        %v2226 = vmul.f32 %v1600, %v2222
        %v2227 = vmul.f32 %v1605, %v2222
        %v2228 = vmul.f32 %v1610, %v2222
        %v2229 = vmul.f32 %v1615, %v2222
        %v2230 = vmul.f32 %v1620, %v2222
        %v2231 = vmul.f32 %v1625, %v2222
        %v2232 = vmul.f32 %v1630, %v2222
        %v2233 = vmul.f32 %v1635, %v2222
        %v2234 = vmul.f32 %v1640, %v2222
        %v2235 = vmul.f32 %v1645, %v2222
        %v2236 = vmul.f32 %v1650, %v2222
        %v2237 = vmul.f32 %v1655, %v2222
        %v2238 = vmul.f32 %v1660, %v2222
        %v2239 = vmul.f32 %v1665, %v2222
        %v2240 = vmul.f32 %v1670, %v2222
        %v2241 = vmul.f32 %v1675, %v2222
        %v2242 = vmul.f32 %v1680, %v2222
        %v2243 = vmul.f32 %v1685, %v2222
        %v2244 = vmul.f32 %v1690, %v2222
        %v2245 = vmul.f32 %v1695, %v2222
        %v2246 = vmul.f32 %v1700, %v2222
        %v2247 = vmul.f32 %v1705, %v2222
        %v2248 = vmul.f32 %v1710, %v2222
        %v2249 = vmul.f32 %v1715, %v2222
        %v2250 = vmul.f32 %v1720, %v2222
        %v2251 = vmul.f32 %v1725, %v2222
        %v2252 = vmul.f32 %v1730, %v2222
        %v2253 = vmul.f32 %v1735, %v2222
        %v2254 = vmul.f32 %v1740, %v2222
        %v2255 = vmul.f32 %v1745, %v2222
        %v2256 = vmul.f32 %v1750, %v2222
        %v2257 = vmul.f32 %v1755, %v2222
        %v2258 = vmul.f32 %v1760, %v2222
        %v2259 = vmul.f32 %v1765, %v2222
        %v2260 = vmul.f32 %v1770, %v2222
        %v2261 = vmul.f32 %v1775, %v2222
        %v2262 = vmul.f32 %v1780, %v2222
        %v2263 = vmul.f32 %v1785, %v2222
        %v2264 = vmul.f32 %v1790, %v2222
        %v2265 = vmul.f32 %v1795, %v2222
        %v2266 = vmul.f32 %v1800, %v2222
        %v2267 = vmul.f32 %v1805, %v2222
        %v2268 = vmul.f32 %v1810, %v2222
        %v2269 = vmul.f32 %v1815, %v2222
        %v2270 = vmul.f32 %v1820, %v2222
        %v2271 = vmul.f32 %v1825, %v2222
        %v2272 = vmul.f32 %v1830, %v2222
        %v2273 = vmul.f32 %v1835, %v2222
        %v2274 = vmul.f32 %v1840, %v2222
        %v2275 = vmul.f32 %v1845, %v2222
        %v2276 = vmul.f32 %v1850, %v2222
        %v2277 = vmul.f32 %v1855, %v2222
        %v2278 = vmul.f32 %v1860, %v2222
        %v2279 = vmul.f32 %v1865, %v2222
        %v2280 = vmul.f32 %v1870, %v2222
        %v2281 = vmul.f32 %v1875, %v2222
        %v2282 = vmul.f32 %v1880, %v2222
        %v2283 = vmul.f32 %v1885, %v2222
        %v2284 = vmul.f32 %v1890, %v2222
        %v2285 = vmul.f32 %v1895, %v2222
        %v2286 = vmul.f32 %v1900, %v2222
        %v2287 = vmul.f32 %v1905, %v2222
        %v2288 = vmul.f32 %v1910, %v2222
        %v2289 = vmul.f32 %v1915, %v2222
        %v2290 = vmul.f32 %v1920, %v2222
        %v2291 = vmul.f32 %v1925, %v2222
        %v2292 = vmul.f32 %v1930, %v2222
        %v2293 = vmul.f32 %v1935, %v2222
        %v2294 = vmul.f32 %v1940, %v2222
        %v2295 = vmul.f32 %v1945, %v2222
        %v2296 = vmul.f32 %v1950, %v2222
        %v2297 = vmul.f32 %v1955, %v2222
        %v2298 = vmul.f32 %v1960, %v2222
        %v2299 = vmul.f32 %v1965, %v2222
        %v2300 = vmul.f32 %v1970, %v2222
        %v2301 = vmul.f32 %v1975, %v2222
        %v2302 = vmul.f32 %v1980, %v2222
        %v2303 = vmul.f32 %v1985, %v2222
        %v2304 = vmul.f32 %v1990, %v2222
        %v2305 = vmul.f32 %v1995, %v2222
        %v2306 = vmul.f32 %v2000, %v2222
        %v2307 = vmul.f32 %v2005, %v2222
        %v2308 = vmul.f32 %v2010, %v2222
        %v2309 = vmul.f32 %v2015, %v2222
        %v2310 = vmul.f32 %v2020, %v2222
        %v2311 = vmul.f32 %v2025, %v2222
        %v2312 = vmul.f32 %v2030, %v2222
        %v2313 = vmul.f32 %v2035, %v2222
        %v2314 = vmul.f32 %v2040, %v2222
        %v2315 = vmul.f32 %v2045, %v2222
        %v2316 = vmul.f32 %v2050, %v2222
        %v2317 = vmul.f32 %v2055, %v2222
        %v2318 = vmul.f32 %v2060, %v2222
        %v2319 = vmul.f32 %v2065, %v2222
        %v2320 = vmul.f32 %v2070, %v2222
        %v2321 = vmul.f32 %v2075, %v2222
        %v2322 = vmul.f32 %v2080, %v2222
        %v2323 = vmul.f32 %v2085, %v2222
        %v2324 = vmul.f32 %v2090, %v2222
        %v2325 = vmul.f32 %v2095, %v2222
        %v2326 = vmul.f32 %v2100, %v2222
        %v2327 = vmul.f32 %v2105, %v2222
        %v2328 = vmul.f32 %v2110, %v2222
        %v2329 = vmul.f32 %v2115, %v2222
        %v2330 = vmul.f32 %v2120, %v2222
        %v2331 = vmul.f32 %v2125, %v2222
        %v2332 = vmul.f32 %v2130, %v2222
        %v2333 = vmul.f32 %v2135, %v2222
        %v2334 = vmul.f32 %v2140, %v2222
        %v2335 = vmul.f32 %v2145, %v2222
        %v2336 = vmul.f32 %v2150, %v2222
        %v2337 = vmul.f32 %v2155, %v2222
        %v2338 = vmul.f32 %v2160, %v2222
        %v2339 = vmul.f32 %v2165, %v2222
        %v2340 = vmul.f32 %v2170, %v2222
        %v2341 = vmul.f32 %v2175, %v2222
        %v2342 = vmul.f32 %v2180, %v2222
        %v2343 = vmul.f32 %v2185, %v2222
        %v2344 = vmul.f32 %v2190, %v2222
        %v2345 = vmul.f32 %v2195, %v2222
        %v2346 = vmul.f32 %v2200, %v2222
        %v2347 = vmul.f32 %v2205, %v2222
        %v2348 = vmul.f32 %v2210, %v2222
        %v2349 = vmul.f32 %v2215, %v2222
        %v2350 = vmul.f32 %v2220, %v2222
        %v2351 = vadd.f32 %v1323, %v2223
        %v2352 = vadd.f32 %v1324, %v2224
        %v2353 = vadd.f32 %v1325, %v2225
        %v2354 = vadd.f32 %v1326, %v2226
        %v2355 = vadd.f32 %v1327, %v2227
        %v2356 = vadd.f32 %v1328, %v2228
        %v2357 = vadd.f32 %v1329, %v2229
        %v2358 = vadd.f32 %v1330, %v2230
        %v2359 = vadd.f32 %v1331, %v2231
        %v2360 = vadd.f32 %v1332, %v2232
        %v2361 = vadd.f32 %v1333, %v2233
        %v2362 = vadd.f32 %v1334, %v2234
        %v2363 = vadd.f32 %v1335, %v2235
        %v2364 = vadd.f32 %v1336, %v2236
        %v2365 = vadd.f32 %v1337, %v2237
        %v2366 = vadd.f32 %v1338, %v2238
        %v2367 = vadd.f32 %v1339, %v2239
        %v2368 = vadd.f32 %v1340, %v2240
        %v2369 = vadd.f32 %v1341, %v2241
        %v2370 = vadd.f32 %v1342, %v2242
        %v2371 = vadd.f32 %v1343, %v2243
        %v2372 = vadd.f32 %v1344, %v2244
        %v2373 = vadd.f32 %v1345, %v2245
        %v2374 = vadd.f32 %v1346, %v2246
        %v2375 = vadd.f32 %v1347, %v2247
        %v2376 = vadd.f32 %v1348, %v2248
        %v2377 = vadd.f32 %v1349, %v2249
        %v2378 = vadd.f32 %v1350, %v2250
        %v2379 = vadd.f32 %v1351, %v2251
        %v2380 = vadd.f32 %v1352, %v2252
        %v2381 = vadd.f32 %v1353, %v2253
        %v2382 = vadd.f32 %v1354, %v2254
        %v2383 = vadd.f32 %v1355, %v2255
        %v2384 = vadd.f32 %v1356, %v2256
        %v2385 = vadd.f32 %v1357, %v2257
        %v2386 = vadd.f32 %v1358, %v2258
        %v2387 = vadd.f32 %v1359, %v2259
        %v2388 = vadd.f32 %v1360, %v2260
        %v2389 = vadd.f32 %v1361, %v2261
        %v2390 = vadd.f32 %v1362, %v2262
        %v2391 = vadd.f32 %v1363, %v2263
        %v2392 = vadd.f32 %v1364, %v2264
        %v2393 = vadd.f32 %v1365, %v2265
        %v2394 = vadd.f32 %v1366, %v2266
        %v2395 = vadd.f32 %v1367, %v2267
        %v2396 = vadd.f32 %v1368, %v2268
        %v2397 = vadd.f32 %v1369, %v2269
        %v2398 = vadd.f32 %v1370, %v2270
        %v2399 = vadd.f32 %v1371, %v2271
        %v2400 = vadd.f32 %v1372, %v2272
        %v2401 = vadd.f32 %v1373, %v2273
        %v2402 = vadd.f32 %v1374, %v2274
        %v2403 = vadd.f32 %v1375, %v2275
        %v2404 = vadd.f32 %v1376, %v2276
        %v2405 = vadd.f32 %v1377, %v2277
        %v2406 = vadd.f32 %v1378, %v2278
        %v2407 = vadd.f32 %v1379, %v2279
        %v2408 = vadd.f32 %v1380, %v2280
        %v2409 = vadd.f32 %v1381, %v2281
        %v2410 = vadd.f32 %v1382, %v2282
        %v2411 = vadd.f32 %v1383, %v2283
        %v2412 = vadd.f32 %v1384, %v2284
        %v2413 = vadd.f32 %v1385, %v2285
        %v2414 = vadd.f32 %v1386, %v2286
        %v2415 = vadd.f32 %v1387, %v2287
        %v2416 = vadd.f32 %v1388, %v2288
        %v2417 = vadd.f32 %v1389, %v2289
        %v2418 = vadd.f32 %v1390, %v2290
        %v2419 = vadd.f32 %v1391, %v2291
        %v2420 = vadd.f32 %v1392, %v2292
        %v2421 = vadd.f32 %v1393, %v2293
        %v2422 = vadd.f32 %v1394, %v2294
        %v2423 = vadd.f32 %v1395, %v2295
        %v2424 = vadd.f32 %v1396, %v2296
        %v2425 = vadd.f32 %v1397, %v2297
        %v2426 = vadd.f32 %v1398, %v2298
        %v2427 = vadd.f32 %v1399, %v2299
        %v2428 = vadd.f32 %v1400, %v2300
        %v2429 = vadd.f32 %v1401, %v2301
        %v2430 = vadd.f32 %v1402, %v2302
        %v2431 = vadd.f32 %v1403, %v2303
        %v2432 = vadd.f32 %v1404, %v2304
        %v2433 = vadd.f32 %v1405, %v2305
        %v2434 = vadd.f32 %v1406, %v2306
        %v2435 = vadd.f32 %v1407, %v2307
        %v2436 = vadd.f32 %v1408, %v2308
        %v2437 = vadd.f32 %v1409, %v2309
        %v2438 = vadd.f32 %v1410, %v2310
        %v2439 = vadd.f32 %v1411, %v2311
        %v2440 = vadd.f32 %v1412, %v2312
        %v2441 = vadd.f32 %v1413, %v2313
        %v2442 = vadd.f32 %v1414, %v2314
        %v2443 = vadd.f32 %v1415, %v2315
        %v2444 = vadd.f32 %v1416, %v2316
        %v2445 = vadd.f32 %v1417, %v2317
        %v2446 = vadd.f32 %v1418, %v2318
        %v2447 = vadd.f32 %v1419, %v2319
        %v2448 = vadd.f32 %v1420, %v2320
        %v2449 = vadd.f32 %v1421, %v2321
        %v2450 = vadd.f32 %v1422, %v2322
        %v2451 = vadd.f32 %v1423, %v2323
        %v2452 = vadd.f32 %v1424, %v2324
        %v2453 = vadd.f32 %v1425, %v2325
        %v2454 = vadd.f32 %v1426, %v2326
        %v2455 = vadd.f32 %v1427, %v2327
        %v2456 = vadd.f32 %v1428, %v2328
        %v2457 = vadd.f32 %v1429, %v2329
        %v2458 = vadd.f32 %v1430, %v2330
        %v2459 = vadd.f32 %v1431, %v2331
        %v2460 = vadd.f32 %v1432, %v2332
        %v2461 = vadd.f32 %v1433, %v2333
        %v2462 = vadd.f32 %v1434, %v2334
        %v2463 = vadd.f32 %v1435, %v2335
        %v2464 = vadd.f32 %v1436, %v2336
        %v2465 = vadd.f32 %v1437, %v2337
        %v2466 = vadd.f32 %v1438, %v2338
        %v2467 = vadd.f32 %v1439, %v2339
        %v2468 = vadd.f32 %v1440, %v2340
        %v2469 = vadd.f32 %v1441, %v2341
        %v2470 = vadd.f32 %v1442, %v2342
        %v2471 = vadd.f32 %v1443, %v2343
        %v2472 = vadd.f32 %v1444, %v2344
        %v2473 = vadd.f32 %v1445, %v2345
        %v2474 = vadd.f32 %v1446, %v2346
        %v2475 = vadd.f32 %v1447, %v2347
        %v2476 = vadd.f32 %v1448, %v2348
        %v2477 = vadd.f32 %v1449, %v2349
        %v2478 = vadd.f32 %v1450, %v2350
        %v2479 = vld [vmem:[#allocation2 + $0x2] sm:$0xff]
        %v2480 = vld [vmem:[#allocation2 + $0xa] sm:$0xff]
        %v2481 = vld [vmem:[#allocation2 + $0x12] sm:$0xff]
        %v2482 = vld [vmem:[#allocation2 + $0x1a] sm:$0xff]
        %v2483 = vld [vmem:[#allocation2 + $0x2a] sm:$0xff]
        %v2484 = vld [vmem:[#allocation2 + $0x32] sm:$0xff]
        %v2485 = vld [vmem:[#allocation2 + $0x3a] sm:$0xff]
        %v2486 = vld [vmem:[#allocation2 + $0x42] sm:$0xff]
        %v2487 = vld [vmem:[#allocation2 + $0x52] sm:$0xff]
        %v2488 = vld [vmem:[#allocation2 + $0x5a] sm:$0xff]
        %v2489 = vld [vmem:[#allocation2 + $0x62] sm:$0xff]
        %v2490 = vld [vmem:[#allocation2 + $0x6a] sm:$0xff]
        %v2491 = vld [vmem:[#allocation2 + $0x7a] sm:$0xff]
        %v2492 = vld [vmem:[#allocation2 + $0x82] sm:$0xff]
        %v2493 = vld [vmem:[#allocation2 + $0x8a] sm:$0xff]
        %v2494 = vld [vmem:[#allocation2 + $0x92] sm:$0xff]
        %v2495 = vld [vmem:[#allocation2 + $0xa2] sm:$0xff]
        %v2496 = vld [vmem:[#allocation2 + $0xaa] sm:$0xff]
        %v2497 = vld [vmem:[#allocation2 + $0xb2] sm:$0xff]
        %v2498 = vld [vmem:[#allocation2 + $0xba] sm:$0xff]
        %v2499 = vld [vmem:[#allocation2 + $0xca] sm:$0xff]
        %v2500 = vld [vmem:[#allocation2 + $0xd2] sm:$0xff]
        %v2501 = vld [vmem:[#allocation2 + $0xda] sm:$0xff]
        %v2502 = vld [vmem:[#allocation2 + $0xe2] sm:$0xff]
        %v2503 = vld [vmem:[#allocation2 + $0xf2] sm:$0xff]
        %v2504 = vld [vmem:[#allocation2 + $0xfa] sm:$0xff]
        %v2505 = vld [vmem:[#allocation2 + $0x102] sm:$0xff]
        %v2506 = vld [vmem:[#allocation2 + $0x10a] sm:$0xff]
        %v2507 = vld [vmem:[#allocation2 + $0x11a] sm:$0xff]
        %v2508 = vld [vmem:[#allocation2 + $0x122] sm:$0xff]
        %v2509 = vld [vmem:[#allocation2 + $0x12a] sm:$0xff]
        %v2510 = vld [vmem:[#allocation2 + $0x132] sm:$0xff]
        %v2511 = vld [vmem:[#allocation2 + $0x142] sm:$0xff]
        %v2512 = vld [vmem:[#allocation2 + $0x14a] sm:$0xff]
        %v2513 = vld [vmem:[#allocation2 + $0x152] sm:$0xff]
        %v2514 = vld [vmem:[#allocation2 + $0x15a] sm:$0xff]
        %v2515 = vld [vmem:[#allocation2 + $0x16a] sm:$0xff]
        %v2516 = vld [vmem:[#allocation2 + $0x172] sm:$0xff]
        %v2517 = vld [vmem:[#allocation2 + $0x17a] sm:$0xff]
        %v2518 = vld [vmem:[#allocation2 + $0x182] sm:$0xff]
        %v2519 = vld [vmem:[#allocation2 + $0x192] sm:$0xff]
        %v2520 = vld [vmem:[#allocation2 + $0x19a] sm:$0xff]
        %v2521 = vld [vmem:[#allocation2 + $0x1a2] sm:$0xff]
        %v2522 = vld [vmem:[#allocation2 + $0x1aa] sm:$0xff]
        %v2523 = vld [vmem:[#allocation2 + $0x1ba] sm:$0xff]
        %v2524 = vld [vmem:[#allocation2 + $0x1c2] sm:$0xff]
        %v2525 = vld [vmem:[#allocation2 + $0x1ca] sm:$0xff]
        %v2526 = vld [vmem:[#allocation2 + $0x1d2] sm:$0xff]
        %v2527 = vld [vmem:[#allocation2 + $0x1e2] sm:$0xff]
        %v2528 = vld [vmem:[#allocation2 + $0x1ea] sm:$0xff]
        %v2529 = vld [vmem:[#allocation2 + $0x1f2] sm:$0xff]
        %v2530 = vld [vmem:[#allocation2 + $0x1fa] sm:$0xff]
        %v2531 = vld [vmem:[#allocation2 + $0x20a] sm:$0xff]
        %v2532 = vld [vmem:[#allocation2 + $0x212] sm:$0xff]
        %v2533 = vld [vmem:[#allocation2 + $0x21a] sm:$0xff]
        %v2534 = vld [vmem:[#allocation2 + $0x222] sm:$0xff]
        %v2535 = vld [vmem:[#allocation2 + $0x232] sm:$0xff]
        %v2536 = vld [vmem:[#allocation2 + $0x23a] sm:$0xff]
        %v2537 = vld [vmem:[#allocation2 + $0x242] sm:$0xff]
        %v2538 = vld [vmem:[#allocation2 + $0x24a] sm:$0xff]
        %v2539 = vld [vmem:[#allocation2 + $0x25a] sm:$0xff]
        %v2540 = vld [vmem:[#allocation2 + $0x262] sm:$0xff]
        %v2541 = vld [vmem:[#allocation2 + $0x26a] sm:$0xff]
        %v2542 = vld [vmem:[#allocation2 + $0x272] sm:$0xff]
        %v2543 = vld [vmem:[#allocation2 + $0x282] sm:$0xff]
        %v2544 = vld [vmem:[#allocation2 + $0x28a] sm:$0xff]
        %v2545 = vld [vmem:[#allocation2 + $0x292] sm:$0xff]
        %v2546 = vld [vmem:[#allocation2 + $0x29a] sm:$0xff]
        %v2547 = vld [vmem:[#allocation2 + $0x2aa] sm:$0xff]
        %v2548 = vld [vmem:[#allocation2 + $0x2b2] sm:$0xff]
        %v2549 = vld [vmem:[#allocation2 + $0x2ba] sm:$0xff]
        %v2550 = vld [vmem:[#allocation2 + $0x2c2] sm:$0xff]
        %v2551 = vld [vmem:[#allocation2 + $0x2d2] sm:$0xff]
        %v2552 = vld [vmem:[#allocation2 + $0x2da] sm:$0xff]
        %v2553 = vld [vmem:[#allocation2 + $0x2e2] sm:$0xff]
        %v2554 = vld [vmem:[#allocation2 + $0x2ea] sm:$0xff]
        %v2555 = vld [vmem:[#allocation2 + $0x2fa] sm:$0xff]
        %v2556 = vld [vmem:[#allocation2 + $0x302] sm:$0xff]
        %v2557 = vld [vmem:[#allocation2 + $0x30a] sm:$0xff]
        %v2558 = vld [vmem:[#allocation2 + $0x312] sm:$0xff]
        %v2559 = vld [vmem:[#allocation2 + $0x322] sm:$0xff]
        %v2560 = vld [vmem:[#allocation2 + $0x32a] sm:$0xff]
        %v2561 = vld [vmem:[#allocation2 + $0x332] sm:$0xff]
        %v2562 = vld [vmem:[#allocation2 + $0x33a] sm:$0xff]
        %v2563 = vld [vmem:[#allocation2 + $0x34a] sm:$0xff]
        %v2564 = vld [vmem:[#allocation2 + $0x352] sm:$0xff]
        %v2565 = vld [vmem:[#allocation2 + $0x35a] sm:$0xff]
        %v2566 = vld [vmem:[#allocation2 + $0x362] sm:$0xff]
        %v2567 = vld [vmem:[#allocation2 + $0x372] sm:$0xff]
        %v2568 = vld [vmem:[#allocation2 + $0x37a] sm:$0xff]
        %v2569 = vld [vmem:[#allocation2 + $0x382] sm:$0xff]
        %v2570 = vld [vmem:[#allocation2 + $0x38a] sm:$0xff]
        %v2571 = vld [vmem:[#allocation2 + $0x39a] sm:$0xff]
        %v2572 = vld [vmem:[#allocation2 + $0x3a2] sm:$0xff]
        %v2573 = vld [vmem:[#allocation2 + $0x3aa] sm:$0xff]
        %v2574 = vld [vmem:[#allocation2 + $0x3b2] sm:$0xff]
        %v2575 = vld [vmem:[#allocation2 + $0x3c2] sm:$0xff]
        %v2576 = vld [vmem:[#allocation2 + $0x3ca] sm:$0xff]
        %v2577 = vld [vmem:[#allocation2 + $0x3d2] sm:$0xff]
        %v2578 = vld [vmem:[#allocation2 + $0x3da] sm:$0xff]
        %v2579 = vld [vmem:[#allocation2 + $0x3ea] sm:$0xff]
        %v2580 = vld [vmem:[#allocation2 + $0x3f2] sm:$0xff]
        %v2581 = vld [vmem:[#allocation2 + $0x3fa] sm:$0xff]
        %v2582 = vld [vmem:[#allocation2 + $0x402] sm:$0xff]
        %v2583 = vld [vmem:[#allocation2 + $0x412] sm:$0xff]
        %v2584 = vld [vmem:[#allocation2 + $0x41a] sm:$0xff]
        %v2585 = vld [vmem:[#allocation2 + $0x422] sm:$0xff]
        %v2586 = vld [vmem:[#allocation2 + $0x42a] sm:$0xff]
        %v2587 = vld [vmem:[#allocation2 + $0x43a] sm:$0xff]
        %v2588 = vld [vmem:[#allocation2 + $0x442] sm:$0xff]
        %v2589 = vld [vmem:[#allocation2 + $0x44a] sm:$0xff]
        %v2590 = vld [vmem:[#allocation2 + $0x452] sm:$0xff]
        %v2591 = vld [vmem:[#allocation2 + $0x462] sm:$0xff]
        %v2592 = vld [vmem:[#allocation2 + $0x46a] sm:$0xff]
        %v2593 = vld [vmem:[#allocation2 + $0x472] sm:$0xff]
        %v2594 = vld [vmem:[#allocation2 + $0x47a] sm:$0xff]
        %v2595 = vld [vmem:[#allocation2 + $0x48a] sm:$0xff]
        %v2596 = vld [vmem:[#allocation2 + $0x492] sm:$0xff]
        %v2597 = vld [vmem:[#allocation2 + $0x49a] sm:$0xff]
        %v2598 = vld [vmem:[#allocation2 + $0x4a2] sm:$0xff]
        %v2599 = vld [vmem:[#allocation2 + $0x4b2] sm:$0xff]
        %v2600 = vld [vmem:[#allocation2 + $0x4ba] sm:$0xff]
        %v2601 = vld [vmem:[#allocation2 + $0x4c2] sm:$0xff]
        %v2602 = vld [vmem:[#allocation2 + $0x4ca] sm:$0xff]
        %v2603 = vld [vmem:[#allocation2 + $0x4da] sm:$0xff]
        %v2604 = vld [vmem:[#allocation2 + $0x4e2] sm:$0xff]
        %v2605 = vld [vmem:[#allocation2 + $0x4ea] sm:$0xff]
        %v2606 = vld [vmem:[#allocation2 + $0x4f2] sm:$0xff]
        %s2607 = scalar_lea.vmem %s1, 2
        %v2608 = vld [vmem:[%s2607] sm:$0x1]
        %v2609 = vunpack.c.l.bf16 %v2608
        %2611 = vset.pattern.permute.xlu0 0
        %2612 = vperm.xlu0 %2611, %v2479
        %v2613 = vpop.permute.xlu0 %2612
        %2616 = vset.pattern.permute.xlu0 0
        %2617 = vperm.xlu0 %2616, %v2480
        %v2618 = vpop.permute.xlu0 %2617
        %2621 = vset.pattern.permute.xlu0 0
        %2622 = vperm.xlu0 %2621, %v2481
        %v2623 = vpop.permute.xlu0 %2622
        %2626 = vset.pattern.permute.xlu0 0
        %2627 = vperm.xlu0 %2626, %v2482
        %v2628 = vpop.permute.xlu0 %2627
        %2631 = vset.pattern.permute.xlu0 0
        %2632 = vperm.xlu0 %2631, %v2483
        %v2633 = vpop.permute.xlu0 %2632
        %2636 = vset.pattern.permute.xlu0 0
        %2637 = vperm.xlu0 %2636, %v2484
        %v2638 = vpop.permute.xlu0 %2637
        %2641 = vset.pattern.permute.xlu0 0
        %2642 = vperm.xlu0 %2641, %v2485
        %v2643 = vpop.permute.xlu0 %2642
        %2646 = vset.pattern.permute.xlu0 0
        %2647 = vperm.xlu0 %2646, %v2486
        %v2648 = vpop.permute.xlu0 %2647
        %2651 = vset.pattern.permute.xlu0 0
        %2652 = vperm.xlu0 %2651, %v2487
        %v2653 = vpop.permute.xlu0 %2652
        %2656 = vset.pattern.permute.xlu0 0
        %2657 = vperm.xlu0 %2656, %v2488
        %v2658 = vpop.permute.xlu0 %2657
        %2661 = vset.pattern.permute.xlu0 0
        %2662 = vperm.xlu0 %2661, %v2489
        %v2663 = vpop.permute.xlu0 %2662
        %2666 = vset.pattern.permute.xlu0 0
        %2667 = vperm.xlu0 %2666, %v2490
        %v2668 = vpop.permute.xlu0 %2667
        %2671 = vset.pattern.permute.xlu0 0
        %2672 = vperm.xlu0 %2671, %v2491
        %v2673 = vpop.permute.xlu0 %2672
        %2676 = vset.pattern.permute.xlu0 0
        %2677 = vperm.xlu0 %2676, %v2492
        %v2678 = vpop.permute.xlu0 %2677
        %2681 = vset.pattern.permute.xlu0 0
        %2682 = vperm.xlu0 %2681, %v2493
        %v2683 = vpop.permute.xlu0 %2682
        %2686 = vset.pattern.permute.xlu0 0
        %2687 = vperm.xlu0 %2686, %v2494
        %v2688 = vpop.permute.xlu0 %2687
        %2691 = vset.pattern.permute.xlu0 0
        %2692 = vperm.xlu0 %2691, %v2495
        %v2693 = vpop.permute.xlu0 %2692
        %2696 = vset.pattern.permute.xlu0 0
        %2697 = vperm.xlu0 %2696, %v2496
        %v2698 = vpop.permute.xlu0 %2697
        %2701 = vset.pattern.permute.xlu0 0
        %2702 = vperm.xlu0 %2701, %v2497
        %v2703 = vpop.permute.xlu0 %2702
        %2706 = vset.pattern.permute.xlu0 0
        %2707 = vperm.xlu0 %2706, %v2498
        %v2708 = vpop.permute.xlu0 %2707
        %2711 = vset.pattern.permute.xlu0 0
        %2712 = vperm.xlu0 %2711, %v2499
        %v2713 = vpop.permute.xlu0 %2712
        %2716 = vset.pattern.permute.xlu0 0
        %2717 = vperm.xlu0 %2716, %v2500
        %v2718 = vpop.permute.xlu0 %2717
        %2721 = vset.pattern.permute.xlu0 0
        %2722 = vperm.xlu0 %2721, %v2501
        %v2723 = vpop.permute.xlu0 %2722
        %2726 = vset.pattern.permute.xlu0 0
        %2727 = vperm.xlu0 %2726, %v2502
        %v2728 = vpop.permute.xlu0 %2727
        %2731 = vset.pattern.permute.xlu0 0
        %2732 = vperm.xlu0 %2731, %v2503
        %v2733 = vpop.permute.xlu0 %2732
        %2736 = vset.pattern.permute.xlu0 0
        %2737 = vperm.xlu0 %2736, %v2504
        %v2738 = vpop.permute.xlu0 %2737
        %2741 = vset.pattern.permute.xlu0 0
        %2742 = vperm.xlu0 %2741, %v2505
        %v2743 = vpop.permute.xlu0 %2742
        %2746 = vset.pattern.permute.xlu0 0
        %2747 = vperm.xlu0 %2746, %v2506
        %v2748 = vpop.permute.xlu0 %2747
        %2751 = vset.pattern.permute.xlu0 0
        %2752 = vperm.xlu0 %2751, %v2507
        %v2753 = vpop.permute.xlu0 %2752
        %2756 = vset.pattern.permute.xlu0 0
        %2757 = vperm.xlu0 %2756, %v2508
        %v2758 = vpop.permute.xlu0 %2757
        %2761 = vset.pattern.permute.xlu0 0
        %2762 = vperm.xlu0 %2761, %v2509
        %v2763 = vpop.permute.xlu0 %2762
        %2766 = vset.pattern.permute.xlu0 0
        %2767 = vperm.xlu0 %2766, %v2510
        %v2768 = vpop.permute.xlu0 %2767
        %2771 = vset.pattern.permute.xlu0 0
        %2772 = vperm.xlu0 %2771, %v2511
        %v2773 = vpop.permute.xlu0 %2772
        %2776 = vset.pattern.permute.xlu0 0
        %2777 = vperm.xlu0 %2776, %v2512
        %v2778 = vpop.permute.xlu0 %2777
        %2781 = vset.pattern.permute.xlu0 0
        %2782 = vperm.xlu0 %2781, %v2513
        %v2783 = vpop.permute.xlu0 %2782
        %2786 = vset.pattern.permute.xlu0 0
        %2787 = vperm.xlu0 %2786, %v2514
        %v2788 = vpop.permute.xlu0 %2787
        %2791 = vset.pattern.permute.xlu0 0
        %2792 = vperm.xlu0 %2791, %v2515
        %v2793 = vpop.permute.xlu0 %2792
        %2796 = vset.pattern.permute.xlu0 0
        %2797 = vperm.xlu0 %2796, %v2516
        %v2798 = vpop.permute.xlu0 %2797
        %2801 = vset.pattern.permute.xlu0 0
        %2802 = vperm.xlu0 %2801, %v2517
        %v2803 = vpop.permute.xlu0 %2802
        %2806 = vset.pattern.permute.xlu0 0
        %2807 = vperm.xlu0 %2806, %v2518
        %v2808 = vpop.permute.xlu0 %2807
        %2811 = vset.pattern.permute.xlu0 0
        %2812 = vperm.xlu0 %2811, %v2519
        %v2813 = vpop.permute.xlu0 %2812
        %2816 = vset.pattern.permute.xlu0 0
        %2817 = vperm.xlu0 %2816, %v2520
        %v2818 = vpop.permute.xlu0 %2817
        %2821 = vset.pattern.permute.xlu0 0
        %2822 = vperm.xlu0 %2821, %v2521
        %v2823 = vpop.permute.xlu0 %2822
        %2826 = vset.pattern.permute.xlu0 0
        %2827 = vperm.xlu0 %2826, %v2522
        %v2828 = vpop.permute.xlu0 %2827
        %2831 = vset.pattern.permute.xlu0 0
        %2832 = vperm.xlu0 %2831, %v2523
        %v2833 = vpop.permute.xlu0 %2832
        %2836 = vset.pattern.permute.xlu0 0
        %2837 = vperm.xlu0 %2836, %v2524
        %v2838 = vpop.permute.xlu0 %2837
        %2841 = vset.pattern.permute.xlu0 0
        %2842 = vperm.xlu0 %2841, %v2525
        %v2843 = vpop.permute.xlu0 %2842
        %2846 = vset.pattern.permute.xlu0 0
        %2847 = vperm.xlu0 %2846, %v2526
        %v2848 = vpop.permute.xlu0 %2847
        %2851 = vset.pattern.permute.xlu0 0
        %2852 = vperm.xlu0 %2851, %v2527
        %v2853 = vpop.permute.xlu0 %2852
        %2856 = vset.pattern.permute.xlu0 0
        %2857 = vperm.xlu0 %2856, %v2528
        %v2858 = vpop.permute.xlu0 %2857
        %2861 = vset.pattern.permute.xlu0 0
        %2862 = vperm.xlu0 %2861, %v2529
        %v2863 = vpop.permute.xlu0 %2862
        %2866 = vset.pattern.permute.xlu0 0
        %2867 = vperm.xlu0 %2866, %v2530
        %v2868 = vpop.permute.xlu0 %2867
        %2871 = vset.pattern.permute.xlu0 0
        %2872 = vperm.xlu0 %2871, %v2531
        %v2873 = vpop.permute.xlu0 %2872
        %2876 = vset.pattern.permute.xlu0 0
        %2877 = vperm.xlu0 %2876, %v2532
        %v2878 = vpop.permute.xlu0 %2877
        %2881 = vset.pattern.permute.xlu0 0
        %2882 = vperm.xlu0 %2881, %v2533
        %v2883 = vpop.permute.xlu0 %2882
        %2886 = vset.pattern.permute.xlu0 0
        %2887 = vperm.xlu0 %2886, %v2534
        %v2888 = vpop.permute.xlu0 %2887
        %2891 = vset.pattern.permute.xlu0 0
        %2892 = vperm.xlu0 %2891, %v2535
        %v2893 = vpop.permute.xlu0 %2892
        %2896 = vset.pattern.permute.xlu0 0
        %2897 = vperm.xlu0 %2896, %v2536
        %v2898 = vpop.permute.xlu0 %2897
        %2901 = vset.pattern.permute.xlu0 0
        %2902 = vperm.xlu0 %2901, %v2537
        %v2903 = vpop.permute.xlu0 %2902
        %2906 = vset.pattern.permute.xlu0 0
        %2907 = vperm.xlu0 %2906, %v2538
        %v2908 = vpop.permute.xlu0 %2907
        %2911 = vset.pattern.permute.xlu0 0
        %2912 = vperm.xlu0 %2911, %v2539
        %v2913 = vpop.permute.xlu0 %2912
        %2916 = vset.pattern.permute.xlu0 0
        %2917 = vperm.xlu0 %2916, %v2540
        %v2918 = vpop.permute.xlu0 %2917
        %2921 = vset.pattern.permute.xlu0 0
        %2922 = vperm.xlu0 %2921, %v2541
        %v2923 = vpop.permute.xlu0 %2922
        %2926 = vset.pattern.permute.xlu0 0
        %2927 = vperm.xlu0 %2926, %v2542
        %v2928 = vpop.permute.xlu0 %2927
        %2931 = vset.pattern.permute.xlu0 0
        %2932 = vperm.xlu0 %2931, %v2543
        %v2933 = vpop.permute.xlu0 %2932
        %2936 = vset.pattern.permute.xlu0 0
        %2937 = vperm.xlu0 %2936, %v2544
        %v2938 = vpop.permute.xlu0 %2937
        %2941 = vset.pattern.permute.xlu0 0
        %2942 = vperm.xlu0 %2941, %v2545
        %v2943 = vpop.permute.xlu0 %2942
        %2946 = vset.pattern.permute.xlu0 0
        %2947 = vperm.xlu0 %2946, %v2546
        %v2948 = vpop.permute.xlu0 %2947
        %2951 = vset.pattern.permute.xlu0 0
        %2952 = vperm.xlu0 %2951, %v2547
        %v2953 = vpop.permute.xlu0 %2952
        %2956 = vset.pattern.permute.xlu0 0
        %2957 = vperm.xlu0 %2956, %v2548
        %v2958 = vpop.permute.xlu0 %2957
        %2961 = vset.pattern.permute.xlu0 0
        %2962 = vperm.xlu0 %2961, %v2549
        %v2963 = vpop.permute.xlu0 %2962
        %2966 = vset.pattern.permute.xlu0 0
        %2967 = vperm.xlu0 %2966, %v2550
        %v2968 = vpop.permute.xlu0 %2967
        %2971 = vset.pattern.permute.xlu0 0
        %2972 = vperm.xlu0 %2971, %v2551
        %v2973 = vpop.permute.xlu0 %2972
        %2976 = vset.pattern.permute.xlu0 0
        %2977 = vperm.xlu0 %2976, %v2552
        %v2978 = vpop.permute.xlu0 %2977
        %2981 = vset.pattern.permute.xlu0 0
        %2982 = vperm.xlu0 %2981, %v2553
        %v2983 = vpop.permute.xlu0 %2982
        %2986 = vset.pattern.permute.xlu0 0
        %2987 = vperm.xlu0 %2986, %v2554
        %v2988 = vpop.permute.xlu0 %2987
        %2991 = vset.pattern.permute.xlu0 0
        %2992 = vperm.xlu0 %2991, %v2555
        %v2993 = vpop.permute.xlu0 %2992
        %2996 = vset.pattern.permute.xlu0 0
        %2997 = vperm.xlu0 %2996, %v2556
        %v2998 = vpop.permute.xlu0 %2997
        %3001 = vset.pattern.permute.xlu0 0
        %3002 = vperm.xlu0 %3001, %v2557
        %v3003 = vpop.permute.xlu0 %3002
        %3006 = vset.pattern.permute.xlu0 0
        %3007 = vperm.xlu0 %3006, %v2558
        %v3008 = vpop.permute.xlu0 %3007
        %3011 = vset.pattern.permute.xlu0 0
        %3012 = vperm.xlu0 %3011, %v2559
        %v3013 = vpop.permute.xlu0 %3012
        %3016 = vset.pattern.permute.xlu0 0
        %3017 = vperm.xlu0 %3016, %v2560
        %v3018 = vpop.permute.xlu0 %3017
        %3021 = vset.pattern.permute.xlu0 0
        %3022 = vperm.xlu0 %3021, %v2561
        %v3023 = vpop.permute.xlu0 %3022
        %3026 = vset.pattern.permute.xlu0 0
        %3027 = vperm.xlu0 %3026, %v2562
        %v3028 = vpop.permute.xlu0 %3027
        %3031 = vset.pattern.permute.xlu0 0
        %3032 = vperm.xlu0 %3031, %v2563
        %v3033 = vpop.permute.xlu0 %3032
        %3036 = vset.pattern.permute.xlu0 0
        %3037 = vperm.xlu0 %3036, %v2564
        %v3038 = vpop.permute.xlu0 %3037
        %3041 = vset.pattern.permute.xlu0 0
        %3042 = vperm.xlu0 %3041, %v2565
        %v3043 = vpop.permute.xlu0 %3042
        %3046 = vset.pattern.permute.xlu0 0
        %3047 = vperm.xlu0 %3046, %v2566
        %v3048 = vpop.permute.xlu0 %3047
        %3051 = vset.pattern.permute.xlu0 0
        %3052 = vperm.xlu0 %3051, %v2567
        %v3053 = vpop.permute.xlu0 %3052
        %3056 = vset.pattern.permute.xlu0 0
        %3057 = vperm.xlu0 %3056, %v2568
        %v3058 = vpop.permute.xlu0 %3057
        %3061 = vset.pattern.permute.xlu0 0
        %3062 = vperm.xlu0 %3061, %v2569
        %v3063 = vpop.permute.xlu0 %3062
        %3066 = vset.pattern.permute.xlu0 0
        %3067 = vperm.xlu0 %3066, %v2570
        %v3068 = vpop.permute.xlu0 %3067
        %3071 = vset.pattern.permute.xlu0 0
        %3072 = vperm.xlu0 %3071, %v2571
        %v3073 = vpop.permute.xlu0 %3072
        %3076 = vset.pattern.permute.xlu0 0
        %3077 = vperm.xlu0 %3076, %v2572
        %v3078 = vpop.permute.xlu0 %3077
        %3081 = vset.pattern.permute.xlu0 0
        %3082 = vperm.xlu0 %3081, %v2573
        %v3083 = vpop.permute.xlu0 %3082
        %3086 = vset.pattern.permute.xlu0 0
        %3087 = vperm.xlu0 %3086, %v2574
        %v3088 = vpop.permute.xlu0 %3087
        %3091 = vset.pattern.permute.xlu0 0
        %3092 = vperm.xlu0 %3091, %v2575
        %v3093 = vpop.permute.xlu0 %3092
        %3096 = vset.pattern.permute.xlu0 0
        %3097 = vperm.xlu0 %3096, %v2576
        %v3098 = vpop.permute.xlu0 %3097
        %3101 = vset.pattern.permute.xlu0 0
        %3102 = vperm.xlu0 %3101, %v2577
        %v3103 = vpop.permute.xlu0 %3102
        %3106 = vset.pattern.permute.xlu0 0
        %3107 = vperm.xlu0 %3106, %v2578
        %v3108 = vpop.permute.xlu0 %3107
        %3111 = vset.pattern.permute.xlu0 0
        %3112 = vperm.xlu0 %3111, %v2579
        %v3113 = vpop.permute.xlu0 %3112
        %3116 = vset.pattern.permute.xlu0 0
        %3117 = vperm.xlu0 %3116, %v2580
        %v3118 = vpop.permute.xlu0 %3117
        %3121 = vset.pattern.permute.xlu0 0
        %3122 = vperm.xlu0 %3121, %v2581
        %v3123 = vpop.permute.xlu0 %3122
        %3126 = vset.pattern.permute.xlu0 0
        %3127 = vperm.xlu0 %3126, %v2582
        %v3128 = vpop.permute.xlu0 %3127
        %3131 = vset.pattern.permute.xlu0 0
        %3132 = vperm.xlu0 %3131, %v2583
        %v3133 = vpop.permute.xlu0 %3132
        %3136 = vset.pattern.permute.xlu0 0
        %3137 = vperm.xlu0 %3136, %v2584
        %v3138 = vpop.permute.xlu0 %3137
        %3141 = vset.pattern.permute.xlu0 0
        %3142 = vperm.xlu0 %3141, %v2585
        %v3143 = vpop.permute.xlu0 %3142
        %3146 = vset.pattern.permute.xlu0 0
        %3147 = vperm.xlu0 %3146, %v2586
        %v3148 = vpop.permute.xlu0 %3147
        %3151 = vset.pattern.permute.xlu0 0
        %3152 = vperm.xlu0 %3151, %v2587
        %v3153 = vpop.permute.xlu0 %3152
        %3156 = vset.pattern.permute.xlu0 0
        %3157 = vperm.xlu0 %3156, %v2588
        %v3158 = vpop.permute.xlu0 %3157
        %3161 = vset.pattern.permute.xlu0 0
        %3162 = vperm.xlu0 %3161, %v2589
        %v3163 = vpop.permute.xlu0 %3162
        %3166 = vset.pattern.permute.xlu0 0
        %3167 = vperm.xlu0 %3166, %v2590
        %v3168 = vpop.permute.xlu0 %3167
        %3171 = vset.pattern.permute.xlu0 0
        %3172 = vperm.xlu0 %3171, %v2591
        %v3173 = vpop.permute.xlu0 %3172
        %3176 = vset.pattern.permute.xlu0 0
        %3177 = vperm.xlu0 %3176, %v2592
        %v3178 = vpop.permute.xlu0 %3177
        %3181 = vset.pattern.permute.xlu0 0
        %3182 = vperm.xlu0 %3181, %v2593
        %v3183 = vpop.permute.xlu0 %3182
        %3186 = vset.pattern.permute.xlu0 0
        %3187 = vperm.xlu0 %3186, %v2594
        %v3188 = vpop.permute.xlu0 %3187
        %3191 = vset.pattern.permute.xlu0 0
        %3192 = vperm.xlu0 %3191, %v2595
        %v3193 = vpop.permute.xlu0 %3192
        %3196 = vset.pattern.permute.xlu0 0
        %3197 = vperm.xlu0 %3196, %v2596
        %v3198 = vpop.permute.xlu0 %3197
        %3201 = vset.pattern.permute.xlu0 0
        %3202 = vperm.xlu0 %3201, %v2597
        %v3203 = vpop.permute.xlu0 %3202
        %3206 = vset.pattern.permute.xlu0 0
        %3207 = vperm.xlu0 %3206, %v2598
        %v3208 = vpop.permute.xlu0 %3207
        %3211 = vset.pattern.permute.xlu0 0
        %3212 = vperm.xlu0 %3211, %v2599
        %v3213 = vpop.permute.xlu0 %3212
        %3216 = vset.pattern.permute.xlu0 0
        %3217 = vperm.xlu0 %3216, %v2600
        %v3218 = vpop.permute.xlu0 %3217
        %3221 = vset.pattern.permute.xlu0 0
        %3222 = vperm.xlu0 %3221, %v2601
        %v3223 = vpop.permute.xlu0 %3222
        %3226 = vset.pattern.permute.xlu0 0
        %3227 = vperm.xlu0 %3226, %v2602
        %v3228 = vpop.permute.xlu0 %3227
        %3231 = vset.pattern.permute.xlu0 0
        %3232 = vperm.xlu0 %3231, %v2603
        %v3233 = vpop.permute.xlu0 %3232
        %3236 = vset.pattern.permute.xlu0 0
        %3237 = vperm.xlu0 %3236, %v2604
        %v3238 = vpop.permute.xlu0 %3237
        %3241 = vset.pattern.permute.xlu0 0
        %3242 = vperm.xlu0 %3241, %v2605
        %v3243 = vpop.permute.xlu0 %3242
        %3246 = vset.pattern.permute.xlu0 0
        %3247 = vperm.xlu0 %3246, %v2606
        %v3248 = vpop.permute.xlu0 %3247
        %v3250 = vperm.slane %v2609, 0
        %v3251 = vmul.f32 %v2613, %v3250
        %v3252 = vmul.f32 %v2618, %v3250
        %v3253 = vmul.f32 %v2623, %v3250
        %v3254 = vmul.f32 %v2628, %v3250
        %v3255 = vmul.f32 %v2633, %v3250
        %v3256 = vmul.f32 %v2638, %v3250
        %v3257 = vmul.f32 %v2643, %v3250
        %v3258 = vmul.f32 %v2648, %v3250
        %v3259 = vmul.f32 %v2653, %v3250
        %v3260 = vmul.f32 %v2658, %v3250
        %v3261 = vmul.f32 %v2663, %v3250
        %v3262 = vmul.f32 %v2668, %v3250
        %v3263 = vmul.f32 %v2673, %v3250
        %v3264 = vmul.f32 %v2678, %v3250
        %v3265 = vmul.f32 %v2683, %v3250
        %v3266 = vmul.f32 %v2688, %v3250
        %v3267 = vmul.f32 %v2693, %v3250
        %v3268 = vmul.f32 %v2698, %v3250
        %v3269 = vmul.f32 %v2703, %v3250
        %v3270 = vmul.f32 %v2708, %v3250
        %v3271 = vmul.f32 %v2713, %v3250
        %v3272 = vmul.f32 %v2718, %v3250
        %v3273 = vmul.f32 %v2723, %v3250
        %v3274 = vmul.f32 %v2728, %v3250
        %v3275 = vmul.f32 %v2733, %v3250
        %v3276 = vmul.f32 %v2738, %v3250
        %v3277 = vmul.f32 %v2743, %v3250
        %v3278 = vmul.f32 %v2748, %v3250
        %v3279 = vmul.f32 %v2753, %v3250
        %v3280 = vmul.f32 %v2758, %v3250
        %v3281 = vmul.f32 %v2763, %v3250
        %v3282 = vmul.f32 %v2768, %v3250
        %v3283 = vmul.f32 %v2773, %v3250
        %v3284 = vmul.f32 %v2778, %v3250
        %v3285 = vmul.f32 %v2783, %v3250
        %v3286 = vmul.f32 %v2788, %v3250
        %v3287 = vmul.f32 %v2793, %v3250
        %v3288 = vmul.f32 %v2798, %v3250
        %v3289 = vmul.f32 %v2803, %v3250
        %v3290 = vmul.f32 %v2808, %v3250
        %v3291 = vmul.f32 %v2813, %v3250
        %v3292 = vmul.f32 %v2818, %v3250
        %v3293 = vmul.f32 %v2823, %v3250
        %v3294 = vmul.f32 %v2828, %v3250
        %v3295 = vmul.f32 %v2833, %v3250
        %v3296 = vmul.f32 %v2838, %v3250
        %v3297 = vmul.f32 %v2843, %v3250
        %v3298 = vmul.f32 %v2848, %v3250
        %v3299 = vmul.f32 %v2853, %v3250
        %v3300 = vmul.f32 %v2858, %v3250
        %v3301 = vmul.f32 %v2863, %v3250
        %v3302 = vmul.f32 %v2868, %v3250
        %v3303 = vmul.f32 %v2873, %v3250
        %v3304 = vmul.f32 %v2878, %v3250
        %v3305 = vmul.f32 %v2883, %v3250
        %v3306 = vmul.f32 %v2888, %v3250
        %v3307 = vmul.f32 %v2893, %v3250
        %v3308 = vmul.f32 %v2898, %v3250
        %v3309 = vmul.f32 %v2903, %v3250
        %v3310 = vmul.f32 %v2908, %v3250
        %v3311 = vmul.f32 %v2913, %v3250
        %v3312 = vmul.f32 %v2918, %v3250
        %v3313 = vmul.f32 %v2923, %v3250
        %v3314 = vmul.f32 %v2928, %v3250
        %v3315 = vmul.f32 %v2933, %v3250
        %v3316 = vmul.f32 %v2938, %v3250
        %v3317 = vmul.f32 %v2943, %v3250
        %v3318 = vmul.f32 %v2948, %v3250
        %v3319 = vmul.f32 %v2953, %v3250
        %v3320 = vmul.f32 %v2958, %v3250
        %v3321 = vmul.f32 %v2963, %v3250
        %v3322 = vmul.f32 %v2968, %v3250
        %v3323 = vmul.f32 %v2973, %v3250
        %v3324 = vmul.f32 %v2978, %v3250
        %v3325 = vmul.f32 %v2983, %v3250
        %v3326 = vmul.f32 %v2988, %v3250
        %v3327 = vmul.f32 %v2993, %v3250
        %v3328 = vmul.f32 %v2998, %v3250
        %v3329 = vmul.f32 %v3003, %v3250
        %v3330 = vmul.f32 %v3008, %v3250
        %v3331 = vmul.f32 %v3013, %v3250
        %v3332 = vmul.f32 %v3018, %v3250
        %v3333 = vmul.f32 %v3023, %v3250
        %v3334 = vmul.f32 %v3028, %v3250
        %v3335 = vmul.f32 %v3033, %v3250
        %v3336 = vmul.f32 %v3038, %v3250
        %v3337 = vmul.f32 %v3043, %v3250
        %v3338 = vmul.f32 %v3048, %v3250
        %v3339 = vmul.f32 %v3053, %v3250
        %v3340 = vmul.f32 %v3058, %v3250
        %v3341 = vmul.f32 %v3063, %v3250
        %v3342 = vmul.f32 %v3068, %v3250
        %v3343 = vmul.f32 %v3073, %v3250
        %v3344 = vmul.f32 %v3078, %v3250
        %v3345 = vmul.f32 %v3083, %v3250
        %v3346 = vmul.f32 %v3088, %v3250
        %v3347 = vmul.f32 %v3093, %v3250
        %v3348 = vmul.f32 %v3098, %v3250
        %v3349 = vmul.f32 %v3103, %v3250
        %v3350 = vmul.f32 %v3108, %v3250
        %v3351 = vmul.f32 %v3113, %v3250
        %v3352 = vmul.f32 %v3118, %v3250
        %v3353 = vmul.f32 %v3123, %v3250
        %v3354 = vmul.f32 %v3128, %v3250
        %v3355 = vmul.f32 %v3133, %v3250
        %v3356 = vmul.f32 %v3138, %v3250
        %v3357 = vmul.f32 %v3143, %v3250
        %v3358 = vmul.f32 %v3148, %v3250
        %v3359 = vmul.f32 %v3153, %v3250
        %v3360 = vmul.f32 %v3158, %v3250
        %v3361 = vmul.f32 %v3163, %v3250
        %v3362 = vmul.f32 %v3168, %v3250
        %v3363 = vmul.f32 %v3173, %v3250
        %v3364 = vmul.f32 %v3178, %v3250
        %v3365 = vmul.f32 %v3183, %v3250
        %v3366 = vmul.f32 %v3188, %v3250
        %v3367 = vmul.f32 %v3193, %v3250
        %v3368 = vmul.f32 %v3198, %v3250
        %v3369 = vmul.f32 %v3203, %v3250
        %v3370 = vmul.f32 %v3208, %v3250
        %v3371 = vmul.f32 %v3213, %v3250
        %v3372 = vmul.f32 %v3218, %v3250
        %v3373 = vmul.f32 %v3223, %v3250
        %v3374 = vmul.f32 %v3228, %v3250
        %v3375 = vmul.f32 %v3233, %v3250
        %v3376 = vmul.f32 %v3238, %v3250
        %v3377 = vmul.f32 %v3243, %v3250
        %v3378 = vmul.f32 %v3248, %v3250
        %v3379 = vadd.f32 %v2351, %v3251
        %v3380 = vadd.f32 %v2352, %v3252
        %v3381 = vadd.f32 %v2353, %v3253
        %v3382 = vadd.f32 %v2354, %v3254
        %v3383 = vadd.f32 %v2355, %v3255
        %v3384 = vadd.f32 %v2356, %v3256
        %v3385 = vadd.f32 %v2357, %v3257
        %v3386 = vadd.f32 %v2358, %v3258
        %v3387 = vadd.f32 %v2359, %v3259
        %v3388 = vadd.f32 %v2360, %v3260
        %v3389 = vadd.f32 %v2361, %v3261
        %v3390 = vadd.f32 %v2362, %v3262
        %v3391 = vadd.f32 %v2363, %v3263
        %v3392 = vadd.f32 %v2364, %v3264
        %v3393 = vadd.f32 %v2365, %v3265
        %v3394 = vadd.f32 %v2366, %v3266
        %v3395 = vadd.f32 %v2367, %v3267
        %v3396 = vadd.f32 %v2368, %v3268
        %v3397 = vadd.f32 %v2369, %v3269
        %v3398 = vadd.f32 %v2370, %v3270
        %v3399 = vadd.f32 %v2371, %v3271
        %v3400 = vadd.f32 %v2372, %v3272
        %v3401 = vadd.f32 %v2373, %v3273
        %v3402 = vadd.f32 %v2374, %v3274
        %v3403 = vadd.f32 %v2375, %v3275
        %v3404 = vadd.f32 %v2376, %v3276
        %v3405 = vadd.f32 %v2377, %v3277
        %v3406 = vadd.f32 %v2378, %v3278
        %v3407 = vadd.f32 %v2379, %v3279
        %v3408 = vadd.f32 %v2380, %v3280
        %v3409 = vadd.f32 %v2381, %v3281
        %v3410 = vadd.f32 %v2382, %v3282
        %v3411 = vadd.f32 %v2383, %v3283
        %v3412 = vadd.f32 %v2384, %v3284
        %v3413 = vadd.f32 %v2385, %v3285
        %v3414 = vadd.f32 %v2386, %v3286
        %v3415 = vadd.f32 %v2387, %v3287
        %v3416 = vadd.f32 %v2388, %v3288
        %v3417 = vadd.f32 %v2389, %v3289
        %v3418 = vadd.f32 %v2390, %v3290
        %v3419 = vadd.f32 %v2391, %v3291
        %v3420 = vadd.f32 %v2392, %v3292
        %v3421 = vadd.f32 %v2393, %v3293
        %v3422 = vadd.f32 %v2394, %v3294
        %v3423 = vadd.f32 %v2395, %v3295
        %v3424 = vadd.f32 %v2396, %v3296
        %v3425 = vadd.f32 %v2397, %v3297
        %v3426 = vadd.f32 %v2398, %v3298
        %v3427 = vadd.f32 %v2399, %v3299
        %v3428 = vadd.f32 %v2400, %v3300
        %v3429 = vadd.f32 %v2401, %v3301
        %v3430 = vadd.f32 %v2402, %v3302
        %v3431 = vadd.f32 %v2403, %v3303
        %v3432 = vadd.f32 %v2404, %v3304
        %v3433 = vadd.f32 %v2405, %v3305
        %v3434 = vadd.f32 %v2406, %v3306
        %v3435 = vadd.f32 %v2407, %v3307
        %v3436 = vadd.f32 %v2408, %v3308
        %v3437 = vadd.f32 %v2409, %v3309
        %v3438 = vadd.f32 %v2410, %v3310
        %v3439 = vadd.f32 %v2411, %v3311
        %v3440 = vadd.f32 %v2412, %v3312
        %v3441 = vadd.f32 %v2413, %v3313
        %v3442 = vadd.f32 %v2414, %v3314
        %v3443 = vadd.f32 %v2415, %v3315
        %v3444 = vadd.f32 %v2416, %v3316
        %v3445 = vadd.f32 %v2417, %v3317
        %v3446 = vadd.f32 %v2418, %v3318
        %v3447 = vadd.f32 %v2419, %v3319
        %v3448 = vadd.f32 %v2420, %v3320
        %v3449 = vadd.f32 %v2421, %v3321
        %v3450 = vadd.f32 %v2422, %v3322
        %v3451 = vadd.f32 %v2423, %v3323
        %v3452 = vadd.f32 %v2424, %v3324
        %v3453 = vadd.f32 %v2425, %v3325
        %v3454 = vadd.f32 %v2426, %v3326
        %v3455 = vadd.f32 %v2427, %v3327
        %v3456 = vadd.f32 %v2428, %v3328
        %v3457 = vadd.f32 %v2429, %v3329
        %v3458 = vadd.f32 %v2430, %v3330
        %v3459 = vadd.f32 %v2431, %v3331
        %v3460 = vadd.f32 %v2432, %v3332
        %v3461 = vadd.f32 %v2433, %v3333
        %v3462 = vadd.f32 %v2434, %v3334
        %v3463 = vadd.f32 %v2435, %v3335
        %v3464 = vadd.f32 %v2436, %v3336
        %v3465 = vadd.f32 %v2437, %v3337
        %v3466 = vadd.f32 %v2438, %v3338
        %v3467 = vadd.f32 %v2439, %v3339
        %v3468 = vadd.f32 %v2440, %v3340
        %v3469 = vadd.f32 %v2441, %v3341
        %v3470 = vadd.f32 %v2442, %v3342
        %v3471 = vadd.f32 %v2443, %v3343
        %v3472 = vadd.f32 %v2444, %v3344
        %v3473 = vadd.f32 %v2445, %v3345
        %v3474 = vadd.f32 %v2446, %v3346
        %v3475 = vadd.f32 %v2447, %v3347
        %v3476 = vadd.f32 %v2448, %v3348
        %v3477 = vadd.f32 %v2449, %v3349
        %v3478 = vadd.f32 %v2450, %v3350
        %v3479 = vadd.f32 %v2451, %v3351
        %v3480 = vadd.f32 %v2452, %v3352
        %v3481 = vadd.f32 %v2453, %v3353
        %v3482 = vadd.f32 %v2454, %v3354
        %v3483 = vadd.f32 %v2455, %v3355
        %v3484 = vadd.f32 %v2456, %v3356
        %v3485 = vadd.f32 %v2457, %v3357
        %v3486 = vadd.f32 %v2458, %v3358
        %v3487 = vadd.f32 %v2459, %v3359
        %v3488 = vadd.f32 %v2460, %v3360
        %v3489 = vadd.f32 %v2461, %v3361
        %v3490 = vadd.f32 %v2462, %v3362
        %v3491 = vadd.f32 %v2463, %v3363
        %v3492 = vadd.f32 %v2464, %v3364
        %v3493 = vadd.f32 %v2465, %v3365
        %v3494 = vadd.f32 %v2466, %v3366
        %v3495 = vadd.f32 %v2467, %v3367
        %v3496 = vadd.f32 %v2468, %v3368
        %v3497 = vadd.f32 %v2469, %v3369
        %v3498 = vadd.f32 %v2470, %v3370
        %v3499 = vadd.f32 %v2471, %v3371
        %v3500 = vadd.f32 %v2472, %v3372
        %v3501 = vadd.f32 %v2473, %v3373
        %v3502 = vadd.f32 %v2474, %v3374
        %v3503 = vadd.f32 %v2475, %v3375
        %v3504 = vadd.f32 %v2476, %v3376
        %v3505 = vadd.f32 %v2477, %v3377
        %v3506 = vadd.f32 %v2478, %v3378
        %v3507 = vld [vmem:[%s358] sm:$0xff]
        %v3508 = vld [vmem:[%s358 + $0x8] sm:$0xff]
        %v3509 = vld [vmem:[%s358 + $0x10] sm:$0xff]
        %v3510 = vld [vmem:[%s358 + $0x18] sm:$0xff]
        %v3511 = vld [vmem:[%s358 + $0x28] sm:$0xff]
        %v3512 = vld [vmem:[%s358 + $0x30] sm:$0xff]
        %v3513 = vld [vmem:[%s358 + $0x38] sm:$0xff]
        %v3514 = vld [vmem:[%s358 + $0x40] sm:$0xff]
        %v3515 = vld [vmem:[%s358 + $0x50] sm:$0xff]
        %v3516 = vld [vmem:[%s358 + $0x58] sm:$0xff]
        %v3517 = vld [vmem:[%s358 + $0x60] sm:$0xff]
        %v3518 = vld [vmem:[%s358 + $0x68] sm:$0xff]
        %v3519 = vld [vmem:[%s358 + $0x78] sm:$0xff]
        %v3520 = vld [vmem:[%s358 + $0x80] sm:$0xff]
        %v3521 = vld [vmem:[%s358 + $0x88] sm:$0xff]
        %v3522 = vld [vmem:[%s358 + $0x90] sm:$0xff]
        %v3523 = vld [vmem:[%s358 + $0xa0] sm:$0xff]
        %v3524 = vld [vmem:[%s358 + $0xa8] sm:$0xff]
        %v3525 = vld [vmem:[%s358 + $0xb0] sm:$0xff]
        %v3526 = vld [vmem:[%s358 + $0xb8] sm:$0xff]
        %v3527 = vld [vmem:[%s358 + $0xc8] sm:$0xff]
        %v3528 = vld [vmem:[%s358 + $0xd0] sm:$0xff]
        %v3529 = vld [vmem:[%s358 + $0xd8] sm:$0xff]
        %v3530 = vld [vmem:[%s358 + $0xe0] sm:$0xff]
        %v3531 = vld [vmem:[%s358 + $0xf0] sm:$0xff]
        %v3532 = vld [vmem:[%s358 + $0xf8] sm:$0xff]
        %v3533 = vld [vmem:[%s358 + $0x100] sm:$0xff]
        %v3534 = vld [vmem:[%s358 + $0x108] sm:$0xff]
        %v3535 = vld [vmem:[%s358 + $0x118] sm:$0xff]
        %v3536 = vld [vmem:[%s358 + $0x120] sm:$0xff]
        %v3537 = vld [vmem:[%s358 + $0x128] sm:$0xff]
        %v3538 = vld [vmem:[%s358 + $0x130] sm:$0xff]
        %v3539 = vld [vmem:[%s358 + $0x140] sm:$0xff]
        %v3540 = vld [vmem:[%s358 + $0x148] sm:$0xff]
        %v3541 = vld [vmem:[%s358 + $0x150] sm:$0xff]
        %v3542 = vld [vmem:[%s358 + $0x158] sm:$0xff]
        %v3543 = vld [vmem:[%s358 + $0x168] sm:$0xff]
        %v3544 = vld [vmem:[%s358 + $0x170] sm:$0xff]
        %v3545 = vld [vmem:[%s358 + $0x178] sm:$0xff]
        %v3546 = vld [vmem:[%s358 + $0x180] sm:$0xff]
        %v3547 = vld [vmem:[%s358 + $0x190] sm:$0xff]
        %v3548 = vld [vmem:[%s358 + $0x198] sm:$0xff]
        %v3549 = vld [vmem:[%s358 + $0x1a0] sm:$0xff]
        %v3550 = vld [vmem:[%s358 + $0x1a8] sm:$0xff]
        %v3551 = vld [vmem:[%s358 + $0x1b8] sm:$0xff]
        %v3552 = vld [vmem:[%s358 + $0x1c0] sm:$0xff]
        %v3553 = vld [vmem:[%s358 + $0x1c8] sm:$0xff]
        %v3554 = vld [vmem:[%s358 + $0x1d0] sm:$0xff]
        %v3555 = vld [vmem:[%s358 + $0x1e0] sm:$0xff]
        %v3556 = vld [vmem:[%s358 + $0x1e8] sm:$0xff]
        %v3557 = vld [vmem:[%s358 + $0x1f0] sm:$0xff]
        %v3558 = vld [vmem:[%s358 + $0x1f8] sm:$0xff]
        %v3559 = vld [vmem:[%s358 + $0x208] sm:$0xff]
        %v3560 = vld [vmem:[%s358 + $0x210] sm:$0xff]
        %v3561 = vld [vmem:[%s358 + $0x218] sm:$0xff]
        %v3562 = vld [vmem:[%s358 + $0x220] sm:$0xff]
        %v3563 = vld [vmem:[%s358 + $0x230] sm:$0xff]
        %v3564 = vld [vmem:[%s358 + $0x238] sm:$0xff]
        %v3565 = vld [vmem:[%s358 + $0x240] sm:$0xff]
        %v3566 = vld [vmem:[%s358 + $0x248] sm:$0xff]
        %v3567 = vld [vmem:[%s358 + $0x258] sm:$0xff]
        %v3568 = vld [vmem:[%s358 + $0x260] sm:$0xff]
        %v3569 = vld [vmem:[%s358 + $0x268] sm:$0xff]
        %v3570 = vld [vmem:[%s358 + $0x270] sm:$0xff]
        %v3571 = vld [vmem:[%s358 + $0x280] sm:$0xff]
        %v3572 = vld [vmem:[%s358 + $0x288] sm:$0xff]
        %v3573 = vld [vmem:[%s358 + $0x290] sm:$0xff]
        %v3574 = vld [vmem:[%s358 + $0x298] sm:$0xff]
        %v3575 = vld [vmem:[%s358 + $0x2a8] sm:$0xff]
        %v3576 = vld [vmem:[%s358 + $0x2b0] sm:$0xff]
        %v3577 = vld [vmem:[%s358 + $0x2b8] sm:$0xff]
        %v3578 = vld [vmem:[%s358 + $0x2c0] sm:$0xff]
        %v3579 = vld [vmem:[%s358 + $0x2d0] sm:$0xff]
        %v3580 = vld [vmem:[%s358 + $0x2d8] sm:$0xff]
        %v3581 = vld [vmem:[%s358 + $0x2e0] sm:$0xff]
        %v3582 = vld [vmem:[%s358 + $0x2e8] sm:$0xff]
        %v3583 = vld [vmem:[%s358 + $0x2f8] sm:$0xff]
        %v3584 = vld [vmem:[%s358 + $0x300] sm:$0xff]
        %v3585 = vld [vmem:[%s358 + $0x308] sm:$0xff]
        %v3586 = vld [vmem:[%s358 + $0x310] sm:$0xff]
        %v3587 = vld [vmem:[%s358 + $0x320] sm:$0xff]
        %v3588 = vld [vmem:[%s358 + $0x328] sm:$0xff]
        %v3589 = vld [vmem:[%s358 + $0x330] sm:$0xff]
        %v3590 = vld [vmem:[%s358 + $0x338] sm:$0xff]
        %v3591 = vld [vmem:[%s358 + $0x348] sm:$0xff]
        %v3592 = vld [vmem:[%s358 + $0x350] sm:$0xff]
        %v3593 = vld [vmem:[%s358 + $0x358] sm:$0xff]
        %v3594 = vld [vmem:[%s358 + $0x360] sm:$0xff]
        %v3595 = vld [vmem:[%s358 + $0x370] sm:$0xff]
        %v3596 = vld [vmem:[%s358 + $0x378] sm:$0xff]
        %v3597 = vld [vmem:[%s358 + $0x380] sm:$0xff]
        %v3598 = vld [vmem:[%s358 + $0x388] sm:$0xff]
        %v3599 = vld [vmem:[%s358 + $0x398] sm:$0xff]
        %v3600 = vld [vmem:[%s358 + $0x3a0] sm:$0xff]
        %v3601 = vld [vmem:[%s358 + $0x3a8] sm:$0xff]
        %v3602 = vld [vmem:[%s358 + $0x3b0] sm:$0xff]
        %v3603 = vld [vmem:[%s358 + $0x3c0] sm:$0xff]
        %v3604 = vld [vmem:[%s358 + $0x3c8] sm:$0xff]
        %v3605 = vld [vmem:[%s358 + $0x3d0] sm:$0xff]
        %v3606 = vld [vmem:[%s358 + $0x3d8] sm:$0xff]
        %v3607 = vld [vmem:[%s358 + $0x3e8] sm:$0xff]
        %v3608 = vld [vmem:[%s358 + $0x3f0] sm:$0xff]
        %v3609 = vld [vmem:[%s358 + $0x3f8] sm:$0xff]
        %v3610 = vld [vmem:[%s358 + $0x400] sm:$0xff]
        %v3611 = vld [vmem:[%s358 + $0x410] sm:$0xff]
        %v3612 = vld [vmem:[%s358 + $0x418] sm:$0xff]
        %v3613 = vld [vmem:[%s358 + $0x420] sm:$0xff]
        %v3614 = vld [vmem:[%s358 + $0x428] sm:$0xff]
        %v3615 = vld [vmem:[%s358 + $0x438] sm:$0xff]
        %v3616 = vld [vmem:[%s358 + $0x440] sm:$0xff]
        %v3617 = vld [vmem:[%s358 + $0x448] sm:$0xff]
        %v3618 = vld [vmem:[%s358 + $0x450] sm:$0xff]
        %v3619 = vld [vmem:[%s358 + $0x460] sm:$0xff]
        %v3620 = vld [vmem:[%s358 + $0x468] sm:$0xff]
        %v3621 = vld [vmem:[%s358 + $0x470] sm:$0xff]
        %v3622 = vld [vmem:[%s358 + $0x478] sm:$0xff]
        %v3623 = vld [vmem:[%s358 + $0x488] sm:$0xff]
        %v3624 = vld [vmem:[%s358 + $0x490] sm:$0xff]
        %v3625 = vld [vmem:[%s358 + $0x498] sm:$0xff]
        %v3626 = vld [vmem:[%s358 + $0x4a0] sm:$0xff]
        %v3627 = vld [vmem:[%s358 + $0x4b0] sm:$0xff]
        %v3628 = vld [vmem:[%s358 + $0x4b8] sm:$0xff]
        %v3629 = vld [vmem:[%s358 + $0x4c0] sm:$0xff]
        %v3630 = vld [vmem:[%s358 + $0x4c8] sm:$0xff]
        %v3631 = vld [vmem:[%s358 + $0x4d8] sm:$0xff]
        %v3632 = vld [vmem:[%s358 + $0x4e0] sm:$0xff]
        %v3633 = vld [vmem:[%s358 + $0x4e8] sm:$0xff]
        %v3634 = vld [vmem:[%s358 + $0x4f0] sm:$0xff]
        %s3635 = scalar_lea.vmem %s1, 3
        %v3636 = vld [vmem:[%s3635] sm:$0x1]
        %v3637 = vunpack.c.l.bf16 %v3636
        %3639 = vset.pattern.permute.xlu0 0
        %3640 = vperm.xlu0 %3639, %v3507
        %v3641 = vpop.permute.xlu0 %3640
        %3644 = vset.pattern.permute.xlu0 0
        %3645 = vperm.xlu0 %3644, %v3508
        %v3646 = vpop.permute.xlu0 %3645
        %3649 = vset.pattern.permute.xlu0 0
        %3650 = vperm.xlu0 %3649, %v3509
        %v3651 = vpop.permute.xlu0 %3650
        %3654 = vset.pattern.permute.xlu0 0
        %3655 = vperm.xlu0 %3654, %v3510
        %v3656 = vpop.permute.xlu0 %3655
        %3659 = vset.pattern.permute.xlu0 0
        %3660 = vperm.xlu0 %3659, %v3511
        %v3661 = vpop.permute.xlu0 %3660
        %3664 = vset.pattern.permute.xlu0 0
        %3665 = vperm.xlu0 %3664, %v3512
        %v3666 = vpop.permute.xlu0 %3665
        %3669 = vset.pattern.permute.xlu0 0
        %3670 = vperm.xlu0 %3669, %v3513
        %v3671 = vpop.permute.xlu0 %3670
        %3674 = vset.pattern.permute.xlu0 0
        %3675 = vperm.xlu0 %3674, %v3514
        %v3676 = vpop.permute.xlu0 %3675
        %3679 = vset.pattern.permute.xlu0 0
        %3680 = vperm.xlu0 %3679, %v3515
        %v3681 = vpop.permute.xlu0 %3680
        %3684 = vset.pattern.permute.xlu0 0
        %3685 = vperm.xlu0 %3684, %v3516
        %v3686 = vpop.permute.xlu0 %3685
        %3689 = vset.pattern.permute.xlu0 0
        %3690 = vperm.xlu0 %3689, %v3517
        %v3691 = vpop.permute.xlu0 %3690
        %3694 = vset.pattern.permute.xlu0 0
        %3695 = vperm.xlu0 %3694, %v3518
        %v3696 = vpop.permute.xlu0 %3695
        %3699 = vset.pattern.permute.xlu0 0
        %3700 = vperm.xlu0 %3699, %v3519
        %v3701 = vpop.permute.xlu0 %3700
        %3704 = vset.pattern.permute.xlu0 0
        %3705 = vperm.xlu0 %3704, %v3520
        %v3706 = vpop.permute.xlu0 %3705
        %3709 = vset.pattern.permute.xlu0 0
        %3710 = vperm.xlu0 %3709, %v3521
        %v3711 = vpop.permute.xlu0 %3710
        %3714 = vset.pattern.permute.xlu0 0
        %3715 = vperm.xlu0 %3714, %v3522
        %v3716 = vpop.permute.xlu0 %3715
        %3719 = vset.pattern.permute.xlu0 0
        %3720 = vperm.xlu0 %3719, %v3523
        %v3721 = vpop.permute.xlu0 %3720
        %3724 = vset.pattern.permute.xlu0 0
        %3725 = vperm.xlu0 %3724, %v3524
        %v3726 = vpop.permute.xlu0 %3725
        %3729 = vset.pattern.permute.xlu0 0
        %3730 = vperm.xlu0 %3729, %v3525
        %v3731 = vpop.permute.xlu0 %3730
        %3734 = vset.pattern.permute.xlu0 0
        %3735 = vperm.xlu0 %3734, %v3526
        %v3736 = vpop.permute.xlu0 %3735
        %3739 = vset.pattern.permute.xlu0 0
        %3740 = vperm.xlu0 %3739, %v3527
        %v3741 = vpop.permute.xlu0 %3740
        %3744 = vset.pattern.permute.xlu0 0
        %3745 = vperm.xlu0 %3744, %v3528
        %v3746 = vpop.permute.xlu0 %3745
        %3749 = vset.pattern.permute.xlu0 0
        %3750 = vperm.xlu0 %3749, %v3529
        %v3751 = vpop.permute.xlu0 %3750
        %3754 = vset.pattern.permute.xlu0 0
        %3755 = vperm.xlu0 %3754, %v3530
        %v3756 = vpop.permute.xlu0 %3755
        %3759 = vset.pattern.permute.xlu0 0
        %3760 = vperm.xlu0 %3759, %v3531
        %v3761 = vpop.permute.xlu0 %3760
        %3764 = vset.pattern.permute.xlu0 0
        %3765 = vperm.xlu0 %3764, %v3532
        %v3766 = vpop.permute.xlu0 %3765
        %3769 = vset.pattern.permute.xlu0 0
        %3770 = vperm.xlu0 %3769, %v3533
        %v3771 = vpop.permute.xlu0 %3770
        %3774 = vset.pattern.permute.xlu0 0
        %3775 = vperm.xlu0 %3774, %v3534
        %v3776 = vpop.permute.xlu0 %3775
        %3779 = vset.pattern.permute.xlu0 0
        %3780 = vperm.xlu0 %3779, %v3535
        %v3781 = vpop.permute.xlu0 %3780
        %3784 = vset.pattern.permute.xlu0 0
        %3785 = vperm.xlu0 %3784, %v3536
        %v3786 = vpop.permute.xlu0 %3785
        %3789 = vset.pattern.permute.xlu0 0
        %3790 = vperm.xlu0 %3789, %v3537
        %v3791 = vpop.permute.xlu0 %3790
        %3794 = vset.pattern.permute.xlu0 0
        %3795 = vperm.xlu0 %3794, %v3538
        %v3796 = vpop.permute.xlu0 %3795
        %3799 = vset.pattern.permute.xlu0 0
        %3800 = vperm.xlu0 %3799, %v3539
        %v3801 = vpop.permute.xlu0 %3800
        %3804 = vset.pattern.permute.xlu0 0
        %3805 = vperm.xlu0 %3804, %v3540
        %v3806 = vpop.permute.xlu0 %3805
        %3809 = vset.pattern.permute.xlu0 0
        %3810 = vperm.xlu0 %3809, %v3541
        %v3811 = vpop.permute.xlu0 %3810
        %3814 = vset.pattern.permute.xlu0 0
        %3815 = vperm.xlu0 %3814, %v3542
        %v3816 = vpop.permute.xlu0 %3815
        %3819 = vset.pattern.permute.xlu0 0
        %3820 = vperm.xlu0 %3819, %v3543
        %v3821 = vpop.permute.xlu0 %3820
        %3824 = vset.pattern.permute.xlu0 0
        %3825 = vperm.xlu0 %3824, %v3544
        %v3826 = vpop.permute.xlu0 %3825
        %3829 = vset.pattern.permute.xlu0 0
        %3830 = vperm.xlu0 %3829, %v3545
        %v3831 = vpop.permute.xlu0 %3830
        %3834 = vset.pattern.permute.xlu0 0
        %3835 = vperm.xlu0 %3834, %v3546
        %v3836 = vpop.permute.xlu0 %3835
        %3839 = vset.pattern.permute.xlu0 0
        %3840 = vperm.xlu0 %3839, %v3547
        %v3841 = vpop.permute.xlu0 %3840
        %3844 = vset.pattern.permute.xlu0 0
        %3845 = vperm.xlu0 %3844, %v3548
        %v3846 = vpop.permute.xlu0 %3845
        %3849 = vset.pattern.permute.xlu0 0
        %3850 = vperm.xlu0 %3849, %v3549
        %v3851 = vpop.permute.xlu0 %3850
        %3854 = vset.pattern.permute.xlu0 0
        %3855 = vperm.xlu0 %3854, %v3550
        %v3856 = vpop.permute.xlu0 %3855
        %3859 = vset.pattern.permute.xlu0 0
        %3860 = vperm.xlu0 %3859, %v3551
        %v3861 = vpop.permute.xlu0 %3860
        %3864 = vset.pattern.permute.xlu0 0
        %3865 = vperm.xlu0 %3864, %v3552
        %v3866 = vpop.permute.xlu0 %3865
        %3869 = vset.pattern.permute.xlu0 0
        %3870 = vperm.xlu0 %3869, %v3553
        %v3871 = vpop.permute.xlu0 %3870
        %3874 = vset.pattern.permute.xlu0 0
        %3875 = vperm.xlu0 %3874, %v3554
        %v3876 = vpop.permute.xlu0 %3875
        %3879 = vset.pattern.permute.xlu0 0
        %3880 = vperm.xlu0 %3879, %v3555
        %v3881 = vpop.permute.xlu0 %3880
        %3884 = vset.pattern.permute.xlu0 0
        %3885 = vperm.xlu0 %3884, %v3556
        %v3886 = vpop.permute.xlu0 %3885
        %3889 = vset.pattern.permute.xlu0 0
        %3890 = vperm.xlu0 %3889, %v3557
        %v3891 = vpop.permute.xlu0 %3890
        %3894 = vset.pattern.permute.xlu0 0
        %3895 = vperm.xlu0 %3894, %v3558
        %v3896 = vpop.permute.xlu0 %3895
        %3899 = vset.pattern.permute.xlu0 0
        %3900 = vperm.xlu0 %3899, %v3559
        %v3901 = vpop.permute.xlu0 %3900
        %3904 = vset.pattern.permute.xlu0 0
        %3905 = vperm.xlu0 %3904, %v3560
        %v3906 = vpop.permute.xlu0 %3905
        %3909 = vset.pattern.permute.xlu0 0
        %3910 = vperm.xlu0 %3909, %v3561
        %v3911 = vpop.permute.xlu0 %3910
        %3914 = vset.pattern.permute.xlu0 0
        %3915 = vperm.xlu0 %3914, %v3562
        %v3916 = vpop.permute.xlu0 %3915
        %3919 = vset.pattern.permute.xlu0 0
        %3920 = vperm.xlu0 %3919, %v3563
        %v3921 = vpop.permute.xlu0 %3920
        %3924 = vset.pattern.permute.xlu0 0
        %3925 = vperm.xlu0 %3924, %v3564
        %v3926 = vpop.permute.xlu0 %3925
        %3929 = vset.pattern.permute.xlu0 0
        %3930 = vperm.xlu0 %3929, %v3565
        %v3931 = vpop.permute.xlu0 %3930
        %3934 = vset.pattern.permute.xlu0 0
        %3935 = vperm.xlu0 %3934, %v3566
        %v3936 = vpop.permute.xlu0 %3935
        %3939 = vset.pattern.permute.xlu0 0
        %3940 = vperm.xlu0 %3939, %v3567
        %v3941 = vpop.permute.xlu0 %3940
        %3944 = vset.pattern.permute.xlu0 0
        %3945 = vperm.xlu0 %3944, %v3568
        %v3946 = vpop.permute.xlu0 %3945
        %3949 = vset.pattern.permute.xlu0 0
        %3950 = vperm.xlu0 %3949, %v3569
        %v3951 = vpop.permute.xlu0 %3950
        %3954 = vset.pattern.permute.xlu0 0
        %3955 = vperm.xlu0 %3954, %v3570
        %v3956 = vpop.permute.xlu0 %3955
        %3959 = vset.pattern.permute.xlu0 0
        %3960 = vperm.xlu0 %3959, %v3571
        %v3961 = vpop.permute.xlu0 %3960
        %3964 = vset.pattern.permute.xlu0 0
        %3965 = vperm.xlu0 %3964, %v3572
        %v3966 = vpop.permute.xlu0 %3965
        %3969 = vset.pattern.permute.xlu0 0
        %3970 = vperm.xlu0 %3969, %v3573
        %v3971 = vpop.permute.xlu0 %3970
        %3974 = vset.pattern.permute.xlu0 0
        %3975 = vperm.xlu0 %3974, %v3574
        %v3976 = vpop.permute.xlu0 %3975
        %3979 = vset.pattern.permute.xlu0 0
        %3980 = vperm.xlu0 %3979, %v3575
        %v3981 = vpop.permute.xlu0 %3980
        %3984 = vset.pattern.permute.xlu0 0
        %3985 = vperm.xlu0 %3984, %v3576
        %v3986 = vpop.permute.xlu0 %3985
        %3989 = vset.pattern.permute.xlu0 0
        %3990 = vperm.xlu0 %3989, %v3577
        %v3991 = vpop.permute.xlu0 %3990
        %3994 = vset.pattern.permute.xlu0 0
        %3995 = vperm.xlu0 %3994, %v3578
        %v3996 = vpop.permute.xlu0 %3995
        %3999 = vset.pattern.permute.xlu0 0
        %4000 = vperm.xlu0 %3999, %v3579
        %v4001 = vpop.permute.xlu0 %4000
        %4004 = vset.pattern.permute.xlu0 0
        %4005 = vperm.xlu0 %4004, %v3580
        %v4006 = vpop.permute.xlu0 %4005
        %4009 = vset.pattern.permute.xlu0 0
        %4010 = vperm.xlu0 %4009, %v3581
        %v4011 = vpop.permute.xlu0 %4010
        %4014 = vset.pattern.permute.xlu0 0
        %4015 = vperm.xlu0 %4014, %v3582
        %v4016 = vpop.permute.xlu0 %4015
        %4019 = vset.pattern.permute.xlu0 0
        %4020 = vperm.xlu0 %4019, %v3583
        %v4021 = vpop.permute.xlu0 %4020
        %4024 = vset.pattern.permute.xlu0 0
        %4025 = vperm.xlu0 %4024, %v3584
        %v4026 = vpop.permute.xlu0 %4025
        %4029 = vset.pattern.permute.xlu0 0
        %4030 = vperm.xlu0 %4029, %v3585
        %v4031 = vpop.permute.xlu0 %4030
        %4034 = vset.pattern.permute.xlu0 0
        %4035 = vperm.xlu0 %4034, %v3586
        %v4036 = vpop.permute.xlu0 %4035
        %4039 = vset.pattern.permute.xlu0 0
        %4040 = vperm.xlu0 %4039, %v3587
        %v4041 = vpop.permute.xlu0 %4040
        %4044 = vset.pattern.permute.xlu0 0
        %4045 = vperm.xlu0 %4044, %v3588
        %v4046 = vpop.permute.xlu0 %4045
        %4049 = vset.pattern.permute.xlu0 0
        %4050 = vperm.xlu0 %4049, %v3589
        %v4051 = vpop.permute.xlu0 %4050
        %4054 = vset.pattern.permute.xlu0 0
        %4055 = vperm.xlu0 %4054, %v3590
        %v4056 = vpop.permute.xlu0 %4055
        %4059 = vset.pattern.permute.xlu0 0
        %4060 = vperm.xlu0 %4059, %v3591
        %v4061 = vpop.permute.xlu0 %4060
        %4064 = vset.pattern.permute.xlu0 0
        %4065 = vperm.xlu0 %4064, %v3592
        %v4066 = vpop.permute.xlu0 %4065
        %4069 = vset.pattern.permute.xlu0 0
        %4070 = vperm.xlu0 %4069, %v3593
        %v4071 = vpop.permute.xlu0 %4070
        %4074 = vset.pattern.permute.xlu0 0
        %4075 = vperm.xlu0 %4074, %v3594
        %v4076 = vpop.permute.xlu0 %4075
        %4079 = vset.pattern.permute.xlu0 0
        %4080 = vperm.xlu0 %4079, %v3595
        %v4081 = vpop.permute.xlu0 %4080
        %4084 = vset.pattern.permute.xlu0 0
        %4085 = vperm.xlu0 %4084, %v3596
        %v4086 = vpop.permute.xlu0 %4085
        %4089 = vset.pattern.permute.xlu0 0
        %4090 = vperm.xlu0 %4089, %v3597
        %v4091 = vpop.permute.xlu0 %4090
        %4094 = vset.pattern.permute.xlu0 0
        %4095 = vperm.xlu0 %4094, %v3598
        %v4096 = vpop.permute.xlu0 %4095
        %4099 = vset.pattern.permute.xlu0 0
        %4100 = vperm.xlu0 %4099, %v3599
        %v4101 = vpop.permute.xlu0 %4100
        %4104 = vset.pattern.permute.xlu0 0
        %4105 = vperm.xlu0 %4104, %v3600
        %v4106 = vpop.permute.xlu0 %4105
        %4109 = vset.pattern.permute.xlu0 0
        %4110 = vperm.xlu0 %4109, %v3601
        %v4111 = vpop.permute.xlu0 %4110
        %4114 = vset.pattern.permute.xlu0 0
        %4115 = vperm.xlu0 %4114, %v3602
        %v4116 = vpop.permute.xlu0 %4115
        %4119 = vset.pattern.permute.xlu0 0
        %4120 = vperm.xlu0 %4119, %v3603
        %v4121 = vpop.permute.xlu0 %4120
        %4124 = vset.pattern.permute.xlu0 0
        %4125 = vperm.xlu0 %4124, %v3604
        %v4126 = vpop.permute.xlu0 %4125
        %4129 = vset.pattern.permute.xlu0 0
        %4130 = vperm.xlu0 %4129, %v3605
        %v4131 = vpop.permute.xlu0 %4130
        %4134 = vset.pattern.permute.xlu0 0
        %4135 = vperm.xlu0 %4134, %v3606
        %v4136 = vpop.permute.xlu0 %4135
        %4139 = vset.pattern.permute.xlu0 0
        %4140 = vperm.xlu0 %4139, %v3607
        %v4141 = vpop.permute.xlu0 %4140
        %4144 = vset.pattern.permute.xlu0 0
        %4145 = vperm.xlu0 %4144, %v3608
        %v4146 = vpop.permute.xlu0 %4145
        %4149 = vset.pattern.permute.xlu0 0
        %4150 = vperm.xlu0 %4149, %v3609
        %v4151 = vpop.permute.xlu0 %4150
        %4154 = vset.pattern.permute.xlu0 0
        %4155 = vperm.xlu0 %4154, %v3610
        %v4156 = vpop.permute.xlu0 %4155
        %4159 = vset.pattern.permute.xlu0 0
        %4160 = vperm.xlu0 %4159, %v3611
        %v4161 = vpop.permute.xlu0 %4160
        %4164 = vset.pattern.permute.xlu0 0
        %4165 = vperm.xlu0 %4164, %v3612
        %v4166 = vpop.permute.xlu0 %4165
        %4169 = vset.pattern.permute.xlu0 0
        %4170 = vperm.xlu0 %4169, %v3613
        %v4171 = vpop.permute.xlu0 %4170
        %4174 = vset.pattern.permute.xlu0 0
        %4175 = vperm.xlu0 %4174, %v3614
        %v4176 = vpop.permute.xlu0 %4175
        %4179 = vset.pattern.permute.xlu0 0
        %4180 = vperm.xlu0 %4179, %v3615
        %v4181 = vpop.permute.xlu0 %4180
        %4184 = vset.pattern.permute.xlu0 0
        %4185 = vperm.xlu0 %4184, %v3616
        %v4186 = vpop.permute.xlu0 %4185
        %4189 = vset.pattern.permute.xlu0 0
        %4190 = vperm.xlu0 %4189, %v3617
        %v4191 = vpop.permute.xlu0 %4190
        %4194 = vset.pattern.permute.xlu0 0
        %4195 = vperm.xlu0 %4194, %v3618
        %v4196 = vpop.permute.xlu0 %4195
        %4199 = vset.pattern.permute.xlu0 0
        %4200 = vperm.xlu0 %4199, %v3619
        %v4201 = vpop.permute.xlu0 %4200
        %4204 = vset.pattern.permute.xlu0 0
        %4205 = vperm.xlu0 %4204, %v3620
        %v4206 = vpop.permute.xlu0 %4205
        %4209 = vset.pattern.permute.xlu0 0
        %4210 = vperm.xlu0 %4209, %v3621
        %v4211 = vpop.permute.xlu0 %4210
        %4214 = vset.pattern.permute.xlu0 0
        %4215 = vperm.xlu0 %4214, %v3622
        %v4216 = vpop.permute.xlu0 %4215
        %4219 = vset.pattern.permute.xlu0 0
        %4220 = vperm.xlu0 %4219, %v3623
        %v4221 = vpop.permute.xlu0 %4220
        %4224 = vset.pattern.permute.xlu0 0
        %4225 = vperm.xlu0 %4224, %v3624
        %v4226 = vpop.permute.xlu0 %4225
        %4229 = vset.pattern.permute.xlu0 0
        %4230 = vperm.xlu0 %4229, %v3625
        %v4231 = vpop.permute.xlu0 %4230
        %4234 = vset.pattern.permute.xlu0 0
        %4235 = vperm.xlu0 %4234, %v3626
        %v4236 = vpop.permute.xlu0 %4235
        %4239 = vset.pattern.permute.xlu0 0
        %4240 = vperm.xlu0 %4239, %v3627
        %v4241 = vpop.permute.xlu0 %4240
        %4244 = vset.pattern.permute.xlu0 0
        %4245 = vperm.xlu0 %4244, %v3628
        %v4246 = vpop.permute.xlu0 %4245
        %4249 = vset.pattern.permute.xlu0 0
        %4250 = vperm.xlu0 %4249, %v3629
        %v4251 = vpop.permute.xlu0 %4250
        %4254 = vset.pattern.permute.xlu0 0
        %4255 = vperm.xlu0 %4254, %v3630
        %v4256 = vpop.permute.xlu0 %4255
        %4259 = vset.pattern.permute.xlu0 0
        %4260 = vperm.xlu0 %4259, %v3631
        %v4261 = vpop.permute.xlu0 %4260
        %4264 = vset.pattern.permute.xlu0 0
        %4265 = vperm.xlu0 %4264, %v3632
        %v4266 = vpop.permute.xlu0 %4265
        %4269 = vset.pattern.permute.xlu0 0
        %4270 = vperm.xlu0 %4269, %v3633
        %v4271 = vpop.permute.xlu0 %4270
        %4274 = vset.pattern.permute.xlu0 0
        %4275 = vperm.xlu0 %4274, %v3634
        %v4276 = vpop.permute.xlu0 %4275
        %v4278 = vperm.slane %v3637, 0
        %v4279 = vmul.f32 %v3641, %v4278
        %v4280 = vmul.f32 %v3646, %v4278
        %v4281 = vmul.f32 %v3651, %v4278
        %v4282 = vmul.f32 %v3656, %v4278
        %v4283 = vmul.f32 %v3661, %v4278
        %v4284 = vmul.f32 %v3666, %v4278
        %v4285 = vmul.f32 %v3671, %v4278
        %v4286 = vmul.f32 %v3676, %v4278
        %v4287 = vmul.f32 %v3681, %v4278
        %v4288 = vmul.f32 %v3686, %v4278
        %v4289 = vmul.f32 %v3691, %v4278
        %v4290 = vmul.f32 %v3696, %v4278
        %v4291 = vmul.f32 %v3701, %v4278
        %v4292 = vmul.f32 %v3706, %v4278
        %v4293 = vmul.f32 %v3711, %v4278
        %v4294 = vmul.f32 %v3716, %v4278
        %v4295 = vmul.f32 %v3721, %v4278
        %v4296 = vmul.f32 %v3726, %v4278
        %v4297 = vmul.f32 %v3731, %v4278
        %v4298 = vmul.f32 %v3736, %v4278
        %v4299 = vmul.f32 %v3741, %v4278
        %v4300 = vmul.f32 %v3746, %v4278
        %v4301 = vmul.f32 %v3751, %v4278
        %v4302 = vmul.f32 %v3756, %v4278
        %v4303 = vmul.f32 %v3761, %v4278
        %v4304 = vmul.f32 %v3766, %v4278
        %v4305 = vmul.f32 %v3771, %v4278
        %v4306 = vmul.f32 %v3776, %v4278
        %v4307 = vmul.f32 %v3781, %v4278
        %v4308 = vmul.f32 %v3786, %v4278
        %v4309 = vmul.f32 %v3791, %v4278
        %v4310 = vmul.f32 %v3796, %v4278
        %v4311 = vmul.f32 %v3801, %v4278
        %v4312 = vmul.f32 %v3806, %v4278
        %v4313 = vmul.f32 %v3811, %v4278
        %v4314 = vmul.f32 %v3816, %v4278
        %v4315 = vmul.f32 %v3821, %v4278
        %v4316 = vmul.f32 %v3826, %v4278
        %v4317 = vmul.f32 %v3831, %v4278
        %v4318 = vmul.f32 %v3836, %v4278
        %v4319 = vmul.f32 %v3841, %v4278
        %v4320 = vmul.f32 %v3846, %v4278
        %v4321 = vmul.f32 %v3851, %v4278
        %v4322 = vmul.f32 %v3856, %v4278
        %v4323 = vmul.f32 %v3861, %v4278
        %v4324 = vmul.f32 %v3866, %v4278
        %v4325 = vmul.f32 %v3871, %v4278
        %v4326 = vmul.f32 %v3876, %v4278
        %v4327 = vmul.f32 %v3881, %v4278
        %v4328 = vmul.f32 %v3886, %v4278
        %v4329 = vmul.f32 %v3891, %v4278
        %v4330 = vmul.f32 %v3896, %v4278
        %v4331 = vmul.f32 %v3901, %v4278
        %v4332 = vmul.f32 %v3906, %v4278
        %v4333 = vmul.f32 %v3911, %v4278
        %v4334 = vmul.f32 %v3916, %v4278
        %v4335 = vmul.f32 %v3921, %v4278
        %v4336 = vmul.f32 %v3926, %v4278
        %v4337 = vmul.f32 %v3931, %v4278
        %v4338 = vmul.f32 %v3936, %v4278
        %v4339 = vmul.f32 %v3941, %v4278
        %v4340 = vmul.f32 %v3946, %v4278
        %v4341 = vmul.f32 %v3951, %v4278
        %v4342 = vmul.f32 %v3956, %v4278
        %v4343 = vmul.f32 %v3961, %v4278
        %v4344 = vmul.f32 %v3966, %v4278
        %v4345 = vmul.f32 %v3971, %v4278
        %v4346 = vmul.f32 %v3976, %v4278
        %v4347 = vmul.f32 %v3981, %v4278
        %v4348 = vmul.f32 %v3986, %v4278
        %v4349 = vmul.f32 %v3991, %v4278
        %v4350 = vmul.f32 %v3996, %v4278
        %v4351 = vmul.f32 %v4001, %v4278
        %v4352 = vmul.f32 %v4006, %v4278
        %v4353 = vmul.f32 %v4011, %v4278
        %v4354 = vmul.f32 %v4016, %v4278
        %v4355 = vmul.f32 %v4021, %v4278
        %v4356 = vmul.f32 %v4026, %v4278
        %v4357 = vmul.f32 %v4031, %v4278
        %v4358 = vmul.f32 %v4036, %v4278
        %v4359 = vmul.f32 %v4041, %v4278
        %v4360 = vmul.f32 %v4046, %v4278
        %v4361 = vmul.f32 %v4051, %v4278
        %v4362 = vmul.f32 %v4056, %v4278
        %v4363 = vmul.f32 %v4061, %v4278
        %v4364 = vmul.f32 %v4066, %v4278
        %v4365 = vmul.f32 %v4071, %v4278
        %v4366 = vmul.f32 %v4076, %v4278
        %v4367 = vmul.f32 %v4081, %v4278
        %v4368 = vmul.f32 %v4086, %v4278
        %v4369 = vmul.f32 %v4091, %v4278
        %v4370 = vmul.f32 %v4096, %v4278
        %v4371 = vmul.f32 %v4101, %v4278
        %v4372 = vmul.f32 %v4106, %v4278
        %v4373 = vmul.f32 %v4111, %v4278
        %v4374 = vmul.f32 %v4116, %v4278
        %v4375 = vmul.f32 %v4121, %v4278
        %v4376 = vmul.f32 %v4126, %v4278
        %v4377 = vmul.f32 %v4131, %v4278
        %v4378 = vmul.f32 %v4136, %v4278
        %v4379 = vmul.f32 %v4141, %v4278
        %v4380 = vmul.f32 %v4146, %v4278
        %v4381 = vmul.f32 %v4151, %v4278
        %v4382 = vmul.f32 %v4156, %v4278
        %v4383 = vmul.f32 %v4161, %v4278
        %v4384 = vmul.f32 %v4166, %v4278
        %v4385 = vmul.f32 %v4171, %v4278
        %v4386 = vmul.f32 %v4176, %v4278
        %v4387 = vmul.f32 %v4181, %v4278
        %v4388 = vmul.f32 %v4186, %v4278
        %v4389 = vmul.f32 %v4191, %v4278
        %v4390 = vmul.f32 %v4196, %v4278
        %v4391 = vmul.f32 %v4201, %v4278
        %v4392 = vmul.f32 %v4206, %v4278
        %v4393 = vmul.f32 %v4211, %v4278
        %v4394 = vmul.f32 %v4216, %v4278
        %v4395 = vmul.f32 %v4221, %v4278
        %v4396 = vmul.f32 %v4226, %v4278
        %v4397 = vmul.f32 %v4231, %v4278
        %v4398 = vmul.f32 %v4236, %v4278
        %v4399 = vmul.f32 %v4241, %v4278
        %v4400 = vmul.f32 %v4246, %v4278
        %v4401 = vmul.f32 %v4251, %v4278
        %v4402 = vmul.f32 %v4256, %v4278
        %v4403 = vmul.f32 %v4261, %v4278
        %v4404 = vmul.f32 %v4266, %v4278
        %v4405 = vmul.f32 %v4271, %v4278
        %v4406 = vmul.f32 %v4276, %v4278
        %v4407 = vadd.f32 %v3379, %v4279
        %v4408 = vadd.f32 %v3380, %v4280
        %v4409 = vadd.f32 %v3381, %v4281
        %v4410 = vadd.f32 %v3382, %v4282
        %v4411 = vadd.f32 %v3383, %v4283
        %v4412 = vadd.f32 %v3384, %v4284
        %v4413 = vadd.f32 %v3385, %v4285
        %v4414 = vadd.f32 %v3386, %v4286
        %v4415 = vadd.f32 %v3387, %v4287
        %v4416 = vadd.f32 %v3388, %v4288
        %v4417 = vadd.f32 %v3389, %v4289
        %v4418 = vadd.f32 %v3390, %v4290
        %v4419 = vadd.f32 %v3391, %v4291
        %v4420 = vadd.f32 %v3392, %v4292
        %v4421 = vadd.f32 %v3393, %v4293
        %v4422 = vadd.f32 %v3394, %v4294
        %v4423 = vadd.f32 %v3395, %v4295
        %v4424 = vadd.f32 %v3396, %v4296
        %v4425 = vadd.f32 %v3397, %v4297
        %v4426 = vadd.f32 %v3398, %v4298
        %v4427 = vadd.f32 %v3399, %v4299
        %v4428 = vadd.f32 %v3400, %v4300
        %v4429 = vadd.f32 %v3401, %v4301
        %v4430 = vadd.f32 %v3402, %v4302
        %v4431 = vadd.f32 %v3403, %v4303
        %v4432 = vadd.f32 %v3404, %v4304
        %v4433 = vadd.f32 %v3405, %v4305
        %v4434 = vadd.f32 %v3406, %v4306
        %v4435 = vadd.f32 %v3407, %v4307
        %v4436 = vadd.f32 %v3408, %v4308
        %v4437 = vadd.f32 %v3409, %v4309
        %v4438 = vadd.f32 %v3410, %v4310
        %v4439 = vadd.f32 %v3411, %v4311
        %v4440 = vadd.f32 %v3412, %v4312
        %v4441 = vadd.f32 %v3413, %v4313
        %v4442 = vadd.f32 %v3414, %v4314
        %v4443 = vadd.f32 %v3415, %v4315
        %v4444 = vadd.f32 %v3416, %v4316
        %v4445 = vadd.f32 %v3417, %v4317
        %v4446 = vadd.f32 %v3418, %v4318
        %v4447 = vadd.f32 %v3419, %v4319
        %v4448 = vadd.f32 %v3420, %v4320
        %v4449 = vadd.f32 %v3421, %v4321
        %v4450 = vadd.f32 %v3422, %v4322
        %v4451 = vadd.f32 %v3423, %v4323
        %v4452 = vadd.f32 %v3424, %v4324
        %v4453 = vadd.f32 %v3425, %v4325
        %v4454 = vadd.f32 %v3426, %v4326
        %v4455 = vadd.f32 %v3427, %v4327
        %v4456 = vadd.f32 %v3428, %v4328
        %v4457 = vadd.f32 %v3429, %v4329
        %v4458 = vadd.f32 %v3430, %v4330
        %v4459 = vadd.f32 %v3431, %v4331
        %v4460 = vadd.f32 %v3432, %v4332
        %v4461 = vadd.f32 %v3433, %v4333
        %v4462 = vadd.f32 %v3434, %v4334
        %v4463 = vadd.f32 %v3435, %v4335
        %v4464 = vadd.f32 %v3436, %v4336
        %v4465 = vadd.f32 %v3437, %v4337
        %v4466 = vadd.f32 %v3438, %v4338
        %v4467 = vadd.f32 %v3439, %v4339
        %v4468 = vadd.f32 %v3440, %v4340
        %v4469 = vadd.f32 %v3441, %v4341
        %v4470 = vadd.f32 %v3442, %v4342
        %v4471 = vadd.f32 %v3443, %v4343
        %v4472 = vadd.f32 %v3444, %v4344
        %v4473 = vadd.f32 %v3445, %v4345
        %v4474 = vadd.f32 %v3446, %v4346
        %v4475 = vadd.f32 %v3447, %v4347
        %v4476 = vadd.f32 %v3448, %v4348
        %v4477 = vadd.f32 %v3449, %v4349
        %v4478 = vadd.f32 %v3450, %v4350
        %v4479 = vadd.f32 %v3451, %v4351
        %v4480 = vadd.f32 %v3452, %v4352
        %v4481 = vadd.f32 %v3453, %v4353
        %v4482 = vadd.f32 %v3454, %v4354
        %v4483 = vadd.f32 %v3455, %v4355
        %v4484 = vadd.f32 %v3456, %v4356
        %v4485 = vadd.f32 %v3457, %v4357
        %v4486 = vadd.f32 %v3458, %v4358
        %v4487 = vadd.f32 %v3459, %v4359
        %v4488 = vadd.f32 %v3460, %v4360
        %v4489 = vadd.f32 %v3461, %v4361
        %v4490 = vadd.f32 %v3462, %v4362
        %v4491 = vadd.f32 %v3463, %v4363
        %v4492 = vadd.f32 %v3464, %v4364
        %v4493 = vadd.f32 %v3465, %v4365
        %v4494 = vadd.f32 %v3466, %v4366
        %v4495 = vadd.f32 %v3467, %v4367
        %v4496 = vadd.f32 %v3468, %v4368
        %v4497 = vadd.f32 %v3469, %v4369
        %v4498 = vadd.f32 %v3470, %v4370
        %v4499 = vadd.f32 %v3471, %v4371
        %v4500 = vadd.f32 %v3472, %v4372
        %v4501 = vadd.f32 %v3473, %v4373
        %v4502 = vadd.f32 %v3474, %v4374
        %v4503 = vadd.f32 %v3475, %v4375
        %v4504 = vadd.f32 %v3476, %v4376
        %v4505 = vadd.f32 %v3477, %v4377
        %v4506 = vadd.f32 %v3478, %v4378
        %v4507 = vadd.f32 %v3479, %v4379
        %v4508 = vadd.f32 %v3480, %v4380
        %v4509 = vadd.f32 %v3481, %v4381
        %v4510 = vadd.f32 %v3482, %v4382
        %v4511 = vadd.f32 %v3483, %v4383
        %v4512 = vadd.f32 %v3484, %v4384
        %v4513 = vadd.f32 %v3485, %v4385
        %v4514 = vadd.f32 %v3486, %v4386
        %v4515 = vadd.f32 %v3487, %v4387
        %v4516 = vadd.f32 %v3488, %v4388
        %v4517 = vadd.f32 %v3489, %v4389
        %v4518 = vadd.f32 %v3490, %v4390
        %v4519 = vadd.f32 %v3491, %v4391
        %v4520 = vadd.f32 %v3492, %v4392
        %v4521 = vadd.f32 %v3493, %v4393
        %v4522 = vadd.f32 %v3494, %v4394
        %v4523 = vadd.f32 %v3495, %v4395
        %v4524 = vadd.f32 %v3496, %v4396
        %v4525 = vadd.f32 %v3497, %v4397
        %v4526 = vadd.f32 %v3498, %v4398
        %v4527 = vadd.f32 %v3499, %v4399
        %v4528 = vadd.f32 %v3500, %v4400
        %v4529 = vadd.f32 %v3501, %v4401
        %v4530 = vadd.f32 %v3502, %v4402
        %v4531 = vadd.f32 %v3503, %v4403
        %v4532 = vadd.f32 %v3504, %v4404
        %v4533 = vadd.f32 %v3505, %v4405
        %v4534 = vadd.f32 %v3506, %v4406
        %v4535 = vld [vmem:[%s358 + $0x1] sm:$0xff]
        %v4536 = vld [vmem:[%s358 + $0x9] sm:$0xff]
        %v4537 = vld [vmem:[%s358 + $0x11] sm:$0xff]
        %v4538 = vld [vmem:[%s358 + $0x19] sm:$0xff]
        %v4539 = vld [vmem:[%s358 + $0x29] sm:$0xff]
        %v4540 = vld [vmem:[%s358 + $0x31] sm:$0xff]
        %v4541 = vld [vmem:[%s358 + $0x39] sm:$0xff]
        %v4542 = vld [vmem:[%s358 + $0x41] sm:$0xff]
        %v4543 = vld [vmem:[%s358 + $0x51] sm:$0xff]
        %v4544 = vld [vmem:[%s358 + $0x59] sm:$0xff]
        %v4545 = vld [vmem:[%s358 + $0x61] sm:$0xff]
        %v4546 = vld [vmem:[%s358 + $0x69] sm:$0xff]
        %v4547 = vld [vmem:[%s358 + $0x79] sm:$0xff]
        %v4548 = vld [vmem:[%s358 + $0x81] sm:$0xff]
        %v4549 = vld [vmem:[%s358 + $0x89] sm:$0xff]
        %v4550 = vld [vmem:[%s358 + $0x91] sm:$0xff]
        %v4551 = vld [vmem:[%s358 + $0xa1] sm:$0xff]
        %v4552 = vld [vmem:[%s358 + $0xa9] sm:$0xff]
        %v4553 = vld [vmem:[%s358 + $0xb1] sm:$0xff]
        %v4554 = vld [vmem:[%s358 + $0xb9] sm:$0xff]
        %v4555 = vld [vmem:[%s358 + $0xc9] sm:$0xff]
        %v4556 = vld [vmem:[%s358 + $0xd1] sm:$0xff]
        %v4557 = vld [vmem:[%s358 + $0xd9] sm:$0xff]
        %v4558 = vld [vmem:[%s358 + $0xe1] sm:$0xff]
        %v4559 = vld [vmem:[%s358 + $0xf1] sm:$0xff]
        %v4560 = vld [vmem:[%s358 + $0xf9] sm:$0xff]
        %v4561 = vld [vmem:[%s358 + $0x101] sm:$0xff]
        %v4562 = vld [vmem:[%s358 + $0x109] sm:$0xff]
        %v4563 = vld [vmem:[%s358 + $0x119] sm:$0xff]
        %v4564 = vld [vmem:[%s358 + $0x121] sm:$0xff]
        %v4565 = vld [vmem:[%s358 + $0x129] sm:$0xff]
        %v4566 = vld [vmem:[%s358 + $0x131] sm:$0xff]
        %v4567 = vld [vmem:[%s358 + $0x141] sm:$0xff]
        %v4568 = vld [vmem:[%s358 + $0x149] sm:$0xff]
        %v4569 = vld [vmem:[%s358 + $0x151] sm:$0xff]
        %v4570 = vld [vmem:[%s358 + $0x159] sm:$0xff]
        %v4571 = vld [vmem:[%s358 + $0x169] sm:$0xff]
        %v4572 = vld [vmem:[%s358 + $0x171] sm:$0xff]
        %v4573 = vld [vmem:[%s358 + $0x179] sm:$0xff]
        %v4574 = vld [vmem:[%s358 + $0x181] sm:$0xff]
        %v4575 = vld [vmem:[%s358 + $0x191] sm:$0xff]
        %v4576 = vld [vmem:[%s358 + $0x199] sm:$0xff]
        %v4577 = vld [vmem:[%s358 + $0x1a1] sm:$0xff]
        %v4578 = vld [vmem:[%s358 + $0x1a9] sm:$0xff]
        %v4579 = vld [vmem:[%s358 + $0x1b9] sm:$0xff]
        %v4580 = vld [vmem:[%s358 + $0x1c1] sm:$0xff]
        %v4581 = vld [vmem:[%s358 + $0x1c9] sm:$0xff]
        %v4582 = vld [vmem:[%s358 + $0x1d1] sm:$0xff]
        %v4583 = vld [vmem:[%s358 + $0x1e1] sm:$0xff]
        %v4584 = vld [vmem:[%s358 + $0x1e9] sm:$0xff]
        %v4585 = vld [vmem:[%s358 + $0x1f1] sm:$0xff]
        %v4586 = vld [vmem:[%s358 + $0x1f9] sm:$0xff]
        %v4587 = vld [vmem:[%s358 + $0x209] sm:$0xff]
        %v4588 = vld [vmem:[%s358 + $0x211] sm:$0xff]
        %v4589 = vld [vmem:[%s358 + $0x219] sm:$0xff]
        %v4590 = vld [vmem:[%s358 + $0x221] sm:$0xff]
        %v4591 = vld [vmem:[%s358 + $0x231] sm:$0xff]
        %v4592 = vld [vmem:[%s358 + $0x239] sm:$0xff]
        %v4593 = vld [vmem:[%s358 + $0x241] sm:$0xff]
        %v4594 = vld [vmem:[%s358 + $0x249] sm:$0xff]
        %v4595 = vld [vmem:[%s358 + $0x259] sm:$0xff]
        %v4596 = vld [vmem:[%s358 + $0x261] sm:$0xff]
        %v4597 = vld [vmem:[%s358 + $0x269] sm:$0xff]
        %v4598 = vld [vmem:[%s358 + $0x271] sm:$0xff]
        %v4599 = vld [vmem:[%s358 + $0x281] sm:$0xff]
        %v4600 = vld [vmem:[%s358 + $0x289] sm:$0xff]
        %v4601 = vld [vmem:[%s358 + $0x291] sm:$0xff]
        %v4602 = vld [vmem:[%s358 + $0x299] sm:$0xff]
        %v4603 = vld [vmem:[%s358 + $0x2a9] sm:$0xff]
        %v4604 = vld [vmem:[%s358 + $0x2b1] sm:$0xff]
        %v4605 = vld [vmem:[%s358 + $0x2b9] sm:$0xff]
        %v4606 = vld [vmem:[%s358 + $0x2c1] sm:$0xff]
        %v4607 = vld [vmem:[%s358 + $0x2d1] sm:$0xff]
        %v4608 = vld [vmem:[%s358 + $0x2d9] sm:$0xff]
        %v4609 = vld [vmem:[%s358 + $0x2e1] sm:$0xff]
        %v4610 = vld [vmem:[%s358 + $0x2e9] sm:$0xff]
        %v4611 = vld [vmem:[%s358 + $0x2f9] sm:$0xff]
        %v4612 = vld [vmem:[%s358 + $0x301] sm:$0xff]
        %v4613 = vld [vmem:[%s358 + $0x309] sm:$0xff]
        %v4614 = vld [vmem:[%s358 + $0x311] sm:$0xff]
        %v4615 = vld [vmem:[%s358 + $0x321] sm:$0xff]
        %v4616 = vld [vmem:[%s358 + $0x329] sm:$0xff]
        %v4617 = vld [vmem:[%s358 + $0x331] sm:$0xff]
        %v4618 = vld [vmem:[%s358 + $0x339] sm:$0xff]
        %v4619 = vld [vmem:[%s358 + $0x349] sm:$0xff]
        %v4620 = vld [vmem:[%s358 + $0x351] sm:$0xff]
        %v4621 = vld [vmem:[%s358 + $0x359] sm:$0xff]
        %v4622 = vld [vmem:[%s358 + $0x361] sm:$0xff]
        %v4623 = vld [vmem:[%s358 + $0x371] sm:$0xff]
        %v4624 = vld [vmem:[%s358 + $0x379] sm:$0xff]
        %v4625 = vld [vmem:[%s358 + $0x381] sm:$0xff]
        %v4626 = vld [vmem:[%s358 + $0x389] sm:$0xff]
        %v4627 = vld [vmem:[%s358 + $0x399] sm:$0xff]
        %v4628 = vld [vmem:[%s358 + $0x3a1] sm:$0xff]
        %v4629 = vld [vmem:[%s358 + $0x3a9] sm:$0xff]
        %v4630 = vld [vmem:[%s358 + $0x3b1] sm:$0xff]
        %v4631 = vld [vmem:[%s358 + $0x3c1] sm:$0xff]
        %v4632 = vld [vmem:[%s358 + $0x3c9] sm:$0xff]
        %v4633 = vld [vmem:[%s358 + $0x3d1] sm:$0xff]
        %v4634 = vld [vmem:[%s358 + $0x3d9] sm:$0xff]
        %v4635 = vld [vmem:[%s358 + $0x3e9] sm:$0xff]
        %v4636 = vld [vmem:[%s358 + $0x3f1] sm:$0xff]
        %v4637 = vld [vmem:[%s358 + $0x3f9] sm:$0xff]
        %v4638 = vld [vmem:[%s358 + $0x401] sm:$0xff]
        %v4639 = vld [vmem:[%s358 + $0x411] sm:$0xff]
        %v4640 = vld [vmem:[%s358 + $0x419] sm:$0xff]
        %v4641 = vld [vmem:[%s358 + $0x421] sm:$0xff]
        %v4642 = vld [vmem:[%s358 + $0x429] sm:$0xff]
        %v4643 = vld [vmem:[%s358 + $0x439] sm:$0xff]
        %v4644 = vld [vmem:[%s358 + $0x441] sm:$0xff]
        %v4645 = vld [vmem:[%s358 + $0x449] sm:$0xff]
        %v4646 = vld [vmem:[%s358 + $0x451] sm:$0xff]
        %v4647 = vld [vmem:[%s358 + $0x461] sm:$0xff]
        %v4648 = vld [vmem:[%s358 + $0x469] sm:$0xff]
        %v4649 = vld [vmem:[%s358 + $0x471] sm:$0xff]
        %v4650 = vld [vmem:[%s358 + $0x479] sm:$0xff]
        %v4651 = vld [vmem:[%s358 + $0x489] sm:$0xff]
        %v4652 = vld [vmem:[%s358 + $0x491] sm:$0xff]
        %v4653 = vld [vmem:[%s358 + $0x499] sm:$0xff]
        %v4654 = vld [vmem:[%s358 + $0x4a1] sm:$0xff]
        %v4655 = vld [vmem:[%s358 + $0x4b1] sm:$0xff]
        %v4656 = vld [vmem:[%s358 + $0x4b9] sm:$0xff]
        %v4657 = vld [vmem:[%s358 + $0x4c1] sm:$0xff]
        %v4658 = vld [vmem:[%s358 + $0x4c9] sm:$0xff]
        %v4659 = vld [vmem:[%s358 + $0x4d9] sm:$0xff]
        %v4660 = vld [vmem:[%s358 + $0x4e1] sm:$0xff]
        %v4661 = vld [vmem:[%s358 + $0x4e9] sm:$0xff]
        %v4662 = vld [vmem:[%s358 + $0x4f1] sm:$0xff]
        %s4663 = scalar_lea.vmem %s1, 4
        %v4664 = vld [vmem:[%s4663] sm:$0x1]
        %v4665 = vunpack.c.l.bf16 %v4664
        %4667 = vset.pattern.permute.xlu0 0
        %4668 = vperm.xlu0 %4667, %v4535
        %v4669 = vpop.permute.xlu0 %4668
        %4672 = vset.pattern.permute.xlu0 0
        %4673 = vperm.xlu0 %4672, %v4536
        %v4674 = vpop.permute.xlu0 %4673
        %4677 = vset.pattern.permute.xlu0 0
        %4678 = vperm.xlu0 %4677, %v4537
        %v4679 = vpop.permute.xlu0 %4678
        %4682 = vset.pattern.permute.xlu0 0
        %4683 = vperm.xlu0 %4682, %v4538
        %v4684 = vpop.permute.xlu0 %4683
        %4687 = vset.pattern.permute.xlu0 0
        %4688 = vperm.xlu0 %4687, %v4539
        %v4689 = vpop.permute.xlu0 %4688
        %4692 = vset.pattern.permute.xlu0 0
        %4693 = vperm.xlu0 %4692, %v4540
        %v4694 = vpop.permute.xlu0 %4693
        %4697 = vset.pattern.permute.xlu0 0
        %4698 = vperm.xlu0 %4697, %v4541
        %v4699 = vpop.permute.xlu0 %4698
        %4702 = vset.pattern.permute.xlu0 0
        %4703 = vperm.xlu0 %4702, %v4542
        %v4704 = vpop.permute.xlu0 %4703
        %4707 = vset.pattern.permute.xlu0 0
        %4708 = vperm.xlu0 %4707, %v4543
        %v4709 = vpop.permute.xlu0 %4708
        %4712 = vset.pattern.permute.xlu0 0
        %4713 = vperm.xlu0 %4712, %v4544
        %v4714 = vpop.permute.xlu0 %4713
        %4717 = vset.pattern.permute.xlu0 0
        %4718 = vperm.xlu0 %4717, %v4545
        %v4719 = vpop.permute.xlu0 %4718
        %4722 = vset.pattern.permute.xlu0 0
        %4723 = vperm.xlu0 %4722, %v4546
        %v4724 = vpop.permute.xlu0 %4723
        %4727 = vset.pattern.permute.xlu0 0
        %4728 = vperm.xlu0 %4727, %v4547
        %v4729 = vpop.permute.xlu0 %4728
        %4732 = vset.pattern.permute.xlu0 0
        %4733 = vperm.xlu0 %4732, %v4548
        %v4734 = vpop.permute.xlu0 %4733
        %4737 = vset.pattern.permute.xlu0 0
        %4738 = vperm.xlu0 %4737, %v4549
        %v4739 = vpop.permute.xlu0 %4738
        %4742 = vset.pattern.permute.xlu0 0
        %4743 = vperm.xlu0 %4742, %v4550
        %v4744 = vpop.permute.xlu0 %4743
        %4747 = vset.pattern.permute.xlu0 0
        %4748 = vperm.xlu0 %4747, %v4551
        %v4749 = vpop.permute.xlu0 %4748
        %4752 = vset.pattern.permute.xlu0 0
        %4753 = vperm.xlu0 %4752, %v4552
        %v4754 = vpop.permute.xlu0 %4753
        %4757 = vset.pattern.permute.xlu0 0
        %4758 = vperm.xlu0 %4757, %v4553
        %v4759 = vpop.permute.xlu0 %4758
        %4762 = vset.pattern.permute.xlu0 0
        %4763 = vperm.xlu0 %4762, %v4554
        %v4764 = vpop.permute.xlu0 %4763
        %4767 = vset.pattern.permute.xlu0 0
        %4768 = vperm.xlu0 %4767, %v4555
        %v4769 = vpop.permute.xlu0 %4768
        %4772 = vset.pattern.permute.xlu0 0
        %4773 = vperm.xlu0 %4772, %v4556
        %v4774 = vpop.permute.xlu0 %4773
        %4777 = vset.pattern.permute.xlu0 0
        %4778 = vperm.xlu0 %4777, %v4557
        %v4779 = vpop.permute.xlu0 %4778
        %4782 = vset.pattern.permute.xlu0 0
        %4783 = vperm.xlu0 %4782, %v4558
        %v4784 = vpop.permute.xlu0 %4783
        %4787 = vset.pattern.permute.xlu0 0
        %4788 = vperm.xlu0 %4787, %v4559
        %v4789 = vpop.permute.xlu0 %4788
        %4792 = vset.pattern.permute.xlu0 0
        %4793 = vperm.xlu0 %4792, %v4560
        %v4794 = vpop.permute.xlu0 %4793
        %4797 = vset.pattern.permute.xlu0 0
        %4798 = vperm.xlu0 %4797, %v4561
        %v4799 = vpop.permute.xlu0 %4798
        %4802 = vset.pattern.permute.xlu0 0
        %4803 = vperm.xlu0 %4802, %v4562
        %v4804 = vpop.permute.xlu0 %4803
        %4807 = vset.pattern.permute.xlu0 0
        %4808 = vperm.xlu0 %4807, %v4563
        %v4809 = vpop.permute.xlu0 %4808
        %4812 = vset.pattern.permute.xlu0 0
        %4813 = vperm.xlu0 %4812, %v4564
        %v4814 = vpop.permute.xlu0 %4813
        %4817 = vset.pattern.permute.xlu0 0
        %4818 = vperm.xlu0 %4817, %v4565
        %v4819 = vpop.permute.xlu0 %4818
        %4822 = vset.pattern.permute.xlu0 0
        %4823 = vperm.xlu0 %4822, %v4566
        %v4824 = vpop.permute.xlu0 %4823
        %4827 = vset.pattern.permute.xlu0 0
        %4828 = vperm.xlu0 %4827, %v4567
        %v4829 = vpop.permute.xlu0 %4828
        %4832 = vset.pattern.permute.xlu0 0
        %4833 = vperm.xlu0 %4832, %v4568
        %v4834 = vpop.permute.xlu0 %4833
        %4837 = vset.pattern.permute.xlu0 0
        %4838 = vperm.xlu0 %4837, %v4569
        %v4839 = vpop.permute.xlu0 %4838
        %4842 = vset.pattern.permute.xlu0 0
        %4843 = vperm.xlu0 %4842, %v4570
        %v4844 = vpop.permute.xlu0 %4843
        %4847 = vset.pattern.permute.xlu0 0
        %4848 = vperm.xlu0 %4847, %v4571
        %v4849 = vpop.permute.xlu0 %4848
        %4852 = vset.pattern.permute.xlu0 0
        %4853 = vperm.xlu0 %4852, %v4572
        %v4854 = vpop.permute.xlu0 %4853
        %4857 = vset.pattern.permute.xlu0 0
        %4858 = vperm.xlu0 %4857, %v4573
        %v4859 = vpop.permute.xlu0 %4858
        %4862 = vset.pattern.permute.xlu0 0
        %4863 = vperm.xlu0 %4862, %v4574
        %v4864 = vpop.permute.xlu0 %4863
        %4867 = vset.pattern.permute.xlu0 0
        %4868 = vperm.xlu0 %4867, %v4575
        %v4869 = vpop.permute.xlu0 %4868
        %4872 = vset.pattern.permute.xlu0 0
        %4873 = vperm.xlu0 %4872, %v4576
        %v4874 = vpop.permute.xlu0 %4873
        %4877 = vset.pattern.permute.xlu0 0
        %4878 = vperm.xlu0 %4877, %v4577
        %v4879 = vpop.permute.xlu0 %4878
        %4882 = vset.pattern.permute.xlu0 0
        %4883 = vperm.xlu0 %4882, %v4578
        %v4884 = vpop.permute.xlu0 %4883
        %4887 = vset.pattern.permute.xlu0 0
        %4888 = vperm.xlu0 %4887, %v4579
        %v4889 = vpop.permute.xlu0 %4888
        %4892 = vset.pattern.permute.xlu0 0
        %4893 = vperm.xlu0 %4892, %v4580
        %v4894 = vpop.permute.xlu0 %4893
        %4897 = vset.pattern.permute.xlu0 0
        %4898 = vperm.xlu0 %4897, %v4581
        %v4899 = vpop.permute.xlu0 %4898
        %4902 = vset.pattern.permute.xlu0 0
        %4903 = vperm.xlu0 %4902, %v4582
        %v4904 = vpop.permute.xlu0 %4903
        %4907 = vset.pattern.permute.xlu0 0
        %4908 = vperm.xlu0 %4907, %v4583
        %v4909 = vpop.permute.xlu0 %4908
        %4912 = vset.pattern.permute.xlu0 0
        %4913 = vperm.xlu0 %4912, %v4584
        %v4914 = vpop.permute.xlu0 %4913
        %4917 = vset.pattern.permute.xlu0 0
        %4918 = vperm.xlu0 %4917, %v4585
        %v4919 = vpop.permute.xlu0 %4918
        %4922 = vset.pattern.permute.xlu0 0
        %4923 = vperm.xlu0 %4922, %v4586
        %v4924 = vpop.permute.xlu0 %4923
        %4927 = vset.pattern.permute.xlu0 0
        %4928 = vperm.xlu0 %4927, %v4587
        %v4929 = vpop.permute.xlu0 %4928
        %4932 = vset.pattern.permute.xlu0 0
        %4933 = vperm.xlu0 %4932, %v4588
        %v4934 = vpop.permute.xlu0 %4933
        %4937 = vset.pattern.permute.xlu0 0
        %4938 = vperm.xlu0 %4937, %v4589
        %v4939 = vpop.permute.xlu0 %4938
        %4942 = vset.pattern.permute.xlu0 0
        %4943 = vperm.xlu0 %4942, %v4590
        %v4944 = vpop.permute.xlu0 %4943
        %4947 = vset.pattern.permute.xlu0 0
        %4948 = vperm.xlu0 %4947, %v4591
        %v4949 = vpop.permute.xlu0 %4948
        %4952 = vset.pattern.permute.xlu0 0
        %4953 = vperm.xlu0 %4952, %v4592
        %v4954 = vpop.permute.xlu0 %4953
        %4957 = vset.pattern.permute.xlu0 0
        %4958 = vperm.xlu0 %4957, %v4593
        %v4959 = vpop.permute.xlu0 %4958
        %4962 = vset.pattern.permute.xlu0 0
        %4963 = vperm.xlu0 %4962, %v4594
        %v4964 = vpop.permute.xlu0 %4963
        %4967 = vset.pattern.permute.xlu0 0
        %4968 = vperm.xlu0 %4967, %v4595
        %v4969 = vpop.permute.xlu0 %4968
        %4972 = vset.pattern.permute.xlu0 0
        %4973 = vperm.xlu0 %4972, %v4596
        %v4974 = vpop.permute.xlu0 %4973
        %4977 = vset.pattern.permute.xlu0 0
        %4978 = vperm.xlu0 %4977, %v4597
        %v4979 = vpop.permute.xlu0 %4978
        %4982 = vset.pattern.permute.xlu0 0
        %4983 = vperm.xlu0 %4982, %v4598
        %v4984 = vpop.permute.xlu0 %4983
        %4987 = vset.pattern.permute.xlu0 0
        %4988 = vperm.xlu0 %4987, %v4599
        %v4989 = vpop.permute.xlu0 %4988
        %4992 = vset.pattern.permute.xlu0 0
        %4993 = vperm.xlu0 %4992, %v4600
        %v4994 = vpop.permute.xlu0 %4993
        %4997 = vset.pattern.permute.xlu0 0
        %4998 = vperm.xlu0 %4997, %v4601
        %v4999 = vpop.permute.xlu0 %4998
        %5002 = vset.pattern.permute.xlu0 0
        %5003 = vperm.xlu0 %5002, %v4602
        %v5004 = vpop.permute.xlu0 %5003
        %5007 = vset.pattern.permute.xlu0 0
        %5008 = vperm.xlu0 %5007, %v4603
        %v5009 = vpop.permute.xlu0 %5008
        %5012 = vset.pattern.permute.xlu0 0
        %5013 = vperm.xlu0 %5012, %v4604
        %v5014 = vpop.permute.xlu0 %5013
        %5017 = vset.pattern.permute.xlu0 0
        %5018 = vperm.xlu0 %5017, %v4605
        %v5019 = vpop.permute.xlu0 %5018
        %5022 = vset.pattern.permute.xlu0 0
        %5023 = vperm.xlu0 %5022, %v4606
        %v5024 = vpop.permute.xlu0 %5023
        %5027 = vset.pattern.permute.xlu0 0
        %5028 = vperm.xlu0 %5027, %v4607
        %v5029 = vpop.permute.xlu0 %5028
        %5032 = vset.pattern.permute.xlu0 0
        %5033 = vperm.xlu0 %5032, %v4608
        %v5034 = vpop.permute.xlu0 %5033
        %5037 = vset.pattern.permute.xlu0 0
        %5038 = vperm.xlu0 %5037, %v4609
        %v5039 = vpop.permute.xlu0 %5038
        %5042 = vset.pattern.permute.xlu0 0
        %5043 = vperm.xlu0 %5042, %v4610
        %v5044 = vpop.permute.xlu0 %5043
        %5047 = vset.pattern.permute.xlu0 0
        %5048 = vperm.xlu0 %5047, %v4611
        %v5049 = vpop.permute.xlu0 %5048
        %5052 = vset.pattern.permute.xlu0 0
        %5053 = vperm.xlu0 %5052, %v4612
        %v5054 = vpop.permute.xlu0 %5053
        %5057 = vset.pattern.permute.xlu0 0
        %5058 = vperm.xlu0 %5057, %v4613
        %v5059 = vpop.permute.xlu0 %5058
        %5062 = vset.pattern.permute.xlu0 0
        %5063 = vperm.xlu0 %5062, %v4614
        %v5064 = vpop.permute.xlu0 %5063
        %5067 = vset.pattern.permute.xlu0 0
        %5068 = vperm.xlu0 %5067, %v4615
        %v5069 = vpop.permute.xlu0 %5068
        %5072 = vset.pattern.permute.xlu0 0
        %5073 = vperm.xlu0 %5072, %v4616
        %v5074 = vpop.permute.xlu0 %5073
        %5077 = vset.pattern.permute.xlu0 0
        %5078 = vperm.xlu0 %5077, %v4617
        %v5079 = vpop.permute.xlu0 %5078
        %5082 = vset.pattern.permute.xlu0 0
        %5083 = vperm.xlu0 %5082, %v4618
        %v5084 = vpop.permute.xlu0 %5083
        %5087 = vset.pattern.permute.xlu0 0
        %5088 = vperm.xlu0 %5087, %v4619
        %v5089 = vpop.permute.xlu0 %5088
        %5092 = vset.pattern.permute.xlu0 0
        %5093 = vperm.xlu0 %5092, %v4620
        %v5094 = vpop.permute.xlu0 %5093
        %5097 = vset.pattern.permute.xlu0 0
        %5098 = vperm.xlu0 %5097, %v4621
        %v5099 = vpop.permute.xlu0 %5098
        %5102 = vset.pattern.permute.xlu0 0
        %5103 = vperm.xlu0 %5102, %v4622
        %v5104 = vpop.permute.xlu0 %5103
        %5107 = vset.pattern.permute.xlu0 0
        %5108 = vperm.xlu0 %5107, %v4623
        %v5109 = vpop.permute.xlu0 %5108
        %5112 = vset.pattern.permute.xlu0 0
        %5113 = vperm.xlu0 %5112, %v4624
        %v5114 = vpop.permute.xlu0 %5113
        %5117 = vset.pattern.permute.xlu0 0
        %5118 = vperm.xlu0 %5117, %v4625
        %v5119 = vpop.permute.xlu0 %5118
        %5122 = vset.pattern.permute.xlu0 0
        %5123 = vperm.xlu0 %5122, %v4626
        %v5124 = vpop.permute.xlu0 %5123
        %5127 = vset.pattern.permute.xlu0 0
        %5128 = vperm.xlu0 %5127, %v4627
        %v5129 = vpop.permute.xlu0 %5128
        %5132 = vset.pattern.permute.xlu0 0
        %5133 = vperm.xlu0 %5132, %v4628
        %v5134 = vpop.permute.xlu0 %5133
        %5137 = vset.pattern.permute.xlu0 0
        %5138 = vperm.xlu0 %5137, %v4629
        %v5139 = vpop.permute.xlu0 %5138
        %5142 = vset.pattern.permute.xlu0 0
        %5143 = vperm.xlu0 %5142, %v4630
        %v5144 = vpop.permute.xlu0 %5143
        %5147 = vset.pattern.permute.xlu0 0
        %5148 = vperm.xlu0 %5147, %v4631
        %v5149 = vpop.permute.xlu0 %5148
        %5152 = vset.pattern.permute.xlu0 0
        %5153 = vperm.xlu0 %5152, %v4632
        %v5154 = vpop.permute.xlu0 %5153
        %5157 = vset.pattern.permute.xlu0 0
        %5158 = vperm.xlu0 %5157, %v4633
        %v5159 = vpop.permute.xlu0 %5158
        %5162 = vset.pattern.permute.xlu0 0
        %5163 = vperm.xlu0 %5162, %v4634
        %v5164 = vpop.permute.xlu0 %5163
        %5167 = vset.pattern.permute.xlu0 0
        %5168 = vperm.xlu0 %5167, %v4635
        %v5169 = vpop.permute.xlu0 %5168
        %5172 = vset.pattern.permute.xlu0 0
        %5173 = vperm.xlu0 %5172, %v4636
        %v5174 = vpop.permute.xlu0 %5173
        %5177 = vset.pattern.permute.xlu0 0
        %5178 = vperm.xlu0 %5177, %v4637
        %v5179 = vpop.permute.xlu0 %5178
        %5182 = vset.pattern.permute.xlu0 0
        %5183 = vperm.xlu0 %5182, %v4638
        %v5184 = vpop.permute.xlu0 %5183
        %5187 = vset.pattern.permute.xlu0 0
        %5188 = vperm.xlu0 %5187, %v4639
        %v5189 = vpop.permute.xlu0 %5188
        %5192 = vset.pattern.permute.xlu0 0
        %5193 = vperm.xlu0 %5192, %v4640
        %v5194 = vpop.permute.xlu0 %5193
        %5197 = vset.pattern.permute.xlu0 0
        %5198 = vperm.xlu0 %5197, %v4641
        %v5199 = vpop.permute.xlu0 %5198
        %5202 = vset.pattern.permute.xlu0 0
        %5203 = vperm.xlu0 %5202, %v4642
        %v5204 = vpop.permute.xlu0 %5203
        %5207 = vset.pattern.permute.xlu0 0
        %5208 = vperm.xlu0 %5207, %v4643
        %v5209 = vpop.permute.xlu0 %5208
        %5212 = vset.pattern.permute.xlu0 0
        %5213 = vperm.xlu0 %5212, %v4644
        %v5214 = vpop.permute.xlu0 %5213
        %5217 = vset.pattern.permute.xlu0 0
        %5218 = vperm.xlu0 %5217, %v4645
        %v5219 = vpop.permute.xlu0 %5218
        %5222 = vset.pattern.permute.xlu0 0
        %5223 = vperm.xlu0 %5222, %v4646
        %v5224 = vpop.permute.xlu0 %5223
        %5227 = vset.pattern.permute.xlu0 0
        %5228 = vperm.xlu0 %5227, %v4647
        %v5229 = vpop.permute.xlu0 %5228
        %5232 = vset.pattern.permute.xlu0 0
        %5233 = vperm.xlu0 %5232, %v4648
        %v5234 = vpop.permute.xlu0 %5233
        %5237 = vset.pattern.permute.xlu0 0
        %5238 = vperm.xlu0 %5237, %v4649
        %v5239 = vpop.permute.xlu0 %5238
        %5242 = vset.pattern.permute.xlu0 0
        %5243 = vperm.xlu0 %5242, %v4650
        %v5244 = vpop.permute.xlu0 %5243
        %5247 = vset.pattern.permute.xlu0 0
        %5248 = vperm.xlu0 %5247, %v4651
        %v5249 = vpop.permute.xlu0 %5248
        %5252 = vset.pattern.permute.xlu0 0
        %5253 = vperm.xlu0 %5252, %v4652
        %v5254 = vpop.permute.xlu0 %5253
        %5257 = vset.pattern.permute.xlu0 0
        %5258 = vperm.xlu0 %5257, %v4653
        %v5259 = vpop.permute.xlu0 %5258
        %5262 = vset.pattern.permute.xlu0 0
        %5263 = vperm.xlu0 %5262, %v4654
        %v5264 = vpop.permute.xlu0 %5263
        %5267 = vset.pattern.permute.xlu0 0
        %5268 = vperm.xlu0 %5267, %v4655
        %v5269 = vpop.permute.xlu0 %5268
        %5272 = vset.pattern.permute.xlu0 0
        %5273 = vperm.xlu0 %5272, %v4656
        %v5274 = vpop.permute.xlu0 %5273
        %5277 = vset.pattern.permute.xlu0 0
        %5278 = vperm.xlu0 %5277, %v4657
        %v5279 = vpop.permute.xlu0 %5278
        %5282 = vset.pattern.permute.xlu0 0
        %5283 = vperm.xlu0 %5282, %v4658
        %v5284 = vpop.permute.xlu0 %5283
        %5287 = vset.pattern.permute.xlu0 0
        %5288 = vperm.xlu0 %5287, %v4659
        %v5289 = vpop.permute.xlu0 %5288
        %5292 = vset.pattern.permute.xlu0 0
        %5293 = vperm.xlu0 %5292, %v4660
        %v5294 = vpop.permute.xlu0 %5293
        %5297 = vset.pattern.permute.xlu0 0
        %5298 = vperm.xlu0 %5297, %v4661
        %v5299 = vpop.permute.xlu0 %5298
        %5302 = vset.pattern.permute.xlu0 0
        %5303 = vperm.xlu0 %5302, %v4662
        %v5304 = vpop.permute.xlu0 %5303
        %v5306 = vperm.slane %v4665, 0
        %v5307 = vmul.f32 %v4669, %v5306
        %v5308 = vmul.f32 %v4674, %v5306
        %v5309 = vmul.f32 %v4679, %v5306
        %v5310 = vmul.f32 %v4684, %v5306
        %v5311 = vmul.f32 %v4689, %v5306
        %v5312 = vmul.f32 %v4694, %v5306
        %v5313 = vmul.f32 %v4699, %v5306
        %v5314 = vmul.f32 %v4704, %v5306
        %v5315 = vmul.f32 %v4709, %v5306
        %v5316 = vmul.f32 %v4714, %v5306
        %v5317 = vmul.f32 %v4719, %v5306
        %v5318 = vmul.f32 %v4724, %v5306
        %v5319 = vmul.f32 %v4729, %v5306
        %v5320 = vmul.f32 %v4734, %v5306
        %v5321 = vmul.f32 %v4739, %v5306
        %v5322 = vmul.f32 %v4744, %v5306
        %v5323 = vmul.f32 %v4749, %v5306
        %v5324 = vmul.f32 %v4754, %v5306
        %v5325 = vmul.f32 %v4759, %v5306
        %v5326 = vmul.f32 %v4764, %v5306
        %v5327 = vmul.f32 %v4769, %v5306
        %v5328 = vmul.f32 %v4774, %v5306
        %v5329 = vmul.f32 %v4779, %v5306
        %v5330 = vmul.f32 %v4784, %v5306
        %v5331 = vmul.f32 %v4789, %v5306
        %v5332 = vmul.f32 %v4794, %v5306
        %v5333 = vmul.f32 %v4799, %v5306
        %v5334 = vmul.f32 %v4804, %v5306
        %v5335 = vmul.f32 %v4809, %v5306
        %v5336 = vmul.f32 %v4814, %v5306
        %v5337 = vmul.f32 %v4819, %v5306
        %v5338 = vmul.f32 %v4824, %v5306
        %v5339 = vmul.f32 %v4829, %v5306
        %v5340 = vmul.f32 %v4834, %v5306
        %v5341 = vmul.f32 %v4839, %v5306
        %v5342 = vmul.f32 %v4844, %v5306
        %v5343 = vmul.f32 %v4849, %v5306
        %v5344 = vmul.f32 %v4854, %v5306
        %v5345 = vmul.f32 %v4859, %v5306
        %v5346 = vmul.f32 %v4864, %v5306
        %v5347 = vmul.f32 %v4869, %v5306
        %v5348 = vmul.f32 %v4874, %v5306
        %v5349 = vmul.f32 %v4879, %v5306
        %v5350 = vmul.f32 %v4884, %v5306
        %v5351 = vmul.f32 %v4889, %v5306
        %v5352 = vmul.f32 %v4894, %v5306
        %v5353 = vmul.f32 %v4899, %v5306
        %v5354 = vmul.f32 %v4904, %v5306
        %v5355 = vmul.f32 %v4909, %v5306
        %v5356 = vmul.f32 %v4914, %v5306
        %v5357 = vmul.f32 %v4919, %v5306
        %v5358 = vmul.f32 %v4924, %v5306
        %v5359 = vmul.f32 %v4929, %v5306
        %v5360 = vmul.f32 %v4934, %v5306
        %v5361 = vmul.f32 %v4939, %v5306
        %v5362 = vmul.f32 %v4944, %v5306
        %v5363 = vmul.f32 %v4949, %v5306
        %v5364 = vmul.f32 %v4954, %v5306
        %v5365 = vmul.f32 %v4959, %v5306
        %v5366 = vmul.f32 %v4964, %v5306
        %v5367 = vmul.f32 %v4969, %v5306
        %v5368 = vmul.f32 %v4974, %v5306
        %v5369 = vmul.f32 %v4979, %v5306
        %v5370 = vmul.f32 %v4984, %v5306
        %v5371 = vmul.f32 %v4989, %v5306
        %v5372 = vmul.f32 %v4994, %v5306
        %v5373 = vmul.f32 %v4999, %v5306
        %v5374 = vmul.f32 %v5004, %v5306
        %v5375 = vmul.f32 %v5009, %v5306
        %v5376 = vmul.f32 %v5014, %v5306
        %v5377 = vmul.f32 %v5019, %v5306
        %v5378 = vmul.f32 %v5024, %v5306
        %v5379 = vmul.f32 %v5029, %v5306
        %v5380 = vmul.f32 %v5034, %v5306
        %v5381 = vmul.f32 %v5039, %v5306
        %v5382 = vmul.f32 %v5044, %v5306
        %v5383 = vmul.f32 %v5049, %v5306
        %v5384 = vmul.f32 %v5054, %v5306
        %v5385 = vmul.f32 %v5059, %v5306
        %v5386 = vmul.f32 %v5064, %v5306
        %v5387 = vmul.f32 %v5069, %v5306
        %v5388 = vmul.f32 %v5074, %v5306
        %v5389 = vmul.f32 %v5079, %v5306
        %v5390 = vmul.f32 %v5084, %v5306
        %v5391 = vmul.f32 %v5089, %v5306
        %v5392 = vmul.f32 %v5094, %v5306
        %v5393 = vmul.f32 %v5099, %v5306
        %v5394 = vmul.f32 %v5104, %v5306
        %v5395 = vmul.f32 %v5109, %v5306
        %v5396 = vmul.f32 %v5114, %v5306
        %v5397 = vmul.f32 %v5119, %v5306
        %v5398 = vmul.f32 %v5124, %v5306
        %v5399 = vmul.f32 %v5129, %v5306
        %v5400 = vmul.f32 %v5134, %v5306
        %v5401 = vmul.f32 %v5139, %v5306
        %v5402 = vmul.f32 %v5144, %v5306
        %v5403 = vmul.f32 %v5149, %v5306
        %v5404 = vmul.f32 %v5154, %v5306
        %v5405 = vmul.f32 %v5159, %v5306
        %v5406 = vmul.f32 %v5164, %v5306
        %v5407 = vmul.f32 %v5169, %v5306
        %v5408 = vmul.f32 %v5174, %v5306
        %v5409 = vmul.f32 %v5179, %v5306
        %v5410 = vmul.f32 %v5184, %v5306
        %v5411 = vmul.f32 %v5189, %v5306
        %v5412 = vmul.f32 %v5194, %v5306
        %v5413 = vmul.f32 %v5199, %v5306
        %v5414 = vmul.f32 %v5204, %v5306
        %v5415 = vmul.f32 %v5209, %v5306
        %v5416 = vmul.f32 %v5214, %v5306
        %v5417 = vmul.f32 %v5219, %v5306
        %v5418 = vmul.f32 %v5224, %v5306
        %v5419 = vmul.f32 %v5229, %v5306
        %v5420 = vmul.f32 %v5234, %v5306
        %v5421 = vmul.f32 %v5239, %v5306
        %v5422 = vmul.f32 %v5244, %v5306
        %v5423 = vmul.f32 %v5249, %v5306
        %v5424 = vmul.f32 %v5254, %v5306
        %v5425 = vmul.f32 %v5259, %v5306
        %v5426 = vmul.f32 %v5264, %v5306
        %v5427 = vmul.f32 %v5269, %v5306
        %v5428 = vmul.f32 %v5274, %v5306
        %v5429 = vmul.f32 %v5279, %v5306
        %v5430 = vmul.f32 %v5284, %v5306
        %v5431 = vmul.f32 %v5289, %v5306
        %v5432 = vmul.f32 %v5294, %v5306
        %v5433 = vmul.f32 %v5299, %v5306
        %v5434 = vmul.f32 %v5304, %v5306
        %v5435 = vadd.f32 %v4407, %v5307
        %v5436 = vadd.f32 %v4408, %v5308
        %v5437 = vadd.f32 %v4409, %v5309
        %v5438 = vadd.f32 %v4410, %v5310
        %v5439 = vadd.f32 %v4411, %v5311
        %v5440 = vadd.f32 %v4412, %v5312
        %v5441 = vadd.f32 %v4413, %v5313
        %v5442 = vadd.f32 %v4414, %v5314
        %v5443 = vadd.f32 %v4415, %v5315
        %v5444 = vadd.f32 %v4416, %v5316
        %v5445 = vadd.f32 %v4417, %v5317
        %v5446 = vadd.f32 %v4418, %v5318
        %v5447 = vadd.f32 %v4419, %v5319
        %v5448 = vadd.f32 %v4420, %v5320
        %v5449 = vadd.f32 %v4421, %v5321
        %v5450 = vadd.f32 %v4422, %v5322
        %v5451 = vadd.f32 %v4423, %v5323
        %v5452 = vadd.f32 %v4424, %v5324
        %v5453 = vadd.f32 %v4425, %v5325
        %v5454 = vadd.f32 %v4426, %v5326
        %v5455 = vadd.f32 %v4427, %v5327
        %v5456 = vadd.f32 %v4428, %v5328
        %v5457 = vadd.f32 %v4429, %v5329
        %v5458 = vadd.f32 %v4430, %v5330
        %v5459 = vadd.f32 %v4431, %v5331
        %v5460 = vadd.f32 %v4432, %v5332
        %v5461 = vadd.f32 %v4433, %v5333
        %v5462 = vadd.f32 %v4434, %v5334
        %v5463 = vadd.f32 %v4435, %v5335
        %v5464 = vadd.f32 %v4436, %v5336
        %v5465 = vadd.f32 %v4437, %v5337
        %v5466 = vadd.f32 %v4438, %v5338
        %v5467 = vadd.f32 %v4439, %v5339
        %v5468 = vadd.f32 %v4440, %v5340
        %v5469 = vadd.f32 %v4441, %v5341
        %v5470 = vadd.f32 %v4442, %v5342
        %v5471 = vadd.f32 %v4443, %v5343
        %v5472 = vadd.f32 %v4444, %v5344
        %v5473 = vadd.f32 %v4445, %v5345
        %v5474 = vadd.f32 %v4446, %v5346
        %v5475 = vadd.f32 %v4447, %v5347
        %v5476 = vadd.f32 %v4448, %v5348
        %v5477 = vadd.f32 %v4449, %v5349
        %v5478 = vadd.f32 %v4450, %v5350
        %v5479 = vadd.f32 %v4451, %v5351
        %v5480 = vadd.f32 %v4452, %v5352
        %v5481 = vadd.f32 %v4453, %v5353
        %v5482 = vadd.f32 %v4454, %v5354
        %v5483 = vadd.f32 %v4455, %v5355
        %v5484 = vadd.f32 %v4456, %v5356
        %v5485 = vadd.f32 %v4457, %v5357
        %v5486 = vadd.f32 %v4458, %v5358
        %v5487 = vadd.f32 %v4459, %v5359
        %v5488 = vadd.f32 %v4460, %v5360
        %v5489 = vadd.f32 %v4461, %v5361
        %v5490 = vadd.f32 %v4462, %v5362
        %v5491 = vadd.f32 %v4463, %v5363
        %v5492 = vadd.f32 %v4464, %v5364
        %v5493 = vadd.f32 %v4465, %v5365
        %v5494 = vadd.f32 %v4466, %v5366
        %v5495 = vadd.f32 %v4467, %v5367
        %v5496 = vadd.f32 %v4468, %v5368
        %v5497 = vadd.f32 %v4469, %v5369
        %v5498 = vadd.f32 %v4470, %v5370
        %v5499 = vadd.f32 %v4471, %v5371
        %v5500 = vadd.f32 %v4472, %v5372
        %v5501 = vadd.f32 %v4473, %v5373
        %v5502 = vadd.f32 %v4474, %v5374
        %v5503 = vadd.f32 %v4475, %v5375
        %v5504 = vadd.f32 %v4476, %v5376
        %v5505 = vadd.f32 %v4477, %v5377
        %v5506 = vadd.f32 %v4478, %v5378
        %v5507 = vadd.f32 %v4479, %v5379
        %v5508 = vadd.f32 %v4480, %v5380
        %v5509 = vadd.f32 %v4481, %v5381
        %v5510 = vadd.f32 %v4482, %v5382
        %v5511 = vadd.f32 %v4483, %v5383
        %v5512 = vadd.f32 %v4484, %v5384
        %v5513 = vadd.f32 %v4485, %v5385
        %v5514 = vadd.f32 %v4486, %v5386
        %v5515 = vadd.f32 %v4487, %v5387
        %v5516 = vadd.f32 %v4488, %v5388
        %v5517 = vadd.f32 %v4489, %v5389
        %v5518 = vadd.f32 %v4490, %v5390
        %v5519 = vadd.f32 %v4491, %v5391
        %v5520 = vadd.f32 %v4492, %v5392
        %v5521 = vadd.f32 %v4493, %v5393
        %v5522 = vadd.f32 %v4494, %v5394
        %v5523 = vadd.f32 %v4495, %v5395
        %v5524 = vadd.f32 %v4496, %v5396
        %v5525 = vadd.f32 %v4497, %v5397
        %v5526 = vadd.f32 %v4498, %v5398
        %v5527 = vadd.f32 %v4499, %v5399
        %v5528 = vadd.f32 %v4500, %v5400
        %v5529 = vadd.f32 %v4501, %v5401
        %v5530 = vadd.f32 %v4502, %v5402
        %v5531 = vadd.f32 %v4503, %v5403
        %v5532 = vadd.f32 %v4504, %v5404
        %v5533 = vadd.f32 %v4505, %v5405
        %v5534 = vadd.f32 %v4506, %v5406
        %v5535 = vadd.f32 %v4507, %v5407
        %v5536 = vadd.f32 %v4508, %v5408
        %v5537 = vadd.f32 %v4509, %v5409
        %v5538 = vadd.f32 %v4510, %v5410
        %v5539 = vadd.f32 %v4511, %v5411
        %v5540 = vadd.f32 %v4512, %v5412
        %v5541 = vadd.f32 %v4513, %v5413
        %v5542 = vadd.f32 %v4514, %v5414
        %v5543 = vadd.f32 %v4515, %v5415
        %v5544 = vadd.f32 %v4516, %v5416
        %v5545 = vadd.f32 %v4517, %v5417
        %v5546 = vadd.f32 %v4518, %v5418
        %v5547 = vadd.f32 %v4519, %v5419
        %v5548 = vadd.f32 %v4520, %v5420
        %v5549 = vadd.f32 %v4521, %v5421
        %v5550 = vadd.f32 %v4522, %v5422
        %v5551 = vadd.f32 %v4523, %v5423
        %v5552 = vadd.f32 %v4524, %v5424
        %v5553 = vadd.f32 %v4525, %v5425
        %v5554 = vadd.f32 %v4526, %v5426
        %v5555 = vadd.f32 %v4527, %v5427
        %v5556 = vadd.f32 %v4528, %v5428
        %v5557 = vadd.f32 %v4529, %v5429
        %v5558 = vadd.f32 %v4530, %v5430
        %v5559 = vadd.f32 %v4531, %v5431
        %v5560 = vadd.f32 %v4532, %v5432
        %v5561 = vadd.f32 %v4533, %v5433
        %v5562 = vadd.f32 %v4534, %v5434
        %v5563 = vld [vmem:[%s358 + $0x2] sm:$0xff]
        %v5564 = vld [vmem:[%s358 + $0xa] sm:$0xff]
        %v5565 = vld [vmem:[%s358 + $0x12] sm:$0xff]
        %v5566 = vld [vmem:[%s358 + $0x1a] sm:$0xff]
        %v5567 = vld [vmem:[%s358 + $0x2a] sm:$0xff]
        %v5568 = vld [vmem:[%s358 + $0x32] sm:$0xff]
        %v5569 = vld [vmem:[%s358 + $0x3a] sm:$0xff]
        %v5570 = vld [vmem:[%s358 + $0x42] sm:$0xff]
        %v5571 = vld [vmem:[%s358 + $0x52] sm:$0xff]
        %v5572 = vld [vmem:[%s358 + $0x5a] sm:$0xff]
        %v5573 = vld [vmem:[%s358 + $0x62] sm:$0xff]
        %v5574 = vld [vmem:[%s358 + $0x6a] sm:$0xff]
        %v5575 = vld [vmem:[%s358 + $0x7a] sm:$0xff]
        %v5576 = vld [vmem:[%s358 + $0x82] sm:$0xff]
        %v5577 = vld [vmem:[%s358 + $0x8a] sm:$0xff]
        %v5578 = vld [vmem:[%s358 + $0x92] sm:$0xff]
        %v5579 = vld [vmem:[%s358 + $0xa2] sm:$0xff]
        %v5580 = vld [vmem:[%s358 + $0xaa] sm:$0xff]
        %v5581 = vld [vmem:[%s358 + $0xb2] sm:$0xff]
        %v5582 = vld [vmem:[%s358 + $0xba] sm:$0xff]
        %v5583 = vld [vmem:[%s358 + $0xca] sm:$0xff]
        %v5584 = vld [vmem:[%s358 + $0xd2] sm:$0xff]
        %v5585 = vld [vmem:[%s358 + $0xda] sm:$0xff]
        %v5586 = vld [vmem:[%s358 + $0xe2] sm:$0xff]
        %v5587 = vld [vmem:[%s358 + $0xf2] sm:$0xff]
        %v5588 = vld [vmem:[%s358 + $0xfa] sm:$0xff]
        %v5589 = vld [vmem:[%s358 + $0x102] sm:$0xff]
        %v5590 = vld [vmem:[%s358 + $0x10a] sm:$0xff]
        %v5591 = vld [vmem:[%s358 + $0x11a] sm:$0xff]
        %v5592 = vld [vmem:[%s358 + $0x122] sm:$0xff]
        %v5593 = vld [vmem:[%s358 + $0x12a] sm:$0xff]
        %v5594 = vld [vmem:[%s358 + $0x132] sm:$0xff]
        %v5595 = vld [vmem:[%s358 + $0x142] sm:$0xff]
        %v5596 = vld [vmem:[%s358 + $0x14a] sm:$0xff]
        %v5597 = vld [vmem:[%s358 + $0x152] sm:$0xff]
        %v5598 = vld [vmem:[%s358 + $0x15a] sm:$0xff]
        %v5599 = vld [vmem:[%s358 + $0x16a] sm:$0xff]
        %v5600 = vld [vmem:[%s358 + $0x172] sm:$0xff]
        %v5601 = vld [vmem:[%s358 + $0x17a] sm:$0xff]
        %v5602 = vld [vmem:[%s358 + $0x182] sm:$0xff]
        %v5603 = vld [vmem:[%s358 + $0x192] sm:$0xff]
        %v5604 = vld [vmem:[%s358 + $0x19a] sm:$0xff]
        %v5605 = vld [vmem:[%s358 + $0x1a2] sm:$0xff]
        %v5606 = vld [vmem:[%s358 + $0x1aa] sm:$0xff]
        %v5607 = vld [vmem:[%s358 + $0x1ba] sm:$0xff]
        %v5608 = vld [vmem:[%s358 + $0x1c2] sm:$0xff]
        %v5609 = vld [vmem:[%s358 + $0x1ca] sm:$0xff]
        %v5610 = vld [vmem:[%s358 + $0x1d2] sm:$0xff]
        %v5611 = vld [vmem:[%s358 + $0x1e2] sm:$0xff]
        %v5612 = vld [vmem:[%s358 + $0x1ea] sm:$0xff]
        %v5613 = vld [vmem:[%s358 + $0x1f2] sm:$0xff]
        %v5614 = vld [vmem:[%s358 + $0x1fa] sm:$0xff]
        %v5615 = vld [vmem:[%s358 + $0x20a] sm:$0xff]
        %v5616 = vld [vmem:[%s358 + $0x212] sm:$0xff]
        %v5617 = vld [vmem:[%s358 + $0x21a] sm:$0xff]
        %v5618 = vld [vmem:[%s358 + $0x222] sm:$0xff]
        %v5619 = vld [vmem:[%s358 + $0x232] sm:$0xff]
        %v5620 = vld [vmem:[%s358 + $0x23a] sm:$0xff]
        %v5621 = vld [vmem:[%s358 + $0x242] sm:$0xff]
        %v5622 = vld [vmem:[%s358 + $0x24a] sm:$0xff]
        %v5623 = vld [vmem:[%s358 + $0x25a] sm:$0xff]
        %v5624 = vld [vmem:[%s358 + $0x262] sm:$0xff]
        %v5625 = vld [vmem:[%s358 + $0x26a] sm:$0xff]
        %v5626 = vld [vmem:[%s358 + $0x272] sm:$0xff]
        %v5627 = vld [vmem:[%s358 + $0x282] sm:$0xff]
        %v5628 = vld [vmem:[%s358 + $0x28a] sm:$0xff]
        %v5629 = vld [vmem:[%s358 + $0x292] sm:$0xff]
        %v5630 = vld [vmem:[%s358 + $0x29a] sm:$0xff]
        %v5631 = vld [vmem:[%s358 + $0x2aa] sm:$0xff]
        %v5632 = vld [vmem:[%s358 + $0x2b2] sm:$0xff]
        %v5633 = vld [vmem:[%s358 + $0x2ba] sm:$0xff]
        %v5634 = vld [vmem:[%s358 + $0x2c2] sm:$0xff]
        %v5635 = vld [vmem:[%s358 + $0x2d2] sm:$0xff]
        %v5636 = vld [vmem:[%s358 + $0x2da] sm:$0xff]
        %v5637 = vld [vmem:[%s358 + $0x2e2] sm:$0xff]
        %v5638 = vld [vmem:[%s358 + $0x2ea] sm:$0xff]
        %v5639 = vld [vmem:[%s358 + $0x2fa] sm:$0xff]
        %v5640 = vld [vmem:[%s358 + $0x302] sm:$0xff]
        %v5641 = vld [vmem:[%s358 + $0x30a] sm:$0xff]
        %v5642 = vld [vmem:[%s358 + $0x312] sm:$0xff]
        %v5643 = vld [vmem:[%s358 + $0x322] sm:$0xff]
        %v5644 = vld [vmem:[%s358 + $0x32a] sm:$0xff]
        %v5645 = vld [vmem:[%s358 + $0x332] sm:$0xff]
        %v5646 = vld [vmem:[%s358 + $0x33a] sm:$0xff]
        %v5647 = vld [vmem:[%s358 + $0x34a] sm:$0xff]
        %v5648 = vld [vmem:[%s358 + $0x352] sm:$0xff]
        %v5649 = vld [vmem:[%s358 + $0x35a] sm:$0xff]
        %v5650 = vld [vmem:[%s358 + $0x362] sm:$0xff]
        %v5651 = vld [vmem:[%s358 + $0x372] sm:$0xff]
        %v5652 = vld [vmem:[%s358 + $0x37a] sm:$0xff]
        %v5653 = vld [vmem:[%s358 + $0x382] sm:$0xff]
        %v5654 = vld [vmem:[%s358 + $0x38a] sm:$0xff]
        %v5655 = vld [vmem:[%s358 + $0x39a] sm:$0xff]
        %v5656 = vld [vmem:[%s358 + $0x3a2] sm:$0xff]
        %v5657 = vld [vmem:[%s358 + $0x3aa] sm:$0xff]
        %v5658 = vld [vmem:[%s358 + $0x3b2] sm:$0xff]
        %v5659 = vld [vmem:[%s358 + $0x3c2] sm:$0xff]
        %v5660 = vld [vmem:[%s358 + $0x3ca] sm:$0xff]
        %v5661 = vld [vmem:[%s358 + $0x3d2] sm:$0xff]
        %v5662 = vld [vmem:[%s358 + $0x3da] sm:$0xff]
        %v5663 = vld [vmem:[%s358 + $0x3ea] sm:$0xff]
        %v5664 = vld [vmem:[%s358 + $0x3f2] sm:$0xff]
        %v5665 = vld [vmem:[%s358 + $0x3fa] sm:$0xff]
        %v5666 = vld [vmem:[%s358 + $0x402] sm:$0xff]
        %v5667 = vld [vmem:[%s358 + $0x412] sm:$0xff]
        %v5668 = vld [vmem:[%s358 + $0x41a] sm:$0xff]
        %v5669 = vld [vmem:[%s358 + $0x422] sm:$0xff]
        %v5670 = vld [vmem:[%s358 + $0x42a] sm:$0xff]
        %v5671 = vld [vmem:[%s358 + $0x43a] sm:$0xff]
        %v5672 = vld [vmem:[%s358 + $0x442] sm:$0xff]
        %v5673 = vld [vmem:[%s358 + $0x44a] sm:$0xff]
        %v5674 = vld [vmem:[%s358 + $0x452] sm:$0xff]
        %v5675 = vld [vmem:[%s358 + $0x462] sm:$0xff]
        %v5676 = vld [vmem:[%s358 + $0x46a] sm:$0xff]
        %v5677 = vld [vmem:[%s358 + $0x472] sm:$0xff]
        %v5678 = vld [vmem:[%s358 + $0x47a] sm:$0xff]
        %v5679 = vld [vmem:[%s358 + $0x48a] sm:$0xff]
        %v5680 = vld [vmem:[%s358 + $0x492] sm:$0xff]
        %v5681 = vld [vmem:[%s358 + $0x49a] sm:$0xff]
        %v5682 = vld [vmem:[%s358 + $0x4a2] sm:$0xff]
        %v5683 = vld [vmem:[%s358 + $0x4b2] sm:$0xff]
        %v5684 = vld [vmem:[%s358 + $0x4ba] sm:$0xff]
        %v5685 = vld [vmem:[%s358 + $0x4c2] sm:$0xff]
        %v5686 = vld [vmem:[%s358 + $0x4ca] sm:$0xff]
        %v5687 = vld [vmem:[%s358 + $0x4da] sm:$0xff]
        %v5688 = vld [vmem:[%s358 + $0x4e2] sm:$0xff]
        %v5689 = vld [vmem:[%s358 + $0x4ea] sm:$0xff]
        %v5690 = vld [vmem:[%s358 + $0x4f2] sm:$0xff]
        %s5691 = scalar_lea.vmem %s1, 5
        %v5692 = vld [vmem:[%s5691] sm:$0x1]
        %v5693 = vunpack.c.l.bf16 %v5692
        %5695 = vset.pattern.permute.xlu0 0
        %5696 = vperm.xlu0 %5695, %v5563
        %v5697 = vpop.permute.xlu0 %5696
        %5700 = vset.pattern.permute.xlu0 0
        %5701 = vperm.xlu0 %5700, %v5564
        %v5702 = vpop.permute.xlu0 %5701
        %5705 = vset.pattern.permute.xlu0 0
        %5706 = vperm.xlu0 %5705, %v5565
        %v5707 = vpop.permute.xlu0 %5706
        %5710 = vset.pattern.permute.xlu0 0
        %5711 = vperm.xlu0 %5710, %v5566
        %v5712 = vpop.permute.xlu0 %5711
        %5715 = vset.pattern.permute.xlu0 0
        %5716 = vperm.xlu0 %5715, %v5567
        %v5717 = vpop.permute.xlu0 %5716
        %5720 = vset.pattern.permute.xlu0 0
        %5721 = vperm.xlu0 %5720, %v5568
        %v5722 = vpop.permute.xlu0 %5721
        %5725 = vset.pattern.permute.xlu0 0
        %5726 = vperm.xlu0 %5725, %v5569
        %v5727 = vpop.permute.xlu0 %5726
        %5730 = vset.pattern.permute.xlu0 0
        %5731 = vperm.xlu0 %5730, %v5570
        %v5732 = vpop.permute.xlu0 %5731
        %5735 = vset.pattern.permute.xlu0 0
        %5736 = vperm.xlu0 %5735, %v5571
        %v5737 = vpop.permute.xlu0 %5736
        %5740 = vset.pattern.permute.xlu0 0
        %5741 = vperm.xlu0 %5740, %v5572
        %v5742 = vpop.permute.xlu0 %5741
        %5745 = vset.pattern.permute.xlu0 0
        %5746 = vperm.xlu0 %5745, %v5573
        %v5747 = vpop.permute.xlu0 %5746
        %5750 = vset.pattern.permute.xlu0 0
        %5751 = vperm.xlu0 %5750, %v5574
        %v5752 = vpop.permute.xlu0 %5751
        %5755 = vset.pattern.permute.xlu0 0
        %5756 = vperm.xlu0 %5755, %v5575
        %v5757 = vpop.permute.xlu0 %5756
        %5760 = vset.pattern.permute.xlu0 0
        %5761 = vperm.xlu0 %5760, %v5576
        %v5762 = vpop.permute.xlu0 %5761
        %5765 = vset.pattern.permute.xlu0 0
        %5766 = vperm.xlu0 %5765, %v5577
        %v5767 = vpop.permute.xlu0 %5766
        %5770 = vset.pattern.permute.xlu0 0
        %5771 = vperm.xlu0 %5770, %v5578
        %v5772 = vpop.permute.xlu0 %5771
        %5775 = vset.pattern.permute.xlu0 0
        %5776 = vperm.xlu0 %5775, %v5579
        %v5777 = vpop.permute.xlu0 %5776
        %5780 = vset.pattern.permute.xlu0 0
        %5781 = vperm.xlu0 %5780, %v5580
        %v5782 = vpop.permute.xlu0 %5781
        %5785 = vset.pattern.permute.xlu0 0
        %5786 = vperm.xlu0 %5785, %v5581
        %v5787 = vpop.permute.xlu0 %5786
        %5790 = vset.pattern.permute.xlu0 0
        %5791 = vperm.xlu0 %5790, %v5582
        %v5792 = vpop.permute.xlu0 %5791
        %5795 = vset.pattern.permute.xlu0 0
        %5796 = vperm.xlu0 %5795, %v5583
        %v5797 = vpop.permute.xlu0 %5796
        %5800 = vset.pattern.permute.xlu0 0
        %5801 = vperm.xlu0 %5800, %v5584
        %v5802 = vpop.permute.xlu0 %5801
        %5805 = vset.pattern.permute.xlu0 0
        %5806 = vperm.xlu0 %5805, %v5585
        %v5807 = vpop.permute.xlu0 %5806
        %5810 = vset.pattern.permute.xlu0 0
        %5811 = vperm.xlu0 %5810, %v5586
        %v5812 = vpop.permute.xlu0 %5811
        %5815 = vset.pattern.permute.xlu0 0
        %5816 = vperm.xlu0 %5815, %v5587
        %v5817 = vpop.permute.xlu0 %5816
        %5820 = vset.pattern.permute.xlu0 0
        %5821 = vperm.xlu0 %5820, %v5588
        %v5822 = vpop.permute.xlu0 %5821
        %5825 = vset.pattern.permute.xlu0 0
        %5826 = vperm.xlu0 %5825, %v5589
        %v5827 = vpop.permute.xlu0 %5826
        %5830 = vset.pattern.permute.xlu0 0
        %5831 = vperm.xlu0 %5830, %v5590
        %v5832 = vpop.permute.xlu0 %5831
        %5835 = vset.pattern.permute.xlu0 0
        %5836 = vperm.xlu0 %5835, %v5591
        %v5837 = vpop.permute.xlu0 %5836
        %5840 = vset.pattern.permute.xlu0 0
        %5841 = vperm.xlu0 %5840, %v5592
        %v5842 = vpop.permute.xlu0 %5841
        %5845 = vset.pattern.permute.xlu0 0
        %5846 = vperm.xlu0 %5845, %v5593
        %v5847 = vpop.permute.xlu0 %5846
        %5850 = vset.pattern.permute.xlu0 0
        %5851 = vperm.xlu0 %5850, %v5594
        %v5852 = vpop.permute.xlu0 %5851
        %5855 = vset.pattern.permute.xlu0 0
        %5856 = vperm.xlu0 %5855, %v5595
        %v5857 = vpop.permute.xlu0 %5856
        %5860 = vset.pattern.permute.xlu0 0
        %5861 = vperm.xlu0 %5860, %v5596
        %v5862 = vpop.permute.xlu0 %5861
        %5865 = vset.pattern.permute.xlu0 0
        %5866 = vperm.xlu0 %5865, %v5597
        %v5867 = vpop.permute.xlu0 %5866
        %5870 = vset.pattern.permute.xlu0 0
        %5871 = vperm.xlu0 %5870, %v5598
        %v5872 = vpop.permute.xlu0 %5871
        %5875 = vset.pattern.permute.xlu0 0
        %5876 = vperm.xlu0 %5875, %v5599
        %v5877 = vpop.permute.xlu0 %5876
        %5880 = vset.pattern.permute.xlu0 0
        %5881 = vperm.xlu0 %5880, %v5600
        %v5882 = vpop.permute.xlu0 %5881
        %5885 = vset.pattern.permute.xlu0 0
        %5886 = vperm.xlu0 %5885, %v5601
        %v5887 = vpop.permute.xlu0 %5886
        %5890 = vset.pattern.permute.xlu0 0
        %5891 = vperm.xlu0 %5890, %v5602
        %v5892 = vpop.permute.xlu0 %5891
        %5895 = vset.pattern.permute.xlu0 0
        %5896 = vperm.xlu0 %5895, %v5603
        %v5897 = vpop.permute.xlu0 %5896
        %5900 = vset.pattern.permute.xlu0 0
        %5901 = vperm.xlu0 %5900, %v5604
        %v5902 = vpop.permute.xlu0 %5901
        %5905 = vset.pattern.permute.xlu0 0
        %5906 = vperm.xlu0 %5905, %v5605
        %v5907 = vpop.permute.xlu0 %5906
        %5910 = vset.pattern.permute.xlu0 0
        %5911 = vperm.xlu0 %5910, %v5606
        %v5912 = vpop.permute.xlu0 %5911
        %5915 = vset.pattern.permute.xlu0 0
        %5916 = vperm.xlu0 %5915, %v5607
        %v5917 = vpop.permute.xlu0 %5916
        %5920 = vset.pattern.permute.xlu0 0
        %5921 = vperm.xlu0 %5920, %v5608
        %v5922 = vpop.permute.xlu0 %5921
        %5925 = vset.pattern.permute.xlu0 0
        %5926 = vperm.xlu0 %5925, %v5609
        %v5927 = vpop.permute.xlu0 %5926
        %5930 = vset.pattern.permute.xlu0 0
        %5931 = vperm.xlu0 %5930, %v5610
        %v5932 = vpop.permute.xlu0 %5931
        %5935 = vset.pattern.permute.xlu0 0
        %5936 = vperm.xlu0 %5935, %v5611
        %v5937 = vpop.permute.xlu0 %5936
        %5940 = vset.pattern.permute.xlu0 0
        %5941 = vperm.xlu0 %5940, %v5612
        %v5942 = vpop.permute.xlu0 %5941
        %5945 = vset.pattern.permute.xlu0 0
        %5946 = vperm.xlu0 %5945, %v5613
        %v5947 = vpop.permute.xlu0 %5946
        %5950 = vset.pattern.permute.xlu0 0
        %5951 = vperm.xlu0 %5950, %v5614
        %v5952 = vpop.permute.xlu0 %5951
        %5955 = vset.pattern.permute.xlu0 0
        %5956 = vperm.xlu0 %5955, %v5615
        %v5957 = vpop.permute.xlu0 %5956
        %5960 = vset.pattern.permute.xlu0 0
        %5961 = vperm.xlu0 %5960, %v5616
        %v5962 = vpop.permute.xlu0 %5961
        %5965 = vset.pattern.permute.xlu0 0
        %5966 = vperm.xlu0 %5965, %v5617
        %v5967 = vpop.permute.xlu0 %5966
        %5970 = vset.pattern.permute.xlu0 0
        %5971 = vperm.xlu0 %5970, %v5618
        %v5972 = vpop.permute.xlu0 %5971
        %5975 = vset.pattern.permute.xlu0 0
        %5976 = vperm.xlu0 %5975, %v5619
        %v5977 = vpop.permute.xlu0 %5976
        %5980 = vset.pattern.permute.xlu0 0
        %5981 = vperm.xlu0 %5980, %v5620
        %v5982 = vpop.permute.xlu0 %5981
        %5985 = vset.pattern.permute.xlu0 0
        %5986 = vperm.xlu0 %5985, %v5621
        %v5987 = vpop.permute.xlu0 %5986
        %5990 = vset.pattern.permute.xlu0 0
        %5991 = vperm.xlu0 %5990, %v5622
        %v5992 = vpop.permute.xlu0 %5991
        %5995 = vset.pattern.permute.xlu0 0
        %5996 = vperm.xlu0 %5995, %v5623
        %v5997 = vpop.permute.xlu0 %5996
        %6000 = vset.pattern.permute.xlu0 0
        %6001 = vperm.xlu0 %6000, %v5624
        %v6002 = vpop.permute.xlu0 %6001
        %6005 = vset.pattern.permute.xlu0 0
        %6006 = vperm.xlu0 %6005, %v5625
        %v6007 = vpop.permute.xlu0 %6006
        %6010 = vset.pattern.permute.xlu0 0
        %6011 = vperm.xlu0 %6010, %v5626
        %v6012 = vpop.permute.xlu0 %6011
        %6015 = vset.pattern.permute.xlu0 0
        %6016 = vperm.xlu0 %6015, %v5627
        %v6017 = vpop.permute.xlu0 %6016
        %6020 = vset.pattern.permute.xlu0 0
        %6021 = vperm.xlu0 %6020, %v5628
        %v6022 = vpop.permute.xlu0 %6021
        %6025 = vset.pattern.permute.xlu0 0
        %6026 = vperm.xlu0 %6025, %v5629
        %v6027 = vpop.permute.xlu0 %6026
        %6030 = vset.pattern.permute.xlu0 0
        %6031 = vperm.xlu0 %6030, %v5630
        %v6032 = vpop.permute.xlu0 %6031
        %6035 = vset.pattern.permute.xlu0 0
        %6036 = vperm.xlu0 %6035, %v5631
        %v6037 = vpop.permute.xlu0 %6036
        %6040 = vset.pattern.permute.xlu0 0
        %6041 = vperm.xlu0 %6040, %v5632
        %v6042 = vpop.permute.xlu0 %6041
        %6045 = vset.pattern.permute.xlu0 0
        %6046 = vperm.xlu0 %6045, %v5633
        %v6047 = vpop.permute.xlu0 %6046
        %6050 = vset.pattern.permute.xlu0 0
        %6051 = vperm.xlu0 %6050, %v5634
        %v6052 = vpop.permute.xlu0 %6051
        %6055 = vset.pattern.permute.xlu0 0
        %6056 = vperm.xlu0 %6055, %v5635
        %v6057 = vpop.permute.xlu0 %6056
        %6060 = vset.pattern.permute.xlu0 0
        %6061 = vperm.xlu0 %6060, %v5636
        %v6062 = vpop.permute.xlu0 %6061
        %6065 = vset.pattern.permute.xlu0 0
        %6066 = vperm.xlu0 %6065, %v5637
        %v6067 = vpop.permute.xlu0 %6066
        %6070 = vset.pattern.permute.xlu0 0
        %6071 = vperm.xlu0 %6070, %v5638
        %v6072 = vpop.permute.xlu0 %6071
        %6075 = vset.pattern.permute.xlu0 0
        %6076 = vperm.xlu0 %6075, %v5639
        %v6077 = vpop.permute.xlu0 %6076
        %6080 = vset.pattern.permute.xlu0 0
        %6081 = vperm.xlu0 %6080, %v5640
        %v6082 = vpop.permute.xlu0 %6081
        %6085 = vset.pattern.permute.xlu0 0
        %6086 = vperm.xlu0 %6085, %v5641
        %v6087 = vpop.permute.xlu0 %6086
        %6090 = vset.pattern.permute.xlu0 0
        %6091 = vperm.xlu0 %6090, %v5642
        %v6092 = vpop.permute.xlu0 %6091
        %6095 = vset.pattern.permute.xlu0 0
        %6096 = vperm.xlu0 %6095, %v5643
        %v6097 = vpop.permute.xlu0 %6096
        %6100 = vset.pattern.permute.xlu0 0
        %6101 = vperm.xlu0 %6100, %v5644
        %v6102 = vpop.permute.xlu0 %6101
        %6105 = vset.pattern.permute.xlu0 0
        %6106 = vperm.xlu0 %6105, %v5645
        %v6107 = vpop.permute.xlu0 %6106
        %6110 = vset.pattern.permute.xlu0 0
        %6111 = vperm.xlu0 %6110, %v5646
        %v6112 = vpop.permute.xlu0 %6111
        %6115 = vset.pattern.permute.xlu0 0
        %6116 = vperm.xlu0 %6115, %v5647
        %v6117 = vpop.permute.xlu0 %6116
        %6120 = vset.pattern.permute.xlu0 0
        %6121 = vperm.xlu0 %6120, %v5648
        %v6122 = vpop.permute.xlu0 %6121
        %6125 = vset.pattern.permute.xlu0 0
        %6126 = vperm.xlu0 %6125, %v5649
        %v6127 = vpop.permute.xlu0 %6126
        %6130 = vset.pattern.permute.xlu0 0
        %6131 = vperm.xlu0 %6130, %v5650
        %v6132 = vpop.permute.xlu0 %6131
        %6135 = vset.pattern.permute.xlu0 0
        %6136 = vperm.xlu0 %6135, %v5651
        %v6137 = vpop.permute.xlu0 %6136
        %6140 = vset.pattern.permute.xlu0 0
        %6141 = vperm.xlu0 %6140, %v5652
        %v6142 = vpop.permute.xlu0 %6141
        %6145 = vset.pattern.permute.xlu0 0
        %6146 = vperm.xlu0 %6145, %v5653
        %v6147 = vpop.permute.xlu0 %6146
        %6150 = vset.pattern.permute.xlu0 0
        %6151 = vperm.xlu0 %6150, %v5654
        %v6152 = vpop.permute.xlu0 %6151
        %6155 = vset.pattern.permute.xlu0 0
        %6156 = vperm.xlu0 %6155, %v5655
        %v6157 = vpop.permute.xlu0 %6156
        %6160 = vset.pattern.permute.xlu0 0
        %6161 = vperm.xlu0 %6160, %v5656
        %v6162 = vpop.permute.xlu0 %6161
        %6165 = vset.pattern.permute.xlu0 0
        %6166 = vperm.xlu0 %6165, %v5657
        %v6167 = vpop.permute.xlu0 %6166
        %6170 = vset.pattern.permute.xlu0 0
        %6171 = vperm.xlu0 %6170, %v5658
        %v6172 = vpop.permute.xlu0 %6171
        %6175 = vset.pattern.permute.xlu0 0
        %6176 = vperm.xlu0 %6175, %v5659
        %v6177 = vpop.permute.xlu0 %6176
        %6180 = vset.pattern.permute.xlu0 0
        %6181 = vperm.xlu0 %6180, %v5660
        %v6182 = vpop.permute.xlu0 %6181
        %6185 = vset.pattern.permute.xlu0 0
        %6186 = vperm.xlu0 %6185, %v5661
        %v6187 = vpop.permute.xlu0 %6186
        %6190 = vset.pattern.permute.xlu0 0
        %6191 = vperm.xlu0 %6190, %v5662
        %v6192 = vpop.permute.xlu0 %6191
        %6195 = vset.pattern.permute.xlu0 0
        %6196 = vperm.xlu0 %6195, %v5663
        %v6197 = vpop.permute.xlu0 %6196
        %6200 = vset.pattern.permute.xlu0 0
        %6201 = vperm.xlu0 %6200, %v5664
        %v6202 = vpop.permute.xlu0 %6201
        %6205 = vset.pattern.permute.xlu0 0
        %6206 = vperm.xlu0 %6205, %v5665
        %v6207 = vpop.permute.xlu0 %6206
        %6210 = vset.pattern.permute.xlu0 0
        %6211 = vperm.xlu0 %6210, %v5666
        %v6212 = vpop.permute.xlu0 %6211
        %6215 = vset.pattern.permute.xlu0 0
        %6216 = vperm.xlu0 %6215, %v5667
        %v6217 = vpop.permute.xlu0 %6216
        %6220 = vset.pattern.permute.xlu0 0
        %6221 = vperm.xlu0 %6220, %v5668
        %v6222 = vpop.permute.xlu0 %6221
        %6225 = vset.pattern.permute.xlu0 0
        %6226 = vperm.xlu0 %6225, %v5669
        %v6227 = vpop.permute.xlu0 %6226
        %6230 = vset.pattern.permute.xlu0 0
        %6231 = vperm.xlu0 %6230, %v5670
        %v6232 = vpop.permute.xlu0 %6231
        %6235 = vset.pattern.permute.xlu0 0
        %6236 = vperm.xlu0 %6235, %v5671
        %v6237 = vpop.permute.xlu0 %6236
        %6240 = vset.pattern.permute.xlu0 0
        %6241 = vperm.xlu0 %6240, %v5672
        %v6242 = vpop.permute.xlu0 %6241
        %6245 = vset.pattern.permute.xlu0 0
        %6246 = vperm.xlu0 %6245, %v5673
        %v6247 = vpop.permute.xlu0 %6246
        %6250 = vset.pattern.permute.xlu0 0
        %6251 = vperm.xlu0 %6250, %v5674
        %v6252 = vpop.permute.xlu0 %6251
        %6255 = vset.pattern.permute.xlu0 0
        %6256 = vperm.xlu0 %6255, %v5675
        %v6257 = vpop.permute.xlu0 %6256
        %6260 = vset.pattern.permute.xlu0 0
        %6261 = vperm.xlu0 %6260, %v5676
        %v6262 = vpop.permute.xlu0 %6261
        %6265 = vset.pattern.permute.xlu0 0
        %6266 = vperm.xlu0 %6265, %v5677
        %v6267 = vpop.permute.xlu0 %6266
        %6270 = vset.pattern.permute.xlu0 0
        %6271 = vperm.xlu0 %6270, %v5678
        %v6272 = vpop.permute.xlu0 %6271
        %6275 = vset.pattern.permute.xlu0 0
        %6276 = vperm.xlu0 %6275, %v5679
        %v6277 = vpop.permute.xlu0 %6276
        %6280 = vset.pattern.permute.xlu0 0
        %6281 = vperm.xlu0 %6280, %v5680
        %v6282 = vpop.permute.xlu0 %6281
        %6285 = vset.pattern.permute.xlu0 0
        %6286 = vperm.xlu0 %6285, %v5681
        %v6287 = vpop.permute.xlu0 %6286
        %6290 = vset.pattern.permute.xlu0 0
        %6291 = vperm.xlu0 %6290, %v5682
        %v6292 = vpop.permute.xlu0 %6291
        %6295 = vset.pattern.permute.xlu0 0
        %6296 = vperm.xlu0 %6295, %v5683
        %v6297 = vpop.permute.xlu0 %6296
        %6300 = vset.pattern.permute.xlu0 0
        %6301 = vperm.xlu0 %6300, %v5684
        %v6302 = vpop.permute.xlu0 %6301
        %6305 = vset.pattern.permute.xlu0 0
        %6306 = vperm.xlu0 %6305, %v5685
        %v6307 = vpop.permute.xlu0 %6306
        %6310 = vset.pattern.permute.xlu0 0
        %6311 = vperm.xlu0 %6310, %v5686
        %v6312 = vpop.permute.xlu0 %6311
        %6315 = vset.pattern.permute.xlu0 0
        %6316 = vperm.xlu0 %6315, %v5687
        %v6317 = vpop.permute.xlu0 %6316
        %6320 = vset.pattern.permute.xlu0 0
        %6321 = vperm.xlu0 %6320, %v5688
        %v6322 = vpop.permute.xlu0 %6321
        %6325 = vset.pattern.permute.xlu0 0
        %6326 = vperm.xlu0 %6325, %v5689
        %v6327 = vpop.permute.xlu0 %6326
        %6330 = vset.pattern.permute.xlu0 0
        %6331 = vperm.xlu0 %6330, %v5690
        %v6332 = vpop.permute.xlu0 %6331
        %v6334 = vperm.slane %v5693, 0
        %v6335 = vmul.f32 %v5697, %v6334
        %v6336 = vmul.f32 %v5702, %v6334
        %v6337 = vmul.f32 %v5707, %v6334
        %v6338 = vmul.f32 %v5712, %v6334
        %v6339 = vmul.f32 %v5717, %v6334
        %v6340 = vmul.f32 %v5722, %v6334
        %v6341 = vmul.f32 %v5727, %v6334
        %v6342 = vmul.f32 %v5732, %v6334
        %v6343 = vmul.f32 %v5737, %v6334
        %v6344 = vmul.f32 %v5742, %v6334
        %v6345 = vmul.f32 %v5747, %v6334
        %v6346 = vmul.f32 %v5752, %v6334
        %v6347 = vmul.f32 %v5757, %v6334
        %v6348 = vmul.f32 %v5762, %v6334
        %v6349 = vmul.f32 %v5767, %v6334
        %v6350 = vmul.f32 %v5772, %v6334
        %v6351 = vmul.f32 %v5777, %v6334
        %v6352 = vmul.f32 %v5782, %v6334
        %v6353 = vmul.f32 %v5787, %v6334
        %v6354 = vmul.f32 %v5792, %v6334
        %v6355 = vmul.f32 %v5797, %v6334
        %v6356 = vmul.f32 %v5802, %v6334
        %v6357 = vmul.f32 %v5807, %v6334
        %v6358 = vmul.f32 %v5812, %v6334
        %v6359 = vmul.f32 %v5817, %v6334
        %v6360 = vmul.f32 %v5822, %v6334
        %v6361 = vmul.f32 %v5827, %v6334
        %v6362 = vmul.f32 %v5832, %v6334
        %v6363 = vmul.f32 %v5837, %v6334
        %v6364 = vmul.f32 %v5842, %v6334
        %v6365 = vmul.f32 %v5847, %v6334
        %v6366 = vmul.f32 %v5852, %v6334
        %v6367 = vmul.f32 %v5857, %v6334
        %v6368 = vmul.f32 %v5862, %v6334
        %v6369 = vmul.f32 %v5867, %v6334
        %v6370 = vmul.f32 %v5872, %v6334
        %v6371 = vmul.f32 %v5877, %v6334
        %v6372 = vmul.f32 %v5882, %v6334
        %v6373 = vmul.f32 %v5887, %v6334
        %v6374 = vmul.f32 %v5892, %v6334
        %v6375 = vmul.f32 %v5897, %v6334
        %v6376 = vmul.f32 %v5902, %v6334
        %v6377 = vmul.f32 %v5907, %v6334
        %v6378 = vmul.f32 %v5912, %v6334
        %v6379 = vmul.f32 %v5917, %v6334
        %v6380 = vmul.f32 %v5922, %v6334
        %v6381 = vmul.f32 %v5927, %v6334
        %v6382 = vmul.f32 %v5932, %v6334
        %v6383 = vmul.f32 %v5937, %v6334
        %v6384 = vmul.f32 %v5942, %v6334
        %v6385 = vmul.f32 %v5947, %v6334
        %v6386 = vmul.f32 %v5952, %v6334
        %v6387 = vmul.f32 %v5957, %v6334
        %v6388 = vmul.f32 %v5962, %v6334
        %v6389 = vmul.f32 %v5967, %v6334
        %v6390 = vmul.f32 %v5972, %v6334
        %v6391 = vmul.f32 %v5977, %v6334
        %v6392 = vmul.f32 %v5982, %v6334
        %v6393 = vmul.f32 %v5987, %v6334
        %v6394 = vmul.f32 %v5992, %v6334
        %v6395 = vmul.f32 %v5997, %v6334
        %v6396 = vmul.f32 %v6002, %v6334
        %v6397 = vmul.f32 %v6007, %v6334
        %v6398 = vmul.f32 %v6012, %v6334
        %v6399 = vmul.f32 %v6017, %v6334
        %v6400 = vmul.f32 %v6022, %v6334
        %v6401 = vmul.f32 %v6027, %v6334
        %v6402 = vmul.f32 %v6032, %v6334
        %v6403 = vmul.f32 %v6037, %v6334
        %v6404 = vmul.f32 %v6042, %v6334
        %v6405 = vmul.f32 %v6047, %v6334
        %v6406 = vmul.f32 %v6052, %v6334
        %v6407 = vmul.f32 %v6057, %v6334
        %v6408 = vmul.f32 %v6062, %v6334
        %v6409 = vmul.f32 %v6067, %v6334
        %v6410 = vmul.f32 %v6072, %v6334
        %v6411 = vmul.f32 %v6077, %v6334
        %v6412 = vmul.f32 %v6082, %v6334
        %v6413 = vmul.f32 %v6087, %v6334
        %v6414 = vmul.f32 %v6092, %v6334
        %v6415 = vmul.f32 %v6097, %v6334
        %v6416 = vmul.f32 %v6102, %v6334
        %v6417 = vmul.f32 %v6107, %v6334
        %v6418 = vmul.f32 %v6112, %v6334
        %v6419 = vmul.f32 %v6117, %v6334
        %v6420 = vmul.f32 %v6122, %v6334
        %v6421 = vmul.f32 %v6127, %v6334
        %v6422 = vmul.f32 %v6132, %v6334
        %v6423 = vmul.f32 %v6137, %v6334
        %v6424 = vmul.f32 %v6142, %v6334
        %v6425 = vmul.f32 %v6147, %v6334
        %v6426 = vmul.f32 %v6152, %v6334
        %v6427 = vmul.f32 %v6157, %v6334
        %v6428 = vmul.f32 %v6162, %v6334
        %v6429 = vmul.f32 %v6167, %v6334
        %v6430 = vmul.f32 %v6172, %v6334
        %v6431 = vmul.f32 %v6177, %v6334
        %v6432 = vmul.f32 %v6182, %v6334
        %v6433 = vmul.f32 %v6187, %v6334
        %v6434 = vmul.f32 %v6192, %v6334
        %v6435 = vmul.f32 %v6197, %v6334
        %v6436 = vmul.f32 %v6202, %v6334
        %v6437 = vmul.f32 %v6207, %v6334
        %v6438 = vmul.f32 %v6212, %v6334
        %v6439 = vmul.f32 %v6217, %v6334
        %v6440 = vmul.f32 %v6222, %v6334
        %v6441 = vmul.f32 %v6227, %v6334
        %v6442 = vmul.f32 %v6232, %v6334
        %v6443 = vmul.f32 %v6237, %v6334
        %v6444 = vmul.f32 %v6242, %v6334
        %v6445 = vmul.f32 %v6247, %v6334
        %v6446 = vmul.f32 %v6252, %v6334
        %v6447 = vmul.f32 %v6257, %v6334
        %v6448 = vmul.f32 %v6262, %v6334
        %v6449 = vmul.f32 %v6267, %v6334
        %v6450 = vmul.f32 %v6272, %v6334
        %v6451 = vmul.f32 %v6277, %v6334
        %v6452 = vmul.f32 %v6282, %v6334
        %v6453 = vmul.f32 %v6287, %v6334
        %v6454 = vmul.f32 %v6292, %v6334
        %v6455 = vmul.f32 %v6297, %v6334
        %v6456 = vmul.f32 %v6302, %v6334
        %v6457 = vmul.f32 %v6307, %v6334
        %v6458 = vmul.f32 %v6312, %v6334
        %v6459 = vmul.f32 %v6317, %v6334
        %v6460 = vmul.f32 %v6322, %v6334
        %v6461 = vmul.f32 %v6327, %v6334
        %v6462 = vmul.f32 %v6332, %v6334
        %v6463 = vadd.f32 %v5435, %v6335
        %v6464 = vadd.f32 %v5436, %v6336
        %v6465 = vadd.f32 %v5437, %v6337
        %v6466 = vadd.f32 %v5438, %v6338
        %v6467 = vadd.f32 %v5439, %v6339
        %v6468 = vadd.f32 %v5440, %v6340
        %v6469 = vadd.f32 %v5441, %v6341
        %v6470 = vadd.f32 %v5442, %v6342
        %v6471 = vadd.f32 %v5443, %v6343
        %v6472 = vadd.f32 %v5444, %v6344
        %v6473 = vadd.f32 %v5445, %v6345
        %v6474 = vadd.f32 %v5446, %v6346
        %v6475 = vadd.f32 %v5447, %v6347
        %v6476 = vadd.f32 %v5448, %v6348
        %v6477 = vadd.f32 %v5449, %v6349
        %v6478 = vadd.f32 %v5450, %v6350
        %v6479 = vadd.f32 %v5451, %v6351
        %v6480 = vadd.f32 %v5452, %v6352
        %v6481 = vadd.f32 %v5453, %v6353
        %v6482 = vadd.f32 %v5454, %v6354
        %v6483 = vadd.f32 %v5455, %v6355
        %v6484 = vadd.f32 %v5456, %v6356
        %v6485 = vadd.f32 %v5457, %v6357
        %v6486 = vadd.f32 %v5458, %v6358
        %v6487 = vadd.f32 %v5459, %v6359
        %v6488 = vadd.f32 %v5460, %v6360
        %v6489 = vadd.f32 %v5461, %v6361
        %v6490 = vadd.f32 %v5462, %v6362
        %v6491 = vadd.f32 %v5463, %v6363
        %v6492 = vadd.f32 %v5464, %v6364
        %v6493 = vadd.f32 %v5465, %v6365
        %v6494 = vadd.f32 %v5466, %v6366
        %v6495 = vadd.f32 %v5467, %v6367
        %v6496 = vadd.f32 %v5468, %v6368
        %v6497 = vadd.f32 %v5469, %v6369
        %v6498 = vadd.f32 %v5470, %v6370
        %v6499 = vadd.f32 %v5471, %v6371
        %v6500 = vadd.f32 %v5472, %v6372
        %v6501 = vadd.f32 %v5473, %v6373
        %v6502 = vadd.f32 %v5474, %v6374
        %v6503 = vadd.f32 %v5475, %v6375
        %v6504 = vadd.f32 %v5476, %v6376
        %v6505 = vadd.f32 %v5477, %v6377
        %v6506 = vadd.f32 %v5478, %v6378
        %v6507 = vadd.f32 %v5479, %v6379
        %v6508 = vadd.f32 %v5480, %v6380
        %v6509 = vadd.f32 %v5481, %v6381
        %v6510 = vadd.f32 %v5482, %v6382
        %v6511 = vadd.f32 %v5483, %v6383
        %v6512 = vadd.f32 %v5484, %v6384
        %v6513 = vadd.f32 %v5485, %v6385
        %v6514 = vadd.f32 %v5486, %v6386
        %v6515 = vadd.f32 %v5487, %v6387
        %v6516 = vadd.f32 %v5488, %v6388
        %v6517 = vadd.f32 %v5489, %v6389
        %v6518 = vadd.f32 %v5490, %v6390
        %v6519 = vadd.f32 %v5491, %v6391
        %v6520 = vadd.f32 %v5492, %v6392
        %v6521 = vadd.f32 %v5493, %v6393
        %v6522 = vadd.f32 %v5494, %v6394
        %v6523 = vadd.f32 %v5495, %v6395
        %v6524 = vadd.f32 %v5496, %v6396
        %v6525 = vadd.f32 %v5497, %v6397
        %v6526 = vadd.f32 %v5498, %v6398
        %v6527 = vadd.f32 %v5499, %v6399
        %v6528 = vadd.f32 %v5500, %v6400
        %v6529 = vadd.f32 %v5501, %v6401
        %v6530 = vadd.f32 %v5502, %v6402
        %v6531 = vadd.f32 %v5503, %v6403
        %v6532 = vadd.f32 %v5504, %v6404
        %v6533 = vadd.f32 %v5505, %v6405
        %v6534 = vadd.f32 %v5506, %v6406
        %v6535 = vadd.f32 %v5507, %v6407
        %v6536 = vadd.f32 %v5508, %v6408
        %v6537 = vadd.f32 %v5509, %v6409
        %v6538 = vadd.f32 %v5510, %v6410
        %v6539 = vadd.f32 %v5511, %v6411
        %v6540 = vadd.f32 %v5512, %v6412
        %v6541 = vadd.f32 %v5513, %v6413
        %v6542 = vadd.f32 %v5514, %v6414
        %v6543 = vadd.f32 %v5515, %v6415
        %v6544 = vadd.f32 %v5516, %v6416
        %v6545 = vadd.f32 %v5517, %v6417
        %v6546 = vadd.f32 %v5518, %v6418
        %v6547 = vadd.f32 %v5519, %v6419
        %v6548 = vadd.f32 %v5520, %v6420
        %v6549 = vadd.f32 %v5521, %v6421
        %v6550 = vadd.f32 %v5522, %v6422
        %v6551 = vadd.f32 %v5523, %v6423
        %v6552 = vadd.f32 %v5524, %v6424
        %v6553 = vadd.f32 %v5525, %v6425
        %v6554 = vadd.f32 %v5526, %v6426
        %v6555 = vadd.f32 %v5527, %v6427
        %v6556 = vadd.f32 %v5528, %v6428
        %v6557 = vadd.f32 %v5529, %v6429
        %v6558 = vadd.f32 %v5530, %v6430
        %v6559 = vadd.f32 %v5531, %v6431
        %v6560 = vadd.f32 %v5532, %v6432
        %v6561 = vadd.f32 %v5533, %v6433
        %v6562 = vadd.f32 %v5534, %v6434
        %v6563 = vadd.f32 %v5535, %v6435
        %v6564 = vadd.f32 %v5536, %v6436
        %v6565 = vadd.f32 %v5537, %v6437
        %v6566 = vadd.f32 %v5538, %v6438
        %v6567 = vadd.f32 %v5539, %v6439
        %v6568 = vadd.f32 %v5540, %v6440
        %v6569 = vadd.f32 %v5541, %v6441
        %v6570 = vadd.f32 %v5542, %v6442
        %v6571 = vadd.f32 %v5543, %v6443
        %v6572 = vadd.f32 %v5544, %v6444
        %v6573 = vadd.f32 %v5545, %v6445
        %v6574 = vadd.f32 %v5546, %v6446
        %v6575 = vadd.f32 %v5547, %v6447
        %v6576 = vadd.f32 %v5548, %v6448
        %v6577 = vadd.f32 %v5549, %v6449
        %v6578 = vadd.f32 %v5550, %v6450
        %v6579 = vadd.f32 %v5551, %v6451
        %v6580 = vadd.f32 %v5552, %v6452
        %v6581 = vadd.f32 %v5553, %v6453
        %v6582 = vadd.f32 %v5554, %v6454
        %v6583 = vadd.f32 %v5555, %v6455
        %v6584 = vadd.f32 %v5556, %v6456
        %v6585 = vadd.f32 %v5557, %v6457
        %v6586 = vadd.f32 %v5558, %v6458
        %v6587 = vadd.f32 %v5559, %v6459
        %v6588 = vadd.f32 %v5560, %v6460
        %v6589 = vadd.f32 %v5561, %v6461
        %v6590 = vadd.f32 %v5562, %v6462
        %s6591 = scalar_lea.vmem [#allocation2], 80
        %v6592 = vld [vmem:[%s6591] sm:$0xff]
        %v6593 = vld [vmem:[%s6591 + $0x8] sm:$0xff]
        %v6594 = vld [vmem:[%s6591 + $0x10] sm:$0xff]
        %v6595 = vld [vmem:[%s6591 + $0x18] sm:$0xff]
        %v6596 = vld [vmem:[%s6591 + $0x28] sm:$0xff]
        %v6597 = vld [vmem:[%s6591 + $0x30] sm:$0xff]
        %v6598 = vld [vmem:[%s6591 + $0x38] sm:$0xff]
        %v6599 = vld [vmem:[%s6591 + $0x40] sm:$0xff]
        %v6600 = vld [vmem:[%s6591 + $0x50] sm:$0xff]
        %v6601 = vld [vmem:[%s6591 + $0x58] sm:$0xff]
        %v6602 = vld [vmem:[%s6591 + $0x60] sm:$0xff]
        %v6603 = vld [vmem:[%s6591 + $0x68] sm:$0xff]
        %v6604 = vld [vmem:[%s6591 + $0x78] sm:$0xff]
        %v6605 = vld [vmem:[%s6591 + $0x80] sm:$0xff]
        %v6606 = vld [vmem:[%s6591 + $0x88] sm:$0xff]
        %v6607 = vld [vmem:[%s6591 + $0x90] sm:$0xff]
        %v6608 = vld [vmem:[%s6591 + $0xa0] sm:$0xff]
        %v6609 = vld [vmem:[%s6591 + $0xa8] sm:$0xff]
        %v6610 = vld [vmem:[%s6591 + $0xb0] sm:$0xff]
        %v6611 = vld [vmem:[%s6591 + $0xb8] sm:$0xff]
        %v6612 = vld [vmem:[%s6591 + $0xc8] sm:$0xff]
        %v6613 = vld [vmem:[%s6591 + $0xd0] sm:$0xff]
        %v6614 = vld [vmem:[%s6591 + $0xd8] sm:$0xff]
        %v6615 = vld [vmem:[%s6591 + $0xe0] sm:$0xff]
        %v6616 = vld [vmem:[%s6591 + $0xf0] sm:$0xff]
        %v6617 = vld [vmem:[%s6591 + $0xf8] sm:$0xff]
        %v6618 = vld [vmem:[%s6591 + $0x100] sm:$0xff]
        %v6619 = vld [vmem:[%s6591 + $0x108] sm:$0xff]
        %v6620 = vld [vmem:[%s6591 + $0x118] sm:$0xff]
        %v6621 = vld [vmem:[%s6591 + $0x120] sm:$0xff]
        %v6622 = vld [vmem:[%s6591 + $0x128] sm:$0xff]
        %v6623 = vld [vmem:[%s6591 + $0x130] sm:$0xff]
        %v6624 = vld [vmem:[%s6591 + $0x140] sm:$0xff]
        %v6625 = vld [vmem:[%s6591 + $0x148] sm:$0xff]
        %v6626 = vld [vmem:[%s6591 + $0x150] sm:$0xff]
        %v6627 = vld [vmem:[%s6591 + $0x158] sm:$0xff]
        %v6628 = vld [vmem:[%s6591 + $0x168] sm:$0xff]
        %v6629 = vld [vmem:[%s6591 + $0x170] sm:$0xff]
        %v6630 = vld [vmem:[%s6591 + $0x178] sm:$0xff]
        %v6631 = vld [vmem:[%s6591 + $0x180] sm:$0xff]
        %v6632 = vld [vmem:[%s6591 + $0x190] sm:$0xff]
        %v6633 = vld [vmem:[%s6591 + $0x198] sm:$0xff]
        %v6634 = vld [vmem:[%s6591 + $0x1a0] sm:$0xff]
        %v6635 = vld [vmem:[%s6591 + $0x1a8] sm:$0xff]
        %v6636 = vld [vmem:[%s6591 + $0x1b8] sm:$0xff]
        %v6637 = vld [vmem:[%s6591 + $0x1c0] sm:$0xff]
        %v6638 = vld [vmem:[%s6591 + $0x1c8] sm:$0xff]
        %v6639 = vld [vmem:[%s6591 + $0x1d0] sm:$0xff]
        %v6640 = vld [vmem:[%s6591 + $0x1e0] sm:$0xff]
        %v6641 = vld [vmem:[%s6591 + $0x1e8] sm:$0xff]
        %v6642 = vld [vmem:[%s6591 + $0x1f0] sm:$0xff]
        %v6643 = vld [vmem:[%s6591 + $0x1f8] sm:$0xff]
        %v6644 = vld [vmem:[%s6591 + $0x208] sm:$0xff]
        %v6645 = vld [vmem:[%s6591 + $0x210] sm:$0xff]
        %v6646 = vld [vmem:[%s6591 + $0x218] sm:$0xff]
        %v6647 = vld [vmem:[%s6591 + $0x220] sm:$0xff]
        %v6648 = vld [vmem:[%s6591 + $0x230] sm:$0xff]
        %v6649 = vld [vmem:[%s6591 + $0x238] sm:$0xff]
        %v6650 = vld [vmem:[%s6591 + $0x240] sm:$0xff]
        %v6651 = vld [vmem:[%s6591 + $0x248] sm:$0xff]
        %v6652 = vld [vmem:[%s6591 + $0x258] sm:$0xff]
        %v6653 = vld [vmem:[%s6591 + $0x260] sm:$0xff]
        %v6654 = vld [vmem:[%s6591 + $0x268] sm:$0xff]
        %v6655 = vld [vmem:[%s6591 + $0x270] sm:$0xff]
        %v6656 = vld [vmem:[%s6591 + $0x280] sm:$0xff]
        %v6657 = vld [vmem:[%s6591 + $0x288] sm:$0xff]
        %v6658 = vld [vmem:[%s6591 + $0x290] sm:$0xff]
        %v6659 = vld [vmem:[%s6591 + $0x298] sm:$0xff]
        %v6660 = vld [vmem:[%s6591 + $0x2a8] sm:$0xff]
        %v6661 = vld [vmem:[%s6591 + $0x2b0] sm:$0xff]
        %v6662 = vld [vmem:[%s6591 + $0x2b8] sm:$0xff]
        %v6663 = vld [vmem:[%s6591 + $0x2c0] sm:$0xff]
        %v6664 = vld [vmem:[%s6591 + $0x2d0] sm:$0xff]
        %v6665 = vld [vmem:[%s6591 + $0x2d8] sm:$0xff]
        %v6666 = vld [vmem:[%s6591 + $0x2e0] sm:$0xff]
        %v6667 = vld [vmem:[%s6591 + $0x2e8] sm:$0xff]
        %v6668 = vld [vmem:[%s6591 + $0x2f8] sm:$0xff]
        %v6669 = vld [vmem:[%s6591 + $0x300] sm:$0xff]
        %v6670 = vld [vmem:[%s6591 + $0x308] sm:$0xff]
        %v6671 = vld [vmem:[%s6591 + $0x310] sm:$0xff]
        %v6672 = vld [vmem:[%s6591 + $0x320] sm:$0xff]
        %v6673 = vld [vmem:[%s6591 + $0x328] sm:$0xff]
        %v6674 = vld [vmem:[%s6591 + $0x330] sm:$0xff]
        %v6675 = vld [vmem:[%s6591 + $0x338] sm:$0xff]
        %v6676 = vld [vmem:[%s6591 + $0x348] sm:$0xff]
        %v6677 = vld [vmem:[%s6591 + $0x350] sm:$0xff]
        %v6678 = vld [vmem:[%s6591 + $0x358] sm:$0xff]
        %v6679 = vld [vmem:[%s6591 + $0x360] sm:$0xff]
        %v6680 = vld [vmem:[%s6591 + $0x370] sm:$0xff]
        %v6681 = vld [vmem:[%s6591 + $0x378] sm:$0xff]
        %v6682 = vld [vmem:[%s6591 + $0x380] sm:$0xff]
        %v6683 = vld [vmem:[%s6591 + $0x388] sm:$0xff]
        %v6684 = vld [vmem:[%s6591 + $0x398] sm:$0xff]
        %v6685 = vld [vmem:[%s6591 + $0x3a0] sm:$0xff]
        %v6686 = vld [vmem:[%s6591 + $0x3a8] sm:$0xff]
        %v6687 = vld [vmem:[%s6591 + $0x3b0] sm:$0xff]
        %v6688 = vld [vmem:[%s6591 + $0x3c0] sm:$0xff]
        %v6689 = vld [vmem:[%s6591 + $0x3c8] sm:$0xff]
        %v6690 = vld [vmem:[%s6591 + $0x3d0] sm:$0xff]
        %v6691 = vld [vmem:[%s6591 + $0x3d8] sm:$0xff]
        %v6692 = vld [vmem:[%s6591 + $0x3e8] sm:$0xff]
        %v6693 = vld [vmem:[%s6591 + $0x3f0] sm:$0xff]
        %v6694 = vld [vmem:[%s6591 + $0x3f8] sm:$0xff]
        %v6695 = vld [vmem:[%s6591 + $0x400] sm:$0xff]
        %v6696 = vld [vmem:[%s6591 + $0x410] sm:$0xff]
        %v6697 = vld [vmem:[%s6591 + $0x418] sm:$0xff]
        %v6698 = vld [vmem:[%s6591 + $0x420] sm:$0xff]
        %v6699 = vld [vmem:[%s6591 + $0x428] sm:$0xff]
        %v6700 = vld [vmem:[%s6591 + $0x438] sm:$0xff]
        %v6701 = vld [vmem:[%s6591 + $0x440] sm:$0xff]
        %v6702 = vld [vmem:[%s6591 + $0x448] sm:$0xff]
        %v6703 = vld [vmem:[%s6591 + $0x450] sm:$0xff]
        %v6704 = vld [vmem:[%s6591 + $0x460] sm:$0xff]
        %v6705 = vld [vmem:[%s6591 + $0x468] sm:$0xff]
        %v6706 = vld [vmem:[%s6591 + $0x470] sm:$0xff]
        %v6707 = vld [vmem:[%s6591 + $0x478] sm:$0xff]
        %v6708 = vld [vmem:[%s6591 + $0x488] sm:$0xff]
        %v6709 = vld [vmem:[%s6591 + $0x490] sm:$0xff]
        %v6710 = vld [vmem:[%s6591 + $0x498] sm:$0xff]
        %v6711 = vld [vmem:[%s6591 + $0x4a0] sm:$0xff]
        %v6712 = vld [vmem:[%s6591 + $0x4b0] sm:$0xff]
        %v6713 = vld [vmem:[%s6591 + $0x4b8] sm:$0xff]
        %v6714 = vld [vmem:[%s6591 + $0x4c0] sm:$0xff]
        %v6715 = vld [vmem:[%s6591 + $0x4c8] sm:$0xff]
        %v6716 = vld [vmem:[%s6591 + $0x4d8] sm:$0xff]
        %v6717 = vld [vmem:[%s6591 + $0x4e0] sm:$0xff]
        %v6718 = vld [vmem:[%s6591 + $0x4e8] sm:$0xff]
        %v6719 = vld [vmem:[%s6591 + $0x4f0] sm:$0xff]
        %s6720 = scalar_lea.vmem %s1, 6
        %v6721 = vld [vmem:[%s6720] sm:$0x1]
        %v6722 = vunpack.c.l.bf16 %v6721
        %6724 = vset.pattern.permute.xlu0 0
        %6725 = vperm.xlu0 %6724, %v6592
        %v6726 = vpop.permute.xlu0 %6725
        %6729 = vset.pattern.permute.xlu0 0
        %6730 = vperm.xlu0 %6729, %v6593
        %v6731 = vpop.permute.xlu0 %6730
        %6734 = vset.pattern.permute.xlu0 0
        %6735 = vperm.xlu0 %6734, %v6594
        %v6736 = vpop.permute.xlu0 %6735
        %6739 = vset.pattern.permute.xlu0 0
        %6740 = vperm.xlu0 %6739, %v6595
        %v6741 = vpop.permute.xlu0 %6740
        %6744 = vset.pattern.permute.xlu0 0
        %6745 = vperm.xlu0 %6744, %v6596
        %v6746 = vpop.permute.xlu0 %6745
        %6749 = vset.pattern.permute.xlu0 0
        %6750 = vperm.xlu0 %6749, %v6597
        %v6751 = vpop.permute.xlu0 %6750
        %6754 = vset.pattern.permute.xlu0 0
        %6755 = vperm.xlu0 %6754, %v6598
        %v6756 = vpop.permute.xlu0 %6755
        %6759 = vset.pattern.permute.xlu0 0
        %6760 = vperm.xlu0 %6759, %v6599
        %v6761 = vpop.permute.xlu0 %6760
        %6764 = vset.pattern.permute.xlu0 0
        %6765 = vperm.xlu0 %6764, %v6600
        %v6766 = vpop.permute.xlu0 %6765
        %6769 = vset.pattern.permute.xlu0 0
        %6770 = vperm.xlu0 %6769, %v6601
        %v6771 = vpop.permute.xlu0 %6770
        %6774 = vset.pattern.permute.xlu0 0
        %6775 = vperm.xlu0 %6774, %v6602
        %v6776 = vpop.permute.xlu0 %6775
        %6779 = vset.pattern.permute.xlu0 0
        %6780 = vperm.xlu0 %6779, %v6603
        %v6781 = vpop.permute.xlu0 %6780
        %6784 = vset.pattern.permute.xlu0 0
        %6785 = vperm.xlu0 %6784, %v6604
        %v6786 = vpop.permute.xlu0 %6785
        %6789 = vset.pattern.permute.xlu0 0
        %6790 = vperm.xlu0 %6789, %v6605
        %v6791 = vpop.permute.xlu0 %6790
        %6794 = vset.pattern.permute.xlu0 0
        %6795 = vperm.xlu0 %6794, %v6606
        %v6796 = vpop.permute.xlu0 %6795
        %6799 = vset.pattern.permute.xlu0 0
        %6800 = vperm.xlu0 %6799, %v6607
        %v6801 = vpop.permute.xlu0 %6800
        %6804 = vset.pattern.permute.xlu0 0
        %6805 = vperm.xlu0 %6804, %v6608
        %v6806 = vpop.permute.xlu0 %6805
        %6809 = vset.pattern.permute.xlu0 0
        %6810 = vperm.xlu0 %6809, %v6609
        %v6811 = vpop.permute.xlu0 %6810
        %6814 = vset.pattern.permute.xlu0 0
        %6815 = vperm.xlu0 %6814, %v6610
        %v6816 = vpop.permute.xlu0 %6815
        %6819 = vset.pattern.permute.xlu0 0
        %6820 = vperm.xlu0 %6819, %v6611
        %v6821 = vpop.permute.xlu0 %6820
        %6824 = vset.pattern.permute.xlu0 0
        %6825 = vperm.xlu0 %6824, %v6612
        %v6826 = vpop.permute.xlu0 %6825
        %6829 = vset.pattern.permute.xlu0 0
        %6830 = vperm.xlu0 %6829, %v6613
        %v6831 = vpop.permute.xlu0 %6830
        %6834 = vset.pattern.permute.xlu0 0
        %6835 = vperm.xlu0 %6834, %v6614
        %v6836 = vpop.permute.xlu0 %6835
        %6839 = vset.pattern.permute.xlu0 0
        %6840 = vperm.xlu0 %6839, %v6615
        %v6841 = vpop.permute.xlu0 %6840
        %6844 = vset.pattern.permute.xlu0 0
        %6845 = vperm.xlu0 %6844, %v6616
        %v6846 = vpop.permute.xlu0 %6845
        %6849 = vset.pattern.permute.xlu0 0
        %6850 = vperm.xlu0 %6849, %v6617
        %v6851 = vpop.permute.xlu0 %6850
        %6854 = vset.pattern.permute.xlu0 0
        %6855 = vperm.xlu0 %6854, %v6618
        %v6856 = vpop.permute.xlu0 %6855
        %6859 = vset.pattern.permute.xlu0 0
        %6860 = vperm.xlu0 %6859, %v6619
        %v6861 = vpop.permute.xlu0 %6860
        %6864 = vset.pattern.permute.xlu0 0
        %6865 = vperm.xlu0 %6864, %v6620
        %v6866 = vpop.permute.xlu0 %6865
        %6869 = vset.pattern.permute.xlu0 0
        %6870 = vperm.xlu0 %6869, %v6621
        %v6871 = vpop.permute.xlu0 %6870
        %6874 = vset.pattern.permute.xlu0 0
        %6875 = vperm.xlu0 %6874, %v6622
        %v6876 = vpop.permute.xlu0 %6875
        %6879 = vset.pattern.permute.xlu0 0
        %6880 = vperm.xlu0 %6879, %v6623
        %v6881 = vpop.permute.xlu0 %6880
        %6884 = vset.pattern.permute.xlu0 0
        %6885 = vperm.xlu0 %6884, %v6624
        %v6886 = vpop.permute.xlu0 %6885
        %6889 = vset.pattern.permute.xlu0 0
        %6890 = vperm.xlu0 %6889, %v6625
        %v6891 = vpop.permute.xlu0 %6890
        %6894 = vset.pattern.permute.xlu0 0
        %6895 = vperm.xlu0 %6894, %v6626
        %v6896 = vpop.permute.xlu0 %6895
        %6899 = vset.pattern.permute.xlu0 0
        %6900 = vperm.xlu0 %6899, %v6627
        %v6901 = vpop.permute.xlu0 %6900
        %6904 = vset.pattern.permute.xlu0 0
        %6905 = vperm.xlu0 %6904, %v6628
        %v6906 = vpop.permute.xlu0 %6905
        %6909 = vset.pattern.permute.xlu0 0
        %6910 = vperm.xlu0 %6909, %v6629
        %v6911 = vpop.permute.xlu0 %6910
        %6914 = vset.pattern.permute.xlu0 0
        %6915 = vperm.xlu0 %6914, %v6630
        %v6916 = vpop.permute.xlu0 %6915
        %6919 = vset.pattern.permute.xlu0 0
        %6920 = vperm.xlu0 %6919, %v6631
        %v6921 = vpop.permute.xlu0 %6920
        %6924 = vset.pattern.permute.xlu0 0
        %6925 = vperm.xlu0 %6924, %v6632
        %v6926 = vpop.permute.xlu0 %6925
        %6929 = vset.pattern.permute.xlu0 0
        %6930 = vperm.xlu0 %6929, %v6633
        %v6931 = vpop.permute.xlu0 %6930
        %6934 = vset.pattern.permute.xlu0 0
        %6935 = vperm.xlu0 %6934, %v6634
        %v6936 = vpop.permute.xlu0 %6935
        %6939 = vset.pattern.permute.xlu0 0
        %6940 = vperm.xlu0 %6939, %v6635
        %v6941 = vpop.permute.xlu0 %6940
        %6944 = vset.pattern.permute.xlu0 0
        %6945 = vperm.xlu0 %6944, %v6636
        %v6946 = vpop.permute.xlu0 %6945
        %6949 = vset.pattern.permute.xlu0 0
        %6950 = vperm.xlu0 %6949, %v6637
        %v6951 = vpop.permute.xlu0 %6950
        %6954 = vset.pattern.permute.xlu0 0
        %6955 = vperm.xlu0 %6954, %v6638
        %v6956 = vpop.permute.xlu0 %6955
        %6959 = vset.pattern.permute.xlu0 0
        %6960 = vperm.xlu0 %6959, %v6639
        %v6961 = vpop.permute.xlu0 %6960
        %6964 = vset.pattern.permute.xlu0 0
        %6965 = vperm.xlu0 %6964, %v6640
        %v6966 = vpop.permute.xlu0 %6965
        %6969 = vset.pattern.permute.xlu0 0
        %6970 = vperm.xlu0 %6969, %v6641
        %v6971 = vpop.permute.xlu0 %6970
        %6974 = vset.pattern.permute.xlu0 0
        %6975 = vperm.xlu0 %6974, %v6642
        %v6976 = vpop.permute.xlu0 %6975
        %6979 = vset.pattern.permute.xlu0 0
        %6980 = vperm.xlu0 %6979, %v6643
        %v6981 = vpop.permute.xlu0 %6980
        %6984 = vset.pattern.permute.xlu0 0
        %6985 = vperm.xlu0 %6984, %v6644
        %v6986 = vpop.permute.xlu0 %6985
        %6989 = vset.pattern.permute.xlu0 0
        %6990 = vperm.xlu0 %6989, %v6645
        %v6991 = vpop.permute.xlu0 %6990
        %6994 = vset.pattern.permute.xlu0 0
        %6995 = vperm.xlu0 %6994, %v6646
        %v6996 = vpop.permute.xlu0 %6995
        %6999 = vset.pattern.permute.xlu0 0
        %7000 = vperm.xlu0 %6999, %v6647
        %v7001 = vpop.permute.xlu0 %7000
        %7004 = vset.pattern.permute.xlu0 0
        %7005 = vperm.xlu0 %7004, %v6648
        %v7006 = vpop.permute.xlu0 %7005
        %7009 = vset.pattern.permute.xlu0 0
        %7010 = vperm.xlu0 %7009, %v6649
        %v7011 = vpop.permute.xlu0 %7010
        %7014 = vset.pattern.permute.xlu0 0
        %7015 = vperm.xlu0 %7014, %v6650
        %v7016 = vpop.permute.xlu0 %7015
        %7019 = vset.pattern.permute.xlu0 0
        %7020 = vperm.xlu0 %7019, %v6651
        %v7021 = vpop.permute.xlu0 %7020
        %7024 = vset.pattern.permute.xlu0 0
        %7025 = vperm.xlu0 %7024, %v6652
        %v7026 = vpop.permute.xlu0 %7025
        %7029 = vset.pattern.permute.xlu0 0
        %7030 = vperm.xlu0 %7029, %v6653
        %v7031 = vpop.permute.xlu0 %7030
        %7034 = vset.pattern.permute.xlu0 0
        %7035 = vperm.xlu0 %7034, %v6654
        %v7036 = vpop.permute.xlu0 %7035
        %7039 = vset.pattern.permute.xlu0 0
        %7040 = vperm.xlu0 %7039, %v6655
        %v7041 = vpop.permute.xlu0 %7040
        %7044 = vset.pattern.permute.xlu0 0
        %7045 = vperm.xlu0 %7044, %v6656
        %v7046 = vpop.permute.xlu0 %7045
        %7049 = vset.pattern.permute.xlu0 0
        %7050 = vperm.xlu0 %7049, %v6657
        %v7051 = vpop.permute.xlu0 %7050
        %7054 = vset.pattern.permute.xlu0 0
        %7055 = vperm.xlu0 %7054, %v6658
        %v7056 = vpop.permute.xlu0 %7055
        %7059 = vset.pattern.permute.xlu0 0
        %7060 = vperm.xlu0 %7059, %v6659
        %v7061 = vpop.permute.xlu0 %7060
        %7064 = vset.pattern.permute.xlu0 0
        %7065 = vperm.xlu0 %7064, %v6660
        %v7066 = vpop.permute.xlu0 %7065
        %7069 = vset.pattern.permute.xlu0 0
        %7070 = vperm.xlu0 %7069, %v6661
        %v7071 = vpop.permute.xlu0 %7070
        %7074 = vset.pattern.permute.xlu0 0
        %7075 = vperm.xlu0 %7074, %v6662
        %v7076 = vpop.permute.xlu0 %7075
        %7079 = vset.pattern.permute.xlu0 0
        %7080 = vperm.xlu0 %7079, %v6663
        %v7081 = vpop.permute.xlu0 %7080
        %7084 = vset.pattern.permute.xlu0 0
        %7085 = vperm.xlu0 %7084, %v6664
        %v7086 = vpop.permute.xlu0 %7085
        %7089 = vset.pattern.permute.xlu0 0
        %7090 = vperm.xlu0 %7089, %v6665
        %v7091 = vpop.permute.xlu0 %7090
        %7094 = vset.pattern.permute.xlu0 0
        %7095 = vperm.xlu0 %7094, %v6666
        %v7096 = vpop.permute.xlu0 %7095
        %7099 = vset.pattern.permute.xlu0 0
        %7100 = vperm.xlu0 %7099, %v6667
        %v7101 = vpop.permute.xlu0 %7100
        %7104 = vset.pattern.permute.xlu0 0
        %7105 = vperm.xlu0 %7104, %v6668
        %v7106 = vpop.permute.xlu0 %7105
        %7109 = vset.pattern.permute.xlu0 0
        %7110 = vperm.xlu0 %7109, %v6669
        %v7111 = vpop.permute.xlu0 %7110
        %7114 = vset.pattern.permute.xlu0 0
        %7115 = vperm.xlu0 %7114, %v6670
        %v7116 = vpop.permute.xlu0 %7115
        %7119 = vset.pattern.permute.xlu0 0
        %7120 = vperm.xlu0 %7119, %v6671
        %v7121 = vpop.permute.xlu0 %7120
        %7124 = vset.pattern.permute.xlu0 0
        %7125 = vperm.xlu0 %7124, %v6672
        %v7126 = vpop.permute.xlu0 %7125
        %7129 = vset.pattern.permute.xlu0 0
        %7130 = vperm.xlu0 %7129, %v6673
        %v7131 = vpop.permute.xlu0 %7130
        %7134 = vset.pattern.permute.xlu0 0
        %7135 = vperm.xlu0 %7134, %v6674
        %v7136 = vpop.permute.xlu0 %7135
        %7139 = vset.pattern.permute.xlu0 0
        %7140 = vperm.xlu0 %7139, %v6675
        %v7141 = vpop.permute.xlu0 %7140
        %7144 = vset.pattern.permute.xlu0 0
        %7145 = vperm.xlu0 %7144, %v6676
        %v7146 = vpop.permute.xlu0 %7145
        %7149 = vset.pattern.permute.xlu0 0
        %7150 = vperm.xlu0 %7149, %v6677
        %v7151 = vpop.permute.xlu0 %7150
        %7154 = vset.pattern.permute.xlu0 0
        %7155 = vperm.xlu0 %7154, %v6678
        %v7156 = vpop.permute.xlu0 %7155
        %7159 = vset.pattern.permute.xlu0 0
        %7160 = vperm.xlu0 %7159, %v6679
        %v7161 = vpop.permute.xlu0 %7160
        %7164 = vset.pattern.permute.xlu0 0
        %7165 = vperm.xlu0 %7164, %v6680
        %v7166 = vpop.permute.xlu0 %7165
        %7169 = vset.pattern.permute.xlu0 0
        %7170 = vperm.xlu0 %7169, %v6681
        %v7171 = vpop.permute.xlu0 %7170
        %7174 = vset.pattern.permute.xlu0 0
        %7175 = vperm.xlu0 %7174, %v6682
        %v7176 = vpop.permute.xlu0 %7175
        %7179 = vset.pattern.permute.xlu0 0
        %7180 = vperm.xlu0 %7179, %v6683
        %v7181 = vpop.permute.xlu0 %7180
        %7184 = vset.pattern.permute.xlu0 0
        %7185 = vperm.xlu0 %7184, %v6684
        %v7186 = vpop.permute.xlu0 %7185
        %7189 = vset.pattern.permute.xlu0 0
        %7190 = vperm.xlu0 %7189, %v6685
        %v7191 = vpop.permute.xlu0 %7190
        %7194 = vset.pattern.permute.xlu0 0
        %7195 = vperm.xlu0 %7194, %v6686
        %v7196 = vpop.permute.xlu0 %7195
        %7199 = vset.pattern.permute.xlu0 0
        %7200 = vperm.xlu0 %7199, %v6687
        %v7201 = vpop.permute.xlu0 %7200
        %7204 = vset.pattern.permute.xlu0 0
        %7205 = vperm.xlu0 %7204, %v6688
        %v7206 = vpop.permute.xlu0 %7205
        %7209 = vset.pattern.permute.xlu0 0
        %7210 = vperm.xlu0 %7209, %v6689
        %v7211 = vpop.permute.xlu0 %7210
        %7214 = vset.pattern.permute.xlu0 0
        %7215 = vperm.xlu0 %7214, %v6690
        %v7216 = vpop.permute.xlu0 %7215
        %7219 = vset.pattern.permute.xlu0 0
        %7220 = vperm.xlu0 %7219, %v6691
        %v7221 = vpop.permute.xlu0 %7220
        %7224 = vset.pattern.permute.xlu0 0
        %7225 = vperm.xlu0 %7224, %v6692
        %v7226 = vpop.permute.xlu0 %7225
        %7229 = vset.pattern.permute.xlu0 0
        %7230 = vperm.xlu0 %7229, %v6693
        %v7231 = vpop.permute.xlu0 %7230
        %7234 = vset.pattern.permute.xlu0 0
        %7235 = vperm.xlu0 %7234, %v6694
        %v7236 = vpop.permute.xlu0 %7235
        %7239 = vset.pattern.permute.xlu0 0
        %7240 = vperm.xlu0 %7239, %v6695
        %v7241 = vpop.permute.xlu0 %7240
        %7244 = vset.pattern.permute.xlu0 0
        %7245 = vperm.xlu0 %7244, %v6696
        %v7246 = vpop.permute.xlu0 %7245
        %7249 = vset.pattern.permute.xlu0 0
        %7250 = vperm.xlu0 %7249, %v6697
        %v7251 = vpop.permute.xlu0 %7250
        %7254 = vset.pattern.permute.xlu0 0
        %7255 = vperm.xlu0 %7254, %v6698
        %v7256 = vpop.permute.xlu0 %7255
        %7259 = vset.pattern.permute.xlu0 0
        %7260 = vperm.xlu0 %7259, %v6699
        %v7261 = vpop.permute.xlu0 %7260
        %7264 = vset.pattern.permute.xlu0 0
        %7265 = vperm.xlu0 %7264, %v6700
        %v7266 = vpop.permute.xlu0 %7265
        %7269 = vset.pattern.permute.xlu0 0
        %7270 = vperm.xlu0 %7269, %v6701
        %v7271 = vpop.permute.xlu0 %7270
        %7274 = vset.pattern.permute.xlu0 0
        %7275 = vperm.xlu0 %7274, %v6702
        %v7276 = vpop.permute.xlu0 %7275
        %7279 = vset.pattern.permute.xlu0 0
        %7280 = vperm.xlu0 %7279, %v6703
        %v7281 = vpop.permute.xlu0 %7280
        %7284 = vset.pattern.permute.xlu0 0
        %7285 = vperm.xlu0 %7284, %v6704
        %v7286 = vpop.permute.xlu0 %7285
        %7289 = vset.pattern.permute.xlu0 0
        %7290 = vperm.xlu0 %7289, %v6705
        %v7291 = vpop.permute.xlu0 %7290
        %7294 = vset.pattern.permute.xlu0 0
        %7295 = vperm.xlu0 %7294, %v6706
        %v7296 = vpop.permute.xlu0 %7295
        %7299 = vset.pattern.permute.xlu0 0
        %7300 = vperm.xlu0 %7299, %v6707
        %v7301 = vpop.permute.xlu0 %7300
        %7304 = vset.pattern.permute.xlu0 0
        %7305 = vperm.xlu0 %7304, %v6708
        %v7306 = vpop.permute.xlu0 %7305
        %7309 = vset.pattern.permute.xlu0 0
        %7310 = vperm.xlu0 %7309, %v6709
        %v7311 = vpop.permute.xlu0 %7310
        %7314 = vset.pattern.permute.xlu0 0
        %7315 = vperm.xlu0 %7314, %v6710
        %v7316 = vpop.permute.xlu0 %7315
        %7319 = vset.pattern.permute.xlu0 0
        %7320 = vperm.xlu0 %7319, %v6711
        %v7321 = vpop.permute.xlu0 %7320
        %7324 = vset.pattern.permute.xlu0 0
        %7325 = vperm.xlu0 %7324, %v6712
        %v7326 = vpop.permute.xlu0 %7325
        %7329 = vset.pattern.permute.xlu0 0
        %7330 = vperm.xlu0 %7329, %v6713
        %v7331 = vpop.permute.xlu0 %7330
        %7334 = vset.pattern.permute.xlu0 0
        %7335 = vperm.xlu0 %7334, %v6714
        %v7336 = vpop.permute.xlu0 %7335
        %7339 = vset.pattern.permute.xlu0 0
        %7340 = vperm.xlu0 %7339, %v6715
        %v7341 = vpop.permute.xlu0 %7340
        %7344 = vset.pattern.permute.xlu0 0
        %7345 = vperm.xlu0 %7344, %v6716
        %v7346 = vpop.permute.xlu0 %7345
        %7349 = vset.pattern.permute.xlu0 0
        %7350 = vperm.xlu0 %7349, %v6717
        %v7351 = vpop.permute.xlu0 %7350
        %7354 = vset.pattern.permute.xlu0 0
        %7355 = vperm.xlu0 %7354, %v6718
        %v7356 = vpop.permute.xlu0 %7355
        %7359 = vset.pattern.permute.xlu0 0
        %7360 = vperm.xlu0 %7359, %v6719
        %v7361 = vpop.permute.xlu0 %7360
        %v7363 = vperm.slane %v6722, 0
        %v7364 = vmul.f32 %v6726, %v7363
        %v7365 = vmul.f32 %v6731, %v7363
        %v7366 = vmul.f32 %v6736, %v7363
        %v7367 = vmul.f32 %v6741, %v7363
        %v7368 = vmul.f32 %v6746, %v7363
        %v7369 = vmul.f32 %v6751, %v7363
        %v7370 = vmul.f32 %v6756, %v7363
        %v7371 = vmul.f32 %v6761, %v7363
        %v7372 = vmul.f32 %v6766, %v7363
        %v7373 = vmul.f32 %v6771, %v7363
        %v7374 = vmul.f32 %v6776, %v7363
        %v7375 = vmul.f32 %v6781, %v7363
        %v7376 = vmul.f32 %v6786, %v7363
        %v7377 = vmul.f32 %v6791, %v7363
        %v7378 = vmul.f32 %v6796, %v7363
        %v7379 = vmul.f32 %v6801, %v7363
        %v7380 = vmul.f32 %v6806, %v7363
        %v7381 = vmul.f32 %v6811, %v7363
        %v7382 = vmul.f32 %v6816, %v7363
        %v7383 = vmul.f32 %v6821, %v7363
        %v7384 = vmul.f32 %v6826, %v7363
        %v7385 = vmul.f32 %v6831, %v7363
        %v7386 = vmul.f32 %v6836, %v7363
        %v7387 = vmul.f32 %v6841, %v7363
        %v7388 = vmul.f32 %v6846, %v7363
        %v7389 = vmul.f32 %v6851, %v7363
        %v7390 = vmul.f32 %v6856, %v7363
        %v7391 = vmul.f32 %v6861, %v7363
        %v7392 = vmul.f32 %v6866, %v7363
        %v7393 = vmul.f32 %v6871, %v7363
        %v7394 = vmul.f32 %v6876, %v7363
        %v7395 = vmul.f32 %v6881, %v7363
        %v7396 = vmul.f32 %v6886, %v7363
        %v7397 = vmul.f32 %v6891, %v7363
        %v7398 = vmul.f32 %v6896, %v7363
        %v7399 = vmul.f32 %v6901, %v7363
        %v7400 = vmul.f32 %v6906, %v7363
        %v7401 = vmul.f32 %v6911, %v7363
        %v7402 = vmul.f32 %v6916, %v7363
        %v7403 = vmul.f32 %v6921, %v7363
        %v7404 = vmul.f32 %v6926, %v7363
        %v7405 = vmul.f32 %v6931, %v7363
        %v7406 = vmul.f32 %v6936, %v7363
        %v7407 = vmul.f32 %v6941, %v7363
        %v7408 = vmul.f32 %v6946, %v7363
        %v7409 = vmul.f32 %v6951, %v7363
        %v7410 = vmul.f32 %v6956, %v7363
        %v7411 = vmul.f32 %v6961, %v7363
        %v7412 = vmul.f32 %v6966, %v7363
        %v7413 = vmul.f32 %v6971, %v7363
        %v7414 = vmul.f32 %v6976, %v7363
        %v7415 = vmul.f32 %v6981, %v7363
        %v7416 = vmul.f32 %v6986, %v7363
        %v7417 = vmul.f32 %v6991, %v7363
        %v7418 = vmul.f32 %v6996, %v7363
        %v7419 = vmul.f32 %v7001, %v7363
        %v7420 = vmul.f32 %v7006, %v7363
        %v7421 = vmul.f32 %v7011, %v7363
        %v7422 = vmul.f32 %v7016, %v7363
        %v7423 = vmul.f32 %v7021, %v7363
        %v7424 = vmul.f32 %v7026, %v7363
        %v7425 = vmul.f32 %v7031, %v7363
        %v7426 = vmul.f32 %v7036, %v7363
        %v7427 = vmul.f32 %v7041, %v7363
        %v7428 = vmul.f32 %v7046, %v7363
        %v7429 = vmul.f32 %v7051, %v7363
        %v7430 = vmul.f32 %v7056, %v7363
        %v7431 = vmul.f32 %v7061, %v7363
        %v7432 = vmul.f32 %v7066, %v7363
        %v7433 = vmul.f32 %v7071, %v7363
        %v7434 = vmul.f32 %v7076, %v7363
        %v7435 = vmul.f32 %v7081, %v7363
        %v7436 = vmul.f32 %v7086, %v7363
        %v7437 = vmul.f32 %v7091, %v7363
        %v7438 = vmul.f32 %v7096, %v7363
        %v7439 = vmul.f32 %v7101, %v7363
        %v7440 = vmul.f32 %v7106, %v7363
        %v7441 = vmul.f32 %v7111, %v7363
        %v7442 = vmul.f32 %v7116, %v7363
        %v7443 = vmul.f32 %v7121, %v7363
        %v7444 = vmul.f32 %v7126, %v7363
        %v7445 = vmul.f32 %v7131, %v7363
        %v7446 = vmul.f32 %v7136, %v7363
        %v7447 = vmul.f32 %v7141, %v7363
        %v7448 = vmul.f32 %v7146, %v7363
        %v7449 = vmul.f32 %v7151, %v7363
        %v7450 = vmul.f32 %v7156, %v7363
        %v7451 = vmul.f32 %v7161, %v7363
        %v7452 = vmul.f32 %v7166, %v7363
        %v7453 = vmul.f32 %v7171, %v7363
        %v7454 = vmul.f32 %v7176, %v7363
        %v7455 = vmul.f32 %v7181, %v7363
        %v7456 = vmul.f32 %v7186, %v7363
        %v7457 = vmul.f32 %v7191, %v7363
        %v7458 = vmul.f32 %v7196, %v7363
        %v7459 = vmul.f32 %v7201, %v7363
        %v7460 = vmul.f32 %v7206, %v7363
        %v7461 = vmul.f32 %v7211, %v7363
        %v7462 = vmul.f32 %v7216, %v7363
        %v7463 = vmul.f32 %v7221, %v7363
        %v7464 = vmul.f32 %v7226, %v7363
        %v7465 = vmul.f32 %v7231, %v7363
        %v7466 = vmul.f32 %v7236, %v7363
        %v7467 = vmul.f32 %v7241, %v7363
        %v7468 = vmul.f32 %v7246, %v7363
        %v7469 = vmul.f32 %v7251, %v7363
        %v7470 = vmul.f32 %v7256, %v7363
        %v7471 = vmul.f32 %v7261, %v7363
        %v7472 = vmul.f32 %v7266, %v7363
        %v7473 = vmul.f32 %v7271, %v7363
        %v7474 = vmul.f32 %v7276, %v7363
        %v7475 = vmul.f32 %v7281, %v7363
        %v7476 = vmul.f32 %v7286, %v7363
        %v7477 = vmul.f32 %v7291, %v7363
        %v7478 = vmul.f32 %v7296, %v7363
        %v7479 = vmul.f32 %v7301, %v7363
        %v7480 = vmul.f32 %v7306, %v7363
        %v7481 = vmul.f32 %v7311, %v7363
        %v7482 = vmul.f32 %v7316, %v7363
        %v7483 = vmul.f32 %v7321, %v7363
        %v7484 = vmul.f32 %v7326, %v7363
        %v7485 = vmul.f32 %v7331, %v7363
        %v7486 = vmul.f32 %v7336, %v7363
        %v7487 = vmul.f32 %v7341, %v7363
        %v7488 = vmul.f32 %v7346, %v7363
        %v7489 = vmul.f32 %v7351, %v7363
        %v7490 = vmul.f32 %v7356, %v7363
        %v7491 = vmul.f32 %v7361, %v7363
        %v7492 = vadd.f32 %v6463, %v7364
        %v7493 = vadd.f32 %v6464, %v7365
        %v7494 = vadd.f32 %v6465, %v7366
        %v7495 = vadd.f32 %v6466, %v7367
        %v7496 = vadd.f32 %v6467, %v7368
        %v7497 = vadd.f32 %v6468, %v7369
        %v7498 = vadd.f32 %v6469, %v7370
        %v7499 = vadd.f32 %v6470, %v7371
        %v7500 = vadd.f32 %v6471, %v7372
        %v7501 = vadd.f32 %v6472, %v7373
        %v7502 = vadd.f32 %v6473, %v7374
        %v7503 = vadd.f32 %v6474, %v7375
        %v7504 = vadd.f32 %v6475, %v7376
        %v7505 = vadd.f32 %v6476, %v7377
        %v7506 = vadd.f32 %v6477, %v7378
        %v7507 = vadd.f32 %v6478, %v7379
        %v7508 = vadd.f32 %v6479, %v7380
        %v7509 = vadd.f32 %v6480, %v7381
        %v7510 = vadd.f32 %v6481, %v7382
        %v7511 = vadd.f32 %v6482, %v7383
        %v7512 = vadd.f32 %v6483, %v7384
        %v7513 = vadd.f32 %v6484, %v7385
        %v7514 = vadd.f32 %v6485, %v7386
        %v7515 = vadd.f32 %v6486, %v7387
        %v7516 = vadd.f32 %v6487, %v7388
        %v7517 = vadd.f32 %v6488, %v7389
        %v7518 = vadd.f32 %v6489, %v7390
        %v7519 = vadd.f32 %v6490, %v7391
        %v7520 = vadd.f32 %v6491, %v7392
        %v7521 = vadd.f32 %v6492, %v7393
        %v7522 = vadd.f32 %v6493, %v7394
        %v7523 = vadd.f32 %v6494, %v7395
        %v7524 = vadd.f32 %v6495, %v7396
        %v7525 = vadd.f32 %v6496, %v7397
        %v7526 = vadd.f32 %v6497, %v7398
        %v7527 = vadd.f32 %v6498, %v7399
        %v7528 = vadd.f32 %v6499, %v7400
        %v7529 = vadd.f32 %v6500, %v7401
        %v7530 = vadd.f32 %v6501, %v7402
        %v7531 = vadd.f32 %v6502, %v7403
        %v7532 = vadd.f32 %v6503, %v7404
        %v7533 = vadd.f32 %v6504, %v7405
        %v7534 = vadd.f32 %v6505, %v7406
        %v7535 = vadd.f32 %v6506, %v7407
        %v7536 = vadd.f32 %v6507, %v7408
        %v7537 = vadd.f32 %v6508, %v7409
        %v7538 = vadd.f32 %v6509, %v7410
        %v7539 = vadd.f32 %v6510, %v7411
        %v7540 = vadd.f32 %v6511, %v7412
        %v7541 = vadd.f32 %v6512, %v7413
        %v7542 = vadd.f32 %v6513, %v7414
        %v7543 = vadd.f32 %v6514, %v7415
        %v7544 = vadd.f32 %v6515, %v7416
        %v7545 = vadd.f32 %v6516, %v7417
        %v7546 = vadd.f32 %v6517, %v7418
        %v7547 = vadd.f32 %v6518, %v7419
        %v7548 = vadd.f32 %v6519, %v7420
        %v7549 = vadd.f32 %v6520, %v7421
        %v7550 = vadd.f32 %v6521, %v7422
        %v7551 = vadd.f32 %v6522, %v7423
        %v7552 = vadd.f32 %v6523, %v7424
        %v7553 = vadd.f32 %v6524, %v7425
        %v7554 = vadd.f32 %v6525, %v7426
        %v7555 = vadd.f32 %v6526, %v7427
        %v7556 = vadd.f32 %v6527, %v7428
        %v7557 = vadd.f32 %v6528, %v7429
        %v7558 = vadd.f32 %v6529, %v7430
        %v7559 = vadd.f32 %v6530, %v7431
        %v7560 = vadd.f32 %v6531, %v7432
        %v7561 = vadd.f32 %v6532, %v7433
        %v7562 = vadd.f32 %v6533, %v7434
        %v7563 = vadd.f32 %v6534, %v7435
        %v7564 = vadd.f32 %v6535, %v7436
        %v7565 = vadd.f32 %v6536, %v7437
        %v7566 = vadd.f32 %v6537, %v7438
        %v7567 = vadd.f32 %v6538, %v7439
        %v7568 = vadd.f32 %v6539, %v7440
        %v7569 = vadd.f32 %v6540, %v7441
        %v7570 = vadd.f32 %v6541, %v7442
        %v7571 = vadd.f32 %v6542, %v7443
        %v7572 = vadd.f32 %v6543, %v7444
        %v7573 = vadd.f32 %v6544, %v7445
        %v7574 = vadd.f32 %v6545, %v7446
        %v7575 = vadd.f32 %v6546, %v7447
        %v7576 = vadd.f32 %v6547, %v7448
        %v7577 = vadd.f32 %v6548, %v7449
        %v7578 = vadd.f32 %v6549, %v7450
        %v7579 = vadd.f32 %v6550, %v7451
        %v7580 = vadd.f32 %v6551, %v7452
        %v7581 = vadd.f32 %v6552, %v7453
        %v7582 = vadd.f32 %v6553, %v7454
        %v7583 = vadd.f32 %v6554, %v7455
        %v7584 = vadd.f32 %v6555, %v7456
        %v7585 = vadd.f32 %v6556, %v7457
        %v7586 = vadd.f32 %v6557, %v7458
        %v7587 = vadd.f32 %v6558, %v7459
        %v7588 = vadd.f32 %v6559, %v7460
        %v7589 = vadd.f32 %v6560, %v7461
        %v7590 = vadd.f32 %v6561, %v7462
        %v7591 = vadd.f32 %v6562, %v7463
        %v7592 = vadd.f32 %v6563, %v7464
        %v7593 = vadd.f32 %v6564, %v7465
        %v7594 = vadd.f32 %v6565, %v7466
        %v7595 = vadd.f32 %v6566, %v7467
        %v7596 = vadd.f32 %v6567, %v7468
        %v7597 = vadd.f32 %v6568, %v7469
        %v7598 = vadd.f32 %v6569, %v7470
        %v7599 = vadd.f32 %v6570, %v7471
        %v7600 = vadd.f32 %v6571, %v7472
        %v7601 = vadd.f32 %v6572, %v7473
        %v7602 = vadd.f32 %v6573, %v7474
        %v7603 = vadd.f32 %v6574, %v7475
        %v7604 = vadd.f32 %v6575, %v7476
        %v7605 = vadd.f32 %v6576, %v7477
        %v7606 = vadd.f32 %v6577, %v7478
        %v7607 = vadd.f32 %v6578, %v7479
        %v7608 = vadd.f32 %v6579, %v7480
        %v7609 = vadd.f32 %v6580, %v7481
        %v7610 = vadd.f32 %v6581, %v7482
        %v7611 = vadd.f32 %v6582, %v7483
        %v7612 = vadd.f32 %v6583, %v7484
        %v7613 = vadd.f32 %v6584, %v7485
        %v7614 = vadd.f32 %v6585, %v7486
        %v7615 = vadd.f32 %v6586, %v7487
        %v7616 = vadd.f32 %v6587, %v7488
        %v7617 = vadd.f32 %v6588, %v7489
        %v7618 = vadd.f32 %v6589, %v7490
        %v7619 = vadd.f32 %v6590, %v7491
        %v7620 = vld [vmem:[%s6591 + $0x1] sm:$0xff]
        %v7621 = vld [vmem:[%s6591 + $0x9] sm:$0xff]
        %v7622 = vld [vmem:[%s6591 + $0x11] sm:$0xff]
        %v7623 = vld [vmem:[%s6591 + $0x19] sm:$0xff]
        %v7624 = vld [vmem:[%s6591 + $0x29] sm:$0xff]
        %v7625 = vld [vmem:[%s6591 + $0x31] sm:$0xff]
        %v7626 = vld [vmem:[%s6591 + $0x39] sm:$0xff]
        %v7627 = vld [vmem:[%s6591 + $0x41] sm:$0xff]
        %v7628 = vld [vmem:[%s6591 + $0x51] sm:$0xff]
        %v7629 = vld [vmem:[%s6591 + $0x59] sm:$0xff]
        %v7630 = vld [vmem:[%s6591 + $0x61] sm:$0xff]
        %v7631 = vld [vmem:[%s6591 + $0x69] sm:$0xff]
        %v7632 = vld [vmem:[%s6591 + $0x79] sm:$0xff]
        %v7633 = vld [vmem:[%s6591 + $0x81] sm:$0xff]
        %v7634 = vld [vmem:[%s6591 + $0x89] sm:$0xff]
        %v7635 = vld [vmem:[%s6591 + $0x91] sm:$0xff]
        %v7636 = vld [vmem:[%s6591 + $0xa1] sm:$0xff]
        %v7637 = vld [vmem:[%s6591 + $0xa9] sm:$0xff]
        %v7638 = vld [vmem:[%s6591 + $0xb1] sm:$0xff]
        %v7639 = vld [vmem:[%s6591 + $0xb9] sm:$0xff]
        %v7640 = vld [vmem:[%s6591 + $0xc9] sm:$0xff]
        %v7641 = vld [vmem:[%s6591 + $0xd1] sm:$0xff]
        %v7642 = vld [vmem:[%s6591 + $0xd9] sm:$0xff]
        %v7643 = vld [vmem:[%s6591 + $0xe1] sm:$0xff]
        %v7644 = vld [vmem:[%s6591 + $0xf1] sm:$0xff]
        %v7645 = vld [vmem:[%s6591 + $0xf9] sm:$0xff]
        %v7646 = vld [vmem:[%s6591 + $0x101] sm:$0xff]
        %v7647 = vld [vmem:[%s6591 + $0x109] sm:$0xff]
        %v7648 = vld [vmem:[%s6591 + $0x119] sm:$0xff]
        %v7649 = vld [vmem:[%s6591 + $0x121] sm:$0xff]
        %v7650 = vld [vmem:[%s6591 + $0x129] sm:$0xff]
        %v7651 = vld [vmem:[%s6591 + $0x131] sm:$0xff]
        %v7652 = vld [vmem:[%s6591 + $0x141] sm:$0xff]
        %v7653 = vld [vmem:[%s6591 + $0x149] sm:$0xff]
        %v7654 = vld [vmem:[%s6591 + $0x151] sm:$0xff]
        %v7655 = vld [vmem:[%s6591 + $0x159] sm:$0xff]
        %v7656 = vld [vmem:[%s6591 + $0x169] sm:$0xff]
        %v7657 = vld [vmem:[%s6591 + $0x171] sm:$0xff]
        %v7658 = vld [vmem:[%s6591 + $0x179] sm:$0xff]
        %v7659 = vld [vmem:[%s6591 + $0x181] sm:$0xff]
        %v7660 = vld [vmem:[%s6591 + $0x191] sm:$0xff]
        %v7661 = vld [vmem:[%s6591 + $0x199] sm:$0xff]
        %v7662 = vld [vmem:[%s6591 + $0x1a1] sm:$0xff]
        %v7663 = vld [vmem:[%s6591 + $0x1a9] sm:$0xff]
        %v7664 = vld [vmem:[%s6591 + $0x1b9] sm:$0xff]
        %v7665 = vld [vmem:[%s6591 + $0x1c1] sm:$0xff]
        %v7666 = vld [vmem:[%s6591 + $0x1c9] sm:$0xff]
        %v7667 = vld [vmem:[%s6591 + $0x1d1] sm:$0xff]
        %v7668 = vld [vmem:[%s6591 + $0x1e1] sm:$0xff]
        %v7669 = vld [vmem:[%s6591 + $0x1e9] sm:$0xff]
        %v7670 = vld [vmem:[%s6591 + $0x1f1] sm:$0xff]
        %v7671 = vld [vmem:[%s6591 + $0x1f9] sm:$0xff]
        %v7672 = vld [vmem:[%s6591 + $0x209] sm:$0xff]
        %v7673 = vld [vmem:[%s6591 + $0x211] sm:$0xff]
        %v7674 = vld [vmem:[%s6591 + $0x219] sm:$0xff]
        %v7675 = vld [vmem:[%s6591 + $0x221] sm:$0xff]
        %v7676 = vld [vmem:[%s6591 + $0x231] sm:$0xff]
        %v7677 = vld [vmem:[%s6591 + $0x239] sm:$0xff]
        %v7678 = vld [vmem:[%s6591 + $0x241] sm:$0xff]
        %v7679 = vld [vmem:[%s6591 + $0x249] sm:$0xff]
        %v7680 = vld [vmem:[%s6591 + $0x259] sm:$0xff]
        %v7681 = vld [vmem:[%s6591 + $0x261] sm:$0xff]
        %v7682 = vld [vmem:[%s6591 + $0x269] sm:$0xff]
        %v7683 = vld [vmem:[%s6591 + $0x271] sm:$0xff]
        %v7684 = vld [vmem:[%s6591 + $0x281] sm:$0xff]
        %v7685 = vld [vmem:[%s6591 + $0x289] sm:$0xff]
        %v7686 = vld [vmem:[%s6591 + $0x291] sm:$0xff]
        %v7687 = vld [vmem:[%s6591 + $0x299] sm:$0xff]
        %v7688 = vld [vmem:[%s6591 + $0x2a9] sm:$0xff]
        %v7689 = vld [vmem:[%s6591 + $0x2b1] sm:$0xff]
        %v7690 = vld [vmem:[%s6591 + $0x2b9] sm:$0xff]
        %v7691 = vld [vmem:[%s6591 + $0x2c1] sm:$0xff]
        %v7692 = vld [vmem:[%s6591 + $0x2d1] sm:$0xff]
        %v7693 = vld [vmem:[%s6591 + $0x2d9] sm:$0xff]
        %v7694 = vld [vmem:[%s6591 + $0x2e1] sm:$0xff]
        %v7695 = vld [vmem:[%s6591 + $0x2e9] sm:$0xff]
        %v7696 = vld [vmem:[%s6591 + $0x2f9] sm:$0xff]
        %v7697 = vld [vmem:[%s6591 + $0x301] sm:$0xff]
        %v7698 = vld [vmem:[%s6591 + $0x309] sm:$0xff]
        %v7699 = vld [vmem:[%s6591 + $0x311] sm:$0xff]
        %v7700 = vld [vmem:[%s6591 + $0x321] sm:$0xff]
        %v7701 = vld [vmem:[%s6591 + $0x329] sm:$0xff]
        %v7702 = vld [vmem:[%s6591 + $0x331] sm:$0xff]
        %v7703 = vld [vmem:[%s6591 + $0x339] sm:$0xff]
        %v7704 = vld [vmem:[%s6591 + $0x349] sm:$0xff]
        %v7705 = vld [vmem:[%s6591 + $0x351] sm:$0xff]
        %v7706 = vld [vmem:[%s6591 + $0x359] sm:$0xff]
        %v7707 = vld [vmem:[%s6591 + $0x361] sm:$0xff]
        %v7708 = vld [vmem:[%s6591 + $0x371] sm:$0xff]
        %v7709 = vld [vmem:[%s6591 + $0x379] sm:$0xff]
        %v7710 = vld [vmem:[%s6591 + $0x381] sm:$0xff]
        %v7711 = vld [vmem:[%s6591 + $0x389] sm:$0xff]
        %v7712 = vld [vmem:[%s6591 + $0x399] sm:$0xff]
        %v7713 = vld [vmem:[%s6591 + $0x3a1] sm:$0xff]
        %v7714 = vld [vmem:[%s6591 + $0x3a9] sm:$0xff]
        %v7715 = vld [vmem:[%s6591 + $0x3b1] sm:$0xff]
        %v7716 = vld [vmem:[%s6591 + $0x3c1] sm:$0xff]
        %v7717 = vld [vmem:[%s6591 + $0x3c9] sm:$0xff]
        %v7718 = vld [vmem:[%s6591 + $0x3d1] sm:$0xff]
        %v7719 = vld [vmem:[%s6591 + $0x3d9] sm:$0xff]
        %v7720 = vld [vmem:[%s6591 + $0x3e9] sm:$0xff]
        %v7721 = vld [vmem:[%s6591 + $0x3f1] sm:$0xff]
        %v7722 = vld [vmem:[%s6591 + $0x3f9] sm:$0xff]
        %v7723 = vld [vmem:[%s6591 + $0x401] sm:$0xff]
        %v7724 = vld [vmem:[%s6591 + $0x411] sm:$0xff]
        %v7725 = vld [vmem:[%s6591 + $0x419] sm:$0xff]
        %v7726 = vld [vmem:[%s6591 + $0x421] sm:$0xff]
        %v7727 = vld [vmem:[%s6591 + $0x429] sm:$0xff]
        %v7728 = vld [vmem:[%s6591 + $0x439] sm:$0xff]
        %v7729 = vld [vmem:[%s6591 + $0x441] sm:$0xff]
        %v7730 = vld [vmem:[%s6591 + $0x449] sm:$0xff]
        %v7731 = vld [vmem:[%s6591 + $0x451] sm:$0xff]
        %v7732 = vld [vmem:[%s6591 + $0x461] sm:$0xff]
        %v7733 = vld [vmem:[%s6591 + $0x469] sm:$0xff]
        %v7734 = vld [vmem:[%s6591 + $0x471] sm:$0xff]
        %v7735 = vld [vmem:[%s6591 + $0x479] sm:$0xff]
        %v7736 = vld [vmem:[%s6591 + $0x489] sm:$0xff]
        %v7737 = vld [vmem:[%s6591 + $0x491] sm:$0xff]
        %v7738 = vld [vmem:[%s6591 + $0x499] sm:$0xff]
        %v7739 = vld [vmem:[%s6591 + $0x4a1] sm:$0xff]
        %v7740 = vld [vmem:[%s6591 + $0x4b1] sm:$0xff]
        %v7741 = vld [vmem:[%s6591 + $0x4b9] sm:$0xff]
        %v7742 = vld [vmem:[%s6591 + $0x4c1] sm:$0xff]
        %v7743 = vld [vmem:[%s6591 + $0x4c9] sm:$0xff]
        %v7744 = vld [vmem:[%s6591 + $0x4d9] sm:$0xff]
        %v7745 = vld [vmem:[%s6591 + $0x4e1] sm:$0xff]
        %v7746 = vld [vmem:[%s6591 + $0x4e9] sm:$0xff]
        %v7747 = vld [vmem:[%s6591 + $0x4f1] sm:$0xff]
        %s7748 = scalar_lea.vmem %s1, 7
        %v7749 = vld [vmem:[%s7748] sm:$0x1]
        %v7750 = vunpack.c.l.bf16 %v7749
        %7752 = vset.pattern.permute.xlu0 0
        %7753 = vperm.xlu0 %7752, %v7620
        %v7754 = vpop.permute.xlu0 %7753
        %7757 = vset.pattern.permute.xlu0 0
        %7758 = vperm.xlu0 %7757, %v7621
        %v7759 = vpop.permute.xlu0 %7758
        %7762 = vset.pattern.permute.xlu0 0
        %7763 = vperm.xlu0 %7762, %v7622
        %v7764 = vpop.permute.xlu0 %7763
        %7767 = vset.pattern.permute.xlu0 0
        %7768 = vperm.xlu0 %7767, %v7623
        %v7769 = vpop.permute.xlu0 %7768
        %7772 = vset.pattern.permute.xlu0 0
        %7773 = vperm.xlu0 %7772, %v7624
        %v7774 = vpop.permute.xlu0 %7773
        %7777 = vset.pattern.permute.xlu0 0
        %7778 = vperm.xlu0 %7777, %v7625
        %v7779 = vpop.permute.xlu0 %7778
        %7782 = vset.pattern.permute.xlu0 0
        %7783 = vperm.xlu0 %7782, %v7626
        %v7784 = vpop.permute.xlu0 %7783
        %7787 = vset.pattern.permute.xlu0 0
        %7788 = vperm.xlu0 %7787, %v7627
        %v7789 = vpop.permute.xlu0 %7788
        %7792 = vset.pattern.permute.xlu0 0
        %7793 = vperm.xlu0 %7792, %v7628
        %v7794 = vpop.permute.xlu0 %7793
        %7797 = vset.pattern.permute.xlu0 0
        %7798 = vperm.xlu0 %7797, %v7629
        %v7799 = vpop.permute.xlu0 %7798
        %7802 = vset.pattern.permute.xlu0 0
        %7803 = vperm.xlu0 %7802, %v7630
        %v7804 = vpop.permute.xlu0 %7803
        %7807 = vset.pattern.permute.xlu0 0
        %7808 = vperm.xlu0 %7807, %v7631
        %v7809 = vpop.permute.xlu0 %7808
        %7812 = vset.pattern.permute.xlu0 0
        %7813 = vperm.xlu0 %7812, %v7632
        %v7814 = vpop.permute.xlu0 %7813
        %7817 = vset.pattern.permute.xlu0 0
        %7818 = vperm.xlu0 %7817, %v7633
        %v7819 = vpop.permute.xlu0 %7818
        %7822 = vset.pattern.permute.xlu0 0
        %7823 = vperm.xlu0 %7822, %v7634
        %v7824 = vpop.permute.xlu0 %7823
        %7827 = vset.pattern.permute.xlu0 0
        %7828 = vperm.xlu0 %7827, %v7635
        %v7829 = vpop.permute.xlu0 %7828
        %7832 = vset.pattern.permute.xlu0 0
        %7833 = vperm.xlu0 %7832, %v7636
        %v7834 = vpop.permute.xlu0 %7833
        %7837 = vset.pattern.permute.xlu0 0
        %7838 = vperm.xlu0 %7837, %v7637
        %v7839 = vpop.permute.xlu0 %7838
        %7842 = vset.pattern.permute.xlu0 0
        %7843 = vperm.xlu0 %7842, %v7638
        %v7844 = vpop.permute.xlu0 %7843
        %7847 = vset.pattern.permute.xlu0 0
        %7848 = vperm.xlu0 %7847, %v7639
        %v7849 = vpop.permute.xlu0 %7848
        %7852 = vset.pattern.permute.xlu0 0
        %7853 = vperm.xlu0 %7852, %v7640
        %v7854 = vpop.permute.xlu0 %7853
        %7857 = vset.pattern.permute.xlu0 0
        %7858 = vperm.xlu0 %7857, %v7641
        %v7859 = vpop.permute.xlu0 %7858
        %7862 = vset.pattern.permute.xlu0 0
        %7863 = vperm.xlu0 %7862, %v7642
        %v7864 = vpop.permute.xlu0 %7863
        %7867 = vset.pattern.permute.xlu0 0
        %7868 = vperm.xlu0 %7867, %v7643
        %v7869 = vpop.permute.xlu0 %7868
        %7872 = vset.pattern.permute.xlu0 0
        %7873 = vperm.xlu0 %7872, %v7644
        %v7874 = vpop.permute.xlu0 %7873
        %7877 = vset.pattern.permute.xlu0 0
        %7878 = vperm.xlu0 %7877, %v7645
        %v7879 = vpop.permute.xlu0 %7878
        %7882 = vset.pattern.permute.xlu0 0
        %7883 = vperm.xlu0 %7882, %v7646
        %v7884 = vpop.permute.xlu0 %7883
        %7887 = vset.pattern.permute.xlu0 0
        %7888 = vperm.xlu0 %7887, %v7647
        %v7889 = vpop.permute.xlu0 %7888
        %7892 = vset.pattern.permute.xlu0 0
        %7893 = vperm.xlu0 %7892, %v7648
        %v7894 = vpop.permute.xlu0 %7893
        %7897 = vset.pattern.permute.xlu0 0
        %7898 = vperm.xlu0 %7897, %v7649
        %v7899 = vpop.permute.xlu0 %7898
        %7902 = vset.pattern.permute.xlu0 0
        %7903 = vperm.xlu0 %7902, %v7650
        %v7904 = vpop.permute.xlu0 %7903
        %7907 = vset.pattern.permute.xlu0 0
        %7908 = vperm.xlu0 %7907, %v7651
        %v7909 = vpop.permute.xlu0 %7908
        %7912 = vset.pattern.permute.xlu0 0
        %7913 = vperm.xlu0 %7912, %v7652
        %v7914 = vpop.permute.xlu0 %7913
        %7917 = vset.pattern.permute.xlu0 0
        %7918 = vperm.xlu0 %7917, %v7653
        %v7919 = vpop.permute.xlu0 %7918
        %7922 = vset.pattern.permute.xlu0 0
        %7923 = vperm.xlu0 %7922, %v7654
        %v7924 = vpop.permute.xlu0 %7923
        %7927 = vset.pattern.permute.xlu0 0
        %7928 = vperm.xlu0 %7927, %v7655
        %v7929 = vpop.permute.xlu0 %7928
        %7932 = vset.pattern.permute.xlu0 0
        %7933 = vperm.xlu0 %7932, %v7656
        %v7934 = vpop.permute.xlu0 %7933
        %7937 = vset.pattern.permute.xlu0 0
        %7938 = vperm.xlu0 %7937, %v7657
        %v7939 = vpop.permute.xlu0 %7938
        %7942 = vset.pattern.permute.xlu0 0
        %7943 = vperm.xlu0 %7942, %v7658
        %v7944 = vpop.permute.xlu0 %7943
        %7947 = vset.pattern.permute.xlu0 0
        %7948 = vperm.xlu0 %7947, %v7659
        %v7949 = vpop.permute.xlu0 %7948
        %7952 = vset.pattern.permute.xlu0 0
        %7953 = vperm.xlu0 %7952, %v7660
        %v7954 = vpop.permute.xlu0 %7953
        %7957 = vset.pattern.permute.xlu0 0
        %7958 = vperm.xlu0 %7957, %v7661
        %v7959 = vpop.permute.xlu0 %7958
        %7962 = vset.pattern.permute.xlu0 0
        %7963 = vperm.xlu0 %7962, %v7662
        %v7964 = vpop.permute.xlu0 %7963
        %7967 = vset.pattern.permute.xlu0 0
        %7968 = vperm.xlu0 %7967, %v7663
        %v7969 = vpop.permute.xlu0 %7968
        %7972 = vset.pattern.permute.xlu0 0
        %7973 = vperm.xlu0 %7972, %v7664
        %v7974 = vpop.permute.xlu0 %7973
        %7977 = vset.pattern.permute.xlu0 0
        %7978 = vperm.xlu0 %7977, %v7665
        %v7979 = vpop.permute.xlu0 %7978
        %7982 = vset.pattern.permute.xlu0 0
        %7983 = vperm.xlu0 %7982, %v7666
        %v7984 = vpop.permute.xlu0 %7983
        %7987 = vset.pattern.permute.xlu0 0
        %7988 = vperm.xlu0 %7987, %v7667
        %v7989 = vpop.permute.xlu0 %7988
        %7992 = vset.pattern.permute.xlu0 0
        %7993 = vperm.xlu0 %7992, %v7668
        %v7994 = vpop.permute.xlu0 %7993
        %7997 = vset.pattern.permute.xlu0 0
        %7998 = vperm.xlu0 %7997, %v7669
        %v7999 = vpop.permute.xlu0 %7998
        %8002 = vset.pattern.permute.xlu0 0
        %8003 = vperm.xlu0 %8002, %v7670
        %v8004 = vpop.permute.xlu0 %8003
        %8007 = vset.pattern.permute.xlu0 0
        %8008 = vperm.xlu0 %8007, %v7671
        %v8009 = vpop.permute.xlu0 %8008
        %8012 = vset.pattern.permute.xlu0 0
        %8013 = vperm.xlu0 %8012, %v7672
        %v8014 = vpop.permute.xlu0 %8013
        %8017 = vset.pattern.permute.xlu0 0
        %8018 = vperm.xlu0 %8017, %v7673
        %v8019 = vpop.permute.xlu0 %8018
        %8022 = vset.pattern.permute.xlu0 0
        %8023 = vperm.xlu0 %8022, %v7674
        %v8024 = vpop.permute.xlu0 %8023
        %8027 = vset.pattern.permute.xlu0 0
        %8028 = vperm.xlu0 %8027, %v7675
        %v8029 = vpop.permute.xlu0 %8028
        %8032 = vset.pattern.permute.xlu0 0
        %8033 = vperm.xlu0 %8032, %v7676
        %v8034 = vpop.permute.xlu0 %8033
        %8037 = vset.pattern.permute.xlu0 0
        %8038 = vperm.xlu0 %8037, %v7677
        %v8039 = vpop.permute.xlu0 %8038
        %8042 = vset.pattern.permute.xlu0 0
        %8043 = vperm.xlu0 %8042, %v7678
        %v8044 = vpop.permute.xlu0 %8043
        %8047 = vset.pattern.permute.xlu0 0
        %8048 = vperm.xlu0 %8047, %v7679
        %v8049 = vpop.permute.xlu0 %8048
        %8052 = vset.pattern.permute.xlu0 0
        %8053 = vperm.xlu0 %8052, %v7680
        %v8054 = vpop.permute.xlu0 %8053
        %8057 = vset.pattern.permute.xlu0 0
        %8058 = vperm.xlu0 %8057, %v7681
        %v8059 = vpop.permute.xlu0 %8058
        %8062 = vset.pattern.permute.xlu0 0
        %8063 = vperm.xlu0 %8062, %v7682
        %v8064 = vpop.permute.xlu0 %8063
        %8067 = vset.pattern.permute.xlu0 0
        %8068 = vperm.xlu0 %8067, %v7683
        %v8069 = vpop.permute.xlu0 %8068
        %8072 = vset.pattern.permute.xlu0 0
        %8073 = vperm.xlu0 %8072, %v7684
        %v8074 = vpop.permute.xlu0 %8073
        %8077 = vset.pattern.permute.xlu0 0
        %8078 = vperm.xlu0 %8077, %v7685
        %v8079 = vpop.permute.xlu0 %8078
        %8082 = vset.pattern.permute.xlu0 0
        %8083 = vperm.xlu0 %8082, %v7686
        %v8084 = vpop.permute.xlu0 %8083
        %8087 = vset.pattern.permute.xlu0 0
        %8088 = vperm.xlu0 %8087, %v7687
        %v8089 = vpop.permute.xlu0 %8088
        %8092 = vset.pattern.permute.xlu0 0
        %8093 = vperm.xlu0 %8092, %v7688
        %v8094 = vpop.permute.xlu0 %8093
        %8097 = vset.pattern.permute.xlu0 0
        %8098 = vperm.xlu0 %8097, %v7689
        %v8099 = vpop.permute.xlu0 %8098
        %8102 = vset.pattern.permute.xlu0 0
        %8103 = vperm.xlu0 %8102, %v7690
        %v8104 = vpop.permute.xlu0 %8103
        %8107 = vset.pattern.permute.xlu0 0
        %8108 = vperm.xlu0 %8107, %v7691
        %v8109 = vpop.permute.xlu0 %8108
        %8112 = vset.pattern.permute.xlu0 0
        %8113 = vperm.xlu0 %8112, %v7692
        %v8114 = vpop.permute.xlu0 %8113
        %8117 = vset.pattern.permute.xlu0 0
        %8118 = vperm.xlu0 %8117, %v7693
        %v8119 = vpop.permute.xlu0 %8118
        %8122 = vset.pattern.permute.xlu0 0
        %8123 = vperm.xlu0 %8122, %v7694
        %v8124 = vpop.permute.xlu0 %8123
        %8127 = vset.pattern.permute.xlu0 0
        %8128 = vperm.xlu0 %8127, %v7695
        %v8129 = vpop.permute.xlu0 %8128
        %8132 = vset.pattern.permute.xlu0 0
        %8133 = vperm.xlu0 %8132, %v7696
        %v8134 = vpop.permute.xlu0 %8133
        %8137 = vset.pattern.permute.xlu0 0
        %8138 = vperm.xlu0 %8137, %v7697
        %v8139 = vpop.permute.xlu0 %8138
        %8142 = vset.pattern.permute.xlu0 0
        %8143 = vperm.xlu0 %8142, %v7698
        %v8144 = vpop.permute.xlu0 %8143
        %8147 = vset.pattern.permute.xlu0 0
        %8148 = vperm.xlu0 %8147, %v7699
        %v8149 = vpop.permute.xlu0 %8148
        %8152 = vset.pattern.permute.xlu0 0
        %8153 = vperm.xlu0 %8152, %v7700
        %v8154 = vpop.permute.xlu0 %8153
        %8157 = vset.pattern.permute.xlu0 0
        %8158 = vperm.xlu0 %8157, %v7701
        %v8159 = vpop.permute.xlu0 %8158
        %8162 = vset.pattern.permute.xlu0 0
        %8163 = vperm.xlu0 %8162, %v7702
        %v8164 = vpop.permute.xlu0 %8163
        %8167 = vset.pattern.permute.xlu0 0
        %8168 = vperm.xlu0 %8167, %v7703
        %v8169 = vpop.permute.xlu0 %8168
        %8172 = vset.pattern.permute.xlu0 0
        %8173 = vperm.xlu0 %8172, %v7704
        %v8174 = vpop.permute.xlu0 %8173
        %8177 = vset.pattern.permute.xlu0 0
        %8178 = vperm.xlu0 %8177, %v7705
        %v8179 = vpop.permute.xlu0 %8178
        %8182 = vset.pattern.permute.xlu0 0
        %8183 = vperm.xlu0 %8182, %v7706
        %v8184 = vpop.permute.xlu0 %8183
        %8187 = vset.pattern.permute.xlu0 0
        %8188 = vperm.xlu0 %8187, %v7707
        %v8189 = vpop.permute.xlu0 %8188
        %8192 = vset.pattern.permute.xlu0 0
        %8193 = vperm.xlu0 %8192, %v7708
        %v8194 = vpop.permute.xlu0 %8193
        %8197 = vset.pattern.permute.xlu0 0
        %8198 = vperm.xlu0 %8197, %v7709
        %v8199 = vpop.permute.xlu0 %8198
        %8202 = vset.pattern.permute.xlu0 0
        %8203 = vperm.xlu0 %8202, %v7710
        %v8204 = vpop.permute.xlu0 %8203
        %8207 = vset.pattern.permute.xlu0 0
        %8208 = vperm.xlu0 %8207, %v7711
        %v8209 = vpop.permute.xlu0 %8208
        %8212 = vset.pattern.permute.xlu0 0
        %8213 = vperm.xlu0 %8212, %v7712
        %v8214 = vpop.permute.xlu0 %8213
        %8217 = vset.pattern.permute.xlu0 0
        %8218 = vperm.xlu0 %8217, %v7713
        %v8219 = vpop.permute.xlu0 %8218
        %8222 = vset.pattern.permute.xlu0 0
        %8223 = vperm.xlu0 %8222, %v7714
        %v8224 = vpop.permute.xlu0 %8223
        %8227 = vset.pattern.permute.xlu0 0
        %8228 = vperm.xlu0 %8227, %v7715
        %v8229 = vpop.permute.xlu0 %8228
        %8232 = vset.pattern.permute.xlu0 0
        %8233 = vperm.xlu0 %8232, %v7716
        %v8234 = vpop.permute.xlu0 %8233
        %8237 = vset.pattern.permute.xlu0 0
        %8238 = vperm.xlu0 %8237, %v7717
        %v8239 = vpop.permute.xlu0 %8238
        %8242 = vset.pattern.permute.xlu0 0
        %8243 = vperm.xlu0 %8242, %v7718
        %v8244 = vpop.permute.xlu0 %8243
        %8247 = vset.pattern.permute.xlu0 0
        %8248 = vperm.xlu0 %8247, %v7719
        %v8249 = vpop.permute.xlu0 %8248
        %8252 = vset.pattern.permute.xlu0 0
        %8253 = vperm.xlu0 %8252, %v7720
        %v8254 = vpop.permute.xlu0 %8253
        %8257 = vset.pattern.permute.xlu0 0
        %8258 = vperm.xlu0 %8257, %v7721
        %v8259 = vpop.permute.xlu0 %8258
        %8262 = vset.pattern.permute.xlu0 0
        %8263 = vperm.xlu0 %8262, %v7722
        %v8264 = vpop.permute.xlu0 %8263
        %8267 = vset.pattern.permute.xlu0 0
        %8268 = vperm.xlu0 %8267, %v7723
        %v8269 = vpop.permute.xlu0 %8268
        %8272 = vset.pattern.permute.xlu0 0
        %8273 = vperm.xlu0 %8272, %v7724
        %v8274 = vpop.permute.xlu0 %8273
        %8277 = vset.pattern.permute.xlu0 0
        %8278 = vperm.xlu0 %8277, %v7725
        %v8279 = vpop.permute.xlu0 %8278
        %8282 = vset.pattern.permute.xlu0 0
        %8283 = vperm.xlu0 %8282, %v7726
        %v8284 = vpop.permute.xlu0 %8283
        %8287 = vset.pattern.permute.xlu0 0
        %8288 = vperm.xlu0 %8287, %v7727
        %v8289 = vpop.permute.xlu0 %8288
        %8292 = vset.pattern.permute.xlu0 0
        %8293 = vperm.xlu0 %8292, %v7728
        %v8294 = vpop.permute.xlu0 %8293
        %8297 = vset.pattern.permute.xlu0 0
        %8298 = vperm.xlu0 %8297, %v7729
        %v8299 = vpop.permute.xlu0 %8298
        %8302 = vset.pattern.permute.xlu0 0
        %8303 = vperm.xlu0 %8302, %v7730
        %v8304 = vpop.permute.xlu0 %8303
        %8307 = vset.pattern.permute.xlu0 0
        %8308 = vperm.xlu0 %8307, %v7731
        %v8309 = vpop.permute.xlu0 %8308
        %8312 = vset.pattern.permute.xlu0 0
        %8313 = vperm.xlu0 %8312, %v7732
        %v8314 = vpop.permute.xlu0 %8313
        %8317 = vset.pattern.permute.xlu0 0
        %8318 = vperm.xlu0 %8317, %v7733
        %v8319 = vpop.permute.xlu0 %8318
        %8322 = vset.pattern.permute.xlu0 0
        %8323 = vperm.xlu0 %8322, %v7734
        %v8324 = vpop.permute.xlu0 %8323
        %8327 = vset.pattern.permute.xlu0 0
        %8328 = vperm.xlu0 %8327, %v7735
        %v8329 = vpop.permute.xlu0 %8328
        %8332 = vset.pattern.permute.xlu0 0
        %8333 = vperm.xlu0 %8332, %v7736
        %v8334 = vpop.permute.xlu0 %8333
        %8337 = vset.pattern.permute.xlu0 0
        %8338 = vperm.xlu0 %8337, %v7737
        %v8339 = vpop.permute.xlu0 %8338
        %8342 = vset.pattern.permute.xlu0 0
        %8343 = vperm.xlu0 %8342, %v7738
        %v8344 = vpop.permute.xlu0 %8343
        %8347 = vset.pattern.permute.xlu0 0
        %8348 = vperm.xlu0 %8347, %v7739
        %v8349 = vpop.permute.xlu0 %8348
        %8352 = vset.pattern.permute.xlu0 0
        %8353 = vperm.xlu0 %8352, %v7740
        %v8354 = vpop.permute.xlu0 %8353
        %8357 = vset.pattern.permute.xlu0 0
        %8358 = vperm.xlu0 %8357, %v7741
        %v8359 = vpop.permute.xlu0 %8358
        %8362 = vset.pattern.permute.xlu0 0
        %8363 = vperm.xlu0 %8362, %v7742
        %v8364 = vpop.permute.xlu0 %8363
        %8367 = vset.pattern.permute.xlu0 0
        %8368 = vperm.xlu0 %8367, %v7743
        %v8369 = vpop.permute.xlu0 %8368
        %8372 = vset.pattern.permute.xlu0 0
        %8373 = vperm.xlu0 %8372, %v7744
        %v8374 = vpop.permute.xlu0 %8373
        %8377 = vset.pattern.permute.xlu0 0
        %8378 = vperm.xlu0 %8377, %v7745
        %v8379 = vpop.permute.xlu0 %8378
        %8382 = vset.pattern.permute.xlu0 0
        %8383 = vperm.xlu0 %8382, %v7746
        %v8384 = vpop.permute.xlu0 %8383
        %8387 = vset.pattern.permute.xlu0 0
        %8388 = vperm.xlu0 %8387, %v7747
        %v8389 = vpop.permute.xlu0 %8388
        %v8391 = vperm.slane %v7750, 0
        %v8392 = vmul.f32 %v7754, %v8391
        %v8393 = vmul.f32 %v7759, %v8391
        %v8394 = vmul.f32 %v7764, %v8391
        %v8395 = vmul.f32 %v7769, %v8391
        %v8396 = vmul.f32 %v7774, %v8391
        %v8397 = vmul.f32 %v7779, %v8391
        %v8398 = vmul.f32 %v7784, %v8391
        %v8399 = vmul.f32 %v7789, %v8391
        %v8400 = vmul.f32 %v7794, %v8391
        %v8401 = vmul.f32 %v7799, %v8391
        %v8402 = vmul.f32 %v7804, %v8391
        %v8403 = vmul.f32 %v7809, %v8391
        %v8404 = vmul.f32 %v7814, %v8391
        %v8405 = vmul.f32 %v7819, %v8391
        %v8406 = vmul.f32 %v7824, %v8391
        %v8407 = vmul.f32 %v7829, %v8391
        %v8408 = vmul.f32 %v7834, %v8391
        %v8409 = vmul.f32 %v7839, %v8391
        %v8410 = vmul.f32 %v7844, %v8391
        %v8411 = vmul.f32 %v7849, %v8391
        %v8412 = vmul.f32 %v7854, %v8391
        %v8413 = vmul.f32 %v7859, %v8391
        %v8414 = vmul.f32 %v7864, %v8391
        %v8415 = vmul.f32 %v7869, %v8391
        %v8416 = vmul.f32 %v7874, %v8391
        %v8417 = vmul.f32 %v7879, %v8391
        %v8418 = vmul.f32 %v7884, %v8391
        %v8419 = vmul.f32 %v7889, %v8391
        %v8420 = vmul.f32 %v7894, %v8391
        %v8421 = vmul.f32 %v7899, %v8391
        %v8422 = vmul.f32 %v7904, %v8391
        %v8423 = vmul.f32 %v7909, %v8391
        %v8424 = vmul.f32 %v7914, %v8391
        %v8425 = vmul.f32 %v7919, %v8391
        %v8426 = vmul.f32 %v7924, %v8391
        %v8427 = vmul.f32 %v7929, %v8391
        %v8428 = vmul.f32 %v7934, %v8391
        %v8429 = vmul.f32 %v7939, %v8391
        %v8430 = vmul.f32 %v7944, %v8391
        %v8431 = vmul.f32 %v7949, %v8391
        %v8432 = vmul.f32 %v7954, %v8391
        %v8433 = vmul.f32 %v7959, %v8391
        %v8434 = vmul.f32 %v7964, %v8391
        %v8435 = vmul.f32 %v7969, %v8391
        %v8436 = vmul.f32 %v7974, %v8391
        %v8437 = vmul.f32 %v7979, %v8391
        %v8438 = vmul.f32 %v7984, %v8391
        %v8439 = vmul.f32 %v7989, %v8391
        %v8440 = vmul.f32 %v7994, %v8391
        %v8441 = vmul.f32 %v7999, %v8391
        %v8442 = vmul.f32 %v8004, %v8391
        %v8443 = vmul.f32 %v8009, %v8391
        %v8444 = vmul.f32 %v8014, %v8391
        %v8445 = vmul.f32 %v8019, %v8391
        %v8446 = vmul.f32 %v8024, %v8391
        %v8447 = vmul.f32 %v8029, %v8391
        %v8448 = vmul.f32 %v8034, %v8391
        %v8449 = vmul.f32 %v8039, %v8391
        %v8450 = vmul.f32 %v8044, %v8391
        %v8451 = vmul.f32 %v8049, %v8391
        %v8452 = vmul.f32 %v8054, %v8391
        %v8453 = vmul.f32 %v8059, %v8391
        %v8454 = vmul.f32 %v8064, %v8391
        %v8455 = vmul.f32 %v8069, %v8391
        %v8456 = vmul.f32 %v8074, %v8391
        %v8457 = vmul.f32 %v8079, %v8391
        %v8458 = vmul.f32 %v8084, %v8391
        %v8459 = vmul.f32 %v8089, %v8391
        %v8460 = vmul.f32 %v8094, %v8391
        %v8461 = vmul.f32 %v8099, %v8391
        %v8462 = vmul.f32 %v8104, %v8391
        %v8463 = vmul.f32 %v8109, %v8391
        %v8464 = vmul.f32 %v8114, %v8391
        %v8465 = vmul.f32 %v8119, %v8391
        %v8466 = vmul.f32 %v8124, %v8391
        %v8467 = vmul.f32 %v8129, %v8391
        %v8468 = vmul.f32 %v8134, %v8391
        %v8469 = vmul.f32 %v8139, %v8391
        %v8470 = vmul.f32 %v8144, %v8391
        %v8471 = vmul.f32 %v8149, %v8391
        %v8472 = vmul.f32 %v8154, %v8391
        %v8473 = vmul.f32 %v8159, %v8391
        %v8474 = vmul.f32 %v8164, %v8391
        %v8475 = vmul.f32 %v8169, %v8391
        %v8476 = vmul.f32 %v8174, %v8391
        %v8477 = vmul.f32 %v8179, %v8391
        %v8478 = vmul.f32 %v8184, %v8391
        %v8479 = vmul.f32 %v8189, %v8391
        %v8480 = vmul.f32 %v8194, %v8391
        %v8481 = vmul.f32 %v8199, %v8391
        %v8482 = vmul.f32 %v8204, %v8391
        %v8483 = vmul.f32 %v8209, %v8391
        %v8484 = vmul.f32 %v8214, %v8391
        %v8485 = vmul.f32 %v8219, %v8391
        %v8486 = vmul.f32 %v8224, %v8391
        %v8487 = vmul.f32 %v8229, %v8391
        %v8488 = vmul.f32 %v8234, %v8391
        %v8489 = vmul.f32 %v8239, %v8391
        %v8490 = vmul.f32 %v8244, %v8391
        %v8491 = vmul.f32 %v8249, %v8391
        %v8492 = vmul.f32 %v8254, %v8391
        %v8493 = vmul.f32 %v8259, %v8391
        %v8494 = vmul.f32 %v8264, %v8391
        %v8495 = vmul.f32 %v8269, %v8391
        %v8496 = vmul.f32 %v8274, %v8391
        %v8497 = vmul.f32 %v8279, %v8391
        %v8498 = vmul.f32 %v8284, %v8391
        %v8499 = vmul.f32 %v8289, %v8391
        %v8500 = vmul.f32 %v8294, %v8391
        %v8501 = vmul.f32 %v8299, %v8391
        %v8502 = vmul.f32 %v8304, %v8391
        %v8503 = vmul.f32 %v8309, %v8391
        %v8504 = vmul.f32 %v8314, %v8391
        %v8505 = vmul.f32 %v8319, %v8391
        %v8506 = vmul.f32 %v8324, %v8391
        %v8507 = vmul.f32 %v8329, %v8391
        %v8508 = vmul.f32 %v8334, %v8391
        %v8509 = vmul.f32 %v8339, %v8391
        %v8510 = vmul.f32 %v8344, %v8391
        %v8511 = vmul.f32 %v8349, %v8391
        %v8512 = vmul.f32 %v8354, %v8391
        %v8513 = vmul.f32 %v8359, %v8391
        %v8514 = vmul.f32 %v8364, %v8391
        %v8515 = vmul.f32 %v8369, %v8391
        %v8516 = vmul.f32 %v8374, %v8391
        %v8517 = vmul.f32 %v8379, %v8391
        %v8518 = vmul.f32 %v8384, %v8391
        %v8519 = vmul.f32 %v8389, %v8391
        %v8520 = vadd.f32 %v7492, %v8392
        %v8521 = vadd.f32 %v7493, %v8393
        %v8522 = vadd.f32 %v7494, %v8394
        %v8523 = vadd.f32 %v7495, %v8395
        %v8524 = vadd.f32 %v7496, %v8396
        %v8525 = vadd.f32 %v7497, %v8397
        %v8526 = vadd.f32 %v7498, %v8398
        %v8527 = vadd.f32 %v7499, %v8399
        %v8528 = vadd.f32 %v7500, %v8400
        %v8529 = vadd.f32 %v7501, %v8401
        %v8530 = vadd.f32 %v7502, %v8402
        %v8531 = vadd.f32 %v7503, %v8403
        %v8532 = vadd.f32 %v7504, %v8404
        %v8533 = vadd.f32 %v7505, %v8405
        %v8534 = vadd.f32 %v7506, %v8406
        %v8535 = vadd.f32 %v7507, %v8407
        %v8536 = vadd.f32 %v7508, %v8408
        %v8537 = vadd.f32 %v7509, %v8409
        %v8538 = vadd.f32 %v7510, %v8410
        %v8539 = vadd.f32 %v7511, %v8411
        %v8540 = vadd.f32 %v7512, %v8412
        %v8541 = vadd.f32 %v7513, %v8413
        %v8542 = vadd.f32 %v7514, %v8414
        %v8543 = vadd.f32 %v7515, %v8415
        %v8544 = vadd.f32 %v7516, %v8416
        %v8545 = vadd.f32 %v7517, %v8417
        %v8546 = vadd.f32 %v7518, %v8418
        %v8547 = vadd.f32 %v7519, %v8419
        %v8548 = vadd.f32 %v7520, %v8420
        %v8549 = vadd.f32 %v7521, %v8421
        %v8550 = vadd.f32 %v7522, %v8422
        %v8551 = vadd.f32 %v7523, %v8423
        %v8552 = vadd.f32 %v7524, %v8424
        %v8553 = vadd.f32 %v7525, %v8425
        %v8554 = vadd.f32 %v7526, %v8426
        %v8555 = vadd.f32 %v7527, %v8427
        %v8556 = vadd.f32 %v7528, %v8428
        %v8557 = vadd.f32 %v7529, %v8429
        %v8558 = vadd.f32 %v7530, %v8430
        %v8559 = vadd.f32 %v7531, %v8431
        %v8560 = vadd.f32 %v7532, %v8432
        %v8561 = vadd.f32 %v7533, %v8433
        %v8562 = vadd.f32 %v7534, %v8434
        %v8563 = vadd.f32 %v7535, %v8435
        %v8564 = vadd.f32 %v7536, %v8436
        %v8565 = vadd.f32 %v7537, %v8437
        %v8566 = vadd.f32 %v7538, %v8438
        %v8567 = vadd.f32 %v7539, %v8439
        %v8568 = vadd.f32 %v7540, %v8440
        %v8569 = vadd.f32 %v7541, %v8441
        %v8570 = vadd.f32 %v7542, %v8442
        %v8571 = vadd.f32 %v7543, %v8443
        %v8572 = vadd.f32 %v7544, %v8444
        %v8573 = vadd.f32 %v7545, %v8445
        %v8574 = vadd.f32 %v7546, %v8446
        %v8575 = vadd.f32 %v7547, %v8447
        %v8576 = vadd.f32 %v7548, %v8448
        %v8577 = vadd.f32 %v7549, %v8449
        %v8578 = vadd.f32 %v7550, %v8450
        %v8579 = vadd.f32 %v7551, %v8451
        %v8580 = vadd.f32 %v7552, %v8452
        %v8581 = vadd.f32 %v7553, %v8453
        %v8582 = vadd.f32 %v7554, %v8454
        %v8583 = vadd.f32 %v7555, %v8455
        %v8584 = vadd.f32 %v7556, %v8456
        %v8585 = vadd.f32 %v7557, %v8457
        %v8586 = vadd.f32 %v7558, %v8458
        %v8587 = vadd.f32 %v7559, %v8459
        %v8588 = vadd.f32 %v7560, %v8460
        %v8589 = vadd.f32 %v7561, %v8461
        %v8590 = vadd.f32 %v7562, %v8462
        %v8591 = vadd.f32 %v7563, %v8463
        %v8592 = vadd.f32 %v7564, %v8464
        %v8593 = vadd.f32 %v7565, %v8465
        %v8594 = vadd.f32 %v7566, %v8466
        %v8595 = vadd.f32 %v7567, %v8467
        %v8596 = vadd.f32 %v7568, %v8468
        %v8597 = vadd.f32 %v7569, %v8469
        %v8598 = vadd.f32 %v7570, %v8470
        %v8599 = vadd.f32 %v7571, %v8471
        %v8600 = vadd.f32 %v7572, %v8472
        %v8601 = vadd.f32 %v7573, %v8473
        %v8602 = vadd.f32 %v7574, %v8474
        %v8603 = vadd.f32 %v7575, %v8475
        %v8604 = vadd.f32 %v7576, %v8476
        %v8605 = vadd.f32 %v7577, %v8477
        %v8606 = vadd.f32 %v7578, %v8478
        %v8607 = vadd.f32 %v7579, %v8479
        %v8608 = vadd.f32 %v7580, %v8480
        %v8609 = vadd.f32 %v7581, %v8481
        %v8610 = vadd.f32 %v7582, %v8482
        %v8611 = vadd.f32 %v7583, %v8483
        %v8612 = vadd.f32 %v7584, %v8484
        %v8613 = vadd.f32 %v7585, %v8485
        %v8614 = vadd.f32 %v7586, %v8486
        %v8615 = vadd.f32 %v7587, %v8487
        %v8616 = vadd.f32 %v7588, %v8488
        %v8617 = vadd.f32 %v7589, %v8489
        %v8618 = vadd.f32 %v7590, %v8490
        %v8619 = vadd.f32 %v7591, %v8491
        %v8620 = vadd.f32 %v7592, %v8492
        %v8621 = vadd.f32 %v7593, %v8493
        %v8622 = vadd.f32 %v7594, %v8494
        %v8623 = vadd.f32 %v7595, %v8495
        %v8624 = vadd.f32 %v7596, %v8496
        %v8625 = vadd.f32 %v7597, %v8497
        %v8626 = vadd.f32 %v7598, %v8498
        %v8627 = vadd.f32 %v7599, %v8499
        %v8628 = vadd.f32 %v7600, %v8500
        %v8629 = vadd.f32 %v7601, %v8501
        %v8630 = vadd.f32 %v7602, %v8502
        %v8631 = vadd.f32 %v7603, %v8503
        %v8632 = vadd.f32 %v7604, %v8504
        %v8633 = vadd.f32 %v7605, %v8505
        %v8634 = vadd.f32 %v7606, %v8506
        %v8635 = vadd.f32 %v7607, %v8507
        %v8636 = vadd.f32 %v7608, %v8508
        %v8637 = vadd.f32 %v7609, %v8509
        %v8638 = vadd.f32 %v7610, %v8510
        %v8639 = vadd.f32 %v7611, %v8511
        %v8640 = vadd.f32 %v7612, %v8512
        %v8641 = vadd.f32 %v7613, %v8513
        %v8642 = vadd.f32 %v7614, %v8514
        %v8643 = vadd.f32 %v7615, %v8515
        %v8644 = vadd.f32 %v7616, %v8516
        %v8645 = vadd.f32 %v7617, %v8517
        %v8646 = vadd.f32 %v7618, %v8518
        %v8647 = vadd.f32 %v7619, %v8519
        %v8648 = vld [vmem:[%s6591 + $0x2] sm:$0xff]
        %v8649 = vld [vmem:[%s6591 + $0xa] sm:$0xff]
        %v8650 = vld [vmem:[%s6591 + $0x12] sm:$0xff]
        %v8651 = vld [vmem:[%s6591 + $0x1a] sm:$0xff]
        %v8652 = vld [vmem:[%s6591 + $0x2a] sm:$0xff]
        %v8653 = vld [vmem:[%s6591 + $0x32] sm:$0xff]
        %v8654 = vld [vmem:[%s6591 + $0x3a] sm:$0xff]
        %v8655 = vld [vmem:[%s6591 + $0x42] sm:$0xff]
        %v8656 = vld [vmem:[%s6591 + $0x52] sm:$0xff]
        %v8657 = vld [vmem:[%s6591 + $0x5a] sm:$0xff]
        %v8658 = vld [vmem:[%s6591 + $0x62] sm:$0xff]
        %v8659 = vld [vmem:[%s6591 + $0x6a] sm:$0xff]
        %v8660 = vld [vmem:[%s6591 + $0x7a] sm:$0xff]
        %v8661 = vld [vmem:[%s6591 + $0x82] sm:$0xff]
        %v8662 = vld [vmem:[%s6591 + $0x8a] sm:$0xff]
        %v8663 = vld [vmem:[%s6591 + $0x92] sm:$0xff]
        %v8664 = vld [vmem:[%s6591 + $0xa2] sm:$0xff]
        %v8665 = vld [vmem:[%s6591 + $0xaa] sm:$0xff]
        %v8666 = vld [vmem:[%s6591 + $0xb2] sm:$0xff]
        %v8667 = vld [vmem:[%s6591 + $0xba] sm:$0xff]
        %v8668 = vld [vmem:[%s6591 + $0xca] sm:$0xff]
        %v8669 = vld [vmem:[%s6591 + $0xd2] sm:$0xff]
        %v8670 = vld [vmem:[%s6591 + $0xda] sm:$0xff]
        %v8671 = vld [vmem:[%s6591 + $0xe2] sm:$0xff]
        %v8672 = vld [vmem:[%s6591 + $0xf2] sm:$0xff]
        %v8673 = vld [vmem:[%s6591 + $0xfa] sm:$0xff]
        %v8674 = vld [vmem:[%s6591 + $0x102] sm:$0xff]
        %v8675 = vld [vmem:[%s6591 + $0x10a] sm:$0xff]
        %v8676 = vld [vmem:[%s6591 + $0x11a] sm:$0xff]
        %v8677 = vld [vmem:[%s6591 + $0x122] sm:$0xff]
        %v8678 = vld [vmem:[%s6591 + $0x12a] sm:$0xff]
        %v8679 = vld [vmem:[%s6591 + $0x132] sm:$0xff]
        %v8680 = vld [vmem:[%s6591 + $0x142] sm:$0xff]
        %v8681 = vld [vmem:[%s6591 + $0x14a] sm:$0xff]
        %v8682 = vld [vmem:[%s6591 + $0x152] sm:$0xff]
        %v8683 = vld [vmem:[%s6591 + $0x15a] sm:$0xff]
        %v8684 = vld [vmem:[%s6591 + $0x16a] sm:$0xff]
        %v8685 = vld [vmem:[%s6591 + $0x172] sm:$0xff]
        %v8686 = vld [vmem:[%s6591 + $0x17a] sm:$0xff]
        %v8687 = vld [vmem:[%s6591 + $0x182] sm:$0xff]
        %v8688 = vld [vmem:[%s6591 + $0x192] sm:$0xff]
        %v8689 = vld [vmem:[%s6591 + $0x19a] sm:$0xff]
        %v8690 = vld [vmem:[%s6591 + $0x1a2] sm:$0xff]
        %v8691 = vld [vmem:[%s6591 + $0x1aa] sm:$0xff]
        %v8692 = vld [vmem:[%s6591 + $0x1ba] sm:$0xff]
        %v8693 = vld [vmem:[%s6591 + $0x1c2] sm:$0xff]
        %v8694 = vld [vmem:[%s6591 + $0x1ca] sm:$0xff]
        %v8695 = vld [vmem:[%s6591 + $0x1d2] sm:$0xff]
        %v8696 = vld [vmem:[%s6591 + $0x1e2] sm:$0xff]
        %v8697 = vld [vmem:[%s6591 + $0x1ea] sm:$0xff]
        %v8698 = vld [vmem:[%s6591 + $0x1f2] sm:$0xff]
        %v8699 = vld [vmem:[%s6591 + $0x1fa] sm:$0xff]
        %v8700 = vld [vmem:[%s6591 + $0x20a] sm:$0xff]
        %v8701 = vld [vmem:[%s6591 + $0x212] sm:$0xff]
        %v8702 = vld [vmem:[%s6591 + $0x21a] sm:$0xff]
        %v8703 = vld [vmem:[%s6591 + $0x222] sm:$0xff]
        %v8704 = vld [vmem:[%s6591 + $0x232] sm:$0xff]
        %v8705 = vld [vmem:[%s6591 + $0x23a] sm:$0xff]
        %v8706 = vld [vmem:[%s6591 + $0x242] sm:$0xff]
        %v8707 = vld [vmem:[%s6591 + $0x24a] sm:$0xff]
        %v8708 = vld [vmem:[%s6591 + $0x25a] sm:$0xff]
        %v8709 = vld [vmem:[%s6591 + $0x262] sm:$0xff]
        %v8710 = vld [vmem:[%s6591 + $0x26a] sm:$0xff]
        %v8711 = vld [vmem:[%s6591 + $0x272] sm:$0xff]
        %v8712 = vld [vmem:[%s6591 + $0x282] sm:$0xff]
        %v8713 = vld [vmem:[%s6591 + $0x28a] sm:$0xff]
        %v8714 = vld [vmem:[%s6591 + $0x292] sm:$0xff]
        %v8715 = vld [vmem:[%s6591 + $0x29a] sm:$0xff]
        %v8716 = vld [vmem:[%s6591 + $0x2aa] sm:$0xff]
        %v8717 = vld [vmem:[%s6591 + $0x2b2] sm:$0xff]
        %v8718 = vld [vmem:[%s6591 + $0x2ba] sm:$0xff]
        %v8719 = vld [vmem:[%s6591 + $0x2c2] sm:$0xff]
        %v8720 = vld [vmem:[%s6591 + $0x2d2] sm:$0xff]
        %v8721 = vld [vmem:[%s6591 + $0x2da] sm:$0xff]
        %v8722 = vld [vmem:[%s6591 + $0x2e2] sm:$0xff]
        %v8723 = vld [vmem:[%s6591 + $0x2ea] sm:$0xff]
        %v8724 = vld [vmem:[%s6591 + $0x2fa] sm:$0xff]
        %v8725 = vld [vmem:[%s6591 + $0x302] sm:$0xff]
        %v8726 = vld [vmem:[%s6591 + $0x30a] sm:$0xff]
        %v8727 = vld [vmem:[%s6591 + $0x312] sm:$0xff]
        %v8728 = vld [vmem:[%s6591 + $0x322] sm:$0xff]
        %v8729 = vld [vmem:[%s6591 + $0x32a] sm:$0xff]
        %v8730 = vld [vmem:[%s6591 + $0x332] sm:$0xff]
        %v8731 = vld [vmem:[%s6591 + $0x33a] sm:$0xff]
        %v8732 = vld [vmem:[%s6591 + $0x34a] sm:$0xff]
        %v8733 = vld [vmem:[%s6591 + $0x352] sm:$0xff]
        %v8734 = vld [vmem:[%s6591 + $0x35a] sm:$0xff]
        %v8735 = vld [vmem:[%s6591 + $0x362] sm:$0xff]
        %v8736 = vld [vmem:[%s6591 + $0x372] sm:$0xff]
        %v8737 = vld [vmem:[%s6591 + $0x37a] sm:$0xff]
        %v8738 = vld [vmem:[%s6591 + $0x382] sm:$0xff]
        %v8739 = vld [vmem:[%s6591 + $0x38a] sm:$0xff]
        %v8740 = vld [vmem:[%s6591 + $0x39a] sm:$0xff]
        %v8741 = vld [vmem:[%s6591 + $0x3a2] sm:$0xff]
        %v8742 = vld [vmem:[%s6591 + $0x3aa] sm:$0xff]
        %v8743 = vld [vmem:[%s6591 + $0x3b2] sm:$0xff]
        %v8744 = vld [vmem:[%s6591 + $0x3c2] sm:$0xff]
        %v8745 = vld [vmem:[%s6591 + $0x3ca] sm:$0xff]
        %v8746 = vld [vmem:[%s6591 + $0x3d2] sm:$0xff]
        %v8747 = vld [vmem:[%s6591 + $0x3da] sm:$0xff]
        %v8748 = vld [vmem:[%s6591 + $0x3ea] sm:$0xff]
        %v8749 = vld [vmem:[%s6591 + $0x3f2] sm:$0xff]
        %v8750 = vld [vmem:[%s6591 + $0x3fa] sm:$0xff]
        %v8751 = vld [vmem:[%s6591 + $0x402] sm:$0xff]
        %v8752 = vld [vmem:[%s6591 + $0x412] sm:$0xff]
        %v8753 = vld [vmem:[%s6591 + $0x41a] sm:$0xff]
        %v8754 = vld [vmem:[%s6591 + $0x422] sm:$0xff]
        %v8755 = vld [vmem:[%s6591 + $0x42a] sm:$0xff]
        %v8756 = vld [vmem:[%s6591 + $0x43a] sm:$0xff]
        %v8757 = vld [vmem:[%s6591 + $0x442] sm:$0xff]
        %v8758 = vld [vmem:[%s6591 + $0x44a] sm:$0xff]
        %v8759 = vld [vmem:[%s6591 + $0x452] sm:$0xff]
        %v8760 = vld [vmem:[%s6591 + $0x462] sm:$0xff]
        %v8761 = vld [vmem:[%s6591 + $0x46a] sm:$0xff]
        %v8762 = vld [vmem:[%s6591 + $0x472] sm:$0xff]
        %v8763 = vld [vmem:[%s6591 + $0x47a] sm:$0xff]
        %v8764 = vld [vmem:[%s6591 + $0x48a] sm:$0xff]
        %v8765 = vld [vmem:[%s6591 + $0x492] sm:$0xff]
        %v8766 = vld [vmem:[%s6591 + $0x49a] sm:$0xff]
        %v8767 = vld [vmem:[%s6591 + $0x4a2] sm:$0xff]
        %v8768 = vld [vmem:[%s6591 + $0x4b2] sm:$0xff]
        %v8769 = vld [vmem:[%s6591 + $0x4ba] sm:$0xff]
        %v8770 = vld [vmem:[%s6591 + $0x4c2] sm:$0xff]
        %v8771 = vld [vmem:[%s6591 + $0x4ca] sm:$0xff]
        %v8772 = vld [vmem:[%s6591 + $0x4da] sm:$0xff]
        %v8773 = vld [vmem:[%s6591 + $0x4e2] sm:$0xff]
        %v8774 = vld [vmem:[%s6591 + $0x4ea] sm:$0xff]
        %v8775 = vld [vmem:[%s6591 + $0x4f2] sm:$0xff]
        %s8776 = scalar_lea.vmem %s1, 8
        %v8777 = vld [vmem:[%s8776] sm:$0x1]
        %v8778 = vunpack.c.l.bf16 %v8777
        %8780 = vset.pattern.permute.xlu0 0
        %8781 = vperm.xlu0 %8780, %v8648
        %v8782 = vpop.permute.xlu0 %8781
        %8785 = vset.pattern.permute.xlu0 0
        %8786 = vperm.xlu0 %8785, %v8649
        %v8787 = vpop.permute.xlu0 %8786
        %8790 = vset.pattern.permute.xlu0 0
        %8791 = vperm.xlu0 %8790, %v8650
        %v8792 = vpop.permute.xlu0 %8791
        %8795 = vset.pattern.permute.xlu0 0
        %8796 = vperm.xlu0 %8795, %v8651
        %v8797 = vpop.permute.xlu0 %8796
        %8800 = vset.pattern.permute.xlu0 0
        %8801 = vperm.xlu0 %8800, %v8652
        %v8802 = vpop.permute.xlu0 %8801
        %8805 = vset.pattern.permute.xlu0 0
        %8806 = vperm.xlu0 %8805, %v8653
        %v8807 = vpop.permute.xlu0 %8806
        %8810 = vset.pattern.permute.xlu0 0
        %8811 = vperm.xlu0 %8810, %v8654
        %v8812 = vpop.permute.xlu0 %8811
        %8815 = vset.pattern.permute.xlu0 0
        %8816 = vperm.xlu0 %8815, %v8655
        %v8817 = vpop.permute.xlu0 %8816
        %8820 = vset.pattern.permute.xlu0 0
        %8821 = vperm.xlu0 %8820, %v8656
        %v8822 = vpop.permute.xlu0 %8821
        %8825 = vset.pattern.permute.xlu0 0
        %8826 = vperm.xlu0 %8825, %v8657
        %v8827 = vpop.permute.xlu0 %8826
        %8830 = vset.pattern.permute.xlu0 0
        %8831 = vperm.xlu0 %8830, %v8658
        %v8832 = vpop.permute.xlu0 %8831
        %8835 = vset.pattern.permute.xlu0 0
        %8836 = vperm.xlu0 %8835, %v8659
        %v8837 = vpop.permute.xlu0 %8836
        %8840 = vset.pattern.permute.xlu0 0
        %8841 = vperm.xlu0 %8840, %v8660
        %v8842 = vpop.permute.xlu0 %8841
        %8845 = vset.pattern.permute.xlu0 0
        %8846 = vperm.xlu0 %8845, %v8661
        %v8847 = vpop.permute.xlu0 %8846
        %8850 = vset.pattern.permute.xlu0 0
        %8851 = vperm.xlu0 %8850, %v8662
        %v8852 = vpop.permute.xlu0 %8851
        %8855 = vset.pattern.permute.xlu0 0
        %8856 = vperm.xlu0 %8855, %v8663
        %v8857 = vpop.permute.xlu0 %8856
        %8860 = vset.pattern.permute.xlu0 0
        %8861 = vperm.xlu0 %8860, %v8664
        %v8862 = vpop.permute.xlu0 %8861
        %8865 = vset.pattern.permute.xlu0 0
        %8866 = vperm.xlu0 %8865, %v8665
        %v8867 = vpop.permute.xlu0 %8866
        %8870 = vset.pattern.permute.xlu0 0
        %8871 = vperm.xlu0 %8870, %v8666
        %v8872 = vpop.permute.xlu0 %8871
        %8875 = vset.pattern.permute.xlu0 0
        %8876 = vperm.xlu0 %8875, %v8667
        %v8877 = vpop.permute.xlu0 %8876
        %8880 = vset.pattern.permute.xlu0 0
        %8881 = vperm.xlu0 %8880, %v8668
        %v8882 = vpop.permute.xlu0 %8881
        %8885 = vset.pattern.permute.xlu0 0
        %8886 = vperm.xlu0 %8885, %v8669
        %v8887 = vpop.permute.xlu0 %8886
        %8890 = vset.pattern.permute.xlu0 0
        %8891 = vperm.xlu0 %8890, %v8670
        %v8892 = vpop.permute.xlu0 %8891
        %8895 = vset.pattern.permute.xlu0 0
        %8896 = vperm.xlu0 %8895, %v8671
        %v8897 = vpop.permute.xlu0 %8896
        %8900 = vset.pattern.permute.xlu0 0
        %8901 = vperm.xlu0 %8900, %v8672
        %v8902 = vpop.permute.xlu0 %8901
        %8905 = vset.pattern.permute.xlu0 0
        %8906 = vperm.xlu0 %8905, %v8673
        %v8907 = vpop.permute.xlu0 %8906
        %8910 = vset.pattern.permute.xlu0 0
        %8911 = vperm.xlu0 %8910, %v8674
        %v8912 = vpop.permute.xlu0 %8911
        %8915 = vset.pattern.permute.xlu0 0
        %8916 = vperm.xlu0 %8915, %v8675
        %v8917 = vpop.permute.xlu0 %8916
        %8920 = vset.pattern.permute.xlu0 0
        %8921 = vperm.xlu0 %8920, %v8676
        %v8922 = vpop.permute.xlu0 %8921
        %8925 = vset.pattern.permute.xlu0 0
        %8926 = vperm.xlu0 %8925, %v8677
        %v8927 = vpop.permute.xlu0 %8926
        %8930 = vset.pattern.permute.xlu0 0
        %8931 = vperm.xlu0 %8930, %v8678
        %v8932 = vpop.permute.xlu0 %8931
        %8935 = vset.pattern.permute.xlu0 0
        %8936 = vperm.xlu0 %8935, %v8679
        %v8937 = vpop.permute.xlu0 %8936
        %8940 = vset.pattern.permute.xlu0 0
        %8941 = vperm.xlu0 %8940, %v8680
        %v8942 = vpop.permute.xlu0 %8941
        %8945 = vset.pattern.permute.xlu0 0
        %8946 = vperm.xlu0 %8945, %v8681
        %v8947 = vpop.permute.xlu0 %8946
        %8950 = vset.pattern.permute.xlu0 0
        %8951 = vperm.xlu0 %8950, %v8682
        %v8952 = vpop.permute.xlu0 %8951
        %8955 = vset.pattern.permute.xlu0 0
        %8956 = vperm.xlu0 %8955, %v8683
        %v8957 = vpop.permute.xlu0 %8956
        %8960 = vset.pattern.permute.xlu0 0
        %8961 = vperm.xlu0 %8960, %v8684
        %v8962 = vpop.permute.xlu0 %8961
        %8965 = vset.pattern.permute.xlu0 0
        %8966 = vperm.xlu0 %8965, %v8685
        %v8967 = vpop.permute.xlu0 %8966
        %8970 = vset.pattern.permute.xlu0 0
        %8971 = vperm.xlu0 %8970, %v8686
        %v8972 = vpop.permute.xlu0 %8971
        %8975 = vset.pattern.permute.xlu0 0
        %8976 = vperm.xlu0 %8975, %v8687
        %v8977 = vpop.permute.xlu0 %8976
        %8980 = vset.pattern.permute.xlu0 0
        %8981 = vperm.xlu0 %8980, %v8688
        %v8982 = vpop.permute.xlu0 %8981
        %8985 = vset.pattern.permute.xlu0 0
        %8986 = vperm.xlu0 %8985, %v8689
        %v8987 = vpop.permute.xlu0 %8986
        %8990 = vset.pattern.permute.xlu0 0
        %8991 = vperm.xlu0 %8990, %v8690
        %v8992 = vpop.permute.xlu0 %8991
        %8995 = vset.pattern.permute.xlu0 0
        %8996 = vperm.xlu0 %8995, %v8691
        %v8997 = vpop.permute.xlu0 %8996
        %9000 = vset.pattern.permute.xlu0 0
        %9001 = vperm.xlu0 %9000, %v8692
        %v9002 = vpop.permute.xlu0 %9001
        %9005 = vset.pattern.permute.xlu0 0
        %9006 = vperm.xlu0 %9005, %v8693
        %v9007 = vpop.permute.xlu0 %9006
        %9010 = vset.pattern.permute.xlu0 0
        %9011 = vperm.xlu0 %9010, %v8694
        %v9012 = vpop.permute.xlu0 %9011
        %9015 = vset.pattern.permute.xlu0 0
        %9016 = vperm.xlu0 %9015, %v8695
        %v9017 = vpop.permute.xlu0 %9016
        %9020 = vset.pattern.permute.xlu0 0
        %9021 = vperm.xlu0 %9020, %v8696
        %v9022 = vpop.permute.xlu0 %9021
        %9025 = vset.pattern.permute.xlu0 0
        %9026 = vperm.xlu0 %9025, %v8697
        %v9027 = vpop.permute.xlu0 %9026
        %9030 = vset.pattern.permute.xlu0 0
        %9031 = vperm.xlu0 %9030, %v8698
        %v9032 = vpop.permute.xlu0 %9031
        %9035 = vset.pattern.permute.xlu0 0
        %9036 = vperm.xlu0 %9035, %v8699
        %v9037 = vpop.permute.xlu0 %9036
        %9040 = vset.pattern.permute.xlu0 0
        %9041 = vperm.xlu0 %9040, %v8700
        %v9042 = vpop.permute.xlu0 %9041
        %9045 = vset.pattern.permute.xlu0 0
        %9046 = vperm.xlu0 %9045, %v8701
        %v9047 = vpop.permute.xlu0 %9046
        %9050 = vset.pattern.permute.xlu0 0
        %9051 = vperm.xlu0 %9050, %v8702
        %v9052 = vpop.permute.xlu0 %9051
        %9055 = vset.pattern.permute.xlu0 0
        %9056 = vperm.xlu0 %9055, %v8703
        %v9057 = vpop.permute.xlu0 %9056
        %9060 = vset.pattern.permute.xlu0 0
        %9061 = vperm.xlu0 %9060, %v8704
        %v9062 = vpop.permute.xlu0 %9061
        %9065 = vset.pattern.permute.xlu0 0
        %9066 = vperm.xlu0 %9065, %v8705
        %v9067 = vpop.permute.xlu0 %9066
        %9070 = vset.pattern.permute.xlu0 0
        %9071 = vperm.xlu0 %9070, %v8706
        %v9072 = vpop.permute.xlu0 %9071
        %9075 = vset.pattern.permute.xlu0 0
        %9076 = vperm.xlu0 %9075, %v8707
        %v9077 = vpop.permute.xlu0 %9076
        %9080 = vset.pattern.permute.xlu0 0
        %9081 = vperm.xlu0 %9080, %v8708
        %v9082 = vpop.permute.xlu0 %9081
        %9085 = vset.pattern.permute.xlu0 0
        %9086 = vperm.xlu0 %9085, %v8709
        %v9087 = vpop.permute.xlu0 %9086
        %9090 = vset.pattern.permute.xlu0 0
        %9091 = vperm.xlu0 %9090, %v8710
        %v9092 = vpop.permute.xlu0 %9091
        %9095 = vset.pattern.permute.xlu0 0
        %9096 = vperm.xlu0 %9095, %v8711
        %v9097 = vpop.permute.xlu0 %9096
        %9100 = vset.pattern.permute.xlu0 0
        %9101 = vperm.xlu0 %9100, %v8712
        %v9102 = vpop.permute.xlu0 %9101
        %9105 = vset.pattern.permute.xlu0 0
        %9106 = vperm.xlu0 %9105, %v8713
        %v9107 = vpop.permute.xlu0 %9106
        %9110 = vset.pattern.permute.xlu0 0
        %9111 = vperm.xlu0 %9110, %v8714
        %v9112 = vpop.permute.xlu0 %9111
        %9115 = vset.pattern.permute.xlu0 0
        %9116 = vperm.xlu0 %9115, %v8715
        %v9117 = vpop.permute.xlu0 %9116
        %9120 = vset.pattern.permute.xlu0 0
        %9121 = vperm.xlu0 %9120, %v8716
        %v9122 = vpop.permute.xlu0 %9121
        %9125 = vset.pattern.permute.xlu0 0
        %9126 = vperm.xlu0 %9125, %v8717
        %v9127 = vpop.permute.xlu0 %9126
        %9130 = vset.pattern.permute.xlu0 0
        %9131 = vperm.xlu0 %9130, %v8718
        %v9132 = vpop.permute.xlu0 %9131
        %9135 = vset.pattern.permute.xlu0 0
        %9136 = vperm.xlu0 %9135, %v8719
        %v9137 = vpop.permute.xlu0 %9136
        %9140 = vset.pattern.permute.xlu0 0
        %9141 = vperm.xlu0 %9140, %v8720
        %v9142 = vpop.permute.xlu0 %9141
        %9145 = vset.pattern.permute.xlu0 0
        %9146 = vperm.xlu0 %9145, %v8721
        %v9147 = vpop.permute.xlu0 %9146
        %9150 = vset.pattern.permute.xlu0 0
        %9151 = vperm.xlu0 %9150, %v8722
        %v9152 = vpop.permute.xlu0 %9151
        %9155 = vset.pattern.permute.xlu0 0
        %9156 = vperm.xlu0 %9155, %v8723
        %v9157 = vpop.permute.xlu0 %9156
        %9160 = vset.pattern.permute.xlu0 0
        %9161 = vperm.xlu0 %9160, %v8724
        %v9162 = vpop.permute.xlu0 %9161
        %9165 = vset.pattern.permute.xlu0 0
        %9166 = vperm.xlu0 %9165, %v8725
        %v9167 = vpop.permute.xlu0 %9166
        %9170 = vset.pattern.permute.xlu0 0
        %9171 = vperm.xlu0 %9170, %v8726
        %v9172 = vpop.permute.xlu0 %9171
        %9175 = vset.pattern.permute.xlu0 0
        %9176 = vperm.xlu0 %9175, %v8727
        %v9177 = vpop.permute.xlu0 %9176
        %9180 = vset.pattern.permute.xlu0 0
        %9181 = vperm.xlu0 %9180, %v8728
        %v9182 = vpop.permute.xlu0 %9181
        %9185 = vset.pattern.permute.xlu0 0
        %9186 = vperm.xlu0 %9185, %v8729
        %v9187 = vpop.permute.xlu0 %9186
        %9190 = vset.pattern.permute.xlu0 0
        %9191 = vperm.xlu0 %9190, %v8730
        %v9192 = vpop.permute.xlu0 %9191
        %9195 = vset.pattern.permute.xlu0 0
        %9196 = vperm.xlu0 %9195, %v8731
        %v9197 = vpop.permute.xlu0 %9196
        %9200 = vset.pattern.permute.xlu0 0
        %9201 = vperm.xlu0 %9200, %v8732
        %v9202 = vpop.permute.xlu0 %9201
        %9205 = vset.pattern.permute.xlu0 0
        %9206 = vperm.xlu0 %9205, %v8733
        %v9207 = vpop.permute.xlu0 %9206
        %9210 = vset.pattern.permute.xlu0 0
        %9211 = vperm.xlu0 %9210, %v8734
        %v9212 = vpop.permute.xlu0 %9211
        %9215 = vset.pattern.permute.xlu0 0
        %9216 = vperm.xlu0 %9215, %v8735
        %v9217 = vpop.permute.xlu0 %9216
        %9220 = vset.pattern.permute.xlu0 0
        %9221 = vperm.xlu0 %9220, %v8736
        %v9222 = vpop.permute.xlu0 %9221
        %9225 = vset.pattern.permute.xlu0 0
        %9226 = vperm.xlu0 %9225, %v8737
        %v9227 = vpop.permute.xlu0 %9226
        %9230 = vset.pattern.permute.xlu0 0
        %9231 = vperm.xlu0 %9230, %v8738
        %v9232 = vpop.permute.xlu0 %9231
        %9235 = vset.pattern.permute.xlu0 0
        %9236 = vperm.xlu0 %9235, %v8739
        %v9237 = vpop.permute.xlu0 %9236
        %9240 = vset.pattern.permute.xlu0 0
        %9241 = vperm.xlu0 %9240, %v8740
        %v9242 = vpop.permute.xlu0 %9241
        %9245 = vset.pattern.permute.xlu0 0
        %9246 = vperm.xlu0 %9245, %v8741
        %v9247 = vpop.permute.xlu0 %9246
        %9250 = vset.pattern.permute.xlu0 0
        %9251 = vperm.xlu0 %9250, %v8742
        %v9252 = vpop.permute.xlu0 %9251
        %9255 = vset.pattern.permute.xlu0 0
        %9256 = vperm.xlu0 %9255, %v8743
        %v9257 = vpop.permute.xlu0 %9256
        %9260 = vset.pattern.permute.xlu0 0
        %9261 = vperm.xlu0 %9260, %v8744
        %v9262 = vpop.permute.xlu0 %9261
        %9265 = vset.pattern.permute.xlu0 0
        %9266 = vperm.xlu0 %9265, %v8745
        %v9267 = vpop.permute.xlu0 %9266
        %9270 = vset.pattern.permute.xlu0 0
        %9271 = vperm.xlu0 %9270, %v8746
        %v9272 = vpop.permute.xlu0 %9271
        %9275 = vset.pattern.permute.xlu0 0
        %9276 = vperm.xlu0 %9275, %v8747
        %v9277 = vpop.permute.xlu0 %9276
        %9280 = vset.pattern.permute.xlu0 0
        %9281 = vperm.xlu0 %9280, %v8748
        %v9282 = vpop.permute.xlu0 %9281
        %9285 = vset.pattern.permute.xlu0 0
        %9286 = vperm.xlu0 %9285, %v8749
        %v9287 = vpop.permute.xlu0 %9286
        %9290 = vset.pattern.permute.xlu0 0
        %9291 = vperm.xlu0 %9290, %v8750
        %v9292 = vpop.permute.xlu0 %9291
        %9295 = vset.pattern.permute.xlu0 0
        %9296 = vperm.xlu0 %9295, %v8751
        %v9297 = vpop.permute.xlu0 %9296
        %9300 = vset.pattern.permute.xlu0 0
        %9301 = vperm.xlu0 %9300, %v8752
        %v9302 = vpop.permute.xlu0 %9301
        %9305 = vset.pattern.permute.xlu0 0
        %9306 = vperm.xlu0 %9305, %v8753
        %v9307 = vpop.permute.xlu0 %9306
        %9310 = vset.pattern.permute.xlu0 0
        %9311 = vperm.xlu0 %9310, %v8754
        %v9312 = vpop.permute.xlu0 %9311
        %9315 = vset.pattern.permute.xlu0 0
        %9316 = vperm.xlu0 %9315, %v8755
        %v9317 = vpop.permute.xlu0 %9316
        %9320 = vset.pattern.permute.xlu0 0
        %9321 = vperm.xlu0 %9320, %v8756
        %v9322 = vpop.permute.xlu0 %9321
        %9325 = vset.pattern.permute.xlu0 0
        %9326 = vperm.xlu0 %9325, %v8757
        %v9327 = vpop.permute.xlu0 %9326
        %9330 = vset.pattern.permute.xlu0 0
        %9331 = vperm.xlu0 %9330, %v8758
        %v9332 = vpop.permute.xlu0 %9331
        %9335 = vset.pattern.permute.xlu0 0
        %9336 = vperm.xlu0 %9335, %v8759
        %v9337 = vpop.permute.xlu0 %9336
        %9340 = vset.pattern.permute.xlu0 0
        %9341 = vperm.xlu0 %9340, %v8760
        %v9342 = vpop.permute.xlu0 %9341
        %9345 = vset.pattern.permute.xlu0 0
        %9346 = vperm.xlu0 %9345, %v8761
        %v9347 = vpop.permute.xlu0 %9346
        %9350 = vset.pattern.permute.xlu0 0
        %9351 = vperm.xlu0 %9350, %v8762
        %v9352 = vpop.permute.xlu0 %9351
        %9355 = vset.pattern.permute.xlu0 0
        %9356 = vperm.xlu0 %9355, %v8763
        %v9357 = vpop.permute.xlu0 %9356
        %9360 = vset.pattern.permute.xlu0 0
        %9361 = vperm.xlu0 %9360, %v8764
        %v9362 = vpop.permute.xlu0 %9361
        %9365 = vset.pattern.permute.xlu0 0
        %9366 = vperm.xlu0 %9365, %v8765
        %v9367 = vpop.permute.xlu0 %9366
        %9370 = vset.pattern.permute.xlu0 0
        %9371 = vperm.xlu0 %9370, %v8766
        %v9372 = vpop.permute.xlu0 %9371
        %9375 = vset.pattern.permute.xlu0 0
        %9376 = vperm.xlu0 %9375, %v8767
        %v9377 = vpop.permute.xlu0 %9376
        %9380 = vset.pattern.permute.xlu0 0
        %9381 = vperm.xlu0 %9380, %v8768
        %v9382 = vpop.permute.xlu0 %9381
        %9385 = vset.pattern.permute.xlu0 0
        %9386 = vperm.xlu0 %9385, %v8769
        %v9387 = vpop.permute.xlu0 %9386
        %9390 = vset.pattern.permute.xlu0 0
        %9391 = vperm.xlu0 %9390, %v8770
        %v9392 = vpop.permute.xlu0 %9391
        %9395 = vset.pattern.permute.xlu0 0
        %9396 = vperm.xlu0 %9395, %v8771
        %v9397 = vpop.permute.xlu0 %9396
        %9400 = vset.pattern.permute.xlu0 0
        %9401 = vperm.xlu0 %9400, %v8772
        %v9402 = vpop.permute.xlu0 %9401
        %9405 = vset.pattern.permute.xlu0 0
        %9406 = vperm.xlu0 %9405, %v8773
        %v9407 = vpop.permute.xlu0 %9406
        %9410 = vset.pattern.permute.xlu0 0
        %9411 = vperm.xlu0 %9410, %v8774
        %v9412 = vpop.permute.xlu0 %9411
        %9415 = vset.pattern.permute.xlu0 0
        %9416 = vperm.xlu0 %9415, %v8775
        %v9417 = vpop.permute.xlu0 %9416
        %v9419 = vperm.slane %v8778, 0
        %v9420 = vmul.f32 %v8782, %v9419
        %v9421 = vmul.f32 %v8787, %v9419
        %v9422 = vmul.f32 %v8792, %v9419
        %v9423 = vmul.f32 %v8797, %v9419
        %v9424 = vmul.f32 %v8802, %v9419
        %v9425 = vmul.f32 %v8807, %v9419
        %v9426 = vmul.f32 %v8812, %v9419
        %v9427 = vmul.f32 %v8817, %v9419
        %v9428 = vmul.f32 %v8822, %v9419
        %v9429 = vmul.f32 %v8827, %v9419
        %v9430 = vmul.f32 %v8832, %v9419
        %v9431 = vmul.f32 %v8837, %v9419
        %v9432 = vmul.f32 %v8842, %v9419
        %v9433 = vmul.f32 %v8847, %v9419
        %v9434 = vmul.f32 %v8852, %v9419
        %v9435 = vmul.f32 %v8857, %v9419
        %v9436 = vmul.f32 %v8862, %v9419
        %v9437 = vmul.f32 %v8867, %v9419
        %v9438 = vmul.f32 %v8872, %v9419
        %v9439 = vmul.f32 %v8877, %v9419
        %v9440 = vmul.f32 %v8882, %v9419
        %v9441 = vmul.f32 %v8887, %v9419
        %v9442 = vmul.f32 %v8892, %v9419
        %v9443 = vmul.f32 %v8897, %v9419
        %v9444 = vmul.f32 %v8902, %v9419
        %v9445 = vmul.f32 %v8907, %v9419
        %v9446 = vmul.f32 %v8912, %v9419
        %v9447 = vmul.f32 %v8917, %v9419
        %v9448 = vmul.f32 %v8922, %v9419
        %v9449 = vmul.f32 %v8927, %v9419
        %v9450 = vmul.f32 %v8932, %v9419
        %v9451 = vmul.f32 %v8937, %v9419
        %v9452 = vmul.f32 %v8942, %v9419
        %v9453 = vmul.f32 %v8947, %v9419
        %v9454 = vmul.f32 %v8952, %v9419
        %v9455 = vmul.f32 %v8957, %v9419
        %v9456 = vmul.f32 %v8962, %v9419
        %v9457 = vmul.f32 %v8967, %v9419
        %v9458 = vmul.f32 %v8972, %v9419
        %v9459 = vmul.f32 %v8977, %v9419
        %v9460 = vmul.f32 %v8982, %v9419
        %v9461 = vmul.f32 %v8987, %v9419
        %v9462 = vmul.f32 %v8992, %v9419
        %v9463 = vmul.f32 %v8997, %v9419
        %v9464 = vmul.f32 %v9002, %v9419
        %v9465 = vmul.f32 %v9007, %v9419
        %v9466 = vmul.f32 %v9012, %v9419
        %v9467 = vmul.f32 %v9017, %v9419
        %v9468 = vmul.f32 %v9022, %v9419
        %v9469 = vmul.f32 %v9027, %v9419
        %v9470 = vmul.f32 %v9032, %v9419
        %v9471 = vmul.f32 %v9037, %v9419
        %v9472 = vmul.f32 %v9042, %v9419
        %v9473 = vmul.f32 %v9047, %v9419
        %v9474 = vmul.f32 %v9052, %v9419
        %v9475 = vmul.f32 %v9057, %v9419
        %v9476 = vmul.f32 %v9062, %v9419
        %v9477 = vmul.f32 %v9067, %v9419
        %v9478 = vmul.f32 %v9072, %v9419
        %v9479 = vmul.f32 %v9077, %v9419
        %v9480 = vmul.f32 %v9082, %v9419
        %v9481 = vmul.f32 %v9087, %v9419
        %v9482 = vmul.f32 %v9092, %v9419
        %v9483 = vmul.f32 %v9097, %v9419
        %v9484 = vmul.f32 %v9102, %v9419
        %v9485 = vmul.f32 %v9107, %v9419
        %v9486 = vmul.f32 %v9112, %v9419
        %v9487 = vmul.f32 %v9117, %v9419
        %v9488 = vmul.f32 %v9122, %v9419
        %v9489 = vmul.f32 %v9127, %v9419
        %v9490 = vmul.f32 %v9132, %v9419
        %v9491 = vmul.f32 %v9137, %v9419
        %v9492 = vmul.f32 %v9142, %v9419
        %v9493 = vmul.f32 %v9147, %v9419
        %v9494 = vmul.f32 %v9152, %v9419
        %v9495 = vmul.f32 %v9157, %v9419
        %v9496 = vmul.f32 %v9162, %v9419
        %v9497 = vmul.f32 %v9167, %v9419
        %v9498 = vmul.f32 %v9172, %v9419
        %v9499 = vmul.f32 %v9177, %v9419
        %v9500 = vmul.f32 %v9182, %v9419
        %v9501 = vmul.f32 %v9187, %v9419
        %v9502 = vmul.f32 %v9192, %v9419
        %v9503 = vmul.f32 %v9197, %v9419
        %v9504 = vmul.f32 %v9202, %v9419
        %v9505 = vmul.f32 %v9207, %v9419
        %v9506 = vmul.f32 %v9212, %v9419
        %v9507 = vmul.f32 %v9217, %v9419
        %v9508 = vmul.f32 %v9222, %v9419
        %v9509 = vmul.f32 %v9227, %v9419
        %v9510 = vmul.f32 %v9232, %v9419
        %v9511 = vmul.f32 %v9237, %v9419
        %v9512 = vmul.f32 %v9242, %v9419
        %v9513 = vmul.f32 %v9247, %v9419
        %v9514 = vmul.f32 %v9252, %v9419
        %v9515 = vmul.f32 %v9257, %v9419
        %v9516 = vmul.f32 %v9262, %v9419
        %v9517 = vmul.f32 %v9267, %v9419
        %v9518 = vmul.f32 %v9272, %v9419
        %v9519 = vmul.f32 %v9277, %v9419
        %v9520 = vmul.f32 %v9282, %v9419
        %v9521 = vmul.f32 %v9287, %v9419
        %v9522 = vmul.f32 %v9292, %v9419
        %v9523 = vmul.f32 %v9297, %v9419
        %v9524 = vmul.f32 %v9302, %v9419
        %v9525 = vmul.f32 %v9307, %v9419
        %v9526 = vmul.f32 %v9312, %v9419
        %v9527 = vmul.f32 %v9317, %v9419
        %v9528 = vmul.f32 %v9322, %v9419
        %v9529 = vmul.f32 %v9327, %v9419
        %v9530 = vmul.f32 %v9332, %v9419
        %v9531 = vmul.f32 %v9337, %v9419
        %v9532 = vmul.f32 %v9342, %v9419
        %v9533 = vmul.f32 %v9347, %v9419
        %v9534 = vmul.f32 %v9352, %v9419
        %v9535 = vmul.f32 %v9357, %v9419
        %v9536 = vmul.f32 %v9362, %v9419
        %v9537 = vmul.f32 %v9367, %v9419
        %v9538 = vmul.f32 %v9372, %v9419
        %v9539 = vmul.f32 %v9377, %v9419
        %v9540 = vmul.f32 %v9382, %v9419
        %v9541 = vmul.f32 %v9387, %v9419
        %v9542 = vmul.f32 %v9392, %v9419
        %v9543 = vmul.f32 %v9397, %v9419
        %v9544 = vmul.f32 %v9402, %v9419
        %v9545 = vmul.f32 %v9407, %v9419
        %v9546 = vmul.f32 %v9412, %v9419
        %v9547 = vmul.f32 %v9417, %v9419
        %v9548 = vadd.f32 %v8520, %v9420
        %v9549 = vadd.f32 %v8521, %v9421
        %v9550 = vadd.f32 %v8522, %v9422
        %v9551 = vadd.f32 %v8523, %v9423
        %v9552 = vadd.f32 %v8524, %v9424
        %v9553 = vadd.f32 %v8525, %v9425
        %v9554 = vadd.f32 %v8526, %v9426
        %v9555 = vadd.f32 %v8527, %v9427
        %v9556 = vadd.f32 %v8528, %v9428
        %v9557 = vadd.f32 %v8529, %v9429
        %v9558 = vadd.f32 %v8530, %v9430
        %v9559 = vadd.f32 %v8531, %v9431
        %v9560 = vadd.f32 %v8532, %v9432
        %v9561 = vadd.f32 %v8533, %v9433
        %v9562 = vadd.f32 %v8534, %v9434
        %v9563 = vadd.f32 %v8535, %v9435
        %v9564 = vadd.f32 %v8536, %v9436
        %v9565 = vadd.f32 %v8537, %v9437
        %v9566 = vadd.f32 %v8538, %v9438
        %v9567 = vadd.f32 %v8539, %v9439
        %v9568 = vadd.f32 %v8540, %v9440
        %v9569 = vadd.f32 %v8541, %v9441
        %v9570 = vadd.f32 %v8542, %v9442
        %v9571 = vadd.f32 %v8543, %v9443
        %v9572 = vadd.f32 %v8544, %v9444
        %v9573 = vadd.f32 %v8545, %v9445
        %v9574 = vadd.f32 %v8546, %v9446
        %v9575 = vadd.f32 %v8547, %v9447
        %v9576 = vadd.f32 %v8548, %v9448
        %v9577 = vadd.f32 %v8549, %v9449
        %v9578 = vadd.f32 %v8550, %v9450
        %v9579 = vadd.f32 %v8551, %v9451
        %v9580 = vadd.f32 %v8552, %v9452
        %v9581 = vadd.f32 %v8553, %v9453
        %v9582 = vadd.f32 %v8554, %v9454
        %v9583 = vadd.f32 %v8555, %v9455
        %v9584 = vadd.f32 %v8556, %v9456
        %v9585 = vadd.f32 %v8557, %v9457
        %v9586 = vadd.f32 %v8558, %v9458
        %v9587 = vadd.f32 %v8559, %v9459
        %v9588 = vadd.f32 %v8560, %v9460
        %v9589 = vadd.f32 %v8561, %v9461
        %v9590 = vadd.f32 %v8562, %v9462
        %v9591 = vadd.f32 %v8563, %v9463
        %v9592 = vadd.f32 %v8564, %v9464
        %v9593 = vadd.f32 %v8565, %v9465
        %v9594 = vadd.f32 %v8566, %v9466
        %v9595 = vadd.f32 %v8567, %v9467
        %v9596 = vadd.f32 %v8568, %v9468
        %v9597 = vadd.f32 %v8569, %v9469
        %v9598 = vadd.f32 %v8570, %v9470
        %v9599 = vadd.f32 %v8571, %v9471
        %v9600 = vadd.f32 %v8572, %v9472
        %v9601 = vadd.f32 %v8573, %v9473
        %v9602 = vadd.f32 %v8574, %v9474
        %v9603 = vadd.f32 %v8575, %v9475
        %v9604 = vadd.f32 %v8576, %v9476
        %v9605 = vadd.f32 %v8577, %v9477
        %v9606 = vadd.f32 %v8578, %v9478
        %v9607 = vadd.f32 %v8579, %v9479
        %v9608 = vadd.f32 %v8580, %v9480
        %v9609 = vadd.f32 %v8581, %v9481
        %v9610 = vadd.f32 %v8582, %v9482
        %v9611 = vadd.f32 %v8583, %v9483
        %v9612 = vadd.f32 %v8584, %v9484
        %v9613 = vadd.f32 %v8585, %v9485
        %v9614 = vadd.f32 %v8586, %v9486
        %v9615 = vadd.f32 %v8587, %v9487
        %v9616 = vadd.f32 %v8588, %v9488
        %v9617 = vadd.f32 %v8589, %v9489
        %v9618 = vadd.f32 %v8590, %v9490
        %v9619 = vadd.f32 %v8591, %v9491
        %v9620 = vadd.f32 %v8592, %v9492
        %v9621 = vadd.f32 %v8593, %v9493
        %v9622 = vadd.f32 %v8594, %v9494
        %v9623 = vadd.f32 %v8595, %v9495
        %v9624 = vadd.f32 %v8596, %v9496
        %v9625 = vadd.f32 %v8597, %v9497
        %v9626 = vadd.f32 %v8598, %v9498
        %v9627 = vadd.f32 %v8599, %v9499
        %v9628 = vadd.f32 %v8600, %v9500
        %v9629 = vadd.f32 %v8601, %v9501
        %v9630 = vadd.f32 %v8602, %v9502
        %v9631 = vadd.f32 %v8603, %v9503
        %v9632 = vadd.f32 %v8604, %v9504
        %v9633 = vadd.f32 %v8605, %v9505
        %v9634 = vadd.f32 %v8606, %v9506
        %v9635 = vadd.f32 %v8607, %v9507
        %v9636 = vadd.f32 %v8608, %v9508
        %v9637 = vadd.f32 %v8609, %v9509
        %v9638 = vadd.f32 %v8610, %v9510
        %v9639 = vadd.f32 %v8611, %v9511
        %v9640 = vadd.f32 %v8612, %v9512
        %v9641 = vadd.f32 %v8613, %v9513
        %v9642 = vadd.f32 %v8614, %v9514
        %v9643 = vadd.f32 %v8615, %v9515
        %v9644 = vadd.f32 %v8616, %v9516
        %v9645 = vadd.f32 %v8617, %v9517
        %v9646 = vadd.f32 %v8618, %v9518
        %v9647 = vadd.f32 %v8619, %v9519
        %v9648 = vadd.f32 %v8620, %v9520
        %v9649 = vadd.f32 %v8621, %v9521
        %v9650 = vadd.f32 %v8622, %v9522
        %v9651 = vadd.f32 %v8623, %v9523
        %v9652 = vadd.f32 %v8624, %v9524
        %v9653 = vadd.f32 %v8625, %v9525
        %v9654 = vadd.f32 %v8626, %v9526
        %v9655 = vadd.f32 %v8627, %v9527
        %v9656 = vadd.f32 %v8628, %v9528
        %v9657 = vadd.f32 %v8629, %v9529
        %v9658 = vadd.f32 %v8630, %v9530
        %v9659 = vadd.f32 %v8631, %v9531
        %v9660 = vadd.f32 %v8632, %v9532
        %v9661 = vadd.f32 %v8633, %v9533
        %v9662 = vadd.f32 %v8634, %v9534
        %v9663 = vadd.f32 %v8635, %v9535
        %v9664 = vadd.f32 %v8636, %v9536
        %v9665 = vadd.f32 %v8637, %v9537
        %v9666 = vadd.f32 %v8638, %v9538
        %v9667 = vadd.f32 %v8639, %v9539
        %v9668 = vadd.f32 %v8640, %v9540
        %v9669 = vadd.f32 %v8641, %v9541
        %v9670 = vadd.f32 %v8642, %v9542
        %v9671 = vadd.f32 %v8643, %v9543
        %v9672 = vadd.f32 %v8644, %v9544
        %v9673 = vadd.f32 %v8645, %v9545
        %v9674 = vadd.f32 %v8646, %v9546
        %v9675 = vadd.f32 %v8647, %v9547
        %vm9676 = vcmask 130048
        %9677 = vst.msk [vmem:[%s216] sm:$0xff] %vm9676, %v9548
        %9678 = vst.msk [vmem:[%s216 + $0x8] sm:$0xff] %vm9676, %v9549
        %9679 = vst.msk [vmem:[%s216 + $0x10] sm:$0xff] %vm9676, %v9550
        %9680 = vst.msk [vmem:[%s216 + $0x18] sm:$0xff] %vm9676, %v9551
        %9681 = vst.msk [vmem:[%s216 + $0x20] sm:$0xff] %vm9676, %v9552
        %9682 = vst.msk [vmem:[%s216 + $0x28] sm:$0xff] %vm9676, %v9553
        %9683 = vst.msk [vmem:[%s216 + $0x30] sm:$0xff] %vm9676, %v9554
        %9684 = vst.msk [vmem:[%s216 + $0x38] sm:$0xff] %vm9676, %v9555
        %9685 = vst.msk [vmem:[%s216 + $0x40] sm:$0xff] %vm9676, %v9556
        %9686 = vst.msk [vmem:[%s216 + $0x48] sm:$0xff] %vm9676, %v9557
        %9687 = vst.msk [vmem:[%s216 + $0x50] sm:$0xff] %vm9676, %v9558
        %9688 = vst.msk [vmem:[%s216 + $0x58] sm:$0xff] %vm9676, %v9559
        %9689 = vst.msk [vmem:[%s216 + $0x60] sm:$0xff] %vm9676, %v9560
        %9690 = vst.msk [vmem:[%s216 + $0x68] sm:$0xff] %vm9676, %v9561
        %9691 = vst.msk [vmem:[%s216 + $0x70] sm:$0xff] %vm9676, %v9562
        %9692 = vst.msk [vmem:[%s216 + $0x78] sm:$0xff] %vm9676, %v9563
        %9693 = vst.msk [vmem:[%s216 + $0x80] sm:$0xff] %vm9676, %v9564
        %9694 = vst.msk [vmem:[%s216 + $0x88] sm:$0xff] %vm9676, %v9565
        %9695 = vst.msk [vmem:[%s216 + $0x90] sm:$0xff] %vm9676, %v9566
        %9696 = vst.msk [vmem:[%s216 + $0x98] sm:$0xff] %vm9676, %v9567
        %9697 = vst.msk [vmem:[%s216 + $0xa0] sm:$0xff] %vm9676, %v9568
        %9698 = vst.msk [vmem:[%s216 + $0xa8] sm:$0xff] %vm9676, %v9569
        %9699 = vst.msk [vmem:[%s216 + $0xb0] sm:$0xff] %vm9676, %v9570
        %9700 = vst.msk [vmem:[%s216 + $0xb8] sm:$0xff] %vm9676, %v9571
        %9701 = vst.msk [vmem:[%s216 + $0xc0] sm:$0xff] %vm9676, %v9572
        %9702 = vst.msk [vmem:[%s216 + $0xc8] sm:$0xff] %vm9676, %v9573
        %9703 = vst.msk [vmem:[%s216 + $0xd0] sm:$0xff] %vm9676, %v9574
        %9704 = vst.msk [vmem:[%s216 + $0xd8] sm:$0xff] %vm9676, %v9575
        %9705 = vst.msk [vmem:[%s216 + $0xe0] sm:$0xff] %vm9676, %v9576
        %9706 = vst.msk [vmem:[%s216 + $0xe8] sm:$0xff] %vm9676, %v9577
        %9707 = vst.msk [vmem:[%s216 + $0xf0] sm:$0xff] %vm9676, %v9578
        %9708 = vst.msk [vmem:[%s216 + $0xf8] sm:$0xff] %vm9676, %v9579
        %9709 = vst.msk [vmem:[%s216 + $0x100] sm:$0xff] %vm9676, %v9580
        %9710 = vst.msk [vmem:[%s216 + $0x108] sm:$0xff] %vm9676, %v9581
        %9711 = vst.msk [vmem:[%s216 + $0x110] sm:$0xff] %vm9676, %v9582
        %9712 = vst.msk [vmem:[%s216 + $0x118] sm:$0xff] %vm9676, %v9583
        %9713 = vst.msk [vmem:[%s216 + $0x120] sm:$0xff] %vm9676, %v9584
        %9714 = vst.msk [vmem:[%s216 + $0x128] sm:$0xff] %vm9676, %v9585
        %9715 = vst.msk [vmem:[%s216 + $0x130] sm:$0xff] %vm9676, %v9586
        %9716 = vst.msk [vmem:[%s216 + $0x138] sm:$0xff] %vm9676, %v9587
        %9717 = vst.msk [vmem:[%s216 + $0x140] sm:$0xff] %vm9676, %v9588
        %9718 = vst.msk [vmem:[%s216 + $0x148] sm:$0xff] %vm9676, %v9589
        %9719 = vst.msk [vmem:[%s216 + $0x150] sm:$0xff] %vm9676, %v9590
        %9720 = vst.msk [vmem:[%s216 + $0x158] sm:$0xff] %vm9676, %v9591
        %9721 = vst.msk [vmem:[%s216 + $0x160] sm:$0xff] %vm9676, %v9592
        %9722 = vst.msk [vmem:[%s216 + $0x168] sm:$0xff] %vm9676, %v9593
        %9723 = vst.msk [vmem:[%s216 + $0x170] sm:$0xff] %vm9676, %v9594
        %9724 = vst.msk [vmem:[%s216 + $0x178] sm:$0xff] %vm9676, %v9595
        %9725 = vst.msk [vmem:[%s216 + $0x180] sm:$0xff] %vm9676, %v9596
        %9726 = vst.msk [vmem:[%s216 + $0x188] sm:$0xff] %vm9676, %v9597
        %9727 = vst.msk [vmem:[%s216 + $0x190] sm:$0xff] %vm9676, %v9598
        %9728 = vst.msk [vmem:[%s216 + $0x198] sm:$0xff] %vm9676, %v9599
        %9729 = vst.msk [vmem:[%s216 + $0x1a0] sm:$0xff] %vm9676, %v9600
        %9730 = vst.msk [vmem:[%s216 + $0x1a8] sm:$0xff] %vm9676, %v9601
        %9731 = vst.msk [vmem:[%s216 + $0x1b0] sm:$0xff] %vm9676, %v9602
        %9732 = vst.msk [vmem:[%s216 + $0x1b8] sm:$0xff] %vm9676, %v9603
        %9733 = vst.msk [vmem:[%s216 + $0x1c0] sm:$0xff] %vm9676, %v9604
        %9734 = vst.msk [vmem:[%s216 + $0x1c8] sm:$0xff] %vm9676, %v9605
        %9735 = vst.msk [vmem:[%s216 + $0x1d0] sm:$0xff] %vm9676, %v9606
        %9736 = vst.msk [vmem:[%s216 + $0x1d8] sm:$0xff] %vm9676, %v9607
        %9737 = vst.msk [vmem:[%s216 + $0x1e0] sm:$0xff] %vm9676, %v9608
        %9738 = vst.msk [vmem:[%s216 + $0x1e8] sm:$0xff] %vm9676, %v9609
        %9739 = vst.msk [vmem:[%s216 + $0x1f0] sm:$0xff] %vm9676, %v9610
        %9740 = vst.msk [vmem:[%s216 + $0x1f8] sm:$0xff] %vm9676, %v9611
        %9741 = vst.msk [vmem:[%s216 + $0x200] sm:$0xff] %vm9676, %v9612
        %9742 = vst.msk [vmem:[%s216 + $0x208] sm:$0xff] %vm9676, %v9613
        %9743 = vst.msk [vmem:[%s216 + $0x210] sm:$0xff] %vm9676, %v9614
        %9744 = vst.msk [vmem:[%s216 + $0x218] sm:$0xff] %vm9676, %v9615
        %9745 = vst.msk [vmem:[%s216 + $0x220] sm:$0xff] %vm9676, %v9616
        %9746 = vst.msk [vmem:[%s216 + $0x228] sm:$0xff] %vm9676, %v9617
        %9747 = vst.msk [vmem:[%s216 + $0x230] sm:$0xff] %vm9676, %v9618
        %9748 = vst.msk [vmem:[%s216 + $0x238] sm:$0xff] %vm9676, %v9619
        %9749 = vst.msk [vmem:[%s216 + $0x240] sm:$0xff] %vm9676, %v9620
        %9750 = vst.msk [vmem:[%s216 + $0x248] sm:$0xff] %vm9676, %v9621
        %9751 = vst.msk [vmem:[%s216 + $0x250] sm:$0xff] %vm9676, %v9622
        %9752 = vst.msk [vmem:[%s216 + $0x258] sm:$0xff] %vm9676, %v9623
        %9753 = vst.msk [vmem:[%s216 + $0x260] sm:$0xff] %vm9676, %v9624
        %9754 = vst.msk [vmem:[%s216 + $0x268] sm:$0xff] %vm9676, %v9625
        %9755 = vst.msk [vmem:[%s216 + $0x270] sm:$0xff] %vm9676, %v9626
        %9756 = vst.msk [vmem:[%s216 + $0x278] sm:$0xff] %vm9676, %v9627
        %9757 = vst.msk [vmem:[%s216 + $0x280] sm:$0xff] %vm9676, %v9628
        %9758 = vst.msk [vmem:[%s216 + $0x288] sm:$0xff] %vm9676, %v9629
        %9759 = vst.msk [vmem:[%s216 + $0x290] sm:$0xff] %vm9676, %v9630
        %9760 = vst.msk [vmem:[%s216 + $0x298] sm:$0xff] %vm9676, %v9631
        %9761 = vst.msk [vmem:[%s216 + $0x2a0] sm:$0xff] %vm9676, %v9632
        %9762 = vst.msk [vmem:[%s216 + $0x2a8] sm:$0xff] %vm9676, %v9633
        %9763 = vst.msk [vmem:[%s216 + $0x2b0] sm:$0xff] %vm9676, %v9634
        %9764 = vst.msk [vmem:[%s216 + $0x2b8] sm:$0xff] %vm9676, %v9635
        %9765 = vst.msk [vmem:[%s216 + $0x2c0] sm:$0xff] %vm9676, %v9636
        %9766 = vst.msk [vmem:[%s216 + $0x2c8] sm:$0xff] %vm9676, %v9637
        %9767 = vst.msk [vmem:[%s216 + $0x2d0] sm:$0xff] %vm9676, %v9638
        %9768 = vst.msk [vmem:[%s216 + $0x2d8] sm:$0xff] %vm9676, %v9639
        %9769 = vst.msk [vmem:[%s216 + $0x2e0] sm:$0xff] %vm9676, %v9640
        %9770 = vst.msk [vmem:[%s216 + $0x2e8] sm:$0xff] %vm9676, %v9641
        %9771 = vst.msk [vmem:[%s216 + $0x2f0] sm:$0xff] %vm9676, %v9642
        %9772 = vst.msk [vmem:[%s216 + $0x2f8] sm:$0xff] %vm9676, %v9643
        %9773 = vst.msk [vmem:[%s216 + $0x300] sm:$0xff] %vm9676, %v9644
        %9774 = vst.msk [vmem:[%s216 + $0x308] sm:$0xff] %vm9676, %v9645
        %9775 = vst.msk [vmem:[%s216 + $0x310] sm:$0xff] %vm9676, %v9646
        %9776 = vst.msk [vmem:[%s216 + $0x318] sm:$0xff] %vm9676, %v9647
        %9777 = vst.msk [vmem:[%s216 + $0x320] sm:$0xff] %vm9676, %v9648
        %9778 = vst.msk [vmem:[%s216 + $0x328] sm:$0xff] %vm9676, %v9649
        %9779 = vst.msk [vmem:[%s216 + $0x330] sm:$0xff] %vm9676, %v9650
        %9780 = vst.msk [vmem:[%s216 + $0x338] sm:$0xff] %vm9676, %v9651
        %9781 = vst.msk [vmem:[%s216 + $0x340] sm:$0xff] %vm9676, %v9652
        %9782 = vst.msk [vmem:[%s216 + $0x348] sm:$0xff] %vm9676, %v9653
        %9783 = vst.msk [vmem:[%s216 + $0x350] sm:$0xff] %vm9676, %v9654
        %9784 = vst.msk [vmem:[%s216 + $0x358] sm:$0xff] %vm9676, %v9655
        %9785 = vst.msk [vmem:[%s216 + $0x360] sm:$0xff] %vm9676, %v9656
        %9786 = vst.msk [vmem:[%s216 + $0x368] sm:$0xff] %vm9676, %v9657
        %9787 = vst.msk [vmem:[%s216 + $0x370] sm:$0xff] %vm9676, %v9658
        %9788 = vst.msk [vmem:[%s216 + $0x378] sm:$0xff] %vm9676, %v9659
        %9789 = vst.msk [vmem:[%s216 + $0x380] sm:$0xff] %vm9676, %v9660
        %9790 = vst.msk [vmem:[%s216 + $0x388] sm:$0xff] %vm9676, %v9661
        %9791 = vst.msk [vmem:[%s216 + $0x390] sm:$0xff] %vm9676, %v9662
        %9792 = vst.msk [vmem:[%s216 + $0x398] sm:$0xff] %vm9676, %v9663
        %9793 = vst.msk [vmem:[%s216 + $0x3a0] sm:$0xff] %vm9676, %v9664
        %9794 = vst.msk [vmem:[%s216 + $0x3a8] sm:$0xff] %vm9676, %v9665
        %9795 = vst.msk [vmem:[%s216 + $0x3b0] sm:$0xff] %vm9676, %v9666
        %9796 = vst.msk [vmem:[%s216 + $0x3b8] sm:$0xff] %vm9676, %v9667
        %9797 = vst.msk [vmem:[%s216 + $0x3c0] sm:$0xff] %vm9676, %v9668
        %9798 = vst.msk [vmem:[%s216 + $0x3c8] sm:$0xff] %vm9676, %v9669
        %9799 = vst.msk [vmem:[%s216 + $0x3d0] sm:$0xff] %vm9676, %v9670
        %9800 = vst.msk [vmem:[%s216 + $0x3d8] sm:$0xff] %vm9676, %v9671
        %9801 = vst.msk [vmem:[%s216 + $0x3e0] sm:$0xff] %vm9676, %v9672
        %9802 = vst.msk [vmem:[%s216 + $0x3e8] sm:$0xff] %vm9676, %v9673
        %9803 = vst.msk [vmem:[%s216 + $0x3f0] sm:$0xff] %vm9676, %v9674
        %9804 = vst.msk [vmem:[%s216 + $0x3f8] sm:$0xff] %vm9676, %v9675
        %v9805 = vsel %vm9676, %v9548, 0.0
        %v9806 = vsel %vm9676, %v9549, 0.0
        %v9807 = vadd.f32 %v9805, %v9806
        %v9808 = vsel %vm9676, %v9550, 0.0
        %v9809 = vadd.f32 %v9807, %v9808
        %v9810 = vsel %vm9676, %v9551, 0.0
        %v9811 = vadd.f32 %v9809, %v9810
        %v9812 = vsel %vm9676, %v9552, 0.0
        %v9813 = vadd.f32 %v9811, %v9812
        %v9814 = vsel %vm9676, %v9553, 0.0
        %v9815 = vadd.f32 %v9813, %v9814
        %v9816 = vsel %vm9676, %v9554, 0.0
        %v9817 = vadd.f32 %v9815, %v9816
        %v9818 = vsel %vm9676, %v9555, 0.0
        %v9819 = vadd.f32 %v9817, %v9818
        %v9820 = vsel %vm9676, %v9556, 0.0
        %v9821 = vadd.f32 %v9819, %v9820
        %v9822 = vsel %vm9676, %v9557, 0.0
        %v9823 = vadd.f32 %v9821, %v9822
        %v9824 = vsel %vm9676, %v9558, 0.0
        %v9825 = vadd.f32 %v9823, %v9824
        %v9826 = vsel %vm9676, %v9559, 0.0
        %v9827 = vadd.f32 %v9825, %v9826
        %v9828 = vsel %vm9676, %v9560, 0.0
        %v9829 = vadd.f32 %v9827, %v9828
        %v9830 = vsel %vm9676, %v9561, 0.0
        %v9831 = vadd.f32 %v9829, %v9830
        %v9832 = vsel %vm9676, %v9562, 0.0
        %v9833 = vadd.f32 %v9831, %v9832
        %v9834 = vsel %vm9676, %v9563, 0.0
        %v9835 = vadd.f32 %v9833, %v9834
        %v9836 = vsel %vm9676, %v9564, 0.0
        %v9837 = vadd.f32 %v9835, %v9836
        %v9838 = vsel %vm9676, %v9565, 0.0
        %v9839 = vadd.f32 %v9837, %v9838
        %v9840 = vsel %vm9676, %v9566, 0.0
        %v9841 = vadd.f32 %v9839, %v9840
        %v9842 = vsel %vm9676, %v9567, 0.0
        %v9843 = vadd.f32 %v9841, %v9842
        %v9844 = vsel %vm9676, %v9568, 0.0
        %v9845 = vadd.f32 %v9843, %v9844
        %v9846 = vsel %vm9676, %v9569, 0.0
        %v9847 = vadd.f32 %v9845, %v9846
        %v9848 = vsel %vm9676, %v9570, 0.0
        %v9849 = vadd.f32 %v9847, %v9848
        %v9850 = vsel %vm9676, %v9571, 0.0
        %v9851 = vadd.f32 %v9849, %v9850
        %v9852 = vsel %vm9676, %v9572, 0.0
        %v9853 = vadd.f32 %v9851, %v9852
        %v9854 = vsel %vm9676, %v9573, 0.0
        %v9855 = vadd.f32 %v9853, %v9854
        %v9856 = vsel %vm9676, %v9574, 0.0
        %v9857 = vadd.f32 %v9855, %v9856
        %v9858 = vsel %vm9676, %v9575, 0.0
        %v9859 = vadd.f32 %v9857, %v9858
        %v9860 = vsel %vm9676, %v9576, 0.0
        %v9861 = vadd.f32 %v9859, %v9860
        %v9862 = vsel %vm9676, %v9577, 0.0
        %v9863 = vadd.f32 %v9861, %v9862
        %v9864 = vsel %vm9676, %v9578, 0.0
        %v9865 = vadd.f32 %v9863, %v9864
        %v9866 = vsel %vm9676, %v9579, 0.0
        %v9867 = vadd.f32 %v9865, %v9866
        %v9868 = vsel %vm9676, %v9580, 0.0
        %v9869 = vadd.f32 %v9867, %v9868
        %v9870 = vsel %vm9676, %v9581, 0.0
        %v9871 = vadd.f32 %v9869, %v9870
        %v9872 = vsel %vm9676, %v9582, 0.0
        %v9873 = vadd.f32 %v9871, %v9872
        %v9874 = vsel %vm9676, %v9583, 0.0
        %v9875 = vadd.f32 %v9873, %v9874
        %v9876 = vsel %vm9676, %v9584, 0.0
        %v9877 = vadd.f32 %v9875, %v9876
        %v9878 = vsel %vm9676, %v9585, 0.0
        %v9879 = vadd.f32 %v9877, %v9878
        %v9880 = vsel %vm9676, %v9586, 0.0
        %v9881 = vadd.f32 %v9879, %v9880
        %v9882 = vsel %vm9676, %v9587, 0.0
        %v9883 = vadd.f32 %v9881, %v9882
        %v9884 = vsel %vm9676, %v9588, 0.0
        %v9885 = vadd.f32 %v9883, %v9884
        %v9886 = vsel %vm9676, %v9589, 0.0
        %v9887 = vadd.f32 %v9885, %v9886
        %v9888 = vsel %vm9676, %v9590, 0.0
        %v9889 = vadd.f32 %v9887, %v9888
        %v9890 = vsel %vm9676, %v9591, 0.0
        %v9891 = vadd.f32 %v9889, %v9890
        %v9892 = vsel %vm9676, %v9592, 0.0
        %v9893 = vadd.f32 %v9891, %v9892
        %v9894 = vsel %vm9676, %v9593, 0.0
        %v9895 = vadd.f32 %v9893, %v9894
        %v9896 = vsel %vm9676, %v9594, 0.0
        %v9897 = vadd.f32 %v9895, %v9896
        %v9898 = vsel %vm9676, %v9595, 0.0
        %v9899 = vadd.f32 %v9897, %v9898
        %v9900 = vsel %vm9676, %v9596, 0.0
        %v9901 = vadd.f32 %v9899, %v9900
        %v9902 = vsel %vm9676, %v9597, 0.0
        %v9903 = vadd.f32 %v9901, %v9902
        %v9904 = vsel %vm9676, %v9598, 0.0
        %v9905 = vadd.f32 %v9903, %v9904
        %v9906 = vsel %vm9676, %v9599, 0.0
        %v9907 = vadd.f32 %v9905, %v9906
        %v9908 = vsel %vm9676, %v9600, 0.0
        %v9909 = vadd.f32 %v9907, %v9908
        %v9910 = vsel %vm9676, %v9601, 0.0
        %v9911 = vadd.f32 %v9909, %v9910
        %v9912 = vsel %vm9676, %v9602, 0.0
        %v9913 = vadd.f32 %v9911, %v9912
        %v9914 = vsel %vm9676, %v9603, 0.0
        %v9915 = vadd.f32 %v9913, %v9914
        %v9916 = vsel %vm9676, %v9604, 0.0
        %v9917 = vadd.f32 %v9915, %v9916
        %v9918 = vsel %vm9676, %v9605, 0.0
        %v9919 = vadd.f32 %v9917, %v9918
        %v9920 = vsel %vm9676, %v9606, 0.0
        %v9921 = vadd.f32 %v9919, %v9920
        %v9922 = vsel %vm9676, %v9607, 0.0
        %v9923 = vadd.f32 %v9921, %v9922
        %v9924 = vsel %vm9676, %v9608, 0.0
        %v9925 = vadd.f32 %v9923, %v9924
        %v9926 = vsel %vm9676, %v9609, 0.0
        %v9927 = vadd.f32 %v9925, %v9926
        %v9928 = vsel %vm9676, %v9610, 0.0
        %v9929 = vadd.f32 %v9927, %v9928
        %v9930 = vsel %vm9676, %v9611, 0.0
        %v9931 = vadd.f32 %v9929, %v9930
        %v9932 = vsel %vm9676, %v9612, 0.0
        %v9933 = vadd.f32 %v9931, %v9932
        %v9934 = vsel %vm9676, %v9613, 0.0
        %v9935 = vadd.f32 %v9933, %v9934
        %v9936 = vsel %vm9676, %v9614, 0.0
        %v9937 = vadd.f32 %v9935, %v9936
        %v9938 = vsel %vm9676, %v9615, 0.0
        %v9939 = vadd.f32 %v9937, %v9938
        %v9940 = vsel %vm9676, %v9616, 0.0
        %v9941 = vadd.f32 %v9939, %v9940
        %v9942 = vsel %vm9676, %v9617, 0.0
        %v9943 = vadd.f32 %v9941, %v9942
        %v9944 = vsel %vm9676, %v9618, 0.0
        %v9945 = vadd.f32 %v9943, %v9944
        %v9946 = vsel %vm9676, %v9619, 0.0
        %v9947 = vadd.f32 %v9945, %v9946
        %v9948 = vsel %vm9676, %v9620, 0.0
        %v9949 = vadd.f32 %v9947, %v9948
        %v9950 = vsel %vm9676, %v9621, 0.0
        %v9951 = vadd.f32 %v9949, %v9950
        %v9952 = vsel %vm9676, %v9622, 0.0
        %v9953 = vadd.f32 %v9951, %v9952
        %v9954 = vsel %vm9676, %v9623, 0.0
        %v9955 = vadd.f32 %v9953, %v9954
        %v9956 = vsel %vm9676, %v9624, 0.0
        %v9957 = vadd.f32 %v9955, %v9956
        %v9958 = vsel %vm9676, %v9625, 0.0
        %v9959 = vadd.f32 %v9957, %v9958
        %v9960 = vsel %vm9676, %v9626, 0.0
        %v9961 = vadd.f32 %v9959, %v9960
        %v9962 = vsel %vm9676, %v9627, 0.0
        %v9963 = vadd.f32 %v9961, %v9962
        %v9964 = vsel %vm9676, %v9628, 0.0
        %v9965 = vadd.f32 %v9963, %v9964
        %v9966 = vsel %vm9676, %v9629, 0.0
        %v9967 = vadd.f32 %v9965, %v9966
        %v9968 = vsel %vm9676, %v9630, 0.0
        %v9969 = vadd.f32 %v9967, %v9968
        %v9970 = vsel %vm9676, %v9631, 0.0
        %v9971 = vadd.f32 %v9969, %v9970
        %v9972 = vsel %vm9676, %v9632, 0.0
        %v9973 = vadd.f32 %v9971, %v9972
        %v9974 = vsel %vm9676, %v9633, 0.0
        %v9975 = vadd.f32 %v9973, %v9974
        %v9976 = vsel %vm9676, %v9634, 0.0
        %v9977 = vadd.f32 %v9975, %v9976
        %v9978 = vsel %vm9676, %v9635, 0.0
        %v9979 = vadd.f32 %v9977, %v9978
        %v9980 = vsel %vm9676, %v9636, 0.0
        %v9981 = vadd.f32 %v9979, %v9980
        %v9982 = vsel %vm9676, %v9637, 0.0
        %v9983 = vadd.f32 %v9981, %v9982
        %v9984 = vsel %vm9676, %v9638, 0.0
        %v9985 = vadd.f32 %v9983, %v9984
        %v9986 = vsel %vm9676, %v9639, 0.0
        %v9987 = vadd.f32 %v9985, %v9986
        %v9988 = vsel %vm9676, %v9640, 0.0
        %v9989 = vadd.f32 %v9987, %v9988
        %v9990 = vsel %vm9676, %v9641, 0.0
        %v9991 = vadd.f32 %v9989, %v9990
        %v9992 = vsel %vm9676, %v9642, 0.0
        %v9993 = vadd.f32 %v9991, %v9992
        %v9994 = vsel %vm9676, %v9643, 0.0
        %v9995 = vadd.f32 %v9993, %v9994
        %v9996 = vsel %vm9676, %v9644, 0.0
        %v9997 = vadd.f32 %v9995, %v9996
        %v9998 = vsel %vm9676, %v9645, 0.0
        %v9999 = vadd.f32 %v9997, %v9998
        %v10000 = vsel %vm9676, %v9646, 0.0
        %v10001 = vadd.f32 %v9999, %v10000
        %v10002 = vsel %vm9676, %v9647, 0.0
        %v10003 = vadd.f32 %v10001, %v10002
        %v10004 = vsel %vm9676, %v9648, 0.0
        %v10005 = vadd.f32 %v10003, %v10004
        %v10006 = vsel %vm9676, %v9649, 0.0
        %v10007 = vadd.f32 %v10005, %v10006
        %v10008 = vsel %vm9676, %v9650, 0.0
        %v10009 = vadd.f32 %v10007, %v10008
        %v10010 = vsel %vm9676, %v9651, 0.0
        %v10011 = vadd.f32 %v10009, %v10010
        %v10012 = vsel %vm9676, %v9652, 0.0
        %v10013 = vadd.f32 %v10011, %v10012
        %v10014 = vsel %vm9676, %v9653, 0.0
        %v10015 = vadd.f32 %v10013, %v10014
        %v10016 = vsel %vm9676, %v9654, 0.0
        %v10017 = vadd.f32 %v10015, %v10016
        %v10018 = vsel %vm9676, %v9655, 0.0
        %v10019 = vadd.f32 %v10017, %v10018
        %v10020 = vsel %vm9676, %v9656, 0.0
        %v10021 = vadd.f32 %v10019, %v10020
        %v10022 = vsel %vm9676, %v9657, 0.0
        %v10023 = vadd.f32 %v10021, %v10022
        %v10024 = vsel %vm9676, %v9658, 0.0
        %v10025 = vadd.f32 %v10023, %v10024
        %v10026 = vsel %vm9676, %v9659, 0.0
        %v10027 = vadd.f32 %v10025, %v10026
        %v10028 = vsel %vm9676, %v9660, 0.0
        %v10029 = vadd.f32 %v10027, %v10028
        %v10030 = vsel %vm9676, %v9661, 0.0
        %v10031 = vadd.f32 %v10029, %v10030
        %v10032 = vsel %vm9676, %v9662, 0.0
        %v10033 = vadd.f32 %v10031, %v10032
        %v10034 = vsel %vm9676, %v9663, 0.0
        %v10035 = vadd.f32 %v10033, %v10034
        %v10036 = vsel %vm9676, %v9664, 0.0
        %v10037 = vadd.f32 %v10035, %v10036
        %v10038 = vsel %vm9676, %v9665, 0.0
        %v10039 = vadd.f32 %v10037, %v10038
        %v10040 = vsel %vm9676, %v9666, 0.0
        %v10041 = vadd.f32 %v10039, %v10040
        %v10042 = vsel %vm9676, %v9667, 0.0
        %v10043 = vadd.f32 %v10041, %v10042
        %v10044 = vsel %vm9676, %v9668, 0.0
        %v10045 = vadd.f32 %v10043, %v10044
        %v10046 = vsel %vm9676, %v9669, 0.0
        %v10047 = vadd.f32 %v10045, %v10046
        %v10048 = vsel %vm9676, %v9670, 0.0
        %v10049 = vadd.f32 %v10047, %v10048
        %v10050 = vsel %vm9676, %v9671, 0.0
        %v10051 = vadd.f32 %v10049, %v10050
        %v10052 = vsel %vm9676, %v9672, 0.0
        %v10053 = vadd.f32 %v10051, %v10052
        %v10054 = vsel %vm9676, %v9673, 0.0
        %v10055 = vadd.f32 %v10053, %v10054
        %v10056 = vsel %vm9676, %v9674, 0.0
        %v10057 = vadd.f32 %v10055, %v10056
        %v10058 = vsel %vm9676, %v9675, 0.0
        %v10059 = vadd.f32 %v10057, %v10058
        %v10060 = vrot.slane %v10059, 4
        %v10061 = vadd.f32 %v10059, %v10060
        %v10062 = vrot.slane %v10061, 2
        %v10063 = vadd.f32 %v10061, %v10062
        %v10064 = vrot.slane %v10063, 1
        %v10065 = vadd.f32 %v10063, %v10064
        %vm10066 = vcmask 122880
        %10067 = vst.msk [vmem:[%s200] sm:$0x1] %vm10066, %v10065
        %v10068 = vmul.f32 %v9548, %v9548
        %v10069 = vmul.f32 %v9549, %v9549
        %v10070 = vmul.f32 %v9550, %v9550
        %v10071 = vmul.f32 %v9551, %v9551
        %v10072 = vmul.f32 %v9552, %v9552
        %v10073 = vmul.f32 %v9553, %v9553
        %v10074 = vmul.f32 %v9554, %v9554
        %v10075 = vmul.f32 %v9555, %v9555
        %v10076 = vmul.f32 %v9556, %v9556
        %v10077 = vmul.f32 %v9557, %v9557
        %v10078 = vmul.f32 %v9558, %v9558
        %v10079 = vmul.f32 %v9559, %v9559
        %v10080 = vmul.f32 %v9560, %v9560
        %v10081 = vmul.f32 %v9561, %v9561
        %v10082 = vmul.f32 %v9562, %v9562
        %v10083 = vmul.f32 %v9563, %v9563
        %v10084 = vmul.f32 %v9564, %v9564
        %v10085 = vmul.f32 %v9565, %v9565
        %v10086 = vmul.f32 %v9566, %v9566
        %v10087 = vmul.f32 %v9567, %v9567
        %v10088 = vmul.f32 %v9568, %v9568
        %v10089 = vmul.f32 %v9569, %v9569
        %v10090 = vmul.f32 %v9570, %v9570
        %v10091 = vmul.f32 %v9571, %v9571
        %v10092 = vmul.f32 %v9572, %v9572
        %v10093 = vmul.f32 %v9573, %v9573
        %v10094 = vmul.f32 %v9574, %v9574
        %v10095 = vmul.f32 %v9575, %v9575
        %v10096 = vmul.f32 %v9576, %v9576
        %v10097 = vmul.f32 %v9577, %v9577
        %v10098 = vmul.f32 %v9578, %v9578
        %v10099 = vmul.f32 %v9579, %v9579
        %v10100 = vmul.f32 %v9580, %v9580
        %v10101 = vmul.f32 %v9581, %v9581
        %v10102 = vmul.f32 %v9582, %v9582
        %v10103 = vmul.f32 %v9583, %v9583
        %v10104 = vmul.f32 %v9584, %v9584
        %v10105 = vmul.f32 %v9585, %v9585
        %v10106 = vmul.f32 %v9586, %v9586
        %v10107 = vmul.f32 %v9587, %v9587
        %v10108 = vmul.f32 %v9588, %v9588
        %v10109 = vmul.f32 %v9589, %v9589
        %v10110 = vmul.f32 %v9590, %v9590
        %v10111 = vmul.f32 %v9591, %v9591
        %v10112 = vmul.f32 %v9592, %v9592
        %v10113 = vmul.f32 %v9593, %v9593
        %v10114 = vmul.f32 %v9594, %v9594
        %v10115 = vmul.f32 %v9595, %v9595
        %v10116 = vmul.f32 %v9596, %v9596
        %v10117 = vmul.f32 %v9597, %v9597
        %v10118 = vmul.f32 %v9598, %v9598
        %v10119 = vmul.f32 %v9599, %v9599
        %v10120 = vmul.f32 %v9600, %v9600
        %v10121 = vmul.f32 %v9601, %v9601
        %v10122 = vmul.f32 %v9602, %v9602
        %v10123 = vmul.f32 %v9603, %v9603
        %v10124 = vmul.f32 %v9604, %v9604
        %v10125 = vmul.f32 %v9605, %v9605
        %v10126 = vmul.f32 %v9606, %v9606
        %v10127 = vmul.f32 %v9607, %v9607
        %v10128 = vmul.f32 %v9608, %v9608
        %v10129 = vmul.f32 %v9609, %v9609
        %v10130 = vmul.f32 %v9610, %v9610
        %v10131 = vmul.f32 %v9611, %v9611
        %v10132 = vmul.f32 %v9612, %v9612
        %v10133 = vmul.f32 %v9613, %v9613
        %v10134 = vmul.f32 %v9614, %v9614
        %v10135 = vmul.f32 %v9615, %v9615
        %v10136 = vmul.f32 %v9616, %v9616
        %v10137 = vmul.f32 %v9617, %v9617
        %v10138 = vmul.f32 %v9618, %v9618
        %v10139 = vmul.f32 %v9619, %v9619
        %v10140 = vmul.f32 %v9620, %v9620
        %v10141 = vmul.f32 %v9621, %v9621
        %v10142 = vmul.f32 %v9622, %v9622
        %v10143 = vmul.f32 %v9623, %v9623
        %v10144 = vmul.f32 %v9624, %v9624
        %v10145 = vmul.f32 %v9625, %v9625
        %v10146 = vmul.f32 %v9626, %v9626
        %v10147 = vmul.f32 %v9627, %v9627
        %v10148 = vmul.f32 %v9628, %v9628
        %v10149 = vmul.f32 %v9629, %v9629
        %v10150 = vmul.f32 %v9630, %v9630
        %v10151 = vmul.f32 %v9631, %v9631
        %v10152 = vmul.f32 %v9632, %v9632
        %v10153 = vmul.f32 %v9633, %v9633
        %v10154 = vmul.f32 %v9634, %v9634
        %v10155 = vmul.f32 %v9635, %v9635
        %v10156 = vmul.f32 %v9636, %v9636
        %v10157 = vmul.f32 %v9637, %v9637
        %v10158 = vmul.f32 %v9638, %v9638
        %v10159 = vmul.f32 %v9639, %v9639
        %v10160 = vmul.f32 %v9640, %v9640
        %v10161 = vmul.f32 %v9641, %v9641
        %v10162 = vmul.f32 %v9642, %v9642
        %v10163 = vmul.f32 %v9643, %v9643
        %v10164 = vmul.f32 %v9644, %v9644
        %v10165 = vmul.f32 %v9645, %v9645
        %v10166 = vmul.f32 %v9646, %v9646
        %v10167 = vmul.f32 %v9647, %v9647
        %v10168 = vmul.f32 %v9648, %v9648
        %v10169 = vmul.f32 %v9649, %v9649
        %v10170 = vmul.f32 %v9650, %v9650
        %v10171 = vmul.f32 %v9651, %v9651
        %v10172 = vmul.f32 %v9652, %v9652
        %v10173 = vmul.f32 %v9653, %v9653
        %v10174 = vmul.f32 %v9654, %v9654
        %v10175 = vmul.f32 %v9655, %v9655
        %v10176 = vmul.f32 %v9656, %v9656
        %v10177 = vmul.f32 %v9657, %v9657
        %v10178 = vmul.f32 %v9658, %v9658
        %v10179 = vmul.f32 %v9659, %v9659
        %v10180 = vmul.f32 %v9660, %v9660
        %v10181 = vmul.f32 %v9661, %v9661
        %v10182 = vmul.f32 %v9662, %v9662
        %v10183 = vmul.f32 %v9663, %v9663
        %v10184 = vmul.f32 %v9664, %v9664
        %v10185 = vmul.f32 %v9665, %v9665
        %v10186 = vmul.f32 %v9666, %v9666
        %v10187 = vmul.f32 %v9667, %v9667
        %v10188 = vmul.f32 %v9668, %v9668
        %v10189 = vmul.f32 %v9669, %v9669
        %v10190 = vmul.f32 %v9670, %v9670
        %v10191 = vmul.f32 %v9671, %v9671
        %v10192 = vmul.f32 %v9672, %v9672
        %v10193 = vmul.f32 %v9673, %v9673
        %v10194 = vmul.f32 %v9674, %v9674
        %v10195 = vmul.f32 %v9675, %v9675
        %v10196 = vsel %vm9676, %v10068, 0.0
        %v10197 = vsel %vm9676, %v10069, 0.0
        %v10198 = vadd.f32 %v10196, %v10197
        %v10199 = vsel %vm9676, %v10070, 0.0
        %v10200 = vadd.f32 %v10198, %v10199
        %v10201 = vsel %vm9676, %v10071, 0.0
        %v10202 = vadd.f32 %v10200, %v10201
        %v10203 = vsel %vm9676, %v10072, 0.0
        %v10204 = vadd.f32 %v10202, %v10203
        %v10205 = vsel %vm9676, %v10073, 0.0
        %v10206 = vadd.f32 %v10204, %v10205
        %v10207 = vsel %vm9676, %v10074, 0.0
        %v10208 = vadd.f32 %v10206, %v10207
        %v10209 = vsel %vm9676, %v10075, 0.0
        %v10210 = vadd.f32 %v10208, %v10209
        %v10211 = vsel %vm9676, %v10076, 0.0
        %v10212 = vadd.f32 %v10210, %v10211
        %v10213 = vsel %vm9676, %v10077, 0.0
        %v10214 = vadd.f32 %v10212, %v10213
        %v10215 = vsel %vm9676, %v10078, 0.0
        %v10216 = vadd.f32 %v10214, %v10215
        %v10217 = vsel %vm9676, %v10079, 0.0
        %v10218 = vadd.f32 %v10216, %v10217
        %v10219 = vsel %vm9676, %v10080, 0.0
        %v10220 = vadd.f32 %v10218, %v10219
        %v10221 = vsel %vm9676, %v10081, 0.0
        %v10222 = vadd.f32 %v10220, %v10221
        %v10223 = vsel %vm9676, %v10082, 0.0
        %v10224 = vadd.f32 %v10222, %v10223
        %v10225 = vsel %vm9676, %v10083, 0.0
        %v10226 = vadd.f32 %v10224, %v10225
        %v10227 = vsel %vm9676, %v10084, 0.0
        %v10228 = vadd.f32 %v10226, %v10227
        %v10229 = vsel %vm9676, %v10085, 0.0
        %v10230 = vadd.f32 %v10228, %v10229
        %v10231 = vsel %vm9676, %v10086, 0.0
        %v10232 = vadd.f32 %v10230, %v10231
        %v10233 = vsel %vm9676, %v10087, 0.0
        %v10234 = vadd.f32 %v10232, %v10233
        %v10235 = vsel %vm9676, %v10088, 0.0
        %v10236 = vadd.f32 %v10234, %v10235
        %v10237 = vsel %vm9676, %v10089, 0.0
        %v10238 = vadd.f32 %v10236, %v10237
        %v10239 = vsel %vm9676, %v10090, 0.0
        %v10240 = vadd.f32 %v10238, %v10239
        %v10241 = vsel %vm9676, %v10091, 0.0
        %v10242 = vadd.f32 %v10240, %v10241
        %v10243 = vsel %vm9676, %v10092, 0.0
        %v10244 = vadd.f32 %v10242, %v10243
        %v10245 = vsel %vm9676, %v10093, 0.0
        %v10246 = vadd.f32 %v10244, %v10245
        %v10247 = vsel %vm9676, %v10094, 0.0
        %v10248 = vadd.f32 %v10246, %v10247
        %v10249 = vsel %vm9676, %v10095, 0.0
        %v10250 = vadd.f32 %v10248, %v10249
        %v10251 = vsel %vm9676, %v10096, 0.0
        %v10252 = vadd.f32 %v10250, %v10251
        %v10253 = vsel %vm9676, %v10097, 0.0
        %v10254 = vadd.f32 %v10252, %v10253
        %v10255 = vsel %vm9676, %v10098, 0.0
        %v10256 = vadd.f32 %v10254, %v10255
        %v10257 = vsel %vm9676, %v10099, 0.0
        %v10258 = vadd.f32 %v10256, %v10257
        %v10259 = vsel %vm9676, %v10100, 0.0
        %v10260 = vadd.f32 %v10258, %v10259
        %v10261 = vsel %vm9676, %v10101, 0.0
        %v10262 = vadd.f32 %v10260, %v10261
        %v10263 = vsel %vm9676, %v10102, 0.0
        %v10264 = vadd.f32 %v10262, %v10263
        %v10265 = vsel %vm9676, %v10103, 0.0
        %v10266 = vadd.f32 %v10264, %v10265
        %v10267 = vsel %vm9676, %v10104, 0.0
        %v10268 = vadd.f32 %v10266, %v10267
        %v10269 = vsel %vm9676, %v10105, 0.0
        %v10270 = vadd.f32 %v10268, %v10269
        %v10271 = vsel %vm9676, %v10106, 0.0
        %v10272 = vadd.f32 %v10270, %v10271
        %v10273 = vsel %vm9676, %v10107, 0.0
        %v10274 = vadd.f32 %v10272, %v10273
        %v10275 = vsel %vm9676, %v10108, 0.0
        %v10276 = vadd.f32 %v10274, %v10275
        %v10277 = vsel %vm9676, %v10109, 0.0
        %v10278 = vadd.f32 %v10276, %v10277
        %v10279 = vsel %vm9676, %v10110, 0.0
        %v10280 = vadd.f32 %v10278, %v10279
        %v10281 = vsel %vm9676, %v10111, 0.0
        %v10282 = vadd.f32 %v10280, %v10281
        %v10283 = vsel %vm9676, %v10112, 0.0
        %v10284 = vadd.f32 %v10282, %v10283
        %v10285 = vsel %vm9676, %v10113, 0.0
        %v10286 = vadd.f32 %v10284, %v10285
        %v10287 = vsel %vm9676, %v10114, 0.0
        %v10288 = vadd.f32 %v10286, %v10287
        %v10289 = vsel %vm9676, %v10115, 0.0
        %v10290 = vadd.f32 %v10288, %v10289
        %v10291 = vsel %vm9676, %v10116, 0.0
        %v10292 = vadd.f32 %v10290, %v10291
        %v10293 = vsel %vm9676, %v10117, 0.0
        %v10294 = vadd.f32 %v10292, %v10293
        %v10295 = vsel %vm9676, %v10118, 0.0
        %v10296 = vadd.f32 %v10294, %v10295
        %v10297 = vsel %vm9676, %v10119, 0.0
        %v10298 = vadd.f32 %v10296, %v10297
        %v10299 = vsel %vm9676, %v10120, 0.0
        %v10300 = vadd.f32 %v10298, %v10299
        %v10301 = vsel %vm9676, %v10121, 0.0
        %v10302 = vadd.f32 %v10300, %v10301
        %v10303 = vsel %vm9676, %v10122, 0.0
        %v10304 = vadd.f32 %v10302, %v10303
        %v10305 = vsel %vm9676, %v10123, 0.0
        %v10306 = vadd.f32 %v10304, %v10305
        %v10307 = vsel %vm9676, %v10124, 0.0
        %v10308 = vadd.f32 %v10306, %v10307
        %v10309 = vsel %vm9676, %v10125, 0.0
        %v10310 = vadd.f32 %v10308, %v10309
        %v10311 = vsel %vm9676, %v10126, 0.0
        %v10312 = vadd.f32 %v10310, %v10311
        %v10313 = vsel %vm9676, %v10127, 0.0
        %v10314 = vadd.f32 %v10312, %v10313
        %v10315 = vsel %vm9676, %v10128, 0.0
        %v10316 = vadd.f32 %v10314, %v10315
        %v10317 = vsel %vm9676, %v10129, 0.0
        %v10318 = vadd.f32 %v10316, %v10317
        %v10319 = vsel %vm9676, %v10130, 0.0
        %v10320 = vadd.f32 %v10318, %v10319
        %v10321 = vsel %vm9676, %v10131, 0.0
        %v10322 = vadd.f32 %v10320, %v10321
        %v10323 = vsel %vm9676, %v10132, 0.0
        %v10324 = vadd.f32 %v10322, %v10323
        %v10325 = vsel %vm9676, %v10133, 0.0
        %v10326 = vadd.f32 %v10324, %v10325
        %v10327 = vsel %vm9676, %v10134, 0.0
        %v10328 = vadd.f32 %v10326, %v10327
        %v10329 = vsel %vm9676, %v10135, 0.0
        %v10330 = vadd.f32 %v10328, %v10329
        %v10331 = vsel %vm9676, %v10136, 0.0
        %v10332 = vadd.f32 %v10330, %v10331
        %v10333 = vsel %vm9676, %v10137, 0.0
        %v10334 = vadd.f32 %v10332, %v10333
        %v10335 = vsel %vm9676, %v10138, 0.0
        %v10336 = vadd.f32 %v10334, %v10335
        %v10337 = vsel %vm9676, %v10139, 0.0
        %v10338 = vadd.f32 %v10336, %v10337
        %v10339 = vsel %vm9676, %v10140, 0.0
        %v10340 = vadd.f32 %v10338, %v10339
        %v10341 = vsel %vm9676, %v10141, 0.0
        %v10342 = vadd.f32 %v10340, %v10341
        %v10343 = vsel %vm9676, %v10142, 0.0
        %v10344 = vadd.f32 %v10342, %v10343
        %v10345 = vsel %vm9676, %v10143, 0.0
        %v10346 = vadd.f32 %v10344, %v10345
        %v10347 = vsel %vm9676, %v10144, 0.0
        %v10348 = vadd.f32 %v10346, %v10347
        %v10349 = vsel %vm9676, %v10145, 0.0
        %v10350 = vadd.f32 %v10348, %v10349
        %v10351 = vsel %vm9676, %v10146, 0.0
        %v10352 = vadd.f32 %v10350, %v10351
        %v10353 = vsel %vm9676, %v10147, 0.0
        %v10354 = vadd.f32 %v10352, %v10353
        %v10355 = vsel %vm9676, %v10148, 0.0
        %v10356 = vadd.f32 %v10354, %v10355
        %v10357 = vsel %vm9676, %v10149, 0.0
        %v10358 = vadd.f32 %v10356, %v10357
        %v10359 = vsel %vm9676, %v10150, 0.0
        %v10360 = vadd.f32 %v10358, %v10359
        %v10361 = vsel %vm9676, %v10151, 0.0
        %v10362 = vadd.f32 %v10360, %v10361
        %v10363 = vsel %vm9676, %v10152, 0.0
        %v10364 = vadd.f32 %v10362, %v10363
        %v10365 = vsel %vm9676, %v10153, 0.0
        %v10366 = vadd.f32 %v10364, %v10365
        %v10367 = vsel %vm9676, %v10154, 0.0
        %v10368 = vadd.f32 %v10366, %v10367
        %v10369 = vsel %vm9676, %v10155, 0.0
        %v10370 = vadd.f32 %v10368, %v10369
        %v10371 = vsel %vm9676, %v10156, 0.0
        %v10372 = vadd.f32 %v10370, %v10371
        %v10373 = vsel %vm9676, %v10157, 0.0
        %v10374 = vadd.f32 %v10372, %v10373
        %v10375 = vsel %vm9676, %v10158, 0.0
        %v10376 = vadd.f32 %v10374, %v10375
        %v10377 = vsel %vm9676, %v10159, 0.0
        %v10378 = vadd.f32 %v10376, %v10377
        %v10379 = vsel %vm9676, %v10160, 0.0
        %v10380 = vadd.f32 %v10378, %v10379
        %v10381 = vsel %vm9676, %v10161, 0.0
        %v10382 = vadd.f32 %v10380, %v10381
        %v10383 = vsel %vm9676, %v10162, 0.0
        %v10384 = vadd.f32 %v10382, %v10383
        %v10385 = vsel %vm9676, %v10163, 0.0
        %v10386 = vadd.f32 %v10384, %v10385
        %v10387 = vsel %vm9676, %v10164, 0.0
        %v10388 = vadd.f32 %v10386, %v10387
        %v10389 = vsel %vm9676, %v10165, 0.0
        %v10390 = vadd.f32 %v10388, %v10389
        %v10391 = vsel %vm9676, %v10166, 0.0
        %v10392 = vadd.f32 %v10390, %v10391
        %v10393 = vsel %vm9676, %v10167, 0.0
        %v10394 = vadd.f32 %v10392, %v10393
        %v10395 = vsel %vm9676, %v10168, 0.0
        %v10396 = vadd.f32 %v10394, %v10395
        %v10397 = vsel %vm9676, %v10169, 0.0
        %v10398 = vadd.f32 %v10396, %v10397
        %v10399 = vsel %vm9676, %v10170, 0.0
        %v10400 = vadd.f32 %v10398, %v10399
        %v10401 = vsel %vm9676, %v10171, 0.0
        %v10402 = vadd.f32 %v10400, %v10401
        %v10403 = vsel %vm9676, %v10172, 0.0
        %v10404 = vadd.f32 %v10402, %v10403
        %v10405 = vsel %vm9676, %v10173, 0.0
        %v10406 = vadd.f32 %v10404, %v10405
        %v10407 = vsel %vm9676, %v10174, 0.0
        %v10408 = vadd.f32 %v10406, %v10407
        %v10409 = vsel %vm9676, %v10175, 0.0
        %v10410 = vadd.f32 %v10408, %v10409
        %v10411 = vsel %vm9676, %v10176, 0.0
        %v10412 = vadd.f32 %v10410, %v10411
        %v10413 = vsel %vm9676, %v10177, 0.0
        %v10414 = vadd.f32 %v10412, %v10413
        %v10415 = vsel %vm9676, %v10178, 0.0
        %v10416 = vadd.f32 %v10414, %v10415
        %v10417 = vsel %vm9676, %v10179, 0.0
        %v10418 = vadd.f32 %v10416, %v10417
        %v10419 = vsel %vm9676, %v10180, 0.0
        %v10420 = vadd.f32 %v10418, %v10419
        %v10421 = vsel %vm9676, %v10181, 0.0
        %v10422 = vadd.f32 %v10420, %v10421
        %v10423 = vsel %vm9676, %v10182, 0.0
        %v10424 = vadd.f32 %v10422, %v10423
        %v10425 = vsel %vm9676, %v10183, 0.0
        %v10426 = vadd.f32 %v10424, %v10425
        %v10427 = vsel %vm9676, %v10184, 0.0
        %v10428 = vadd.f32 %v10426, %v10427
        %v10429 = vsel %vm9676, %v10185, 0.0
        %v10430 = vadd.f32 %v10428, %v10429
        %v10431 = vsel %vm9676, %v10186, 0.0
        %v10432 = vadd.f32 %v10430, %v10431
        %v10433 = vsel %vm9676, %v10187, 0.0
        %v10434 = vadd.f32 %v10432, %v10433
        %v10435 = vsel %vm9676, %v10188, 0.0
        %v10436 = vadd.f32 %v10434, %v10435
        %v10437 = vsel %vm9676, %v10189, 0.0
        %v10438 = vadd.f32 %v10436, %v10437
        %v10439 = vsel %vm9676, %v10190, 0.0
        %v10440 = vadd.f32 %v10438, %v10439
        %v10441 = vsel %vm9676, %v10191, 0.0
        %v10442 = vadd.f32 %v10440, %v10441
        %v10443 = vsel %vm9676, %v10192, 0.0
        %v10444 = vadd.f32 %v10442, %v10443
        %v10445 = vsel %vm9676, %v10193, 0.0
        %v10446 = vadd.f32 %v10444, %v10445
        %v10447 = vsel %vm9676, %v10194, 0.0
        %v10448 = vadd.f32 %v10446, %v10447
        %v10449 = vsel %vm9676, %v10195, 0.0
        %v10450 = vadd.f32 %v10448, %v10449
        %v10451 = vrot.slane %v10450, 4
        %v10452 = vadd.f32 %v10450, %v10451
        %v10453 = vrot.slane %v10452, 2
        %v10454 = vadd.f32 %v10452, %v10453
        %v10455 = vrot.slane %v10454, 1
        %v10456 = vadd.f32 %v10454, %v10455
        %10457 = vst.msk [vmem:[%s206] sm:$0x1] %vm10066, %v10456
        %p10458 = scmp.lt.s32.totalorder %s22, 1
        %s10459 = scalar_select %p10458, %s22, 1
        %s10460 = smul.addr %s10459, 128
        %s10461 = smul.addr %s10460, 8
        %s10462 = scalar_lea.vmem %s2, %s10461
        %s10463 = sand.u32 %s103, 1
        %s10464 = scalar_lea.sflag [#allocation4], %s10463
        %s10465 = sand.u32 %s103, 1
        %s10466 = scalar_lea.vmem [#allocation3], %s10465
        %s10467 = sand.u32 %s129, 1
        %s10468 = scalar_lea.sflag [#allocation6], %s10467
        %s10469 = sand.u32 %s129, 1
        %s10470 = scalar_lea.vmem [#allocation5], %s10469
        // Predicated region
        $region29: #{tpu_custom_call.1} parent=27 // pred_check
          %p10471 = pneg %p87
        $region30: #{tpu_custom_call.1} parent=27 // pred_check_branch
          %10473 = sbr.rel (%p10471) target = $region32
        $region31: #{tpu_custom_call.1} parent=27 // pred_region
          _
        $region32: #{tpu_custom_call.1} parent=27 // pred_fallthru
          _
        // Predicated region
        $region33: #{tpu_custom_call.1} parent=27 // pred_check
          %p10474 = pneg %p113
        $region34: #{tpu_custom_call.1} parent=27 // pred_check_branch
          %10476 = sbr.rel (%p10474) target = $region36
        $region35: #{tpu_custom_call.1} parent=27 // pred_region
          %10478 = vsyncadd %s10464, 0
          %s10479 = scalar_lea.hbm %s3, %s22
          %s10481 = sshll.u32 %s10466, 4
          %s10482 = int_to_ptr.vmem [resolvable:$true] %s10481
          %s10483 = sshll.u32 %s10479, 4
          %s10484 = int_to_ptr.hbm [resolvable:$true] %s10483
          %10486 = dma.vmem_to_hbm [thread:$0]  %s10482, 16, %s10484, %s10464
        $region36: #{tpu_custom_call.1} parent=27 // pred_fallthru
          _
        // Predicated region
        $region37: #{tpu_custom_call.1} parent=27 // pred_check
          %p10487 = pneg %p139
        $region38: #{tpu_custom_call.1} parent=27 // pred_check_branch
          %10489 = sbr.rel (%p10487) target = $region40
        $region39: #{tpu_custom_call.1} parent=27 // pred_region
          %10491 = vsyncadd %s10468, 0
          %s10492 = scalar_lea.hbm %s4, %s22
          %s10494 = sshll.u32 %s10470, 4
          %s10495 = int_to_ptr.vmem [resolvable:$true] %s10494
          %s10496 = sshll.u32 %s10492, 4
          %s10497 = int_to_ptr.hbm [resolvable:$true] %s10496
          %10499 = dma.vmem_to_hbm [thread:$0]  %s10495, 16, %s10497, %s10468
        $region40: #{tpu_custom_call.1} parent=27 // pred_fallthru
          _
      $region28: #{tpu_custom_call.1} parent=5 // pred_fallthru
        _
      %p10500 = scmp.le.s32.totalorder 2, %s17
      // Predicated region
      $region41: #{tpu_custom_call.1} parent=5 // pred_check
        %p10501 = pneg %p10500
      $region42: #{tpu_custom_call.1} parent=5 // pred_check_branch
        %10503 = sbr.rel (%p10501) target = $region44
      $region43: #{tpu_custom_call.1} parent=5 // pred_region
        %s10504 = ssub.s32 %s17, 2
        // Predicated region
        $region45: #{tpu_custom_call.1} parent=43 // pred_check
          %p10505 = pneg %p93
        $region46: #{tpu_custom_call.1} parent=43 // pred_check_branch
          %10507 = sbr.rel (%p10505) target = $region48
        $region47: #{tpu_custom_call.1} parent=43 // pred_region
          %p10508 = scmp.lt.s32.totalorder %s23, 1
          %s10509 = scalar_select %p10508, %s23, 1
          %s10510 = smul.addr %s10509, 128
          %s10511 = smul.addr %s10510, 8
          %s10512 = scalar_lea.vmem %s2, %s10511
        $region48: #{tpu_custom_call.1} parent=43 // pred_fallthru
          _
        // Predicated region
        $region49: #{tpu_custom_call.1} parent=43 // pred_check
          %p10513 = pneg %p119
        $region50: #{tpu_custom_call.1} parent=43 // pred_check_branch
          %10515 = sbr.rel (%p10513) target = $region52
        $region51: #{tpu_custom_call.1} parent=43 // pred_region
          %s10516 = sand.u32 %s104, 1
          %s10517 = scalar_lea.sflag [#allocation4], %s10516
          %s10518 = sand.u32 %s104, 1
          %s10519 = scalar_lea.vmem [#allocation3], %s10518
          %10521 = dma.done %s10517, 16
        $region52: #{tpu_custom_call.1} parent=43 // pred_fallthru
          _
        // Predicated region
        $region53: #{tpu_custom_call.1} parent=43 // pred_check
          %p10522 = pneg %p145
        $region54: #{tpu_custom_call.1} parent=43 // pred_check_branch
          %10524 = sbr.rel (%p10522) target = $region56
        $region55: #{tpu_custom_call.1} parent=43 // pred_region
          %s10525 = sand.u32 %s130, 1
          %s10526 = scalar_lea.sflag [#allocation6], %s10525
          %s10527 = sand.u32 %s130, 1
          %s10528 = scalar_lea.vmem [#allocation5], %s10527
          %10530 = dma.done %s10526, 16
        $region56: #{tpu_custom_call.1} parent=43 // pred_fallthru
          _
      $region44: #{tpu_custom_call.1} parent=5 // pred_fallthru
        _
    $region6: #{tpu_custom_call.1} parent=1 // loop_footer
      %s21 = sadd.s32 1, %s17
    $region7: #{tpu_custom_call.1} parent=1 // loop_footer_branch
      %16 = sbr.rel target = $region3
    $region8: #{tpu_custom_call.1} parent=1 // loop_exit
      _
    %10531 = vsyncpa [#allocation4], 1
    %s10532 = scalar_lea.sflag [#allocation4], 1
    %10533 = vsyncpa %s10532, 1
    %10534 = vsyncpa [#allocation6], 1
    %s10535 = scalar_lea.sflag [#allocation6], 1
    %10536 = vsyncpa %s10535, 1

</llo_original>
